<compile_context>
chip_gen: v7x
topology: tpu7x:2x2x1
jax: 0.10.0
libtpu: 0.0.40
codegen_flags: <defaults>
</compile_context>

<pallas_src>
import jax
import jax.numpy as jnp
from jax.experimental import pallas as pl
from jax.experimental.pallas import tpu as pltpu

L_MEAN = 50.0            # CIELAB.L_MEAN
AB_GAMUT_SIZE = 313      # ABGamut.EXPECTED_SIZE (number of ab bins Q)
Q_PAD = 384              # Q padded to a lane multiple (3 * 128)
ANNEALED_MEAN_T = 0.38   # annealed mean temperature (module default)
C_HIDDEN = 128           # hidden width of the simplified VGG-style backbone


# --------------------------------------------------------------------------
# Fused kernel: (l - L_MEAN) -> conv3x3+ReLU -> conv3x3+ReLU -> 1x1 head
#               -> annealed softmax -> ab decode.  One batch image per step.
# --------------------------------------------------------------------------
def _fused_colorize_kernel(l_ref, w1_ref, b1_ref, w2_ref, b2_ref,
                           wq_ref, bq_ref, q2ab_ref, o_ref,
                           lp_ref, h1p_ref):
    # l_ref   : (1, H, W, 1)        lightness channel
    # w1_ref  : (9, C1)   f32       conv1 weights, row k = (dy, dx) tap
    # b1_ref  : (1, C1)   f32
    # w2_ref  : (9, C1, C2) bf16    conv2 weights
    # b2_ref  : (1, C2)   f32
    # wq_ref  : (C2, Qp)  bf16      1x1 head weights with 1/T folded in, Q padded
    # bq_ref  : (1, Qp)   f32       head bias / T; padded bins = -1e9
    # q2ab_ref: (Qp, 2)   f32       ab bin centers (padded rows = 0)
    # o_ref   : (1, H, W, 2)
    # lp_ref  : (H+2, W+2, 1)  f32  VMEM scratch, zero-padded normalized l
    # h1p_ref : (H+2, W+2, C1) bf16 VMEM scratch, zero-padded conv1 output
    H, W = o_ref.shape[1], o_ref.shape[2]
    C1 = w1_ref.shape[1]
    C2 = w2_ref.shape[2]

    # ---- normalize l and zero-pad into VMEM scratch (no HBM pad copy) ----
    lp_ref[...] = jnp.zeros_like(lp_ref)
    lp_ref[1:H + 1, 1:W + 1, :] = l_ref[0] - L_MEAN

    # ---- conv1 (Cin=1): 9-tap VPU stencil, bias, ReLU -------------------
    # (H*W, 1) tap broadcast against (1, C1) weight row -> accumulate in f32.
    acc1 = jnp.zeros((H * W, C1), jnp.float32)
    for k in range(9):
        dy, dx = divmod(k, 3)
        tap = lp_ref[dy:dy + H, dx:dx + W, :].reshape(H * W, 1)     # (H*W, 1)
        acc1 = acc1 + tap * w1_ref[k:k + 1, :]                      # (H*W, C1)
    h1 = jnp.maximum(acc1 + b1_ref[...], 0.0)                       # (H*W, C1)

    # ---- stage conv1 output into zero-padded bf16 scratch ---------------
    h1p_ref[...] = jnp.zeros_like(h1p_ref)
    h1p_ref[1:H + 1, 1:W + 1, :] = h1.reshape(H, W, C1).astype(jnp.bfloat16)

    # ---- conv2: 3x3 over C1 channels, 9-tap MXU accumulate (no im2col) --
    acc2 = jnp.zeros((H * W, C2), jnp.float32)
    for k in range(9):
        dy, dx = divmod(k, 3)
        tap = h1p_ref[dy:dy + H, dx:dx + W, :].reshape(H * W, C1)   # bf16
        acc2 = acc2 + jnp.dot(tap, w2_ref[k],
                              preferred_element_type=jnp.float32)
    h2 = jnp.maximum(acc2 + b2_ref[...], 0.0).astype(jnp.bfloat16)  # (H*W, C2)

    # ---- 1x1 classifier head (1/T pre-folded) + annealed-mean decode ----
    logits = jnp.dot(h2, wq_ref[...], preferred_element_type=jnp.float32)
    logits = logits + bq_ref[...]                                   # (H*W, Qp)
    z = logits - jnp.max(logits, axis=-1, keepdims=True)
    e = jnp.exp(z)                                                  # unnormalized softmax
    s = jnp.sum(e, axis=-1, keepdims=True)                          # (H*W, 1)
    ab = jnp.dot(e, q2ab_ref[...], preferred_element_type=jnp.float32)  # (H*W, 2)
    ab = ab * pl.reciprocal(s, approx=True)                         # normalize numerator only
    # TODO(synk): lane-dense NCHW (N,2,H,W) output planes to avoid the (.,2)
    #             masked stores and the wrapper transpose.
    o_ref[...] = ab.reshape(1, H, W, 2).astype(o_ref.dtype)


# --------------------------------------------------------------------------
# Parameter / table construction (deterministic, in-script).
# --------------------------------------------------------------------------
def init_params(key, c_hidden=C_HIDDEN, q=AB_GAMUT_SIZE):
    k1, k2, k3 = jax.random.split(key, 3)
    return {
        "w1": jax.random.normal(k1, (3, 3, 1, c_hidden), jnp.float32) * 0.05,
        "b1": jnp.zeros((c_hidden,), jnp.float32),
        "w2": jax.random.normal(k2, (3, 3, c_hidden, c_hidden), jnp.float32) * 0.05,
        "b2": jnp.zeros((c_hidden,), jnp.float32),
        "wq": jax.random.normal(k3, (c_hidden, q), jnp.float32) * 0.05,
        "bq": jnp.zeros((q,), jnp.float32),
    }


def make_q_to_ab(q=AB_GAMUT_SIZE):
    # TODO(synk): the real ABGamut loads the 313 in-gamut ab bin centers from a
    # packaged resource file; the first `q` centers of the full 10-spaced ab
    # grid are used deterministically instead.
    grid = jnp.arange(-110.0, 111.0, 10.0)                       # 23 values
    aa, bb = jnp.meshgrid(grid, grid, indexing="ij")
    full = jnp.stack([aa.reshape(-1), bb.reshape(-1)], axis=-1)  # (529, 2)
    return full[:q].astype(jnp.float32)                          # (313, 2)


# --------------------------------------------------------------------------
# ColorizationNetwork.forward (evaluation mode == _forward_decode).
# --------------------------------------------------------------------------
def colorization_forward_eval(img_nchw, params, q_to_ab, T=ANNEALED_MEAN_T):
    """img_nchw: (n, 1, h, w) Lab lightness channel. Returns (n, 2, h, w) ab."""
    N, _, H, W = img_nchw.shape
    C1 = params["w1"].shape[-1]
    C2 = params["w2"].shape[-1]
    Q = q_to_ab.shape[0]
    Qp = Q_PAD

    # NCHW (C=1) -> NHWC is a free reshape.
    l = img_nchw.reshape(N, H, W, 1).astype(jnp.float32)

    # Host-side, one-time weight packaging:
    w1 = params["w1"].reshape(9, C1).astype(jnp.float32)                 # VPU stencil weights
    b1 = params["b1"].reshape(1, C1).astype(jnp.float32)
    w2 = params["w2"].reshape(9, C1, C2).astype(jnp.bfloat16)            # bf16 MXU operands
    b2 = params["b2"].reshape(1, C2).astype(jnp.float32)
    # fold annealed-mean temperature 1/T into the head; pad Q -> Qp lanes.
    wq = jnp.zeros((C2, Qp), jnp.float32).at[:, :Q].set(params["wq"] / T)
    wq = wq.astype(jnp.bfloat16)
    bq = jnp.full((1, Qp), -1e9, jnp.float32).at[:, :Q].set(
        params["bq"].reshape(1, Q) / T)
    q2ab = jnp.zeros((Qp, 2), jnp.float32).at[:Q, :].set(q_to_ab)

    ab_nhwc = pl.pallas_call(
        _fused_colorize_kernel,
        out_shape=jax.ShapeDtypeStruct((N, H, W, 2), jnp.float32),
        grid_spec=pltpu.PrefetchScalarGridSpec(
            num_scalar_prefetch=0,
            grid=(N,),
            in_specs=[
                pl.BlockSpec((1, H, W, 1), lambda n: (n, 0, 0, 0)),
                pl.BlockSpec((9, C1), lambda n: (0, 0)),
                pl.BlockSpec((1, C1), lambda n: (0, 0)),
                pl.BlockSpec((9, C1, C2), lambda n: (0, 0, 0)),
                pl.BlockSpec((1, C2), lambda n: (0, 0)),
                pl.BlockSpec((C2, Qp), lambda n: (0, 0)),
                pl.BlockSpec((1, Qp), lambda n: (0, 0)),
                pl.BlockSpec((Qp, 2), lambda n: (0, 0)),
            ],
            out_specs=pl.BlockSpec((1, H, W, 2), lambda n: (n, 0, 0, 0)),
            scratch_shapes=[
                pltpu.VMEM((H + 2, W + 2, 1), jnp.float32),    # padded l
                pltpu.VMEM((H + 2, W + 2, C1), jnp.bfloat16),  # padded conv1 out
            ],
        ),
        compiler_params=pltpu.CompilerParams(
            dimension_semantics=("parallel",),   # batch images are independent
        ),
    )(l, w1, b1, w2, b2, wq, bq, q2ab)

    return jnp.transpose(ab_nhwc, (0, 3, 1, 2))                  # NHWC -> NCHW


if __name__ == "__main__":
    key = jax.random.PRNGKey(0)
    k_img, k_par = jax.random.split(key)

    n, h, w = 2, 16, 16
    # Lab lightness channel, values in [0, 100]
    img = jax.random.uniform(k_img, (n, 1, h, w), jnp.float32, 0.0, 100.0)

    params = init_params(k_par)
    q_to_ab = make_q_to_ab()

    ab_pred = colorization_forward_eval(img, params, q_to_ab)
    ab_pred = jax.block_until_ready(ab_pred)

    assert ab_pred.shape == (n, 2, h, w), ab_pred.shape
    assert ab_pred.dtype == jnp.float32
    assert bool(jnp.all(jnp.isfinite(ab_pred)))
    print("KERNEL_OK")
</pallas_src>

<mosaic_0001>
module attributes {stable_mosaic.version = 11 : i64} {
  func.func @_fused_colorize_kernel(%arg0: i32, %arg1: memref<1x16x16x1xf32, #tpu.memory_space<vmem>>, %arg2: memref<9x128xf32, #tpu.memory_space<vmem>>, %arg3: memref<1x128xf32, #tpu.memory_space<vmem>>, %arg4: memref<9x128x128xbf16, #tpu.memory_space<vmem>>, %arg5: memref<1x128xf32, #tpu.memory_space<vmem>>, %arg6: memref<128x384xbf16, #tpu.memory_space<vmem>>, %arg7: memref<1x384xf32, #tpu.memory_space<vmem>>, %arg8: memref<384x2xf32, #tpu.memory_space<vmem>>, %arg9: memref<1x16x16x2xf32, #tpu.memory_space<vmem>>, %arg10: memref<18x18x1xf32, #tpu.memory_space<vmem>>, %arg11: memref<18x18x128xbf16, #tpu.memory_space<vmem>>) attributes {dimension_semantics = [#tpu.dimension_semantics<parallel>], iteration_bounds = array<i64: 2>, scalar_prefetch = 0 : i64, scratch_operands = 2 : i64, tpu.core_type = #tpu.core_type<tc>, window_params = [{transform_indices = @transform_0, window_bounds = array<i64: 1, 16, 16, 1>}, {pipeline_mode = #tpu.pipeline_mode<synchronous>, transform_indices = @transform_1, window_bounds = array<i64: 9, 128>}, {pipeline_mode = #tpu.pipeline_mode<synchronous>, transform_indices = @transform_2, window_bounds = array<i64: 1, 128>}, {pipeline_mode = #tpu.pipeline_mode<synchronous>, transform_indices = @transform_3, window_bounds = array<i64: 9, 128, 128>}, {pipeline_mode = #tpu.pipeline_mode<synchronous>, transform_indices = @transform_4, window_bounds = array<i64: 1, 128>}, {pipeline_mode = #tpu.pipeline_mode<synchronous>, transform_indices = @transform_5, window_bounds = array<i64: 128, 384>}, {pipeline_mode = #tpu.pipeline_mode<synchronous>, transform_indices = @transform_6, window_bounds = array<i64: 1, 384>}, {pipeline_mode = #tpu.pipeline_mode<synchronous>, transform_indices = @transform_7, window_bounds = array<i64: 384, 2>}, {transform_indices = @transform_8, window_bounds = array<i64: 1, 16, 16, 2>}]} {
    %cst = arith.constant 0.000000e+00 : f32
    %0 = vector.broadcast %cst : f32 to vector<18x18x1xf32>
    %c0 = arith.constant 0 : index
    %c0_0 = arith.constant 0 : index
    %c0_1 = arith.constant 0 : index
    %1 = vector.load %arg10[%c0, %c0_0, %c0_1] : memref<18x18x1xf32, #tpu.memory_space<vmem>>, vector<18x18x1xf32>
    tpu.vector_store %arg10[%c0, %c0_0, %c0_1], %0 {strides = array<i32>} : memref<18x18x1xf32, #tpu.memory_space<vmem>>, vector<18x18x1xf32>,
    %c0_2 = arith.constant 0 : index
    %c0_3 = arith.constant 0 : index
    %c0_4 = arith.constant 0 : index
    %c0_5 = arith.constant 0 : index
    %2 = vector.load %arg1[%c0_2, %c0_3, %c0_4, %c0_5] : memref<1x16x16x1xf32, #tpu.memory_space<vmem>>, vector<1x16x16x1xf32>
    %3 = vector.shape_cast %2 : vector<1x16x16x1xf32> to vector<16x16x1xf32>
    %cst_6 = arith.constant 5.000000e+01 : f32
    %4 = vector.broadcast %cst_6 : f32 to vector<16x16x1xf32>
    %5 = arith.subf %3, %4 : vector<16x16x1xf32>
    %c1 = arith.constant 1 : index
    %c1_7 = arith.constant 1 : index
    %c0_8 = arith.constant 0 : index
    %6 = vector.load %arg10[%c1, %c1_7, %c0_8] : memref<18x18x1xf32, #tpu.memory_space<vmem>>, vector<16x16x1xf32>
    tpu.vector_store %arg10[%c1, %c1_7, %c0_8], %5 {strides = array<i32>} : memref<18x18x1xf32, #tpu.memory_space<vmem>>, vector<16x16x1xf32>,
    %cst_9 = arith.constant 0.000000e+00 : f32
    %7 = vector.broadcast %cst_9 : f32 to vector<256x128xf32>
    %c0_10 = arith.constant 0 : index
    %c0_11 = arith.constant 0 : index
    %c0_12 = arith.constant 0 : index
    %8 = vector.load %arg10[%c0_10, %c0_11, %c0_12] : memref<18x18x1xf32, #tpu.memory_space<vmem>>, vector<16x16x1xf32>
    %9 = vector.shape_cast %8 : vector<16x16x1xf32> to vector<256x1xf32>
    %c0_13 = arith.constant 0 : index
    %c0_14 = arith.constant 0 : index
    %10 = vector.load %arg2[%c0_13, %c0_14] : memref<9x128xf32, #tpu.memory_space<vmem>>, vector<1x128xf32>
    %11 = vector.broadcast %9 : vector<256x1xf32> to vector<256x128xf32>
    %12 = vector.broadcast %10 : vector<1x128xf32> to vector<256x128xf32>
    %13 = arith.mulf %11, %12 : vector<256x128xf32>
    %14 = arith.addf %7, %13 : vector<256x128xf32>
    %c0_15 = arith.constant 0 : index
    %c1_16 = arith.constant 1 : index
    %c0_17 = arith.constant 0 : index
    %15 = vector.load %arg10[%c0_15, %c1_16, %c0_17] : memref<18x18x1xf32, #tpu.memory_space<vmem>>, vector<16x16x1xf32>
    %16 = vector.shape_cast %15 : vector<16x16x1xf32> to vector<256x1xf32>
    %c1_18 = arith.constant 1 : index
    %c0_19 = arith.constant 0 : index
    %17 = vector.load %arg2[%c1_18, %c0_19] : memref<9x128xf32, #tpu.memory_space<vmem>>, vector<1x128xf32>
    %18 = vector.broadcast %16 : vector<256x1xf32> to vector<256x128xf32>
    %19 = vector.broadcast %17 : vector<1x128xf32> to vector<256x128xf32>
    %20 = arith.mulf %18, %19 : vector<256x128xf32>
    %21 = arith.addf %14, %20 : vector<256x128xf32>
    %c0_20 = arith.constant 0 : index
    %c2 = arith.constant 2 : index
    %c0_21 = arith.constant 0 : index
    %22 = vector.load %arg10[%c0_20, %c2, %c0_21] : memref<18x18x1xf32, #tpu.memory_space<vmem>>, vector<16x16x1xf32>
    %23 = vector.shape_cast %22 : vector<16x16x1xf32> to vector<256x1xf32>
    %c2_22 = arith.constant 2 : index
    %c0_23 = arith.constant 0 : index
    %24 = vector.load %arg2[%c2_22, %c0_23] : memref<9x128xf32, #tpu.memory_space<vmem>>, vector<1x128xf32>
    %25 = vector.broadcast %23 : vector<256x1xf32> to vector<256x128xf32>
    %26 = vector.broadcast %24 : vector<1x128xf32> to vector<256x128xf32>
    %27 = arith.mulf %25, %26 : vector<256x128xf32>
    %28 = arith.addf %21, %27 : vector<256x128xf32>
    %c1_24 = arith.constant 1 : index
    %c0_25 = arith.constant 0 : index
    %c0_26 = arith.constant 0 : index
    %29 = vector.load %arg10[%c1_24, %c0_25, %c0_26] : memref<18x18x1xf32, #tpu.memory_space<vmem>>, vector<16x16x1xf32>
    %30 = vector.shape_cast %29 : vector<16x16x1xf32> to vector<256x1xf32>
    %c3 = arith.constant 3 : index
    %c0_27 = arith.constant 0 : index
    %31 = vector.load %arg2[%c3, %c0_27] : memref<9x128xf32, #tpu.memory_space<vmem>>, vector<1x128xf32>
    %32 = vector.broadcast %30 : vector<256x1xf32> to vector<256x128xf32>
    %33 = vector.broadcast %31 : vector<1x128xf32> to vector<256x128xf32>
    %34 = arith.mulf %32, %33 : vector<256x128xf32>
    %35 = arith.addf %28, %34 : vector<256x128xf32>
    %c1_28 = arith.constant 1 : index
    %c1_29 = arith.constant 1 : index
    %c0_30 = arith.constant 0 : index
    %36 = vector.load %arg10[%c1_28, %c1_29, %c0_30] : memref<18x18x1xf32, #tpu.memory_space<vmem>>, vector<16x16x1xf32>
    %37 = vector.shape_cast %36 : vector<16x16x1xf32> to vector<256x1xf32>
    %c4 = arith.constant 4 : index
    %c0_31 = arith.constant 0 : index
    %38 = vector.load %arg2[%c4, %c0_31] : memref<9x128xf32, #tpu.memory_space<vmem>>, vector<1x128xf32>
    %39 = vector.broadcast %37 : vector<256x1xf32> to vector<256x128xf32>
    %40 = vector.broadcast %38 : vector<1x128xf32> to vector<256x128xf32>
    %41 = arith.mulf %39, %40 : vector<256x128xf32>
    %42 = arith.addf %35, %41 : vector<256x128xf32>
    %c1_32 = arith.constant 1 : index
    %c2_33 = arith.constant 2 : index
    %c0_34 = arith.constant 0 : index
    %43 = vector.load %arg10[%c1_32, %c2_33, %c0_34] : memref<18x18x1xf32, #tpu.memory_space<vmem>>, vector<16x16x1xf32>
    %44 = vector.shape_cast %43 : vector<16x16x1xf32> to vector<256x1xf32>
    %c5 = arith.constant 5 : index
    %c0_35 = arith.constant 0 : index
    %45 = vector.load %arg2[%c5, %c0_35] : memref<9x128xf32, #tpu.memory_space<vmem>>, vector<1x128xf32>
    %46 = vector.broadcast %44 : vector<256x1xf32> to vector<256x128xf32>
    %47 = vector.broadcast %45 : vector<1x128xf32> to vector<256x128xf32>
    %48 = arith.mulf %46, %47 : vector<256x128xf32>
    %49 = arith.addf %42, %48 : vector<256x128xf32>
    %c2_36 = arith.constant 2 : index
    %c0_37 = arith.constant 0 : index
    %c0_38 = arith.constant 0 : index
    %50 = vector.load %arg10[%c2_36, %c0_37, %c0_38] : memref<18x18x1xf32, #tpu.memory_space<vmem>>, vector<16x16x1xf32>
    %51 = vector.shape_cast %50 : vector<16x16x1xf32> to vector<256x1xf32>
    %c6 = arith.constant 6 : index
    %c0_39 = arith.constant 0 : index
    %52 = vector.load %arg2[%c6, %c0_39] : memref<9x128xf32, #tpu.memory_space<vmem>>, vector<1x128xf32>
    %53 = vector.broadcast %51 : vector<256x1xf32> to vector<256x128xf32>
    %54 = vector.broadcast %52 : vector<1x128xf32> to vector<256x128xf32>
    %55 = arith.mulf %53, %54 : vector<256x128xf32>
    %56 = arith.addf %49, %55 : vector<256x128xf32>
    %c2_40 = arith.constant 2 : index
    %c1_41 = arith.constant 1 : index
    %c0_42 = arith.constant 0 : index
    %57 = vector.load %arg10[%c2_40, %c1_41, %c0_42] : memref<18x18x1xf32, #tpu.memory_space<vmem>>, vector<16x16x1xf32>
    %58 = vector.shape_cast %57 : vector<16x16x1xf32> to vector<256x1xf32>
    %c7 = arith.constant 7 : index
    %c0_43 = arith.constant 0 : index
    %59 = vector.load %arg2[%c7, %c0_43] : memref<9x128xf32, #tpu.memory_space<vmem>>, vector<1x128xf32>
    %60 = vector.broadcast %58 : vector<256x1xf32> to vector<256x128xf32>
    %61 = vector.broadcast %59 : vector<1x128xf32> to vector<256x128xf32>
    %62 = arith.mulf %60, %61 : vector<256x128xf32>
    %63 = arith.addf %56, %62 : vector<256x128xf32>
    %c2_44 = arith.constant 2 : index
    %c2_45 = arith.constant 2 : index
    %c0_46 = arith.constant 0 : index
    %64 = vector.load %arg10[%c2_44, %c2_45, %c0_46] : memref<18x18x1xf32, #tpu.memory_space<vmem>>, vector<16x16x1xf32>
    %65 = vector.shape_cast %64 : vector<16x16x1xf32> to vector<256x1xf32>
    %c8 = arith.constant 8 : index
    %c0_47 = arith.constant 0 : index
    %66 = vector.load %arg2[%c8, %c0_47] : memref<9x128xf32, #tpu.memory_space<vmem>>, vector<1x128xf32>
    %67 = vector.broadcast %65 : vector<256x1xf32> to vector<256x128xf32>
    %68 = vector.broadcast %66 : vector<1x128xf32> to vector<256x128xf32>
    %69 = arith.mulf %67, %68 : vector<256x128xf32>
    %70 = arith.addf %63, %69 : vector<256x128xf32>
    %c0_48 = arith.constant 0 : index
    %c0_49 = arith.constant 0 : index
    %71 = vector.load %arg3[%c0_48, %c0_49] : memref<1x128xf32, #tpu.memory_space<vmem>>, vector<1x128xf32>
    %72 = vector.broadcast %71 : vector<1x128xf32> to vector<256x128xf32>
    %73 = arith.addf %70, %72 : vector<256x128xf32>
    %cst_50 = arith.constant 0.000000e+00 : f32
    %74 = vector.broadcast %cst_50 : f32 to vector<256x128xf32>
    %75 = arith.maximumf %73, %74 : vector<256x128xf32>
    %cst_51 = arith.constant 0.000000e+00 : bf16
    %76 = vector.broadcast %cst_51 : bf16 to vector<18x18x128xbf16>
    %c0_52 = arith.constant 0 : index
    %c0_53 = arith.constant 0 : index
    %c0_54 = arith.constant 0 : index
    %77 = vector.load %arg11[%c0_52, %c0_53, %c0_54] : memref<18x18x128xbf16, #tpu.memory_space<vmem>>, vector<18x18x128xbf16>
    tpu.vector_store %arg11[%c0_52, %c0_53, %c0_54], %76 {strides = array<i32>} : memref<18x18x128xbf16, #tpu.memory_space<vmem>>, vector<18x18x128xbf16>,
    %78 = vector.shape_cast %75 : vector<256x128xf32> to vector<16x16x128xf32>
    %79 = arith.truncf %78 : vector<16x16x128xf32> to vector<16x16x128xbf16>
    %c1_55 = arith.constant 1 : index
    %c1_56 = arith.constant 1 : index
    %c0_57 = arith.constant 0 : index
    %80 = vector.load %arg11[%c1_55, %c1_56, %c0_57] : memref<18x18x128xbf16, #tpu.memory_space<vmem>>, vector<16x16x128xbf16>
    tpu.vector_store %arg11[%c1_55, %c1_56, %c0_57], %79 {strides = array<i32>} : memref<18x18x128xbf16, #tpu.memory_space<vmem>>, vector<16x16x128xbf16>,
    %cst_58 = arith.constant 0.000000e+00 : f32
    %81 = vector.broadcast %cst_58 : f32 to vector<256x128xf32>
    %c0_59 = arith.constant 0 : index
    %c0_60 = arith.constant 0 : index
    %c0_61 = arith.constant 0 : index
    %82 = vector.load %arg11[%c0_59, %c0_60, %c0_61] : memref<18x18x128xbf16, #tpu.memory_space<vmem>>, vector<16x16x128xbf16>
    %83 = vector.shape_cast %82 : vector<16x16x128xbf16> to vector<256x128xbf16>
    %c0_62 = arith.constant 0 : index
    %c0_63 = arith.constant 0 : index
    %c0_64 = arith.constant 0 : index
    %84 = vector.load %arg4[%c0_62, %c0_63, %c0_64] : memref<9x128x128xbf16, #tpu.memory_space<vmem>>, vector<1x128x128xbf16>
    %85 = vector.shape_cast %84 : vector<1x128x128xbf16> to vector<128x128xbf16>
    %cst_65 = arith.constant dense<0.000000e+00> : vector<256x128xf32>
    %86 = tpu.matmul %83, %85, %cst_65 {dimension_numbers = #tpu.dot_dimension_numbers<[1], [0], [0], [1], [0, 0, 1, 1], [], []>} : vector<256x128xbf16>, vector<128x128xbf16>, vector<256x128xf32> -> vector<256x128xf32>
    %87 = arith.addf %81, %86 : vector<256x128xf32>
    %c0_66 = arith.constant 0 : index
    %c1_67 = arith.constant 1 : index
    %c0_68 = arith.constant 0 : index
    %88 = vector.load %arg11[%c0_66, %c1_67, %c0_68] : memref<18x18x128xbf16, #tpu.memory_space<vmem>>, vector<16x16x128xbf16>
    %89 = vector.shape_cast %88 : vector<16x16x128xbf16> to vector<256x128xbf16>
    %c1_69 = arith.constant 1 : index
    %c0_70 = arith.constant 0 : index
    %c0_71 = arith.constant 0 : index
    %90 = vector.load %arg4[%c1_69, %c0_70, %c0_71] : memref<9x128x128xbf16, #tpu.memory_space<vmem>>, vector<1x128x128xbf16>
    %91 = vector.shape_cast %90 : vector<1x128x128xbf16> to vector<128x128xbf16>
    %cst_72 = arith.constant dense<0.000000e+00> : vector<256x128xf32>
    %92 = tpu.matmul %89, %91, %cst_72 {dimension_numbers = #tpu.dot_dimension_numbers<[1], [0], [0], [1], [0, 0, 1, 1], [], []>} : vector<256x128xbf16>, vector<128x128xbf16>, vector<256x128xf32> -> vector<256x128xf32>
    %93 = arith.addf %87, %92 : vector<256x128xf32>
    %c0_73 = arith.constant 0 : index
    %c2_74 = arith.constant 2 : index
    %c0_75 = arith.constant 0 : index
    %94 = vector.load %arg11[%c0_73, %c2_74, %c0_75] : memref<18x18x128xbf16, #tpu.memory_space<vmem>>, vector<16x16x128xbf16>
    %95 = vector.shape_cast %94 : vector<16x16x128xbf16> to vector<256x128xbf16>
    %c2_76 = arith.constant 2 : index
    %c0_77 = arith.constant 0 : index
    %c0_78 = arith.constant 0 : index
    %96 = vector.load %arg4[%c2_76, %c0_77, %c0_78] : memref<9x128x128xbf16, #tpu.memory_space<vmem>>, vector<1x128x128xbf16>
    %97 = vector.shape_cast %96 : vector<1x128x128xbf16> to vector<128x128xbf16>
    %cst_79 = arith.constant dense<0.000000e+00> : vector<256x128xf32>
    %98 = tpu.matmul %95, %97, %cst_79 {dimension_numbers = #tpu.dot_dimension_numbers<[1], [0], [0], [1], [0, 0, 1, 1], [], []>} : vector<256x128xbf16>, vector<128x128xbf16>, vector<256x128xf32> -> vector<256x128xf32>
    %99 = arith.addf %93, %98 : vector<256x128xf32>
    %c1_80 = arith.constant 1 : index
    %c0_81 = arith.constant 0 : index
    %c0_82 = arith.constant 0 : index
    %100 = vector.load %arg11[%c1_80, %c0_81, %c0_82] : memref<18x18x128xbf16, #tpu.memory_space<vmem>>, vector<16x16x128xbf16>
    %101 = vector.shape_cast %100 : vector<16x16x128xbf16> to vector<256x128xbf16>
    %c3_83 = arith.constant 3 : index
    %c0_84 = arith.constant 0 : index
    %c0_85 = arith.constant 0 : index
    %102 = vector.load %arg4[%c3_83, %c0_84, %c0_85] : memref<9x128x128xbf16, #tpu.memory_space<vmem>>, vector<1x128x128xbf16>
    %103 = vector.shape_cast %102 : vector<1x128x128xbf16> to vector<128x128xbf16>
    %cst_86 = arith.constant dense<0.000000e+00> : vector<256x128xf32>
    %104 = tpu.matmul %101, %103, %cst_86 {dimension_numbers = #tpu.dot_dimension_numbers<[1], [0], [0], [1], [0, 0, 1, 1], [], []>} : vector<256x128xbf16>, vector<128x128xbf16>, vector<256x128xf32> -> vector<256x128xf32>
    %105 = arith.addf %99, %104 : vector<256x128xf32>
    %c1_87 = arith.constant 1 : index
    %c1_88 = arith.constant 1 : index
    %c0_89 = arith.constant 0 : index
    %106 = vector.load %arg11[%c1_87, %c1_88, %c0_89] : memref<18x18x128xbf16, #tpu.memory_space<vmem>>, vector<16x16x128xbf16>
    %107 = vector.shape_cast %106 : vector<16x16x128xbf16> to vector<256x128xbf16>
    %c4_90 = arith.constant 4 : index
    %c0_91 = arith.constant 0 : index
    %c0_92 = arith.constant 0 : index
    %108 = vector.load %arg4[%c4_90, %c0_91, %c0_92] : memref<9x128x128xbf16, #tpu.memory_space<vmem>>, vector<1x128x128xbf16>
    %109 = vector.shape_cast %108 : vector<1x128x128xbf16> to vector<128x128xbf16>
    %cst_93 = arith.constant dense<0.000000e+00> : vector<256x128xf32>
    %110 = tpu.matmul %107, %109, %cst_93 {dimension_numbers = #tpu.dot_dimension_numbers<[1], [0], [0], [1], [0, 0, 1, 1], [], []>} : vector<256x128xbf16>, vector<128x128xbf16>, vector<256x128xf32> -> vector<256x128xf32>
    %111 = arith.addf %105, %110 : vector<256x128xf32>
    %c1_94 = arith.constant 1 : index
    %c2_95 = arith.constant 2 : index
    %c0_96 = arith.constant 0 : index
    %112 = vector.load %arg11[%c1_94, %c2_95, %c0_96] : memref<18x18x128xbf16, #tpu.memory_space<vmem>>, vector<16x16x128xbf16>
    %113 = vector.shape_cast %112 : vector<16x16x128xbf16> to vector<256x128xbf16>
    %c5_97 = arith.constant 5 : index
    %c0_98 = arith.constant 0 : index
    %c0_99 = arith.constant 0 : index
    %114 = vector.load %arg4[%c5_97, %c0_98, %c0_99] : memref<9x128x128xbf16, #tpu.memory_space<vmem>>, vector<1x128x128xbf16>
    %115 = vector.shape_cast %114 : vector<1x128x128xbf16> to vector<128x128xbf16>
    %cst_100 = arith.constant dense<0.000000e+00> : vector<256x128xf32>
    %116 = tpu.matmul %113, %115, %cst_100 {dimension_numbers = #tpu.dot_dimension_numbers<[1], [0], [0], [1], [0, 0, 1, 1], [], []>} : vector<256x128xbf16>, vector<128x128xbf16>, vector<256x128xf32> -> vector<256x128xf32>
    %117 = arith.addf %111, %116 : vector<256x128xf32>
    %c2_101 = arith.constant 2 : index
    %c0_102 = arith.constant 0 : index
    %c0_103 = arith.constant 0 : index
    %118 = vector.load %arg11[%c2_101, %c0_102, %c0_103] : memref<18x18x128xbf16, #tpu.memory_space<vmem>>, vector<16x16x128xbf16>
    %119 = vector.shape_cast %118 : vector<16x16x128xbf16> to vector<256x128xbf16>
    %c6_104 = arith.constant 6 : index
    %c0_105 = arith.constant 0 : index
    %c0_106 = arith.constant 0 : index
    %120 = vector.load %arg4[%c6_104, %c0_105, %c0_106] : memref<9x128x128xbf16, #tpu.memory_space<vmem>>, vector<1x128x128xbf16>
    %121 = vector.shape_cast %120 : vector<1x128x128xbf16> to vector<128x128xbf16>
    %cst_107 = arith.constant dense<0.000000e+00> : vector<256x128xf32>
    %122 = tpu.matmul %119, %121, %cst_107 {dimension_numbers = #tpu.dot_dimension_numbers<[1], [0], [0], [1], [0, 0, 1, 1], [], []>} : vector<256x128xbf16>, vector<128x128xbf16>, vector<256x128xf32> -> vector<256x128xf32>
    %123 = arith.addf %117, %122 : vector<256x128xf32>
    %c2_108 = arith.constant 2 : index
    %c1_109 = arith.constant 1 : index
    %c0_110 = arith.constant 0 : index
    %124 = vector.load %arg11[%c2_108, %c1_109, %c0_110] : memref<18x18x128xbf16, #tpu.memory_space<vmem>>, vector<16x16x128xbf16>
    %125 = vector.shape_cast %124 : vector<16x16x128xbf16> to vector<256x128xbf16>
    %c7_111 = arith.constant 7 : index
    %c0_112 = arith.constant 0 : index
    %c0_113 = arith.constant 0 : index
    %126 = vector.load %arg4[%c7_111, %c0_112, %c0_113] : memref<9x128x128xbf16, #tpu.memory_space<vmem>>, vector<1x128x128xbf16>
    %127 = vector.shape_cast %126 : vector<1x128x128xbf16> to vector<128x128xbf16>
    %cst_114 = arith.constant dense<0.000000e+00> : vector<256x128xf32>
    %128 = tpu.matmul %125, %127, %cst_114 {dimension_numbers = #tpu.dot_dimension_numbers<[1], [0], [0], [1], [0, 0, 1, 1], [], []>} : vector<256x128xbf16>, vector<128x128xbf16>, vector<256x128xf32> -> vector<256x128xf32>
    %129 = arith.addf %123, %128 : vector<256x128xf32>
    %c2_115 = arith.constant 2 : index
    %c2_116 = arith.constant 2 : index
    %c0_117 = arith.constant 0 : index
    %130 = vector.load %arg11[%c2_115, %c2_116, %c0_117] : memref<18x18x128xbf16, #tpu.memory_space<vmem>>, vector<16x16x128xbf16>
    %131 = vector.shape_cast %130 : vector<16x16x128xbf16> to vector<256x128xbf16>
    %c8_118 = arith.constant 8 : index
    %c0_119 = arith.constant 0 : index
    %c0_120 = arith.constant 0 : index
    %132 = vector.load %arg4[%c8_118, %c0_119, %c0_120] : memref<9x128x128xbf16, #tpu.memory_space<vmem>>, vector<1x128x128xbf16>
    %133 = vector.shape_cast %132 : vector<1x128x128xbf16> to vector<128x128xbf16>
    %cst_121 = arith.constant dense<0.000000e+00> : vector<256x128xf32>
    %134 = tpu.matmul %131, %133, %cst_121 {dimension_numbers = #tpu.dot_dimension_numbers<[1], [0], [0], [1], [0, 0, 1, 1], [], []>} : vector<256x128xbf16>, vector<128x128xbf16>, vector<256x128xf32> -> vector<256x128xf32>
    %135 = arith.addf %129, %134 : vector<256x128xf32>
    %c0_122 = arith.constant 0 : index
    %c0_123 = arith.constant 0 : index
    %136 = vector.load %arg5[%c0_122, %c0_123] : memref<1x128xf32, #tpu.memory_space<vmem>>, vector<1x128xf32>
    %137 = vector.broadcast %136 : vector<1x128xf32> to vector<256x128xf32>
    %138 = arith.addf %135, %137 : vector<256x128xf32>
    %cst_124 = arith.constant 0.000000e+00 : f32
    %139 = vector.broadcast %cst_124 : f32 to vector<256x128xf32>
    %140 = arith.maximumf %138, %139 : vector<256x128xf32>
    %141 = arith.truncf %140 : vector<256x128xf32> to vector<256x128xbf16>
    %c0_125 = arith.constant 0 : index
    %c0_126 = arith.constant 0 : index
    %142 = vector.load %arg6[%c0_125, %c0_126] : memref<128x384xbf16, #tpu.memory_space<vmem>>, vector<128x384xbf16>
    %cst_127 = arith.constant dense<0.000000e+00> : vector<256x384xf32>
    %143 = tpu.matmul %141, %142, %cst_127 {dimension_numbers = #tpu.dot_dimension_numbers<[1], [0], [0], [1], [0, 0, 1, 1], [], []>} : vector<256x128xbf16>, vector<128x384xbf16>, vector<256x384xf32> -> vector<256x384xf32>
    %c0_128 = arith.constant 0 : index
    %c0_129 = arith.constant 0 : index
    %144 = vector.load %arg7[%c0_128, %c0_129] : memref<1x384xf32, #tpu.memory_space<vmem>>, vector<1x384xf32>
    %145 = vector.broadcast %144 : vector<1x384xf32> to vector<256x384xf32>
    %146 = arith.addf %143, %145 : vector<256x384xf32>
    %cst_130 = arith.constant dense<0xFF800000> : vector<256xf32>
    %147 = vector.multi_reduction <maximumf>, %146, %cst_130 [1] : vector<256x384xf32> to vector<256xf32>
    %148 = vector.shape_cast %147 : vector<256xf32> to vector<256x1xf32>
    %149 = vector.broadcast %148 : vector<256x1xf32> to vector<256x384xf32>
    %150 = arith.subf %146, %149 : vector<256x384xf32>
    %151 = math.exp %150 : vector<256x384xf32>
    %cst_131 = arith.constant dense<0.000000e+00> : vector<256xf32>
    %152 = vector.multi_reduction <add>, %151, %cst_131 [1] : vector<256x384xf32> to vector<256xf32>
    %153 = vector.shape_cast %152 : vector<256xf32> to vector<256x1xf32>
    %c0_132 = arith.constant 0 : index
    %c0_133 = arith.constant 0 : index
    %154 = vector.load %arg8[%c0_132, %c0_133] : memref<384x2xf32, #tpu.memory_space<vmem>>, vector<384x2xf32>
    %cst_134 = arith.constant dense<0.000000e+00> : vector<256x2xf32>
    %155 = tpu.matmul %151, %154, %cst_134 {dimension_numbers = #tpu.dot_dimension_numbers<[1], [0], [0], [1], [0, 0, 1, 1], [], []>} : vector<256x384xf32>, vector<384x2xf32>, vector<256x2xf32> -> vector<256x2xf32>
    %156 = tpu.reciprocal %153 {approx = true} : vector<256x1xf32> -> vector<256x1xf32>
    %157 = vector.broadcast %156 : vector<256x1xf32> to vector<256x2xf32>
    %158 = arith.mulf %155, %157 : vector<256x2xf32>
    %159 = vector.shape_cast %158 : vector<256x2xf32> to vector<1x16x16x2xf32>
    %c0_135 = arith.constant 0 : index
    %c0_136 = arith.constant 0 : index
    %c0_137 = arith.constant 0 : index
    %c0_138 = arith.constant 0 : index
    %160 = vector.load %arg9[%c0_135, %c0_136, %c0_137, %c0_138] : memref<1x16x16x2xf32, #tpu.memory_space<vmem>>, vector<1x16x16x2xf32>
    tpu.vector_store %arg9[%c0_135, %c0_136, %c0_137, %c0_138], %159 {strides = array<i32>} : memref<1x16x16x2xf32, #tpu.memory_space<vmem>>, vector<1x16x16x2xf32>,
    return
  }
  func.func @transform_0(%arg0: i32) -> (i32, i32, i32, i32) {
    %c0_i32 = arith.constant 0 : i32
    %c0_i32_0 = arith.constant 0 : i32
    %c0_i32_1 = arith.constant 0 : i32
    %c0_i32_2 = arith.constant 0 : i32
    return %arg0, %c0_i32, %c0_i32_0, %c0_i32_1 : i32, i32, i32, i32
  }
  func.func @transform_1(%arg0: i32) -> (i32, i32) {
    %c0_i32 = arith.constant 0 : i32
    %c0_i32_0 = arith.constant 0 : i32
    %c0_i32_1 = arith.constant 0 : i32
    return %c0_i32, %c0_i32_0 : i32, i32
  }
  func.func @transform_2(%arg0: i32) -> (i32, i32) {
    %c0_i32 = arith.constant 0 : i32
    %c0_i32_0 = arith.constant 0 : i32
    %c0_i32_1 = arith.constant 0 : i32
    return %c0_i32, %c0_i32_0 : i32, i32
  }
  func.func @transform_3(%arg0: i32) -> (i32, i32, i32) {
    %c0_i32 = arith.constant 0 : i32
    %c0_i32_0 = arith.constant 0 : i32
    %c0_i32_1 = arith.constant 0 : i32
    %c0_i32_2 = arith.constant 0 : i32
    return %c0_i32, %c0_i32_0, %c0_i32_1 : i32, i32, i32
  }
  func.func @transform_4(%arg0: i32) -> (i32, i32) {
    %c0_i32 = arith.constant 0 : i32
    %c0_i32_0 = arith.constant 0 : i32
    %c0_i32_1 = arith.constant 0 : i32
    return %c0_i32, %c0_i32_0 : i32, i32
  }
  func.func @transform_5(%arg0: i32) -> (i32, i32) {
    %c0_i32 = arith.constant 0 : i32
    %c0_i32_0 = arith.constant 0 : i32
    %c0_i32_1 = arith.constant 0 : i32
    return %c0_i32, %c0_i32_0 : i32, i32
  }
  func.func @transform_6(%arg0: i32) -> (i32, i32) {
    %c0_i32 = arith.constant 0 : i32
    %c0_i32_0 = arith.constant 0 : i32
    %c0_i32_1 = arith.constant 0 : i32
    return %c0_i32, %c0_i32_0 : i32, i32
  }
  func.func @transform_7(%arg0: i32) -> (i32, i32) {
    %c0_i32 = arith.constant 0 : i32
    %c0_i32_0 = arith.constant 0 : i32
    %c0_i32_1 = arith.constant 0 : i32
    return %c0_i32, %c0_i32_0 : i32, i32
  }
  func.func @transform_8(%arg0: i32) -> (i32, i32, i32, i32) {
    %c0_i32 = arith.constant 0 : i32
    %c0_i32_0 = arith.constant 0 : i32
    %c0_i32_1 = arith.constant 0 : i32
    %c0_i32_2 = arith.constant 0 : i32
    return %arg0, %c0_i32, %c0_i32_0, %c0_i32_1 : i32, i32, i32, i32
  }
}

</mosaic_0001>

<llo_original>
// kernel: tpu_custom_call.1
$region0: #{tpu_custom_call.1}
  #allocation0 [shape = 'u32[]', space=smem, size = 0x4, offset = 0x4, fixed_abs, tag = 'smem constant byte address 0x4 - core index']
  #allocation1 [shape = 'u32[144,128]{1,0:T(1,128)}', space=vmem, size = 0x12000, scoped, tag = 'internal scratch']
  #allocation2 [shape = 'f32[18,18,1]{2,1,0:T(8,128)}', space=vmem, size = 0x36000, scoped, tag = 'scratch operand']
  #allocation3 [shape = 'bf16[18,18,128]{2,1,0:T(8,128)(2,1)}', space=vmem, size = 0x1b000, scoped, tag = 'scratch operand']
  %s0 = inlined_call_operand.vmem [shape: f32[2,16,16,1], index: 0, kind: input, shape index: {}]
  %s1 = inlined_call_operand.vmem [shape: f32[9,128], index: 1, kind: input, shape index: {}]
  %s2 = inlined_call_operand.vmem [shape: f32[1,128], index: 2, kind: input, shape index: {}]
  %s3 = inlined_call_operand.vmem [shape: bf16[9,128,128], index: 3, kind: input, shape index: {}]
  %s4 = inlined_call_operand.vmem [shape: f32[1,128], index: 4, kind: input, shape index: {}]
  %s5 = inlined_call_operand.vmem [shape: bf16[128,384], index: 5, kind: input, shape index: {}]
  %s6 = inlined_call_operand.vmem [shape: f32[1,384], index: 6, kind: input, shape index: {}]
  %s7 = inlined_call_operand.vmem [shape: f32[384,2], index: 7, kind: input, shape index: {}]
  %s8 = inlined_call_operand.vmem [shape: f32[2,16,16,2], index: 8, kind: output, shape index: {}]
  %s9 = sld [smem:[#allocation0]]
  $region65: #{tpu_custom_call.1} parent=0
    _
  %s11 = ssub.s32 1, %s9
  %s12 = scalar_select 0, %s11, %s9
  loop: start=0, step=1, limit=4
  $region2: #{tpu_custom_call.1} parent=0 // loop_pre_header
    _
  $region3: #{tpu_custom_call.1} parent=0 // loop_header
    %s14 = sphi 0, %s18
    %p15 = scmp.ge.s32.totalorder %s14, 4
    %s24 = sphi 0, %s26
    %s27 = sphi 0, %s24
    %s28 = sphi 0, %s27
    %s44 = sphi 0, %s28
    %s48 = sphi 0, %s48
    %s50 = sphi 0, %s48
    %s51 = sphi 0, %s50
    %s65 = sphi 0, %s51
    %s69 = sphi 0, %s69
    %s71 = sphi 0, %s69
    %s72 = sphi 0, %s71
    %s86 = sphi 0, %s72
    %s90 = sphi 0, %s90
    %s92 = sphi 0, %s90
    %s93 = sphi 0, %s92
    %s107 = sphi 0, %s93
    %s111 = sphi 0, %s111
    %s113 = sphi 0, %s111
    %s114 = sphi 0, %s113
    %s128 = sphi 0, %s114
    %s132 = sphi 0, %s132
    %s134 = sphi 0, %s132
    %s135 = sphi 0, %s134
    %s149 = sphi 0, %s135
    %s153 = sphi 0, %s153
    %s155 = sphi 0, %s153
    %s156 = sphi 0, %s155
    %s170 = sphi 0, %s156
    %s174 = sphi 0, %s174
    %s176 = sphi 0, %s174
    %s177 = sphi 0, %s176
    %s191 = sphi 0, %s177
    %s197 = sphi 0, %s199
    %s200 = sphi 0, %s197
    %s201 = sphi 0, %s200
    %s217 = sphi 0, %s201
  $region4: #{tpu_custom_call.1} parent=0 // loop_header_branch
    %17 = sbr.rel (%p15) target = $region8
  $region5: #{tpu_custom_call.1} parent=0 // loop_body
    %s19 = ssub.s32 %s14, 1
    %s20 = ssub.s32 %s14, 2
    %s21 = sadd.s32 %s14, 1
    %s22 = ssub.s32 %s14, %s21
    %p23 = scmp.eq.s32.totalorder %s22, 0
    %s25 = sadd.s32 %s24, 1
    %s26 = scalar_select %p23, %s24, %s25
    %p29 = pneg %p23
    %p30 = scmp.eq.s32.totalorder %s14, 1
    %p31 = por %p29, %p30
    %p32 = scmp.ne.s32.totalorder %s24, %s27
    %p33 = scmp.eq.s32.totalorder %s14, 0
    %p34 = por %p32, %p33
    %p35 = scmp.ne.s32.totalorder %s24, %s27
    %p36 = scmp.eq.s32.totalorder %s19, 1
    %p37 = por %p35, %p36
    %p38 = scmp.ne.s32.totalorder %s27, %s28
    %p39 = scmp.eq.s32.totalorder %s19, 0
    %p40 = por %p38, %p39
    %p41 = scmp.ne.s32.totalorder %s27, %s28
    %p42 = scmp.eq.s32.totalorder %s20, 1
    %p43 = por %p41, %p42
    %p45 = scmp.ne.s32.totalorder %s28, %s44
    %p46 = scmp.eq.s32.totalorder %s20, 0
    %p47 = por %p45, %p46
    %s49 = sadd.s32 %s48, 1
    %p52 = scmp.eq.s32.totalorder %s14, 1
    %p53 = scmp.ne.s32.totalorder %s48, %s50
    %p54 = scmp.eq.s32.totalorder %s14, 0
    %p55 = por %p53, %p54
    %p56 = scmp.ne.s32.totalorder %s48, %s50
    %p57 = scmp.eq.s32.totalorder %s19, 1
    %p58 = por %p56, %p57
    %p59 = scmp.ne.s32.totalorder %s50, %s51
    %p60 = scmp.eq.s32.totalorder %s19, 0
    %p61 = por %p59, %p60
    %p62 = scmp.ne.s32.totalorder %s50, %s51
    %p63 = scmp.eq.s32.totalorder %s20, 1
    %p64 = por %p62, %p63
    %p66 = scmp.ne.s32.totalorder %s51, %s65
    %p67 = scmp.eq.s32.totalorder %s20, 0
    %p68 = por %p66, %p67
    %s70 = sadd.s32 %s69, 1
    %p73 = scmp.eq.s32.totalorder %s14, 1
    %p74 = scmp.ne.s32.totalorder %s69, %s71
    %p75 = scmp.eq.s32.totalorder %s14, 0
    %p76 = por %p74, %p75
    %p77 = scmp.ne.s32.totalorder %s69, %s71
    %p78 = scmp.eq.s32.totalorder %s19, 1
    %p79 = por %p77, %p78
    %p80 = scmp.ne.s32.totalorder %s71, %s72
    %p81 = scmp.eq.s32.totalorder %s19, 0
    %p82 = por %p80, %p81
    %p83 = scmp.ne.s32.totalorder %s71, %s72
    %p84 = scmp.eq.s32.totalorder %s20, 1
    %p85 = por %p83, %p84
    %p87 = scmp.ne.s32.totalorder %s72, %s86
    %p88 = scmp.eq.s32.totalorder %s20, 0
    %p89 = por %p87, %p88
    %s91 = sadd.s32 %s90, 1
    %p94 = scmp.eq.s32.totalorder %s14, 1
    %p95 = scmp.ne.s32.totalorder %s90, %s92
    %p96 = scmp.eq.s32.totalorder %s14, 0
    %p97 = por %p95, %p96
    %p98 = scmp.ne.s32.totalorder %s90, %s92
    %p99 = scmp.eq.s32.totalorder %s19, 1
    %p100 = por %p98, %p99
    %p101 = scmp.ne.s32.totalorder %s92, %s93
    %p102 = scmp.eq.s32.totalorder %s19, 0
    %p103 = por %p101, %p102
    %p104 = scmp.ne.s32.totalorder %s92, %s93
    %p105 = scmp.eq.s32.totalorder %s20, 1
    %p106 = por %p104, %p105
    %p108 = scmp.ne.s32.totalorder %s93, %s107
    %p109 = scmp.eq.s32.totalorder %s20, 0
    %p110 = por %p108, %p109
    %s112 = sadd.s32 %s111, 1
    %p115 = scmp.eq.s32.totalorder %s14, 1
    %p116 = scmp.ne.s32.totalorder %s111, %s113
    %p117 = scmp.eq.s32.totalorder %s14, 0
    %p118 = por %p116, %p117
    %p119 = scmp.ne.s32.totalorder %s111, %s113
    %p120 = scmp.eq.s32.totalorder %s19, 1
    %p121 = por %p119, %p120
    %p122 = scmp.ne.s32.totalorder %s113, %s114
    %p123 = scmp.eq.s32.totalorder %s19, 0
    %p124 = por %p122, %p123
    %p125 = scmp.ne.s32.totalorder %s113, %s114
    %p126 = scmp.eq.s32.totalorder %s20, 1
    %p127 = por %p125, %p126
    %p129 = scmp.ne.s32.totalorder %s114, %s128
    %p130 = scmp.eq.s32.totalorder %s20, 0
    %p131 = por %p129, %p130
    %s133 = sadd.s32 %s132, 1
    %p136 = scmp.eq.s32.totalorder %s14, 1
    %p137 = scmp.ne.s32.totalorder %s132, %s134
    %p138 = scmp.eq.s32.totalorder %s14, 0
    %p139 = por %p137, %p138
    %p140 = scmp.ne.s32.totalorder %s132, %s134
    %p141 = scmp.eq.s32.totalorder %s19, 1
    %p142 = por %p140, %p141
    %p143 = scmp.ne.s32.totalorder %s134, %s135
    %p144 = scmp.eq.s32.totalorder %s19, 0
    %p145 = por %p143, %p144
    %p146 = scmp.ne.s32.totalorder %s134, %s135
    %p147 = scmp.eq.s32.totalorder %s20, 1
    %p148 = por %p146, %p147
    %p150 = scmp.ne.s32.totalorder %s135, %s149
    %p151 = scmp.eq.s32.totalorder %s20, 0
    %p152 = por %p150, %p151
    %s154 = sadd.s32 %s153, 1
    %p157 = scmp.eq.s32.totalorder %s14, 1
    %p158 = scmp.ne.s32.totalorder %s153, %s155
    %p159 = scmp.eq.s32.totalorder %s14, 0
    %p160 = por %p158, %p159
    %p161 = scmp.ne.s32.totalorder %s153, %s155
    %p162 = scmp.eq.s32.totalorder %s19, 1
    %p163 = por %p161, %p162
    %p164 = scmp.ne.s32.totalorder %s155, %s156
    %p165 = scmp.eq.s32.totalorder %s19, 0
    %p166 = por %p164, %p165
    %p167 = scmp.ne.s32.totalorder %s155, %s156
    %p168 = scmp.eq.s32.totalorder %s20, 1
    %p169 = por %p167, %p168
    %p171 = scmp.ne.s32.totalorder %s156, %s170
    %p172 = scmp.eq.s32.totalorder %s20, 0
    %p173 = por %p171, %p172
    %s175 = sadd.s32 %s174, 1
    %p178 = scmp.eq.s32.totalorder %s14, 1
    %p179 = scmp.ne.s32.totalorder %s174, %s176
    %p180 = scmp.eq.s32.totalorder %s14, 0
    %p181 = por %p179, %p180
    %p182 = scmp.ne.s32.totalorder %s174, %s176
    %p183 = scmp.eq.s32.totalorder %s19, 1
    %p184 = por %p182, %p183
    %p185 = scmp.ne.s32.totalorder %s176, %s177
    %p186 = scmp.eq.s32.totalorder %s19, 0
    %p187 = por %p185, %p186
    %p188 = scmp.ne.s32.totalorder %s176, %s177
    %p189 = scmp.eq.s32.totalorder %s20, 1
    %p190 = por %p188, %p189
    %p192 = scmp.ne.s32.totalorder %s177, %s191
    %p193 = scmp.eq.s32.totalorder %s20, 0
    %p194 = por %p192, %p193
    %s195 = ssub.s32 %s14, %s21
    %p196 = scmp.eq.s32.totalorder %s195, 0
    %s198 = sadd.s32 %s197, 1
    %s199 = scalar_select %p196, %s197, %s198
    %p202 = pneg %p196
    %p203 = scmp.eq.s32.totalorder %s14, 1
    %p204 = por %p202, %p203
    %p205 = scmp.ne.s32.totalorder %s197, %s200
    %p206 = scmp.eq.s32.totalorder %s14, 0
    %p207 = por %p205, %p206
    %p208 = scmp.ne.s32.totalorder %s197, %s200
    %p209 = scmp.eq.s32.totalorder %s19, 1
    %p210 = por %p208, %p209
    %p211 = scmp.ne.s32.totalorder %s200, %s201
    %p212 = scmp.eq.s32.totalorder %s19, 0
    %p213 = por %p211, %p212
    %p214 = scmp.ne.s32.totalorder %s200, %s201
    %p215 = scmp.eq.s32.totalorder %s20, 1
    %p216 = por %p214, %p215
    %p218 = scmp.ne.s32.totalorder %s201, %s217
    %p219 = scmp.eq.s32.totalorder %s20, 0
    %p220 = por %p218, %p219
    %p221 = scmp.le.s32.totalorder 1, %s14
    %p222 = scmp.lt.s32.totalorder %s14, 3
    %p223 = pnand %p221, %p222
    %p224 = pneg %p223
    // Predicated region
    $region9: #{tpu_custom_call.1} parent=5 // pred_check
      _
    $region10: #{tpu_custom_call.1} parent=5 // pred_check_branch
      %226 = sbr.rel (%p223) target = $region12
    $region11: #{tpu_custom_call.1} parent=5 // pred_region
      %s227 = ssub.s32 %s14, 1
      // Predicated region
      $region13: #{tpu_custom_call.1} parent=11 // pred_check
        %p228 = pneg %p61
      $region14: #{tpu_custom_call.1} parent=11 // pred_check_branch
        %230 = sbr.rel (%p228) target = $region16
      $region15: #{tpu_custom_call.1} parent=11 // pred_region
        _
      $region16: #{tpu_custom_call.1} parent=11 // pred_fallthru
        _
      // Predicated region
      $region17: #{tpu_custom_call.1} parent=11 // pred_check
        %p231 = pneg %p82
      $region18: #{tpu_custom_call.1} parent=11 // pred_check_branch
        %233 = sbr.rel (%p231) target = $region20
      $region19: #{tpu_custom_call.1} parent=11 // pred_region
        _
      $region20: #{tpu_custom_call.1} parent=11 // pred_fallthru
        _
      // Predicated region
      $region21: #{tpu_custom_call.1} parent=11 // pred_check
        %p234 = pneg %p103
      $region22: #{tpu_custom_call.1} parent=11 // pred_check_branch
        %236 = sbr.rel (%p234) target = $region24
      $region23: #{tpu_custom_call.1} parent=11 // pred_region
        _
      $region24: #{tpu_custom_call.1} parent=11 // pred_fallthru
        _
      // Predicated region
      $region25: #{tpu_custom_call.1} parent=11 // pred_check
        %p237 = pneg %p124
      $region26: #{tpu_custom_call.1} parent=11 // pred_check_branch
        %239 = sbr.rel (%p237) target = $region28
      $region27: #{tpu_custom_call.1} parent=11 // pred_region
        _
      $region28: #{tpu_custom_call.1} parent=11 // pred_fallthru
        _
      // Predicated region
      $region29: #{tpu_custom_call.1} parent=11 // pred_check
        %p240 = pneg %p145
      $region30: #{tpu_custom_call.1} parent=11 // pred_check_branch
        %242 = sbr.rel (%p240) target = $region32
      $region31: #{tpu_custom_call.1} parent=11 // pred_region
        _
      $region32: #{tpu_custom_call.1} parent=11 // pred_fallthru
        _
      // Predicated region
      $region33: #{tpu_custom_call.1} parent=11 // pred_check
        %p243 = pneg %p166
      $region34: #{tpu_custom_call.1} parent=11 // pred_check_branch
        %245 = sbr.rel (%p243) target = $region36
      $region35: #{tpu_custom_call.1} parent=11 // pred_region
        _
      $region36: #{tpu_custom_call.1} parent=11 // pred_fallthru
        _
      // Predicated region
      $region37: #{tpu_custom_call.1} parent=11 // pred_check
        %p246 = pneg %p187
      $region38: #{tpu_custom_call.1} parent=11 // pred_check_branch
        %248 = sbr.rel (%p246) target = $region40
      $region39: #{tpu_custom_call.1} parent=11 // pred_region
        _
      $region40: #{tpu_custom_call.1} parent=11 // pred_fallthru
        _
    $region12: #{tpu_custom_call.1} parent=5 // pred_fallthru
      _
    %p249 = scmp.lt.s32.totalorder %s14, 2
    // Predicated region
    $region41: #{tpu_custom_call.1} parent=5 // pred_check
      %p250 = pneg %p249
    $region42: #{tpu_custom_call.1} parent=5 // pred_check_branch
      %252 = sbr.rel (%p250) target = $region44
    $region43: #{tpu_custom_call.1} parent=5 // pred_region
      // Predicated region
      $region45: #{tpu_custom_call.1} parent=43 // pred_check
        %p253 = pneg %p34
      $region46: #{tpu_custom_call.1} parent=43 // pred_check_branch
        %255 = sbr.rel (%p253) target = $region48
      $region47: #{tpu_custom_call.1} parent=43 // pred_region
        %p256 = scmp.lt.s32.totalorder %s14, 1
        %s257 = scalar_select %p256, %s14, 1
        %s258 = smul.addr %s257, 32
        %s259 = smul.addr %s258, 8
        %s260 = scalar_lea.vmem %s0, %s259
      $region48: #{tpu_custom_call.1} parent=43 // pred_fallthru
        _
    $region44: #{tpu_custom_call.1} parent=5 // pred_fallthru
      _
    %p261 = scmp.le.s32.totalorder 1, %s14
    %p262 = scmp.lt.s32.totalorder %s14, 3
    %p263 = pnand %p261, %p262
    %p264 = pneg %p263
    // Predicated region
    $region49: #{tpu_custom_call.1} parent=5 // pred_check
      _
    $region50: #{tpu_custom_call.1} parent=5 // pred_check_branch
      %266 = sbr.rel (%p263) target = $region52
    $region51: #{tpu_custom_call.1} parent=5 // pred_region
      %s267 = ssub.s32 %s14, 1
      %p268 = scmp.lt.s32.totalorder %s19, 1
      %s269 = scalar_select %p268, %s19, 1
      %s270 = smul.addr %s269, 32
      %s271 = smul.addr %s270, 8
      %s272 = scalar_lea.vmem %s0, %s271
      %p273 = pneg %p40
      %p274 = pneg %p37
      %p275 = pneg %p61
      %p276 = pneg %p58
      %p277 = pneg %p82
      %p278 = pneg %p79
      %p279 = pneg %p103
      %p280 = pneg %p100
      %p281 = pneg %p124
      %p282 = pneg %p121
      %p283 = pneg %p145
      %p284 = pneg %p142
      %p285 = pneg %p166
      %p286 = pneg %p163
      %p287 = pneg %p187
      %p288 = pneg %p184
      %p289 = pneg %p213
      %p290 = pneg %p210
      %p291 = scmp.lt.s32.totalorder %s19, 1
      %s292 = scalar_select %p291, %s19, 1
      %s293 = smul.addr %s292, 32
      %s294 = smul.addr %s293, 8
      %s295 = scalar_lea.vmem %s8, %s294
      %p296 = scmp.lt.s32.totalorder %s19, 1
      %s297 = scalar_select %p296, %s19, 1
      %s298 = smul.addr %s297, 32
      %s299 = smul.addr %s298, 8
      %s300 = scalar_lea.vmem %s0, %s299
      %p301 = scmp.lt.s32.totalorder %s19, 1
      %s302 = scalar_select %p301, %s19, 1
      %s303 = smul.addr %s302, 32
      %s304 = smul.addr %s303, 8
      %s305 = scalar_lea.vmem %s8, %s304
      %vm307 = vcmask 7168
      %308 = vst.msk [vmem:[#allocation2] sm:$0xff] %vm307, 0.0
      %309 = vst.msk [vmem:[#allocation2 + $0x8] sm:$0xff] %vm307, 0.0
      %vm310 = vcmask 1024
      %311 = vst.msk [vmem:[#allocation2 + $0x10] sm:$0x3] %vm310, 0.0
      %312 = vst.msk [vmem:[#allocation2 + $0x18] sm:$0xff] %vm307, 0.0
      %313 = vst.msk [vmem:[#allocation2 + $0x20] sm:$0xff] %vm307, 0.0
      %314 = vst.msk [vmem:[#allocation2 + $0x28] sm:$0x3] %vm310, 0.0
      %315 = vst.msk [vmem:[#allocation2 + $0x30] sm:$0xff] %vm307, 0.0
      %316 = vst.msk [vmem:[#allocation2 + $0x38] sm:$0xff] %vm307, 0.0
      %317 = vst.msk [vmem:[#allocation2 + $0x40] sm:$0x3] %vm310, 0.0
      %318 = vst.msk [vmem:[#allocation2 + $0x48] sm:$0xff] %vm307, 0.0
      %319 = vst.msk [vmem:[#allocation2 + $0x50] sm:$0xff] %vm307, 0.0
      %320 = vst.msk [vmem:[#allocation2 + $0x58] sm:$0x3] %vm310, 0.0
      %321 = vst.msk [vmem:[#allocation2 + $0x60] sm:$0xff] %vm307, 0.0
      %322 = vst.msk [vmem:[#allocation2 + $0x68] sm:$0xff] %vm307, 0.0
      %323 = vst.msk [vmem:[#allocation2 + $0x70] sm:$0x3] %vm310, 0.0
      %324 = vst.msk [vmem:[#allocation2 + $0x78] sm:$0xff] %vm307, 0.0
      %325 = vst.msk [vmem:[#allocation2 + $0x80] sm:$0xff] %vm307, 0.0
      %326 = vst.msk [vmem:[#allocation2 + $0x88] sm:$0x3] %vm310, 0.0
      %327 = vst.msk [vmem:[#allocation2 + $0x90] sm:$0xff] %vm307, 0.0
      %328 = vst.msk [vmem:[#allocation2 + $0x98] sm:$0xff] %vm307, 0.0
      %329 = vst.msk [vmem:[#allocation2 + $0xa0] sm:$0x3] %vm310, 0.0
      %330 = vst.msk [vmem:[#allocation2 + $0xa8] sm:$0xff] %vm307, 0.0
      %331 = vst.msk [vmem:[#allocation2 + $0xb0] sm:$0xff] %vm307, 0.0
      %332 = vst.msk [vmem:[#allocation2 + $0xb8] sm:$0x3] %vm310, 0.0
      %333 = vst.msk [vmem:[#allocation2 + $0xc0] sm:$0xff] %vm307, 0.0
      %334 = vst.msk [vmem:[#allocation2 + $0xc8] sm:$0xff] %vm307, 0.0
      %335 = vst.msk [vmem:[#allocation2 + $0xd0] sm:$0x3] %vm310, 0.0
      %336 = vst.msk [vmem:[#allocation2 + $0xd8] sm:$0xff] %vm307, 0.0
      %337 = vst.msk [vmem:[#allocation2 + $0xe0] sm:$0xff] %vm307, 0.0
      %338 = vst.msk [vmem:[#allocation2 + $0xe8] sm:$0x3] %vm310, 0.0
      %339 = vst.msk [vmem:[#allocation2 + $0xf0] sm:$0xff] %vm307, 0.0
      %340 = vst.msk [vmem:[#allocation2 + $0xf8] sm:$0xff] %vm307, 0.0
      %341 = vst.msk [vmem:[#allocation2 + $0x100] sm:$0x3] %vm310, 0.0
      %342 = vst.msk [vmem:[#allocation2 + $0x108] sm:$0xff] %vm307, 0.0
      %343 = vst.msk [vmem:[#allocation2 + $0x110] sm:$0xff] %vm307, 0.0
      %344 = vst.msk [vmem:[#allocation2 + $0x118] sm:$0x3] %vm310, 0.0
      %345 = vst.msk [vmem:[#allocation2 + $0x120] sm:$0xff] %vm307, 0.0
      %346 = vst.msk [vmem:[#allocation2 + $0x128] sm:$0xff] %vm307, 0.0
      %347 = vst.msk [vmem:[#allocation2 + $0x130] sm:$0x3] %vm310, 0.0
      %348 = vst.msk [vmem:[#allocation2 + $0x138] sm:$0xff] %vm307, 0.0
      %349 = vst.msk [vmem:[#allocation2 + $0x140] sm:$0xff] %vm307, 0.0
      %350 = vst.msk [vmem:[#allocation2 + $0x148] sm:$0x3] %vm310, 0.0
      %351 = vst.msk [vmem:[#allocation2 + $0x150] sm:$0xff] %vm307, 0.0
      %352 = vst.msk [vmem:[#allocation2 + $0x158] sm:$0xff] %vm307, 0.0
      %353 = vst.msk [vmem:[#allocation2 + $0x160] sm:$0x3] %vm310, 0.0
      %354 = vst.msk [vmem:[#allocation2 + $0x168] sm:$0xff] %vm307, 0.0
      %355 = vst.msk [vmem:[#allocation2 + $0x170] sm:$0xff] %vm307, 0.0
      %356 = vst.msk [vmem:[#allocation2 + $0x178] sm:$0x3] %vm310, 0.0
      %357 = vst.msk [vmem:[#allocation2 + $0x180] sm:$0xff] %vm307, 0.0
      %358 = vst.msk [vmem:[#allocation2 + $0x188] sm:$0xff] %vm307, 0.0
      %359 = vst.msk [vmem:[#allocation2 + $0x190] sm:$0x3] %vm310, 0.0
      %360 = vst.msk [vmem:[#allocation2 + $0x198] sm:$0xff] %vm307, 0.0
      %361 = vst.msk [vmem:[#allocation2 + $0x1a0] sm:$0xff] %vm307, 0.0
      %362 = vst.msk [vmem:[#allocation2 + $0x1a8] sm:$0x3] %vm310, 0.0
      %v363 = vld [vmem:[%s300] sm:$0xff]
      %v364 = vld [vmem:[%s300 + $0x8] sm:$0xff]
      %v365 = vld [vmem:[%s300 + $0x10] sm:$0xff]
      %v366 = vld [vmem:[%s300 + $0x18] sm:$0xff]
      %v367 = vld [vmem:[%s300 + $0x20] sm:$0xff]
      %v368 = vld [vmem:[%s300 + $0x28] sm:$0xff]
      %v369 = vld [vmem:[%s300 + $0x30] sm:$0xff]
      %v370 = vld [vmem:[%s300 + $0x38] sm:$0xff]
      %v371 = vld [vmem:[%s300 + $0x40] sm:$0xff]
      %v372 = vld [vmem:[%s300 + $0x48] sm:$0xff]
      %v373 = vld [vmem:[%s300 + $0x50] sm:$0xff]
      %v374 = vld [vmem:[%s300 + $0x58] sm:$0xff]
      %v375 = vld [vmem:[%s300 + $0x60] sm:$0xff]
      %v376 = vld [vmem:[%s300 + $0x68] sm:$0xff]
      %v377 = vld [vmem:[%s300 + $0x70] sm:$0xff]
      %v378 = vld [vmem:[%s300 + $0x78] sm:$0xff]
      %v379 = vld [vmem:[%s300 + $0x80] sm:$0xff]
      %v380 = vld [vmem:[%s300 + $0x88] sm:$0xff]
      %v381 = vld [vmem:[%s300 + $0x90] sm:$0xff]
      %v382 = vld [vmem:[%s300 + $0x98] sm:$0xff]
      %v383 = vld [vmem:[%s300 + $0xa0] sm:$0xff]
      %v384 = vld [vmem:[%s300 + $0xa8] sm:$0xff]
      %v385 = vld [vmem:[%s300 + $0xb0] sm:$0xff]
      %v386 = vld [vmem:[%s300 + $0xb8] sm:$0xff]
      %v387 = vld [vmem:[%s300 + $0xc0] sm:$0xff]
      %v388 = vld [vmem:[%s300 + $0xc8] sm:$0xff]
      %v389 = vld [vmem:[%s300 + $0xd0] sm:$0xff]
      %v390 = vld [vmem:[%s300 + $0xd8] sm:$0xff]
      %v391 = vld [vmem:[%s300 + $0xe0] sm:$0xff]
      %v392 = vld [vmem:[%s300 + $0xe8] sm:$0xff]
      %v393 = vld [vmem:[%s300 + $0xf0] sm:$0xff]
      %v394 = vld [vmem:[%s300 + $0xf8] sm:$0xff]
      %v395 = vsub.f32 %v363, 50.0
      %v396 = vsub.f32 %v364, 50.0
      %v397 = vsub.f32 %v365, 50.0
      %v398 = vsub.f32 %v366, 50.0
      %v399 = vsub.f32 %v367, 50.0
      %v400 = vsub.f32 %v368, 50.0
      %v401 = vsub.f32 %v369, 50.0
      %v402 = vsub.f32 %v370, 50.0
      %v403 = vsub.f32 %v371, 50.0
      %v404 = vsub.f32 %v372, 50.0
      %v405 = vsub.f32 %v373, 50.0
      %v406 = vsub.f32 %v374, 50.0
      %v407 = vsub.f32 %v375, 50.0
      %v408 = vsub.f32 %v376, 50.0
      %v409 = vsub.f32 %v377, 50.0
      %v410 = vsub.f32 %v378, 50.0
      %v411 = vsub.f32 %v379, 50.0
      %v412 = vsub.f32 %v380, 50.0
      %v413 = vsub.f32 %v381, 50.0
      %v414 = vsub.f32 %v382, 50.0
      %v415 = vsub.f32 %v383, 50.0
      %v416 = vsub.f32 %v384, 50.0
      %v417 = vsub.f32 %v385, 50.0
      %v418 = vsub.f32 %v386, 50.0
      %v419 = vsub.f32 %v387, 50.0
      %v420 = vsub.f32 %v388, 50.0
      %v421 = vsub.f32 %v389, 50.0
      %v422 = vsub.f32 %v390, 50.0
      %v423 = vsub.f32 %v391, 50.0
      %v424 = vsub.f32 %v392, 50.0
      %v425 = vsub.f32 %v393, 50.0
      %v426 = vsub.f32 %v394, 50.0
      %s427 = scalar_lea.vmem [#allocation2], 24
      %428 = vst.msk [vmem:[%s427 + $0x1] sm:$0xff] %vm307, %v395
      %429 = vst.msk [vmem:[%s427 + $0x9] sm:$0xff] %vm307, %v396
      %430 = vst.msk [vmem:[%s427 + $0x19] sm:$0xff] %vm307, %v397
      %431 = vst.msk [vmem:[%s427 + $0x21] sm:$0xff] %vm307, %v398
      %432 = vst.msk [vmem:[%s427 + $0x31] sm:$0xff] %vm307, %v399
      %433 = vst.msk [vmem:[%s427 + $0x39] sm:$0xff] %vm307, %v400
      %434 = vst.msk [vmem:[%s427 + $0x49] sm:$0xff] %vm307, %v401
      %435 = vst.msk [vmem:[%s427 + $0x51] sm:$0xff] %vm307, %v402
      %436 = vst.msk [vmem:[%s427 + $0x61] sm:$0xff] %vm307, %v403
      %437 = vst.msk [vmem:[%s427 + $0x69] sm:$0xff] %vm307, %v404
      %438 = vst.msk [vmem:[%s427 + $0x79] sm:$0xff] %vm307, %v405
      %439 = vst.msk [vmem:[%s427 + $0x81] sm:$0xff] %vm307, %v406
      %440 = vst.msk [vmem:[%s427 + $0x91] sm:$0xff] %vm307, %v407
      %441 = vst.msk [vmem:[%s427 + $0x99] sm:$0xff] %vm307, %v408
      %442 = vst.msk [vmem:[%s427 + $0xa9] sm:$0xff] %vm307, %v409
      %443 = vst.msk [vmem:[%s427 + $0xb1] sm:$0xff] %vm307, %v410
      %444 = vst.msk [vmem:[%s427 + $0xc1] sm:$0xff] %vm307, %v411
      %445 = vst.msk [vmem:[%s427 + $0xc9] sm:$0xff] %vm307, %v412
      %446 = vst.msk [vmem:[%s427 + $0xd9] sm:$0xff] %vm307, %v413
      %447 = vst.msk [vmem:[%s427 + $0xe1] sm:$0xff] %vm307, %v414
      %448 = vst.msk [vmem:[%s427 + $0xf1] sm:$0xff] %vm307, %v415
      %449 = vst.msk [vmem:[%s427 + $0xf9] sm:$0xff] %vm307, %v416
      %450 = vst.msk [vmem:[%s427 + $0x109] sm:$0xff] %vm307, %v417
      %451 = vst.msk [vmem:[%s427 + $0x111] sm:$0xff] %vm307, %v418
      %452 = vst.msk [vmem:[%s427 + $0x121] sm:$0xff] %vm307, %v419
      %453 = vst.msk [vmem:[%s427 + $0x129] sm:$0xff] %vm307, %v420
      %454 = vst.msk [vmem:[%s427 + $0x139] sm:$0xff] %vm307, %v421
      %455 = vst.msk [vmem:[%s427 + $0x141] sm:$0xff] %vm307, %v422
      %456 = vst.msk [vmem:[%s427 + $0x151] sm:$0xff] %vm307, %v423
      %457 = vst.msk [vmem:[%s427 + $0x159] sm:$0xff] %vm307, %v424
      %458 = vst.msk [vmem:[%s427 + $0x169] sm:$0xff] %vm307, %v425
      %459 = vst.msk [vmem:[%s427 + $0x171] sm:$0xff] %vm307, %v426
      %v460 = vld [vmem:[#allocation2] sm:$0xff]
      %v461 = vld [vmem:[#allocation2 + $0x8] sm:$0xff]
      %v462 = vld [vmem:[#allocation2 + $0x18] sm:$0xff]
      %v463 = vld [vmem:[#allocation2 + $0x20] sm:$0xff]
      %v464 = vld [vmem:[#allocation2 + $0x30] sm:$0xff]
      %v465 = vld [vmem:[#allocation2 + $0x38] sm:$0xff]
      %v466 = vld [vmem:[#allocation2 + $0x48] sm:$0xff]
      %v467 = vld [vmem:[#allocation2 + $0x50] sm:$0xff]
      %v468 = vld [vmem:[#allocation2 + $0x60] sm:$0xff]
      %v469 = vld [vmem:[#allocation2 + $0x68] sm:$0xff]
      %v470 = vld [vmem:[#allocation2 + $0x78] sm:$0xff]
      %v471 = vld [vmem:[#allocation2 + $0x80] sm:$0xff]
      %v472 = vld [vmem:[#allocation2 + $0x90] sm:$0xff]
      %v473 = vld [vmem:[#allocation2 + $0x98] sm:$0xff]
      %v474 = vld [vmem:[#allocation2 + $0xa8] sm:$0xff]
      %v475 = vld [vmem:[#allocation2 + $0xb0] sm:$0xff]
      %v476 = vld [vmem:[#allocation2 + $0xc0] sm:$0xff]
      %v477 = vld [vmem:[#allocation2 + $0xc8] sm:$0xff]
      %v478 = vld [vmem:[#allocation2 + $0xd8] sm:$0xff]
      %v479 = vld [vmem:[#allocation2 + $0xe0] sm:$0xff]
      %v480 = vld [vmem:[#allocation2 + $0xf0] sm:$0xff]
      %v481 = vld [vmem:[#allocation2 + $0xf8] sm:$0xff]
      %v482 = vld [vmem:[#allocation2 + $0x108] sm:$0xff]
      %v483 = vld [vmem:[#allocation2 + $0x110] sm:$0xff]
      %v484 = vld [vmem:[#allocation2 + $0x120] sm:$0xff]
      %v485 = vld [vmem:[#allocation2 + $0x128] sm:$0xff]
      %v486 = vld [vmem:[#allocation2 + $0x138] sm:$0xff]
      %v487 = vld [vmem:[#allocation2 + $0x140] sm:$0xff]
      %v488 = vld [vmem:[#allocation2 + $0x150] sm:$0xff]
      %v489 = vld [vmem:[#allocation2 + $0x158] sm:$0xff]
      %v490 = vld [vmem:[#allocation2 + $0x168] sm:$0xff]
      %v491 = vld [vmem:[#allocation2 + $0x170] sm:$0xff]
      %v492 = vld [vmem:[%s1] sm:$0x1]
      %494 = vset.pattern.permute.xlu0 0
      %495 = vperm.xlu0 %494, %v460
      %v496 = vpop.permute.xlu0 %495
      %499 = vset.pattern.permute.xlu0 0
      %500 = vperm.xlu0 %499, %v461
      %v501 = vpop.permute.xlu0 %500
      %504 = vset.pattern.permute.xlu0 0
      %505 = vperm.xlu0 %504, %v462
      %v506 = vpop.permute.xlu0 %505
      %509 = vset.pattern.permute.xlu0 0
      %510 = vperm.xlu0 %509, %v463
      %v511 = vpop.permute.xlu0 %510
      %514 = vset.pattern.permute.xlu0 0
      %515 = vperm.xlu0 %514, %v464
      %v516 = vpop.permute.xlu0 %515
      %519 = vset.pattern.permute.xlu0 0
      %520 = vperm.xlu0 %519, %v465
      %v521 = vpop.permute.xlu0 %520
      %524 = vset.pattern.permute.xlu0 0
      %525 = vperm.xlu0 %524, %v466
      %v526 = vpop.permute.xlu0 %525
      %529 = vset.pattern.permute.xlu0 0
      %530 = vperm.xlu0 %529, %v467
      %v531 = vpop.permute.xlu0 %530
      %534 = vset.pattern.permute.xlu0 0
      %535 = vperm.xlu0 %534, %v468
      %v536 = vpop.permute.xlu0 %535
      %539 = vset.pattern.permute.xlu0 0
      %540 = vperm.xlu0 %539, %v469
      %v541 = vpop.permute.xlu0 %540
      %544 = vset.pattern.permute.xlu0 0
      %545 = vperm.xlu0 %544, %v470
      %v546 = vpop.permute.xlu0 %545
      %549 = vset.pattern.permute.xlu0 0
      %550 = vperm.xlu0 %549, %v471
      %v551 = vpop.permute.xlu0 %550
      %554 = vset.pattern.permute.xlu0 0
      %555 = vperm.xlu0 %554, %v472
      %v556 = vpop.permute.xlu0 %555
      %559 = vset.pattern.permute.xlu0 0
      %560 = vperm.xlu0 %559, %v473
      %v561 = vpop.permute.xlu0 %560
      %564 = vset.pattern.permute.xlu0 0
      %565 = vperm.xlu0 %564, %v474
      %v566 = vpop.permute.xlu0 %565
      %569 = vset.pattern.permute.xlu0 0
      %570 = vperm.xlu0 %569, %v475
      %v571 = vpop.permute.xlu0 %570
      %574 = vset.pattern.permute.xlu0 0
      %575 = vperm.xlu0 %574, %v476
      %v576 = vpop.permute.xlu0 %575
      %579 = vset.pattern.permute.xlu0 0
      %580 = vperm.xlu0 %579, %v477
      %v581 = vpop.permute.xlu0 %580
      %584 = vset.pattern.permute.xlu0 0
      %585 = vperm.xlu0 %584, %v478
      %v586 = vpop.permute.xlu0 %585
      %589 = vset.pattern.permute.xlu0 0
      %590 = vperm.xlu0 %589, %v479
      %v591 = vpop.permute.xlu0 %590
      %594 = vset.pattern.permute.xlu0 0
      %595 = vperm.xlu0 %594, %v480
      %v596 = vpop.permute.xlu0 %595
      %599 = vset.pattern.permute.xlu0 0
      %600 = vperm.xlu0 %599, %v481
      %v601 = vpop.permute.xlu0 %600
      %604 = vset.pattern.permute.xlu0 0
      %605 = vperm.xlu0 %604, %v482
      %v606 = vpop.permute.xlu0 %605
      %609 = vset.pattern.permute.xlu0 0
      %610 = vperm.xlu0 %609, %v483
      %v611 = vpop.permute.xlu0 %610
      %614 = vset.pattern.permute.xlu0 0
      %615 = vperm.xlu0 %614, %v484
      %v616 = vpop.permute.xlu0 %615
      %619 = vset.pattern.permute.xlu0 0
      %620 = vperm.xlu0 %619, %v485
      %v621 = vpop.permute.xlu0 %620
      %624 = vset.pattern.permute.xlu0 0
      %625 = vperm.xlu0 %624, %v486
      %v626 = vpop.permute.xlu0 %625
      %629 = vset.pattern.permute.xlu0 0
      %630 = vperm.xlu0 %629, %v487
      %v631 = vpop.permute.xlu0 %630
      %634 = vset.pattern.permute.xlu0 0
      %635 = vperm.xlu0 %634, %v488
      %v636 = vpop.permute.xlu0 %635
      %639 = vset.pattern.permute.xlu0 0
      %640 = vperm.xlu0 %639, %v489
      %v641 = vpop.permute.xlu0 %640
      %644 = vset.pattern.permute.xlu0 0
      %645 = vperm.xlu0 %644, %v490
      %v646 = vpop.permute.xlu0 %645
      %649 = vset.pattern.permute.xlu0 0
      %650 = vperm.xlu0 %649, %v491
      %v651 = vpop.permute.xlu0 %650
      %v653 = vlaneseq
      %v654 = vshrl.u32 %v653, 7
      %v655 = vsub.s32 0, %v654
      %v656 = vrot.slane %v492, %v655
      %v657 = vmul.f32 %v496, %v656
      %v658 = vmul.f32 %v501, %v656
      %v659 = vmul.f32 %v506, %v656
      %v660 = vmul.f32 %v511, %v656
      %v661 = vmul.f32 %v516, %v656
      %v662 = vmul.f32 %v521, %v656
      %v663 = vmul.f32 %v526, %v656
      %v664 = vmul.f32 %v531, %v656
      %v665 = vmul.f32 %v536, %v656
      %v666 = vmul.f32 %v541, %v656
      %v667 = vmul.f32 %v546, %v656
      %v668 = vmul.f32 %v551, %v656
      %v669 = vmul.f32 %v556, %v656
      %v670 = vmul.f32 %v561, %v656
      %v671 = vmul.f32 %v566, %v656
      %v672 = vmul.f32 %v571, %v656
      %v673 = vmul.f32 %v576, %v656
      %v674 = vmul.f32 %v581, %v656
      %v675 = vmul.f32 %v586, %v656
      %v676 = vmul.f32 %v591, %v656
      %v677 = vmul.f32 %v596, %v656
      %v678 = vmul.f32 %v601, %v656
      %v679 = vmul.f32 %v606, %v656
      %v680 = vmul.f32 %v611, %v656
      %v681 = vmul.f32 %v616, %v656
      %v682 = vmul.f32 %v621, %v656
      %v683 = vmul.f32 %v626, %v656
      %v684 = vmul.f32 %v631, %v656
      %v685 = vmul.f32 %v636, %v656
      %v686 = vmul.f32 %v641, %v656
      %v687 = vmul.f32 %v646, %v656
      %v688 = vmul.f32 %v651, %v656
      %v689 = vadd.f32 %v657, 0.0
      %v690 = vadd.f32 %v658, 0.0
      %v691 = vadd.f32 %v659, 0.0
      %v692 = vadd.f32 %v660, 0.0
      %v693 = vadd.f32 %v661, 0.0
      %v694 = vadd.f32 %v662, 0.0
      %v695 = vadd.f32 %v663, 0.0
      %v696 = vadd.f32 %v664, 0.0
      %v697 = vadd.f32 %v665, 0.0
      %v698 = vadd.f32 %v666, 0.0
      %v699 = vadd.f32 %v667, 0.0
      %v700 = vadd.f32 %v668, 0.0
      %v701 = vadd.f32 %v669, 0.0
      %v702 = vadd.f32 %v670, 0.0
      %v703 = vadd.f32 %v671, 0.0
      %v704 = vadd.f32 %v672, 0.0
      %v705 = vadd.f32 %v673, 0.0
      %v706 = vadd.f32 %v674, 0.0
      %v707 = vadd.f32 %v675, 0.0
      %v708 = vadd.f32 %v676, 0.0
      %v709 = vadd.f32 %v677, 0.0
      %v710 = vadd.f32 %v678, 0.0
      %v711 = vadd.f32 %v679, 0.0
      %v712 = vadd.f32 %v680, 0.0
      %v713 = vadd.f32 %v681, 0.0
      %v714 = vadd.f32 %v682, 0.0
      %v715 = vadd.f32 %v683, 0.0
      %v716 = vadd.f32 %v684, 0.0
      %v717 = vadd.f32 %v685, 0.0
      %v718 = vadd.f32 %v686, 0.0
      %v719 = vadd.f32 %v687, 0.0
      %v720 = vadd.f32 %v688, 0.0
      %v721 = vld [vmem:[#allocation2 + $0x1] sm:$0xff]
      %v722 = vld [vmem:[#allocation2 + $0x9] sm:$0xff]
      %v723 = vld [vmem:[#allocation2 + $0x19] sm:$0xff]
      %v724 = vld [vmem:[#allocation2 + $0x21] sm:$0xff]
      %v725 = vld [vmem:[#allocation2 + $0x31] sm:$0xff]
      %v726 = vld [vmem:[#allocation2 + $0x39] sm:$0xff]
      %v727 = vld [vmem:[#allocation2 + $0x49] sm:$0xff]
      %v728 = vld [vmem:[#allocation2 + $0x51] sm:$0xff]
      %v729 = vld [vmem:[#allocation2 + $0x61] sm:$0xff]
      %v730 = vld [vmem:[#allocation2 + $0x69] sm:$0xff]
      %v731 = vld [vmem:[#allocation2 + $0x79] sm:$0xff]
      %v732 = vld [vmem:[#allocation2 + $0x81] sm:$0xff]
      %v733 = vld [vmem:[#allocation2 + $0x91] sm:$0xff]
      %v734 = vld [vmem:[#allocation2 + $0x99] sm:$0xff]
      %v735 = vld [vmem:[#allocation2 + $0xa9] sm:$0xff]
      %v736 = vld [vmem:[#allocation2 + $0xb1] sm:$0xff]
      %v737 = vld [vmem:[#allocation2 + $0xc1] sm:$0xff]
      %v738 = vld [vmem:[#allocation2 + $0xc9] sm:$0xff]
      %v739 = vld [vmem:[#allocation2 + $0xd9] sm:$0xff]
      %v740 = vld [vmem:[#allocation2 + $0xe1] sm:$0xff]
      %v741 = vld [vmem:[#allocation2 + $0xf1] sm:$0xff]
      %v742 = vld [vmem:[#allocation2 + $0xf9] sm:$0xff]
      %v743 = vld [vmem:[#allocation2 + $0x109] sm:$0xff]
      %v744 = vld [vmem:[#allocation2 + $0x111] sm:$0xff]
      %v745 = vld [vmem:[#allocation2 + $0x121] sm:$0xff]
      %v746 = vld [vmem:[#allocation2 + $0x129] sm:$0xff]
      %v747 = vld [vmem:[#allocation2 + $0x139] sm:$0xff]
      %v748 = vld [vmem:[#allocation2 + $0x141] sm:$0xff]
      %v749 = vld [vmem:[#allocation2 + $0x151] sm:$0xff]
      %v750 = vld [vmem:[#allocation2 + $0x159] sm:$0xff]
      %v751 = vld [vmem:[#allocation2 + $0x169] sm:$0xff]
      %v752 = vld [vmem:[#allocation2 + $0x171] sm:$0xff]
      %v753 = vld [vmem:[%s1 + $0x1] sm:$0x1]
      %755 = vset.pattern.permute.xlu0 0
      %756 = vperm.xlu0 %755, %v721
      %v757 = vpop.permute.xlu0 %756
      %760 = vset.pattern.permute.xlu0 0
      %761 = vperm.xlu0 %760, %v722
      %v762 = vpop.permute.xlu0 %761
      %765 = vset.pattern.permute.xlu0 0
      %766 = vperm.xlu0 %765, %v723
      %v767 = vpop.permute.xlu0 %766
      %770 = vset.pattern.permute.xlu0 0
      %771 = vperm.xlu0 %770, %v724
      %v772 = vpop.permute.xlu0 %771
      %775 = vset.pattern.permute.xlu0 0
      %776 = vperm.xlu0 %775, %v725
      %v777 = vpop.permute.xlu0 %776
      %780 = vset.pattern.permute.xlu0 0
      %781 = vperm.xlu0 %780, %v726
      %v782 = vpop.permute.xlu0 %781
      %785 = vset.pattern.permute.xlu0 0
      %786 = vperm.xlu0 %785, %v727
      %v787 = vpop.permute.xlu0 %786
      %790 = vset.pattern.permute.xlu0 0
      %791 = vperm.xlu0 %790, %v728
      %v792 = vpop.permute.xlu0 %791
      %795 = vset.pattern.permute.xlu0 0
      %796 = vperm.xlu0 %795, %v729
      %v797 = vpop.permute.xlu0 %796
      %800 = vset.pattern.permute.xlu0 0
      %801 = vperm.xlu0 %800, %v730
      %v802 = vpop.permute.xlu0 %801
      %805 = vset.pattern.permute.xlu0 0
      %806 = vperm.xlu0 %805, %v731
      %v807 = vpop.permute.xlu0 %806
      %810 = vset.pattern.permute.xlu0 0
      %811 = vperm.xlu0 %810, %v732
      %v812 = vpop.permute.xlu0 %811
      %815 = vset.pattern.permute.xlu0 0
      %816 = vperm.xlu0 %815, %v733
      %v817 = vpop.permute.xlu0 %816
      %820 = vset.pattern.permute.xlu0 0
      %821 = vperm.xlu0 %820, %v734
      %v822 = vpop.permute.xlu0 %821
      %825 = vset.pattern.permute.xlu0 0
      %826 = vperm.xlu0 %825, %v735
      %v827 = vpop.permute.xlu0 %826
      %830 = vset.pattern.permute.xlu0 0
      %831 = vperm.xlu0 %830, %v736
      %v832 = vpop.permute.xlu0 %831
      %835 = vset.pattern.permute.xlu0 0
      %836 = vperm.xlu0 %835, %v737
      %v837 = vpop.permute.xlu0 %836
      %840 = vset.pattern.permute.xlu0 0
      %841 = vperm.xlu0 %840, %v738
      %v842 = vpop.permute.xlu0 %841
      %845 = vset.pattern.permute.xlu0 0
      %846 = vperm.xlu0 %845, %v739
      %v847 = vpop.permute.xlu0 %846
      %850 = vset.pattern.permute.xlu0 0
      %851 = vperm.xlu0 %850, %v740
      %v852 = vpop.permute.xlu0 %851
      %855 = vset.pattern.permute.xlu0 0
      %856 = vperm.xlu0 %855, %v741
      %v857 = vpop.permute.xlu0 %856
      %860 = vset.pattern.permute.xlu0 0
      %861 = vperm.xlu0 %860, %v742
      %v862 = vpop.permute.xlu0 %861
      %865 = vset.pattern.permute.xlu0 0
      %866 = vperm.xlu0 %865, %v743
      %v867 = vpop.permute.xlu0 %866
      %870 = vset.pattern.permute.xlu0 0
      %871 = vperm.xlu0 %870, %v744
      %v872 = vpop.permute.xlu0 %871
      %875 = vset.pattern.permute.xlu0 0
      %876 = vperm.xlu0 %875, %v745
      %v877 = vpop.permute.xlu0 %876
      %880 = vset.pattern.permute.xlu0 0
      %881 = vperm.xlu0 %880, %v746
      %v882 = vpop.permute.xlu0 %881
      %885 = vset.pattern.permute.xlu0 0
      %886 = vperm.xlu0 %885, %v747
      %v887 = vpop.permute.xlu0 %886
      %890 = vset.pattern.permute.xlu0 0
      %891 = vperm.xlu0 %890, %v748
      %v892 = vpop.permute.xlu0 %891
      %895 = vset.pattern.permute.xlu0 0
      %896 = vperm.xlu0 %895, %v749
      %v897 = vpop.permute.xlu0 %896
      %900 = vset.pattern.permute.xlu0 0
      %901 = vperm.xlu0 %900, %v750
      %v902 = vpop.permute.xlu0 %901
      %905 = vset.pattern.permute.xlu0 0
      %906 = vperm.xlu0 %905, %v751
      %v907 = vpop.permute.xlu0 %906
      %910 = vset.pattern.permute.xlu0 0
      %911 = vperm.xlu0 %910, %v752
      %v912 = vpop.permute.xlu0 %911
      %v914 = vlaneseq
      %v915 = vshrl.u32 %v914, 7
      %v916 = vsub.s32 0, %v915
      %v917 = vrot.slane %v753, %v916
      %v918 = vmul.f32 %v757, %v917
      %v919 = vmul.f32 %v762, %v917
      %v920 = vmul.f32 %v767, %v917
      %v921 = vmul.f32 %v772, %v917
      %v922 = vmul.f32 %v777, %v917
      %v923 = vmul.f32 %v782, %v917
      %v924 = vmul.f32 %v787, %v917
      %v925 = vmul.f32 %v792, %v917
      %v926 = vmul.f32 %v797, %v917
      %v927 = vmul.f32 %v802, %v917
      %v928 = vmul.f32 %v807, %v917
      %v929 = vmul.f32 %v812, %v917
      %v930 = vmul.f32 %v817, %v917
      %v931 = vmul.f32 %v822, %v917
      %v932 = vmul.f32 %v827, %v917
      %v933 = vmul.f32 %v832, %v917
      %v934 = vmul.f32 %v837, %v917
      %v935 = vmul.f32 %v842, %v917
      %v936 = vmul.f32 %v847, %v917
      %v937 = vmul.f32 %v852, %v917
      %v938 = vmul.f32 %v857, %v917
      %v939 = vmul.f32 %v862, %v917
      %v940 = vmul.f32 %v867, %v917
      %v941 = vmul.f32 %v872, %v917
      %v942 = vmul.f32 %v877, %v917
      %v943 = vmul.f32 %v882, %v917
      %v944 = vmul.f32 %v887, %v917
      %v945 = vmul.f32 %v892, %v917
      %v946 = vmul.f32 %v897, %v917
      %v947 = vmul.f32 %v902, %v917
      %v948 = vmul.f32 %v907, %v917
      %v949 = vmul.f32 %v912, %v917
      %v950 = vadd.f32 %v689, %v918
      %v951 = vadd.f32 %v690, %v919
      %v952 = vadd.f32 %v691, %v920
      %v953 = vadd.f32 %v692, %v921
      %v954 = vadd.f32 %v693, %v922
      %v955 = vadd.f32 %v694, %v923
      %v956 = vadd.f32 %v695, %v924
      %v957 = vadd.f32 %v696, %v925
      %v958 = vadd.f32 %v697, %v926
      %v959 = vadd.f32 %v698, %v927
      %v960 = vadd.f32 %v699, %v928
      %v961 = vadd.f32 %v700, %v929
      %v962 = vadd.f32 %v701, %v930
      %v963 = vadd.f32 %v702, %v931
      %v964 = vadd.f32 %v703, %v932
      %v965 = vadd.f32 %v704, %v933
      %v966 = vadd.f32 %v705, %v934
      %v967 = vadd.f32 %v706, %v935
      %v968 = vadd.f32 %v707, %v936
      %v969 = vadd.f32 %v708, %v937
      %v970 = vadd.f32 %v709, %v938
      %v971 = vadd.f32 %v710, %v939
      %v972 = vadd.f32 %v711, %v940
      %v973 = vadd.f32 %v712, %v941
      %v974 = vadd.f32 %v713, %v942
      %v975 = vadd.f32 %v714, %v943
      %v976 = vadd.f32 %v715, %v944
      %v977 = vadd.f32 %v716, %v945
      %v978 = vadd.f32 %v717, %v946
      %v979 = vadd.f32 %v718, %v947
      %v980 = vadd.f32 %v719, %v948
      %v981 = vadd.f32 %v720, %v949
      %v982 = vld [vmem:[#allocation2 + $0x2] sm:$0xff]
      %v983 = vld [vmem:[#allocation2 + $0xa] sm:$0xff]
      %v984 = vld [vmem:[#allocation2 + $0x1a] sm:$0xff]
      %v985 = vld [vmem:[#allocation2 + $0x22] sm:$0xff]
      %v986 = vld [vmem:[#allocation2 + $0x32] sm:$0xff]
      %v987 = vld [vmem:[#allocation2 + $0x3a] sm:$0xff]
      %v988 = vld [vmem:[#allocation2 + $0x4a] sm:$0xff]
      %v989 = vld [vmem:[#allocation2 + $0x52] sm:$0xff]
      %v990 = vld [vmem:[#allocation2 + $0x62] sm:$0xff]
      %v991 = vld [vmem:[#allocation2 + $0x6a] sm:$0xff]
      %v992 = vld [vmem:[#allocation2 + $0x7a] sm:$0xff]
      %v993 = vld [vmem:[#allocation2 + $0x82] sm:$0xff]
      %v994 = vld [vmem:[#allocation2 + $0x92] sm:$0xff]
      %v995 = vld [vmem:[#allocation2 + $0x9a] sm:$0xff]
      %v996 = vld [vmem:[#allocation2 + $0xaa] sm:$0xff]
      %v997 = vld [vmem:[#allocation2 + $0xb2] sm:$0xff]
      %v998 = vld [vmem:[#allocation2 + $0xc2] sm:$0xff]
      %v999 = vld [vmem:[#allocation2 + $0xca] sm:$0xff]
      %v1000 = vld [vmem:[#allocation2 + $0xda] sm:$0xff]
      %v1001 = vld [vmem:[#allocation2 + $0xe2] sm:$0xff]
      %v1002 = vld [vmem:[#allocation2 + $0xf2] sm:$0xff]
      %v1003 = vld [vmem:[#allocation2 + $0xfa] sm:$0xff]
      %v1004 = vld [vmem:[#allocation2 + $0x10a] sm:$0xff]
      %v1005 = vld [vmem:[#allocation2 + $0x112] sm:$0xff]
      %v1006 = vld [vmem:[#allocation2 + $0x122] sm:$0xff]
      %v1007 = vld [vmem:[#allocation2 + $0x12a] sm:$0xff]
      %v1008 = vld [vmem:[#allocation2 + $0x13a] sm:$0xff]
      %v1009 = vld [vmem:[#allocation2 + $0x142] sm:$0xff]
      %v1010 = vld [vmem:[#allocation2 + $0x152] sm:$0xff]
      %v1011 = vld [vmem:[#allocation2 + $0x15a] sm:$0xff]
      %v1012 = vld [vmem:[#allocation2 + $0x16a] sm:$0xff]
      %v1013 = vld [vmem:[#allocation2 + $0x172] sm:$0xff]
      %v1014 = vld [vmem:[%s1 + $0x2] sm:$0x1]
      %1016 = vset.pattern.permute.xlu0 0
      %1017 = vperm.xlu0 %1016, %v982
      %v1018 = vpop.permute.xlu0 %1017
      %1021 = vset.pattern.permute.xlu0 0
      %1022 = vperm.xlu0 %1021, %v983
      %v1023 = vpop.permute.xlu0 %1022
      %1026 = vset.pattern.permute.xlu0 0
      %1027 = vperm.xlu0 %1026, %v984
      %v1028 = vpop.permute.xlu0 %1027
      %1031 = vset.pattern.permute.xlu0 0
      %1032 = vperm.xlu0 %1031, %v985
      %v1033 = vpop.permute.xlu0 %1032
      %1036 = vset.pattern.permute.xlu0 0
      %1037 = vperm.xlu0 %1036, %v986
      %v1038 = vpop.permute.xlu0 %1037
      %1041 = vset.pattern.permute.xlu0 0
      %1042 = vperm.xlu0 %1041, %v987
      %v1043 = vpop.permute.xlu0 %1042
      %1046 = vset.pattern.permute.xlu0 0
      %1047 = vperm.xlu0 %1046, %v988
      %v1048 = vpop.permute.xlu0 %1047
      %1051 = vset.pattern.permute.xlu0 0
      %1052 = vperm.xlu0 %1051, %v989
      %v1053 = vpop.permute.xlu0 %1052
      %1056 = vset.pattern.permute.xlu0 0
      %1057 = vperm.xlu0 %1056, %v990
      %v1058 = vpop.permute.xlu0 %1057
      %1061 = vset.pattern.permute.xlu0 0
      %1062 = vperm.xlu0 %1061, %v991
      %v1063 = vpop.permute.xlu0 %1062
      %1066 = vset.pattern.permute.xlu0 0
      %1067 = vperm.xlu0 %1066, %v992
      %v1068 = vpop.permute.xlu0 %1067
      %1071 = vset.pattern.permute.xlu0 0
      %1072 = vperm.xlu0 %1071, %v993
      %v1073 = vpop.permute.xlu0 %1072
      %1076 = vset.pattern.permute.xlu0 0
      %1077 = vperm.xlu0 %1076, %v994
      %v1078 = vpop.permute.xlu0 %1077
      %1081 = vset.pattern.permute.xlu0 0
      %1082 = vperm.xlu0 %1081, %v995
      %v1083 = vpop.permute.xlu0 %1082
      %1086 = vset.pattern.permute.xlu0 0
      %1087 = vperm.xlu0 %1086, %v996
      %v1088 = vpop.permute.xlu0 %1087
      %1091 = vset.pattern.permute.xlu0 0
      %1092 = vperm.xlu0 %1091, %v997
      %v1093 = vpop.permute.xlu0 %1092
      %1096 = vset.pattern.permute.xlu0 0
      %1097 = vperm.xlu0 %1096, %v998
      %v1098 = vpop.permute.xlu0 %1097
      %1101 = vset.pattern.permute.xlu0 0
      %1102 = vperm.xlu0 %1101, %v999
      %v1103 = vpop.permute.xlu0 %1102
      %1106 = vset.pattern.permute.xlu0 0
      %1107 = vperm.xlu0 %1106, %v1000
      %v1108 = vpop.permute.xlu0 %1107
      %1111 = vset.pattern.permute.xlu0 0
      %1112 = vperm.xlu0 %1111, %v1001
      %v1113 = vpop.permute.xlu0 %1112
      %1116 = vset.pattern.permute.xlu0 0
      %1117 = vperm.xlu0 %1116, %v1002
      %v1118 = vpop.permute.xlu0 %1117
      %1121 = vset.pattern.permute.xlu0 0
      %1122 = vperm.xlu0 %1121, %v1003
      %v1123 = vpop.permute.xlu0 %1122
      %1126 = vset.pattern.permute.xlu0 0
      %1127 = vperm.xlu0 %1126, %v1004
      %v1128 = vpop.permute.xlu0 %1127
      %1131 = vset.pattern.permute.xlu0 0
      %1132 = vperm.xlu0 %1131, %v1005
      %v1133 = vpop.permute.xlu0 %1132
      %1136 = vset.pattern.permute.xlu0 0
      %1137 = vperm.xlu0 %1136, %v1006
      %v1138 = vpop.permute.xlu0 %1137
      %1141 = vset.pattern.permute.xlu0 0
      %1142 = vperm.xlu0 %1141, %v1007
      %v1143 = vpop.permute.xlu0 %1142
      %1146 = vset.pattern.permute.xlu0 0
      %1147 = vperm.xlu0 %1146, %v1008
      %v1148 = vpop.permute.xlu0 %1147
      %1151 = vset.pattern.permute.xlu0 0
      %1152 = vperm.xlu0 %1151, %v1009
      %v1153 = vpop.permute.xlu0 %1152
      %1156 = vset.pattern.permute.xlu0 0
      %1157 = vperm.xlu0 %1156, %v1010
      %v1158 = vpop.permute.xlu0 %1157
      %1161 = vset.pattern.permute.xlu0 0
      %1162 = vperm.xlu0 %1161, %v1011
      %v1163 = vpop.permute.xlu0 %1162
      %1166 = vset.pattern.permute.xlu0 0
      %1167 = vperm.xlu0 %1166, %v1012
      %v1168 = vpop.permute.xlu0 %1167
      %1171 = vset.pattern.permute.xlu0 0
      %1172 = vperm.xlu0 %1171, %v1013
      %v1173 = vpop.permute.xlu0 %1172
      %v1175 = vlaneseq
      %v1176 = vshrl.u32 %v1175, 7
      %v1177 = vsub.s32 0, %v1176
      %v1178 = vrot.slane %v1014, %v1177
      %v1179 = vmul.f32 %v1018, %v1178
      %v1180 = vmul.f32 %v1023, %v1178
      %v1181 = vmul.f32 %v1028, %v1178
      %v1182 = vmul.f32 %v1033, %v1178
      %v1183 = vmul.f32 %v1038, %v1178
      %v1184 = vmul.f32 %v1043, %v1178
      %v1185 = vmul.f32 %v1048, %v1178
      %v1186 = vmul.f32 %v1053, %v1178
      %v1187 = vmul.f32 %v1058, %v1178
      %v1188 = vmul.f32 %v1063, %v1178
      %v1189 = vmul.f32 %v1068, %v1178
      %v1190 = vmul.f32 %v1073, %v1178
      %v1191 = vmul.f32 %v1078, %v1178
      %v1192 = vmul.f32 %v1083, %v1178
      %v1193 = vmul.f32 %v1088, %v1178
      %v1194 = vmul.f32 %v1093, %v1178
      %v1195 = vmul.f32 %v1098, %v1178
      %v1196 = vmul.f32 %v1103, %v1178
      %v1197 = vmul.f32 %v1108, %v1178
      %v1198 = vmul.f32 %v1113, %v1178
      %v1199 = vmul.f32 %v1118, %v1178
      %v1200 = vmul.f32 %v1123, %v1178
      %v1201 = vmul.f32 %v1128, %v1178
      %v1202 = vmul.f32 %v1133, %v1178
      %v1203 = vmul.f32 %v1138, %v1178
      %v1204 = vmul.f32 %v1143, %v1178
      %v1205 = vmul.f32 %v1148, %v1178
      %v1206 = vmul.f32 %v1153, %v1178
      %v1207 = vmul.f32 %v1158, %v1178
      %v1208 = vmul.f32 %v1163, %v1178
      %v1209 = vmul.f32 %v1168, %v1178
      %v1210 = vmul.f32 %v1173, %v1178
      %v1211 = vadd.f32 %v950, %v1179
      %v1212 = vadd.f32 %v951, %v1180
      %v1213 = vadd.f32 %v952, %v1181
      %v1214 = vadd.f32 %v953, %v1182
      %v1215 = vadd.f32 %v954, %v1183
      %v1216 = vadd.f32 %v955, %v1184
      %v1217 = vadd.f32 %v956, %v1185
      %v1218 = vadd.f32 %v957, %v1186
      %v1219 = vadd.f32 %v958, %v1187
      %v1220 = vadd.f32 %v959, %v1188
      %v1221 = vadd.f32 %v960, %v1189
      %v1222 = vadd.f32 %v961, %v1190
      %v1223 = vadd.f32 %v962, %v1191
      %v1224 = vadd.f32 %v963, %v1192
      %v1225 = vadd.f32 %v964, %v1193
      %v1226 = vadd.f32 %v965, %v1194
      %v1227 = vadd.f32 %v966, %v1195
      %v1228 = vadd.f32 %v967, %v1196
      %v1229 = vadd.f32 %v968, %v1197
      %v1230 = vadd.f32 %v969, %v1198
      %v1231 = vadd.f32 %v970, %v1199
      %v1232 = vadd.f32 %v971, %v1200
      %v1233 = vadd.f32 %v972, %v1201
      %v1234 = vadd.f32 %v973, %v1202
      %v1235 = vadd.f32 %v974, %v1203
      %v1236 = vadd.f32 %v975, %v1204
      %v1237 = vadd.f32 %v976, %v1205
      %v1238 = vadd.f32 %v977, %v1206
      %v1239 = vadd.f32 %v978, %v1207
      %v1240 = vadd.f32 %v979, %v1208
      %v1241 = vadd.f32 %v980, %v1209
      %v1242 = vadd.f32 %v981, %v1210
      %v1243 = vld [vmem:[%s427] sm:$0xff]
      %v1244 = vld [vmem:[%s427 + $0x8] sm:$0xff]
      %v1245 = vld [vmem:[%s427 + $0x18] sm:$0xff]
      %v1246 = vld [vmem:[%s427 + $0x20] sm:$0xff]
      %v1247 = vld [vmem:[%s427 + $0x30] sm:$0xff]
      %v1248 = vld [vmem:[%s427 + $0x38] sm:$0xff]
      %v1249 = vld [vmem:[%s427 + $0x48] sm:$0xff]
      %v1250 = vld [vmem:[%s427 + $0x50] sm:$0xff]
      %v1251 = vld [vmem:[%s427 + $0x60] sm:$0xff]
      %v1252 = vld [vmem:[%s427 + $0x68] sm:$0xff]
      %v1253 = vld [vmem:[%s427 + $0x78] sm:$0xff]
      %v1254 = vld [vmem:[%s427 + $0x80] sm:$0xff]
      %v1255 = vld [vmem:[%s427 + $0x90] sm:$0xff]
      %v1256 = vld [vmem:[%s427 + $0x98] sm:$0xff]
      %v1257 = vld [vmem:[%s427 + $0xa8] sm:$0xff]
      %v1258 = vld [vmem:[%s427 + $0xb0] sm:$0xff]
      %v1259 = vld [vmem:[%s427 + $0xc0] sm:$0xff]
      %v1260 = vld [vmem:[%s427 + $0xc8] sm:$0xff]
      %v1261 = vld [vmem:[%s427 + $0xd8] sm:$0xff]
      %v1262 = vld [vmem:[%s427 + $0xe0] sm:$0xff]
      %v1263 = vld [vmem:[%s427 + $0xf0] sm:$0xff]
      %v1264 = vld [vmem:[%s427 + $0xf8] sm:$0xff]
      %v1265 = vld [vmem:[%s427 + $0x108] sm:$0xff]
      %v1266 = vld [vmem:[%s427 + $0x110] sm:$0xff]
      %v1267 = vld [vmem:[%s427 + $0x120] sm:$0xff]
      %v1268 = vld [vmem:[%s427 + $0x128] sm:$0xff]
      %v1269 = vld [vmem:[%s427 + $0x138] sm:$0xff]
      %v1270 = vld [vmem:[%s427 + $0x140] sm:$0xff]
      %v1271 = vld [vmem:[%s427 + $0x150] sm:$0xff]
      %v1272 = vld [vmem:[%s427 + $0x158] sm:$0xff]
      %v1273 = vld [vmem:[%s427 + $0x168] sm:$0xff]
      %v1274 = vld [vmem:[%s427 + $0x170] sm:$0xff]
      %v1275 = vld [vmem:[%s1 + $0x3] sm:$0x1]
      %1277 = vset.pattern.permute.xlu0 0
      %1278 = vperm.xlu0 %1277, %v1243
      %v1279 = vpop.permute.xlu0 %1278
      %1282 = vset.pattern.permute.xlu0 0
      %1283 = vperm.xlu0 %1282, %v1244
      %v1284 = vpop.permute.xlu0 %1283
      %1287 = vset.pattern.permute.xlu0 0
      %1288 = vperm.xlu0 %1287, %v1245
      %v1289 = vpop.permute.xlu0 %1288
      %1292 = vset.pattern.permute.xlu0 0
      %1293 = vperm.xlu0 %1292, %v1246
      %v1294 = vpop.permute.xlu0 %1293
      %1297 = vset.pattern.permute.xlu0 0
      %1298 = vperm.xlu0 %1297, %v1247
      %v1299 = vpop.permute.xlu0 %1298
      %1302 = vset.pattern.permute.xlu0 0
      %1303 = vperm.xlu0 %1302, %v1248
      %v1304 = vpop.permute.xlu0 %1303
      %1307 = vset.pattern.permute.xlu0 0
      %1308 = vperm.xlu0 %1307, %v1249
      %v1309 = vpop.permute.xlu0 %1308
      %1312 = vset.pattern.permute.xlu0 0
      %1313 = vperm.xlu0 %1312, %v1250
      %v1314 = vpop.permute.xlu0 %1313
      %1317 = vset.pattern.permute.xlu0 0
      %1318 = vperm.xlu0 %1317, %v1251
      %v1319 = vpop.permute.xlu0 %1318
      %1322 = vset.pattern.permute.xlu0 0
      %1323 = vperm.xlu0 %1322, %v1252
      %v1324 = vpop.permute.xlu0 %1323
      %1327 = vset.pattern.permute.xlu0 0
      %1328 = vperm.xlu0 %1327, %v1253
      %v1329 = vpop.permute.xlu0 %1328
      %1332 = vset.pattern.permute.xlu0 0
      %1333 = vperm.xlu0 %1332, %v1254
      %v1334 = vpop.permute.xlu0 %1333
      %1337 = vset.pattern.permute.xlu0 0
      %1338 = vperm.xlu0 %1337, %v1255
      %v1339 = vpop.permute.xlu0 %1338
      %1342 = vset.pattern.permute.xlu0 0
      %1343 = vperm.xlu0 %1342, %v1256
      %v1344 = vpop.permute.xlu0 %1343
      %1347 = vset.pattern.permute.xlu0 0
      %1348 = vperm.xlu0 %1347, %v1257
      %v1349 = vpop.permute.xlu0 %1348
      %1352 = vset.pattern.permute.xlu0 0
      %1353 = vperm.xlu0 %1352, %v1258
      %v1354 = vpop.permute.xlu0 %1353
      %1357 = vset.pattern.permute.xlu0 0
      %1358 = vperm.xlu0 %1357, %v1259
      %v1359 = vpop.permute.xlu0 %1358
      %1362 = vset.pattern.permute.xlu0 0
      %1363 = vperm.xlu0 %1362, %v1260
      %v1364 = vpop.permute.xlu0 %1363
      %1367 = vset.pattern.permute.xlu0 0
      %1368 = vperm.xlu0 %1367, %v1261
      %v1369 = vpop.permute.xlu0 %1368
      %1372 = vset.pattern.permute.xlu0 0
      %1373 = vperm.xlu0 %1372, %v1262
      %v1374 = vpop.permute.xlu0 %1373
      %1377 = vset.pattern.permute.xlu0 0
      %1378 = vperm.xlu0 %1377, %v1263
      %v1379 = vpop.permute.xlu0 %1378
      %1382 = vset.pattern.permute.xlu0 0
      %1383 = vperm.xlu0 %1382, %v1264
      %v1384 = vpop.permute.xlu0 %1383
      %1387 = vset.pattern.permute.xlu0 0
      %1388 = vperm.xlu0 %1387, %v1265
      %v1389 = vpop.permute.xlu0 %1388
      %1392 = vset.pattern.permute.xlu0 0
      %1393 = vperm.xlu0 %1392, %v1266
      %v1394 = vpop.permute.xlu0 %1393
      %1397 = vset.pattern.permute.xlu0 0
      %1398 = vperm.xlu0 %1397, %v1267
      %v1399 = vpop.permute.xlu0 %1398
      %1402 = vset.pattern.permute.xlu0 0
      %1403 = vperm.xlu0 %1402, %v1268
      %v1404 = vpop.permute.xlu0 %1403
      %1407 = vset.pattern.permute.xlu0 0
      %1408 = vperm.xlu0 %1407, %v1269
      %v1409 = vpop.permute.xlu0 %1408
      %1412 = vset.pattern.permute.xlu0 0
      %1413 = vperm.xlu0 %1412, %v1270
      %v1414 = vpop.permute.xlu0 %1413
      %1417 = vset.pattern.permute.xlu0 0
      %1418 = vperm.xlu0 %1417, %v1271
      %v1419 = vpop.permute.xlu0 %1418
      %1422 = vset.pattern.permute.xlu0 0
      %1423 = vperm.xlu0 %1422, %v1272
      %v1424 = vpop.permute.xlu0 %1423
      %1427 = vset.pattern.permute.xlu0 0
      %1428 = vperm.xlu0 %1427, %v1273
      %v1429 = vpop.permute.xlu0 %1428
      %1432 = vset.pattern.permute.xlu0 0
      %1433 = vperm.xlu0 %1432, %v1274
      %v1434 = vpop.permute.xlu0 %1433
      %v1436 = vlaneseq
      %v1437 = vshrl.u32 %v1436, 7
      %v1438 = vsub.s32 0, %v1437
      %v1439 = vrot.slane %v1275, %v1438
      %v1440 = vmul.f32 %v1279, %v1439
      %v1441 = vmul.f32 %v1284, %v1439
      %v1442 = vmul.f32 %v1289, %v1439
      %v1443 = vmul.f32 %v1294, %v1439
      %v1444 = vmul.f32 %v1299, %v1439
      %v1445 = vmul.f32 %v1304, %v1439
      %v1446 = vmul.f32 %v1309, %v1439
      %v1447 = vmul.f32 %v1314, %v1439
      %v1448 = vmul.f32 %v1319, %v1439
      %v1449 = vmul.f32 %v1324, %v1439
      %v1450 = vmul.f32 %v1329, %v1439
      %v1451 = vmul.f32 %v1334, %v1439
      %v1452 = vmul.f32 %v1339, %v1439
      %v1453 = vmul.f32 %v1344, %v1439
      %v1454 = vmul.f32 %v1349, %v1439
      %v1455 = vmul.f32 %v1354, %v1439
      %v1456 = vmul.f32 %v1359, %v1439
      %v1457 = vmul.f32 %v1364, %v1439
      %v1458 = vmul.f32 %v1369, %v1439
      %v1459 = vmul.f32 %v1374, %v1439
      %v1460 = vmul.f32 %v1379, %v1439
      %v1461 = vmul.f32 %v1384, %v1439
      %v1462 = vmul.f32 %v1389, %v1439
      %v1463 = vmul.f32 %v1394, %v1439
      %v1464 = vmul.f32 %v1399, %v1439
      %v1465 = vmul.f32 %v1404, %v1439
      %v1466 = vmul.f32 %v1409, %v1439
      %v1467 = vmul.f32 %v1414, %v1439
      %v1468 = vmul.f32 %v1419, %v1439
      %v1469 = vmul.f32 %v1424, %v1439
      %v1470 = vmul.f32 %v1429, %v1439
      %v1471 = vmul.f32 %v1434, %v1439
      %v1472 = vadd.f32 %v1211, %v1440
      %v1473 = vadd.f32 %v1212, %v1441
      %v1474 = vadd.f32 %v1213, %v1442
      %v1475 = vadd.f32 %v1214, %v1443
      %v1476 = vadd.f32 %v1215, %v1444
      %v1477 = vadd.f32 %v1216, %v1445
      %v1478 = vadd.f32 %v1217, %v1446
      %v1479 = vadd.f32 %v1218, %v1447
      %v1480 = vadd.f32 %v1219, %v1448
      %v1481 = vadd.f32 %v1220, %v1449
      %v1482 = vadd.f32 %v1221, %v1450
      %v1483 = vadd.f32 %v1222, %v1451
      %v1484 = vadd.f32 %v1223, %v1452
      %v1485 = vadd.f32 %v1224, %v1453
      %v1486 = vadd.f32 %v1225, %v1454
      %v1487 = vadd.f32 %v1226, %v1455
      %v1488 = vadd.f32 %v1227, %v1456
      %v1489 = vadd.f32 %v1228, %v1457
      %v1490 = vadd.f32 %v1229, %v1458
      %v1491 = vadd.f32 %v1230, %v1459
      %v1492 = vadd.f32 %v1231, %v1460
      %v1493 = vadd.f32 %v1232, %v1461
      %v1494 = vadd.f32 %v1233, %v1462
      %v1495 = vadd.f32 %v1234, %v1463
      %v1496 = vadd.f32 %v1235, %v1464
      %v1497 = vadd.f32 %v1236, %v1465
      %v1498 = vadd.f32 %v1237, %v1466
      %v1499 = vadd.f32 %v1238, %v1467
      %v1500 = vadd.f32 %v1239, %v1468
      %v1501 = vadd.f32 %v1240, %v1469
      %v1502 = vadd.f32 %v1241, %v1470
      %v1503 = vadd.f32 %v1242, %v1471
      %v1504 = vld [vmem:[%s427 + $0x1] sm:$0xff]
      %v1505 = vld [vmem:[%s427 + $0x9] sm:$0xff]
      %v1506 = vld [vmem:[%s427 + $0x19] sm:$0xff]
      %v1507 = vld [vmem:[%s427 + $0x21] sm:$0xff]
      %v1508 = vld [vmem:[%s427 + $0x31] sm:$0xff]
      %v1509 = vld [vmem:[%s427 + $0x39] sm:$0xff]
      %v1510 = vld [vmem:[%s427 + $0x49] sm:$0xff]
      %v1511 = vld [vmem:[%s427 + $0x51] sm:$0xff]
      %v1512 = vld [vmem:[%s427 + $0x61] sm:$0xff]
      %v1513 = vld [vmem:[%s427 + $0x69] sm:$0xff]
      %v1514 = vld [vmem:[%s427 + $0x79] sm:$0xff]
      %v1515 = vld [vmem:[%s427 + $0x81] sm:$0xff]
      %v1516 = vld [vmem:[%s427 + $0x91] sm:$0xff]
      %v1517 = vld [vmem:[%s427 + $0x99] sm:$0xff]
      %v1518 = vld [vmem:[%s427 + $0xa9] sm:$0xff]
      %v1519 = vld [vmem:[%s427 + $0xb1] sm:$0xff]
      %v1520 = vld [vmem:[%s427 + $0xc1] sm:$0xff]
      %v1521 = vld [vmem:[%s427 + $0xc9] sm:$0xff]
      %v1522 = vld [vmem:[%s427 + $0xd9] sm:$0xff]
      %v1523 = vld [vmem:[%s427 + $0xe1] sm:$0xff]
      %v1524 = vld [vmem:[%s427 + $0xf1] sm:$0xff]
      %v1525 = vld [vmem:[%s427 + $0xf9] sm:$0xff]
      %v1526 = vld [vmem:[%s427 + $0x109] sm:$0xff]
      %v1527 = vld [vmem:[%s427 + $0x111] sm:$0xff]
      %v1528 = vld [vmem:[%s427 + $0x121] sm:$0xff]
      %v1529 = vld [vmem:[%s427 + $0x129] sm:$0xff]
      %v1530 = vld [vmem:[%s427 + $0x139] sm:$0xff]
      %v1531 = vld [vmem:[%s427 + $0x141] sm:$0xff]
      %v1532 = vld [vmem:[%s427 + $0x151] sm:$0xff]
      %v1533 = vld [vmem:[%s427 + $0x159] sm:$0xff]
      %v1534 = vld [vmem:[%s427 + $0x169] sm:$0xff]
      %v1535 = vld [vmem:[%s427 + $0x171] sm:$0xff]
      %v1536 = vld [vmem:[%s1 + $0x4] sm:$0x1]
      %1538 = vset.pattern.permute.xlu0 0
      %1539 = vperm.xlu0 %1538, %v1504
      %v1540 = vpop.permute.xlu0 %1539
      %1543 = vset.pattern.permute.xlu0 0
      %1544 = vperm.xlu0 %1543, %v1505
      %v1545 = vpop.permute.xlu0 %1544
      %1548 = vset.pattern.permute.xlu0 0
      %1549 = vperm.xlu0 %1548, %v1506
      %v1550 = vpop.permute.xlu0 %1549
      %1553 = vset.pattern.permute.xlu0 0
      %1554 = vperm.xlu0 %1553, %v1507
      %v1555 = vpop.permute.xlu0 %1554
      %1558 = vset.pattern.permute.xlu0 0
      %1559 = vperm.xlu0 %1558, %v1508
      %v1560 = vpop.permute.xlu0 %1559
      %1563 = vset.pattern.permute.xlu0 0
      %1564 = vperm.xlu0 %1563, %v1509
      %v1565 = vpop.permute.xlu0 %1564
      %1568 = vset.pattern.permute.xlu0 0
      %1569 = vperm.xlu0 %1568, %v1510
      %v1570 = vpop.permute.xlu0 %1569
      %1573 = vset.pattern.permute.xlu0 0
      %1574 = vperm.xlu0 %1573, %v1511
      %v1575 = vpop.permute.xlu0 %1574
      %1578 = vset.pattern.permute.xlu0 0
      %1579 = vperm.xlu0 %1578, %v1512
      %v1580 = vpop.permute.xlu0 %1579
      %1583 = vset.pattern.permute.xlu0 0
      %1584 = vperm.xlu0 %1583, %v1513
      %v1585 = vpop.permute.xlu0 %1584
      %1588 = vset.pattern.permute.xlu0 0
      %1589 = vperm.xlu0 %1588, %v1514
      %v1590 = vpop.permute.xlu0 %1589
      %1593 = vset.pattern.permute.xlu0 0
      %1594 = vperm.xlu0 %1593, %v1515
      %v1595 = vpop.permute.xlu0 %1594
      %1598 = vset.pattern.permute.xlu0 0
      %1599 = vperm.xlu0 %1598, %v1516
      %v1600 = vpop.permute.xlu0 %1599
      %1603 = vset.pattern.permute.xlu0 0
      %1604 = vperm.xlu0 %1603, %v1517
      %v1605 = vpop.permute.xlu0 %1604
      %1608 = vset.pattern.permute.xlu0 0
      %1609 = vperm.xlu0 %1608, %v1518
      %v1610 = vpop.permute.xlu0 %1609
      %1613 = vset.pattern.permute.xlu0 0
      %1614 = vperm.xlu0 %1613, %v1519
      %v1615 = vpop.permute.xlu0 %1614
      %1618 = vset.pattern.permute.xlu0 0
      %1619 = vperm.xlu0 %1618, %v1520
      %v1620 = vpop.permute.xlu0 %1619
      %1623 = vset.pattern.permute.xlu0 0
      %1624 = vperm.xlu0 %1623, %v1521
      %v1625 = vpop.permute.xlu0 %1624
      %1628 = vset.pattern.permute.xlu0 0
      %1629 = vperm.xlu0 %1628, %v1522
      %v1630 = vpop.permute.xlu0 %1629
      %1633 = vset.pattern.permute.xlu0 0
      %1634 = vperm.xlu0 %1633, %v1523
      %v1635 = vpop.permute.xlu0 %1634
      %1638 = vset.pattern.permute.xlu0 0
      %1639 = vperm.xlu0 %1638, %v1524
      %v1640 = vpop.permute.xlu0 %1639
      %1643 = vset.pattern.permute.xlu0 0
      %1644 = vperm.xlu0 %1643, %v1525
      %v1645 = vpop.permute.xlu0 %1644
      %1648 = vset.pattern.permute.xlu0 0
      %1649 = vperm.xlu0 %1648, %v1526
      %v1650 = vpop.permute.xlu0 %1649
      %1653 = vset.pattern.permute.xlu0 0
      %1654 = vperm.xlu0 %1653, %v1527
      %v1655 = vpop.permute.xlu0 %1654
      %1658 = vset.pattern.permute.xlu0 0
      %1659 = vperm.xlu0 %1658, %v1528
      %v1660 = vpop.permute.xlu0 %1659
      %1663 = vset.pattern.permute.xlu0 0
      %1664 = vperm.xlu0 %1663, %v1529
      %v1665 = vpop.permute.xlu0 %1664
      %1668 = vset.pattern.permute.xlu0 0
      %1669 = vperm.xlu0 %1668, %v1530
      %v1670 = vpop.permute.xlu0 %1669
      %1673 = vset.pattern.permute.xlu0 0
      %1674 = vperm.xlu0 %1673, %v1531
      %v1675 = vpop.permute.xlu0 %1674
      %1678 = vset.pattern.permute.xlu0 0
      %1679 = vperm.xlu0 %1678, %v1532
      %v1680 = vpop.permute.xlu0 %1679
      %1683 = vset.pattern.permute.xlu0 0
      %1684 = vperm.xlu0 %1683, %v1533
      %v1685 = vpop.permute.xlu0 %1684
      %1688 = vset.pattern.permute.xlu0 0
      %1689 = vperm.xlu0 %1688, %v1534
      %v1690 = vpop.permute.xlu0 %1689
      %1693 = vset.pattern.permute.xlu0 0
      %1694 = vperm.xlu0 %1693, %v1535
      %v1695 = vpop.permute.xlu0 %1694
      %v1697 = vlaneseq
      %v1698 = vshrl.u32 %v1697, 7
      %v1699 = vsub.s32 0, %v1698
      %v1700 = vrot.slane %v1536, %v1699
      %v1701 = vmul.f32 %v1540, %v1700
      %v1702 = vmul.f32 %v1545, %v1700
      %v1703 = vmul.f32 %v1550, %v1700
      %v1704 = vmul.f32 %v1555, %v1700
      %v1705 = vmul.f32 %v1560, %v1700
      %v1706 = vmul.f32 %v1565, %v1700
      %v1707 = vmul.f32 %v1570, %v1700
      %v1708 = vmul.f32 %v1575, %v1700
      %v1709 = vmul.f32 %v1580, %v1700
      %v1710 = vmul.f32 %v1585, %v1700
      %v1711 = vmul.f32 %v1590, %v1700
      %v1712 = vmul.f32 %v1595, %v1700
      %v1713 = vmul.f32 %v1600, %v1700
      %v1714 = vmul.f32 %v1605, %v1700
      %v1715 = vmul.f32 %v1610, %v1700
      %v1716 = vmul.f32 %v1615, %v1700
      %v1717 = vmul.f32 %v1620, %v1700
      %v1718 = vmul.f32 %v1625, %v1700
      %v1719 = vmul.f32 %v1630, %v1700
      %v1720 = vmul.f32 %v1635, %v1700
      %v1721 = vmul.f32 %v1640, %v1700
      %v1722 = vmul.f32 %v1645, %v1700
      %v1723 = vmul.f32 %v1650, %v1700
      %v1724 = vmul.f32 %v1655, %v1700
      %v1725 = vmul.f32 %v1660, %v1700
      %v1726 = vmul.f32 %v1665, %v1700
      %v1727 = vmul.f32 %v1670, %v1700
      %v1728 = vmul.f32 %v1675, %v1700
      %v1729 = vmul.f32 %v1680, %v1700
      %v1730 = vmul.f32 %v1685, %v1700
      %v1731 = vmul.f32 %v1690, %v1700
      %v1732 = vmul.f32 %v1695, %v1700
      %v1733 = vadd.f32 %v1472, %v1701
      %v1734 = vadd.f32 %v1473, %v1702
      %v1735 = vadd.f32 %v1474, %v1703
      %v1736 = vadd.f32 %v1475, %v1704
      %v1737 = vadd.f32 %v1476, %v1705
      %v1738 = vadd.f32 %v1477, %v1706
      %v1739 = vadd.f32 %v1478, %v1707
      %v1740 = vadd.f32 %v1479, %v1708
      %v1741 = vadd.f32 %v1480, %v1709
      %v1742 = vadd.f32 %v1481, %v1710
      %v1743 = vadd.f32 %v1482, %v1711
      %v1744 = vadd.f32 %v1483, %v1712
      %v1745 = vadd.f32 %v1484, %v1713
      %v1746 = vadd.f32 %v1485, %v1714
      %v1747 = vadd.f32 %v1486, %v1715
      %v1748 = vadd.f32 %v1487, %v1716
      %v1749 = vadd.f32 %v1488, %v1717
      %v1750 = vadd.f32 %v1489, %v1718
      %v1751 = vadd.f32 %v1490, %v1719
      %v1752 = vadd.f32 %v1491, %v1720
      %v1753 = vadd.f32 %v1492, %v1721
      %v1754 = vadd.f32 %v1493, %v1722
      %v1755 = vadd.f32 %v1494, %v1723
      %v1756 = vadd.f32 %v1495, %v1724
      %v1757 = vadd.f32 %v1496, %v1725
      %v1758 = vadd.f32 %v1497, %v1726
      %v1759 = vadd.f32 %v1498, %v1727
      %v1760 = vadd.f32 %v1499, %v1728
      %v1761 = vadd.f32 %v1500, %v1729
      %v1762 = vadd.f32 %v1501, %v1730
      %v1763 = vadd.f32 %v1502, %v1731
      %v1764 = vadd.f32 %v1503, %v1732
      %v1765 = vld [vmem:[%s427 + $0x2] sm:$0xff]
      %v1766 = vld [vmem:[%s427 + $0xa] sm:$0xff]
      %v1767 = vld [vmem:[%s427 + $0x1a] sm:$0xff]
      %v1768 = vld [vmem:[%s427 + $0x22] sm:$0xff]
      %v1769 = vld [vmem:[%s427 + $0x32] sm:$0xff]
      %v1770 = vld [vmem:[%s427 + $0x3a] sm:$0xff]
      %v1771 = vld [vmem:[%s427 + $0x4a] sm:$0xff]
      %v1772 = vld [vmem:[%s427 + $0x52] sm:$0xff]
      %v1773 = vld [vmem:[%s427 + $0x62] sm:$0xff]
      %v1774 = vld [vmem:[%s427 + $0x6a] sm:$0xff]
      %v1775 = vld [vmem:[%s427 + $0x7a] sm:$0xff]
      %v1776 = vld [vmem:[%s427 + $0x82] sm:$0xff]
      %v1777 = vld [vmem:[%s427 + $0x92] sm:$0xff]
      %v1778 = vld [vmem:[%s427 + $0x9a] sm:$0xff]
      %v1779 = vld [vmem:[%s427 + $0xaa] sm:$0xff]
      %v1780 = vld [vmem:[%s427 + $0xb2] sm:$0xff]
      %v1781 = vld [vmem:[%s427 + $0xc2] sm:$0xff]
      %v1782 = vld [vmem:[%s427 + $0xca] sm:$0xff]
      %v1783 = vld [vmem:[%s427 + $0xda] sm:$0xff]
      %v1784 = vld [vmem:[%s427 + $0xe2] sm:$0xff]
      %v1785 = vld [vmem:[%s427 + $0xf2] sm:$0xff]
      %v1786 = vld [vmem:[%s427 + $0xfa] sm:$0xff]
      %v1787 = vld [vmem:[%s427 + $0x10a] sm:$0xff]
      %v1788 = vld [vmem:[%s427 + $0x112] sm:$0xff]
      %v1789 = vld [vmem:[%s427 + $0x122] sm:$0xff]
      %v1790 = vld [vmem:[%s427 + $0x12a] sm:$0xff]
      %v1791 = vld [vmem:[%s427 + $0x13a] sm:$0xff]
      %v1792 = vld [vmem:[%s427 + $0x142] sm:$0xff]
      %v1793 = vld [vmem:[%s427 + $0x152] sm:$0xff]
      %v1794 = vld [vmem:[%s427 + $0x15a] sm:$0xff]
      %v1795 = vld [vmem:[%s427 + $0x16a] sm:$0xff]
      %v1796 = vld [vmem:[%s427 + $0x172] sm:$0xff]
      %v1797 = vld [vmem:[%s1 + $0x5] sm:$0x1]
      %1799 = vset.pattern.permute.xlu0 0
      %1800 = vperm.xlu0 %1799, %v1765
      %v1801 = vpop.permute.xlu0 %1800
      %1804 = vset.pattern.permute.xlu0 0
      %1805 = vperm.xlu0 %1804, %v1766
      %v1806 = vpop.permute.xlu0 %1805
      %1809 = vset.pattern.permute.xlu0 0
      %1810 = vperm.xlu0 %1809, %v1767
      %v1811 = vpop.permute.xlu0 %1810
      %1814 = vset.pattern.permute.xlu0 0
      %1815 = vperm.xlu0 %1814, %v1768
      %v1816 = vpop.permute.xlu0 %1815
      %1819 = vset.pattern.permute.xlu0 0
      %1820 = vperm.xlu0 %1819, %v1769
      %v1821 = vpop.permute.xlu0 %1820
      %1824 = vset.pattern.permute.xlu0 0
      %1825 = vperm.xlu0 %1824, %v1770
      %v1826 = vpop.permute.xlu0 %1825
      %1829 = vset.pattern.permute.xlu0 0
      %1830 = vperm.xlu0 %1829, %v1771
      %v1831 = vpop.permute.xlu0 %1830
      %1834 = vset.pattern.permute.xlu0 0
      %1835 = vperm.xlu0 %1834, %v1772
      %v1836 = vpop.permute.xlu0 %1835
      %1839 = vset.pattern.permute.xlu0 0
      %1840 = vperm.xlu0 %1839, %v1773
      %v1841 = vpop.permute.xlu0 %1840
      %1844 = vset.pattern.permute.xlu0 0
      %1845 = vperm.xlu0 %1844, %v1774
      %v1846 = vpop.permute.xlu0 %1845
      %1849 = vset.pattern.permute.xlu0 0
      %1850 = vperm.xlu0 %1849, %v1775
      %v1851 = vpop.permute.xlu0 %1850
      %1854 = vset.pattern.permute.xlu0 0
      %1855 = vperm.xlu0 %1854, %v1776
      %v1856 = vpop.permute.xlu0 %1855
      %1859 = vset.pattern.permute.xlu0 0
      %1860 = vperm.xlu0 %1859, %v1777
      %v1861 = vpop.permute.xlu0 %1860
      %1864 = vset.pattern.permute.xlu0 0
      %1865 = vperm.xlu0 %1864, %v1778
      %v1866 = vpop.permute.xlu0 %1865
      %1869 = vset.pattern.permute.xlu0 0
      %1870 = vperm.xlu0 %1869, %v1779
      %v1871 = vpop.permute.xlu0 %1870
      %1874 = vset.pattern.permute.xlu0 0
      %1875 = vperm.xlu0 %1874, %v1780
      %v1876 = vpop.permute.xlu0 %1875
      %1879 = vset.pattern.permute.xlu0 0
      %1880 = vperm.xlu0 %1879, %v1781
      %v1881 = vpop.permute.xlu0 %1880
      %1884 = vset.pattern.permute.xlu0 0
      %1885 = vperm.xlu0 %1884, %v1782
      %v1886 = vpop.permute.xlu0 %1885
      %1889 = vset.pattern.permute.xlu0 0
      %1890 = vperm.xlu0 %1889, %v1783
      %v1891 = vpop.permute.xlu0 %1890
      %1894 = vset.pattern.permute.xlu0 0
      %1895 = vperm.xlu0 %1894, %v1784
      %v1896 = vpop.permute.xlu0 %1895
      %1899 = vset.pattern.permute.xlu0 0
      %1900 = vperm.xlu0 %1899, %v1785
      %v1901 = vpop.permute.xlu0 %1900
      %1904 = vset.pattern.permute.xlu0 0
      %1905 = vperm.xlu0 %1904, %v1786
      %v1906 = vpop.permute.xlu0 %1905
      %1909 = vset.pattern.permute.xlu0 0
      %1910 = vperm.xlu0 %1909, %v1787
      %v1911 = vpop.permute.xlu0 %1910
      %1914 = vset.pattern.permute.xlu0 0
      %1915 = vperm.xlu0 %1914, %v1788
      %v1916 = vpop.permute.xlu0 %1915
      %1919 = vset.pattern.permute.xlu0 0
      %1920 = vperm.xlu0 %1919, %v1789
      %v1921 = vpop.permute.xlu0 %1920
      %1924 = vset.pattern.permute.xlu0 0
      %1925 = vperm.xlu0 %1924, %v1790
      %v1926 = vpop.permute.xlu0 %1925
      %1929 = vset.pattern.permute.xlu0 0
      %1930 = vperm.xlu0 %1929, %v1791
      %v1931 = vpop.permute.xlu0 %1930
      %1934 = vset.pattern.permute.xlu0 0
      %1935 = vperm.xlu0 %1934, %v1792
      %v1936 = vpop.permute.xlu0 %1935
      %1939 = vset.pattern.permute.xlu0 0
      %1940 = vperm.xlu0 %1939, %v1793
      %v1941 = vpop.permute.xlu0 %1940
      %1944 = vset.pattern.permute.xlu0 0
      %1945 = vperm.xlu0 %1944, %v1794
      %v1946 = vpop.permute.xlu0 %1945
      %1949 = vset.pattern.permute.xlu0 0
      %1950 = vperm.xlu0 %1949, %v1795
      %v1951 = vpop.permute.xlu0 %1950
      %1954 = vset.pattern.permute.xlu0 0
      %1955 = vperm.xlu0 %1954, %v1796
      %v1956 = vpop.permute.xlu0 %1955
      %v1958 = vlaneseq
      %v1959 = vshrl.u32 %v1958, 7
      %v1960 = vsub.s32 0, %v1959
      %v1961 = vrot.slane %v1797, %v1960
      %v1962 = vmul.f32 %v1801, %v1961
      %v1963 = vmul.f32 %v1806, %v1961
      %v1964 = vmul.f32 %v1811, %v1961
      %v1965 = vmul.f32 %v1816, %v1961
      %v1966 = vmul.f32 %v1821, %v1961
      %v1967 = vmul.f32 %v1826, %v1961
      %v1968 = vmul.f32 %v1831, %v1961
      %v1969 = vmul.f32 %v1836, %v1961
      %v1970 = vmul.f32 %v1841, %v1961
      %v1971 = vmul.f32 %v1846, %v1961
      %v1972 = vmul.f32 %v1851, %v1961
      %v1973 = vmul.f32 %v1856, %v1961
      %v1974 = vmul.f32 %v1861, %v1961
      %v1975 = vmul.f32 %v1866, %v1961
      %v1976 = vmul.f32 %v1871, %v1961
      %v1977 = vmul.f32 %v1876, %v1961
      %v1978 = vmul.f32 %v1881, %v1961
      %v1979 = vmul.f32 %v1886, %v1961
      %v1980 = vmul.f32 %v1891, %v1961
      %v1981 = vmul.f32 %v1896, %v1961
      %v1982 = vmul.f32 %v1901, %v1961
      %v1983 = vmul.f32 %v1906, %v1961
      %v1984 = vmul.f32 %v1911, %v1961
      %v1985 = vmul.f32 %v1916, %v1961
      %v1986 = vmul.f32 %v1921, %v1961
      %v1987 = vmul.f32 %v1926, %v1961
      %v1988 = vmul.f32 %v1931, %v1961
      %v1989 = vmul.f32 %v1936, %v1961
      %v1990 = vmul.f32 %v1941, %v1961
      %v1991 = vmul.f32 %v1946, %v1961
      %v1992 = vmul.f32 %v1951, %v1961
      %v1993 = vmul.f32 %v1956, %v1961
      %v1994 = vadd.f32 %v1733, %v1962
      %v1995 = vadd.f32 %v1734, %v1963
      %v1996 = vadd.f32 %v1735, %v1964
      %v1997 = vadd.f32 %v1736, %v1965
      %v1998 = vadd.f32 %v1737, %v1966
      %v1999 = vadd.f32 %v1738, %v1967
      %v2000 = vadd.f32 %v1739, %v1968
      %v2001 = vadd.f32 %v1740, %v1969
      %v2002 = vadd.f32 %v1741, %v1970
      %v2003 = vadd.f32 %v1742, %v1971
      %v2004 = vadd.f32 %v1743, %v1972
      %v2005 = vadd.f32 %v1744, %v1973
      %v2006 = vadd.f32 %v1745, %v1974
      %v2007 = vadd.f32 %v1746, %v1975
      %v2008 = vadd.f32 %v1747, %v1976
      %v2009 = vadd.f32 %v1748, %v1977
      %v2010 = vadd.f32 %v1749, %v1978
      %v2011 = vadd.f32 %v1750, %v1979
      %v2012 = vadd.f32 %v1751, %v1980
      %v2013 = vadd.f32 %v1752, %v1981
      %v2014 = vadd.f32 %v1753, %v1982
      %v2015 = vadd.f32 %v1754, %v1983
      %v2016 = vadd.f32 %v1755, %v1984
      %v2017 = vadd.f32 %v1756, %v1985
      %v2018 = vadd.f32 %v1757, %v1986
      %v2019 = vadd.f32 %v1758, %v1987
      %v2020 = vadd.f32 %v1759, %v1988
      %v2021 = vadd.f32 %v1760, %v1989
      %v2022 = vadd.f32 %v1761, %v1990
      %v2023 = vadd.f32 %v1762, %v1991
      %v2024 = vadd.f32 %v1763, %v1992
      %v2025 = vadd.f32 %v1764, %v1993
      %s2026 = scalar_lea.vmem [#allocation2], 48
      %v2027 = vld [vmem:[%s2026] sm:$0xff]
      %v2028 = vld [vmem:[%s2026 + $0x8] sm:$0xff]
      %v2029 = vld [vmem:[%s2026 + $0x18] sm:$0xff]
      %v2030 = vld [vmem:[%s2026 + $0x20] sm:$0xff]
      %v2031 = vld [vmem:[%s2026 + $0x30] sm:$0xff]
      %v2032 = vld [vmem:[%s2026 + $0x38] sm:$0xff]
      %v2033 = vld [vmem:[%s2026 + $0x48] sm:$0xff]
      %v2034 = vld [vmem:[%s2026 + $0x50] sm:$0xff]
      %v2035 = vld [vmem:[%s2026 + $0x60] sm:$0xff]
      %v2036 = vld [vmem:[%s2026 + $0x68] sm:$0xff]
      %v2037 = vld [vmem:[%s2026 + $0x78] sm:$0xff]
      %v2038 = vld [vmem:[%s2026 + $0x80] sm:$0xff]
      %v2039 = vld [vmem:[%s2026 + $0x90] sm:$0xff]
      %v2040 = vld [vmem:[%s2026 + $0x98] sm:$0xff]
      %v2041 = vld [vmem:[%s2026 + $0xa8] sm:$0xff]
      %v2042 = vld [vmem:[%s2026 + $0xb0] sm:$0xff]
      %v2043 = vld [vmem:[%s2026 + $0xc0] sm:$0xff]
      %v2044 = vld [vmem:[%s2026 + $0xc8] sm:$0xff]
      %v2045 = vld [vmem:[%s2026 + $0xd8] sm:$0xff]
      %v2046 = vld [vmem:[%s2026 + $0xe0] sm:$0xff]
      %v2047 = vld [vmem:[%s2026 + $0xf0] sm:$0xff]
      %v2048 = vld [vmem:[%s2026 + $0xf8] sm:$0xff]
      %v2049 = vld [vmem:[%s2026 + $0x108] sm:$0xff]
      %v2050 = vld [vmem:[%s2026 + $0x110] sm:$0xff]
      %v2051 = vld [vmem:[%s2026 + $0x120] sm:$0xff]
      %v2052 = vld [vmem:[%s2026 + $0x128] sm:$0xff]
      %v2053 = vld [vmem:[%s2026 + $0x138] sm:$0xff]
      %v2054 = vld [vmem:[%s2026 + $0x140] sm:$0xff]
      %v2055 = vld [vmem:[%s2026 + $0x150] sm:$0xff]
      %v2056 = vld [vmem:[%s2026 + $0x158] sm:$0xff]
      %v2057 = vld [vmem:[%s2026 + $0x168] sm:$0xff]
      %v2058 = vld [vmem:[%s2026 + $0x170] sm:$0xff]
      %v2059 = vld [vmem:[%s1 + $0x6] sm:$0x1]
      %2061 = vset.pattern.permute.xlu0 0
      %2062 = vperm.xlu0 %2061, %v2027
      %v2063 = vpop.permute.xlu0 %2062
      %2066 = vset.pattern.permute.xlu0 0
      %2067 = vperm.xlu0 %2066, %v2028
      %v2068 = vpop.permute.xlu0 %2067
      %2071 = vset.pattern.permute.xlu0 0
      %2072 = vperm.xlu0 %2071, %v2029
      %v2073 = vpop.permute.xlu0 %2072
      %2076 = vset.pattern.permute.xlu0 0
      %2077 = vperm.xlu0 %2076, %v2030
      %v2078 = vpop.permute.xlu0 %2077
      %2081 = vset.pattern.permute.xlu0 0
      %2082 = vperm.xlu0 %2081, %v2031
      %v2083 = vpop.permute.xlu0 %2082
      %2086 = vset.pattern.permute.xlu0 0
      %2087 = vperm.xlu0 %2086, %v2032
      %v2088 = vpop.permute.xlu0 %2087
      %2091 = vset.pattern.permute.xlu0 0
      %2092 = vperm.xlu0 %2091, %v2033
      %v2093 = vpop.permute.xlu0 %2092
      %2096 = vset.pattern.permute.xlu0 0
      %2097 = vperm.xlu0 %2096, %v2034
      %v2098 = vpop.permute.xlu0 %2097
      %2101 = vset.pattern.permute.xlu0 0
      %2102 = vperm.xlu0 %2101, %v2035
      %v2103 = vpop.permute.xlu0 %2102
      %2106 = vset.pattern.permute.xlu0 0
      %2107 = vperm.xlu0 %2106, %v2036
      %v2108 = vpop.permute.xlu0 %2107
      %2111 = vset.pattern.permute.xlu0 0
      %2112 = vperm.xlu0 %2111, %v2037
      %v2113 = vpop.permute.xlu0 %2112
      %2116 = vset.pattern.permute.xlu0 0
      %2117 = vperm.xlu0 %2116, %v2038
      %v2118 = vpop.permute.xlu0 %2117
      %2121 = vset.pattern.permute.xlu0 0
      %2122 = vperm.xlu0 %2121, %v2039
      %v2123 = vpop.permute.xlu0 %2122
      %2126 = vset.pattern.permute.xlu0 0
      %2127 = vperm.xlu0 %2126, %v2040
      %v2128 = vpop.permute.xlu0 %2127
      %2131 = vset.pattern.permute.xlu0 0
      %2132 = vperm.xlu0 %2131, %v2041
      %v2133 = vpop.permute.xlu0 %2132
      %2136 = vset.pattern.permute.xlu0 0
      %2137 = vperm.xlu0 %2136, %v2042
      %v2138 = vpop.permute.xlu0 %2137
      %2141 = vset.pattern.permute.xlu0 0
      %2142 = vperm.xlu0 %2141, %v2043
      %v2143 = vpop.permute.xlu0 %2142
      %2146 = vset.pattern.permute.xlu0 0
      %2147 = vperm.xlu0 %2146, %v2044
      %v2148 = vpop.permute.xlu0 %2147
      %2151 = vset.pattern.permute.xlu0 0
      %2152 = vperm.xlu0 %2151, %v2045
      %v2153 = vpop.permute.xlu0 %2152
      %2156 = vset.pattern.permute.xlu0 0
      %2157 = vperm.xlu0 %2156, %v2046
      %v2158 = vpop.permute.xlu0 %2157
      %2161 = vset.pattern.permute.xlu0 0
      %2162 = vperm.xlu0 %2161, %v2047
      %v2163 = vpop.permute.xlu0 %2162
      %2166 = vset.pattern.permute.xlu0 0
      %2167 = vperm.xlu0 %2166, %v2048
      %v2168 = vpop.permute.xlu0 %2167
      %2171 = vset.pattern.permute.xlu0 0
      %2172 = vperm.xlu0 %2171, %v2049
      %v2173 = vpop.permute.xlu0 %2172
      %2176 = vset.pattern.permute.xlu0 0
      %2177 = vperm.xlu0 %2176, %v2050
      %v2178 = vpop.permute.xlu0 %2177
      %2181 = vset.pattern.permute.xlu0 0
      %2182 = vperm.xlu0 %2181, %v2051
      %v2183 = vpop.permute.xlu0 %2182
      %2186 = vset.pattern.permute.xlu0 0
      %2187 = vperm.xlu0 %2186, %v2052
      %v2188 = vpop.permute.xlu0 %2187
      %2191 = vset.pattern.permute.xlu0 0
      %2192 = vperm.xlu0 %2191, %v2053
      %v2193 = vpop.permute.xlu0 %2192
      %2196 = vset.pattern.permute.xlu0 0
      %2197 = vperm.xlu0 %2196, %v2054
      %v2198 = vpop.permute.xlu0 %2197
      %2201 = vset.pattern.permute.xlu0 0
      %2202 = vperm.xlu0 %2201, %v2055
      %v2203 = vpop.permute.xlu0 %2202
      %2206 = vset.pattern.permute.xlu0 0
      %2207 = vperm.xlu0 %2206, %v2056
      %v2208 = vpop.permute.xlu0 %2207
      %2211 = vset.pattern.permute.xlu0 0
      %2212 = vperm.xlu0 %2211, %v2057
      %v2213 = vpop.permute.xlu0 %2212
      %2216 = vset.pattern.permute.xlu0 0
      %2217 = vperm.xlu0 %2216, %v2058
      %v2218 = vpop.permute.xlu0 %2217
      %v2220 = vlaneseq
      %v2221 = vshrl.u32 %v2220, 7
      %v2222 = vsub.s32 0, %v2221
      %v2223 = vrot.slane %v2059, %v2222
      %v2224 = vmul.f32 %v2063, %v2223
      %v2225 = vmul.f32 %v2068, %v2223
      %v2226 = vmul.f32 %v2073, %v2223
      %v2227 = vmul.f32 %v2078, %v2223
      %v2228 = vmul.f32 %v2083, %v2223
      %v2229 = vmul.f32 %v2088, %v2223
      %v2230 = vmul.f32 %v2093, %v2223
      %v2231 = vmul.f32 %v2098, %v2223
      %v2232 = vmul.f32 %v2103, %v2223
      %v2233 = vmul.f32 %v2108, %v2223
      %v2234 = vmul.f32 %v2113, %v2223
      %v2235 = vmul.f32 %v2118, %v2223
      %v2236 = vmul.f32 %v2123, %v2223
      %v2237 = vmul.f32 %v2128, %v2223
      %v2238 = vmul.f32 %v2133, %v2223
      %v2239 = vmul.f32 %v2138, %v2223
      %v2240 = vmul.f32 %v2143, %v2223
      %v2241 = vmul.f32 %v2148, %v2223
      %v2242 = vmul.f32 %v2153, %v2223
      %v2243 = vmul.f32 %v2158, %v2223
      %v2244 = vmul.f32 %v2163, %v2223
      %v2245 = vmul.f32 %v2168, %v2223
      %v2246 = vmul.f32 %v2173, %v2223
      %v2247 = vmul.f32 %v2178, %v2223
      %v2248 = vmul.f32 %v2183, %v2223
      %v2249 = vmul.f32 %v2188, %v2223
      %v2250 = vmul.f32 %v2193, %v2223
      %v2251 = vmul.f32 %v2198, %v2223
      %v2252 = vmul.f32 %v2203, %v2223
      %v2253 = vmul.f32 %v2208, %v2223
      %v2254 = vmul.f32 %v2213, %v2223
      %v2255 = vmul.f32 %v2218, %v2223
      %v2256 = vadd.f32 %v1994, %v2224
      %v2257 = vadd.f32 %v1995, %v2225
      %v2258 = vadd.f32 %v1996, %v2226
      %v2259 = vadd.f32 %v1997, %v2227
      %v2260 = vadd.f32 %v1998, %v2228
      %v2261 = vadd.f32 %v1999, %v2229
      %v2262 = vadd.f32 %v2000, %v2230
      %v2263 = vadd.f32 %v2001, %v2231
      %v2264 = vadd.f32 %v2002, %v2232
      %v2265 = vadd.f32 %v2003, %v2233
      %v2266 = vadd.f32 %v2004, %v2234
      %v2267 = vadd.f32 %v2005, %v2235
      %v2268 = vadd.f32 %v2006, %v2236
      %v2269 = vadd.f32 %v2007, %v2237
      %v2270 = vadd.f32 %v2008, %v2238
      %v2271 = vadd.f32 %v2009, %v2239
      %v2272 = vadd.f32 %v2010, %v2240
      %v2273 = vadd.f32 %v2011, %v2241
      %v2274 = vadd.f32 %v2012, %v2242
      %v2275 = vadd.f32 %v2013, %v2243
      %v2276 = vadd.f32 %v2014, %v2244
      %v2277 = vadd.f32 %v2015, %v2245
      %v2278 = vadd.f32 %v2016, %v2246
      %v2279 = vadd.f32 %v2017, %v2247
      %v2280 = vadd.f32 %v2018, %v2248
      %v2281 = vadd.f32 %v2019, %v2249
      %v2282 = vadd.f32 %v2020, %v2250
      %v2283 = vadd.f32 %v2021, %v2251
      %v2284 = vadd.f32 %v2022, %v2252
      %v2285 = vadd.f32 %v2023, %v2253
      %v2286 = vadd.f32 %v2024, %v2254
      %v2287 = vadd.f32 %v2025, %v2255
      %v2288 = vld [vmem:[%s2026 + $0x1] sm:$0xff]
      %v2289 = vld [vmem:[%s2026 + $0x9] sm:$0xff]
      %v2290 = vld [vmem:[%s2026 + $0x19] sm:$0xff]
      %v2291 = vld [vmem:[%s2026 + $0x21] sm:$0xff]
      %v2292 = vld [vmem:[%s2026 + $0x31] sm:$0xff]
      %v2293 = vld [vmem:[%s2026 + $0x39] sm:$0xff]
      %v2294 = vld [vmem:[%s2026 + $0x49] sm:$0xff]
      %v2295 = vld [vmem:[%s2026 + $0x51] sm:$0xff]
      %v2296 = vld [vmem:[%s2026 + $0x61] sm:$0xff]
      %v2297 = vld [vmem:[%s2026 + $0x69] sm:$0xff]
      %v2298 = vld [vmem:[%s2026 + $0x79] sm:$0xff]
      %v2299 = vld [vmem:[%s2026 + $0x81] sm:$0xff]
      %v2300 = vld [vmem:[%s2026 + $0x91] sm:$0xff]
      %v2301 = vld [vmem:[%s2026 + $0x99] sm:$0xff]
      %v2302 = vld [vmem:[%s2026 + $0xa9] sm:$0xff]
      %v2303 = vld [vmem:[%s2026 + $0xb1] sm:$0xff]
      %v2304 = vld [vmem:[%s2026 + $0xc1] sm:$0xff]
      %v2305 = vld [vmem:[%s2026 + $0xc9] sm:$0xff]
      %v2306 = vld [vmem:[%s2026 + $0xd9] sm:$0xff]
      %v2307 = vld [vmem:[%s2026 + $0xe1] sm:$0xff]
      %v2308 = vld [vmem:[%s2026 + $0xf1] sm:$0xff]
      %v2309 = vld [vmem:[%s2026 + $0xf9] sm:$0xff]
      %v2310 = vld [vmem:[%s2026 + $0x109] sm:$0xff]
      %v2311 = vld [vmem:[%s2026 + $0x111] sm:$0xff]
      %v2312 = vld [vmem:[%s2026 + $0x121] sm:$0xff]
      %v2313 = vld [vmem:[%s2026 + $0x129] sm:$0xff]
      %v2314 = vld [vmem:[%s2026 + $0x139] sm:$0xff]
      %v2315 = vld [vmem:[%s2026 + $0x141] sm:$0xff]
      %v2316 = vld [vmem:[%s2026 + $0x151] sm:$0xff]
      %v2317 = vld [vmem:[%s2026 + $0x159] sm:$0xff]
      %v2318 = vld [vmem:[%s2026 + $0x169] sm:$0xff]
      %v2319 = vld [vmem:[%s2026 + $0x171] sm:$0xff]
      %v2320 = vld [vmem:[%s1 + $0x7] sm:$0x1]
      %2322 = vset.pattern.permute.xlu0 0
      %2323 = vperm.xlu0 %2322, %v2288
      %v2324 = vpop.permute.xlu0 %2323
      %2327 = vset.pattern.permute.xlu0 0
      %2328 = vperm.xlu0 %2327, %v2289
      %v2329 = vpop.permute.xlu0 %2328
      %2332 = vset.pattern.permute.xlu0 0
      %2333 = vperm.xlu0 %2332, %v2290
      %v2334 = vpop.permute.xlu0 %2333
      %2337 = vset.pattern.permute.xlu0 0
      %2338 = vperm.xlu0 %2337, %v2291
      %v2339 = vpop.permute.xlu0 %2338
      %2342 = vset.pattern.permute.xlu0 0
      %2343 = vperm.xlu0 %2342, %v2292
      %v2344 = vpop.permute.xlu0 %2343
      %2347 = vset.pattern.permute.xlu0 0
      %2348 = vperm.xlu0 %2347, %v2293
      %v2349 = vpop.permute.xlu0 %2348
      %2352 = vset.pattern.permute.xlu0 0
      %2353 = vperm.xlu0 %2352, %v2294
      %v2354 = vpop.permute.xlu0 %2353
      %2357 = vset.pattern.permute.xlu0 0
      %2358 = vperm.xlu0 %2357, %v2295
      %v2359 = vpop.permute.xlu0 %2358
      %2362 = vset.pattern.permute.xlu0 0
      %2363 = vperm.xlu0 %2362, %v2296
      %v2364 = vpop.permute.xlu0 %2363
      %2367 = vset.pattern.permute.xlu0 0
      %2368 = vperm.xlu0 %2367, %v2297
      %v2369 = vpop.permute.xlu0 %2368
      %2372 = vset.pattern.permute.xlu0 0
      %2373 = vperm.xlu0 %2372, %v2298
      %v2374 = vpop.permute.xlu0 %2373
      %2377 = vset.pattern.permute.xlu0 0
      %2378 = vperm.xlu0 %2377, %v2299
      %v2379 = vpop.permute.xlu0 %2378
      %2382 = vset.pattern.permute.xlu0 0
      %2383 = vperm.xlu0 %2382, %v2300
      %v2384 = vpop.permute.xlu0 %2383
      %2387 = vset.pattern.permute.xlu0 0
      %2388 = vperm.xlu0 %2387, %v2301
      %v2389 = vpop.permute.xlu0 %2388
      %2392 = vset.pattern.permute.xlu0 0
      %2393 = vperm.xlu0 %2392, %v2302
      %v2394 = vpop.permute.xlu0 %2393
      %2397 = vset.pattern.permute.xlu0 0
      %2398 = vperm.xlu0 %2397, %v2303
      %v2399 = vpop.permute.xlu0 %2398
      %2402 = vset.pattern.permute.xlu0 0
      %2403 = vperm.xlu0 %2402, %v2304
      %v2404 = vpop.permute.xlu0 %2403
      %2407 = vset.pattern.permute.xlu0 0
      %2408 = vperm.xlu0 %2407, %v2305
      %v2409 = vpop.permute.xlu0 %2408
      %2412 = vset.pattern.permute.xlu0 0
      %2413 = vperm.xlu0 %2412, %v2306
      %v2414 = vpop.permute.xlu0 %2413
      %2417 = vset.pattern.permute.xlu0 0
      %2418 = vperm.xlu0 %2417, %v2307
      %v2419 = vpop.permute.xlu0 %2418
      %2422 = vset.pattern.permute.xlu0 0
      %2423 = vperm.xlu0 %2422, %v2308
      %v2424 = vpop.permute.xlu0 %2423
      %2427 = vset.pattern.permute.xlu0 0
      %2428 = vperm.xlu0 %2427, %v2309
      %v2429 = vpop.permute.xlu0 %2428
      %2432 = vset.pattern.permute.xlu0 0
      %2433 = vperm.xlu0 %2432, %v2310
      %v2434 = vpop.permute.xlu0 %2433
      %2437 = vset.pattern.permute.xlu0 0
      %2438 = vperm.xlu0 %2437, %v2311
      %v2439 = vpop.permute.xlu0 %2438
      %2442 = vset.pattern.permute.xlu0 0
      %2443 = vperm.xlu0 %2442, %v2312
      %v2444 = vpop.permute.xlu0 %2443
      %2447 = vset.pattern.permute.xlu0 0
      %2448 = vperm.xlu0 %2447, %v2313
      %v2449 = vpop.permute.xlu0 %2448
      %2452 = vset.pattern.permute.xlu0 0
      %2453 = vperm.xlu0 %2452, %v2314
      %v2454 = vpop.permute.xlu0 %2453
      %2457 = vset.pattern.permute.xlu0 0
      %2458 = vperm.xlu0 %2457, %v2315
      %v2459 = vpop.permute.xlu0 %2458
      %2462 = vset.pattern.permute.xlu0 0
      %2463 = vperm.xlu0 %2462, %v2316
      %v2464 = vpop.permute.xlu0 %2463
      %2467 = vset.pattern.permute.xlu0 0
      %2468 = vperm.xlu0 %2467, %v2317
      %v2469 = vpop.permute.xlu0 %2468
      %2472 = vset.pattern.permute.xlu0 0
      %2473 = vperm.xlu0 %2472, %v2318
      %v2474 = vpop.permute.xlu0 %2473
      %2477 = vset.pattern.permute.xlu0 0
      %2478 = vperm.xlu0 %2477, %v2319
      %v2479 = vpop.permute.xlu0 %2478
      %v2481 = vlaneseq
      %v2482 = vshrl.u32 %v2481, 7
      %v2483 = vsub.s32 0, %v2482
      %v2484 = vrot.slane %v2320, %v2483
      %v2485 = vmul.f32 %v2324, %v2484
      %v2486 = vmul.f32 %v2329, %v2484
      %v2487 = vmul.f32 %v2334, %v2484
      %v2488 = vmul.f32 %v2339, %v2484
      %v2489 = vmul.f32 %v2344, %v2484
      %v2490 = vmul.f32 %v2349, %v2484
      %v2491 = vmul.f32 %v2354, %v2484
      %v2492 = vmul.f32 %v2359, %v2484
      %v2493 = vmul.f32 %v2364, %v2484
      %v2494 = vmul.f32 %v2369, %v2484
      %v2495 = vmul.f32 %v2374, %v2484
      %v2496 = vmul.f32 %v2379, %v2484
      %v2497 = vmul.f32 %v2384, %v2484
      %v2498 = vmul.f32 %v2389, %v2484
      %v2499 = vmul.f32 %v2394, %v2484
      %v2500 = vmul.f32 %v2399, %v2484
      %v2501 = vmul.f32 %v2404, %v2484
      %v2502 = vmul.f32 %v2409, %v2484
      %v2503 = vmul.f32 %v2414, %v2484
      %v2504 = vmul.f32 %v2419, %v2484
      %v2505 = vmul.f32 %v2424, %v2484
      %v2506 = vmul.f32 %v2429, %v2484
      %v2507 = vmul.f32 %v2434, %v2484
      %v2508 = vmul.f32 %v2439, %v2484
      %v2509 = vmul.f32 %v2444, %v2484
      %v2510 = vmul.f32 %v2449, %v2484
      %v2511 = vmul.f32 %v2454, %v2484
      %v2512 = vmul.f32 %v2459, %v2484
      %v2513 = vmul.f32 %v2464, %v2484
      %v2514 = vmul.f32 %v2469, %v2484
      %v2515 = vmul.f32 %v2474, %v2484
      %v2516 = vmul.f32 %v2479, %v2484
      %v2517 = vadd.f32 %v2256, %v2485
      %v2518 = vadd.f32 %v2257, %v2486
      %v2519 = vadd.f32 %v2258, %v2487
      %v2520 = vadd.f32 %v2259, %v2488
      %v2521 = vadd.f32 %v2260, %v2489
      %v2522 = vadd.f32 %v2261, %v2490
      %v2523 = vadd.f32 %v2262, %v2491
      %v2524 = vadd.f32 %v2263, %v2492
      %v2525 = vadd.f32 %v2264, %v2493
      %v2526 = vadd.f32 %v2265, %v2494
      %v2527 = vadd.f32 %v2266, %v2495
      %v2528 = vadd.f32 %v2267, %v2496
      %v2529 = vadd.f32 %v2268, %v2497
      %v2530 = vadd.f32 %v2269, %v2498
      %v2531 = vadd.f32 %v2270, %v2499
      %v2532 = vadd.f32 %v2271, %v2500
      %v2533 = vadd.f32 %v2272, %v2501
      %v2534 = vadd.f32 %v2273, %v2502
      %v2535 = vadd.f32 %v2274, %v2503
      %v2536 = vadd.f32 %v2275, %v2504
      %v2537 = vadd.f32 %v2276, %v2505
      %v2538 = vadd.f32 %v2277, %v2506
      %v2539 = vadd.f32 %v2278, %v2507
      %v2540 = vadd.f32 %v2279, %v2508
      %v2541 = vadd.f32 %v2280, %v2509
      %v2542 = vadd.f32 %v2281, %v2510
      %v2543 = vadd.f32 %v2282, %v2511
      %v2544 = vadd.f32 %v2283, %v2512
      %v2545 = vadd.f32 %v2284, %v2513
      %v2546 = vadd.f32 %v2285, %v2514
      %v2547 = vadd.f32 %v2286, %v2515
      %v2548 = vadd.f32 %v2287, %v2516
      %v2549 = vld [vmem:[%s2026 + $0x2] sm:$0xff]
      %v2550 = vld [vmem:[%s2026 + $0xa] sm:$0xff]
      %v2551 = vld [vmem:[%s2026 + $0x1a] sm:$0xff]
      %v2552 = vld [vmem:[%s2026 + $0x22] sm:$0xff]
      %v2553 = vld [vmem:[%s2026 + $0x32] sm:$0xff]
      %v2554 = vld [vmem:[%s2026 + $0x3a] sm:$0xff]
      %v2555 = vld [vmem:[%s2026 + $0x4a] sm:$0xff]
      %v2556 = vld [vmem:[%s2026 + $0x52] sm:$0xff]
      %v2557 = vld [vmem:[%s2026 + $0x62] sm:$0xff]
      %v2558 = vld [vmem:[%s2026 + $0x6a] sm:$0xff]
      %v2559 = vld [vmem:[%s2026 + $0x7a] sm:$0xff]
      %v2560 = vld [vmem:[%s2026 + $0x82] sm:$0xff]
      %v2561 = vld [vmem:[%s2026 + $0x92] sm:$0xff]
      %v2562 = vld [vmem:[%s2026 + $0x9a] sm:$0xff]
      %v2563 = vld [vmem:[%s2026 + $0xaa] sm:$0xff]
      %v2564 = vld [vmem:[%s2026 + $0xb2] sm:$0xff]
      %v2565 = vld [vmem:[%s2026 + $0xc2] sm:$0xff]
      %v2566 = vld [vmem:[%s2026 + $0xca] sm:$0xff]
      %v2567 = vld [vmem:[%s2026 + $0xda] sm:$0xff]
      %v2568 = vld [vmem:[%s2026 + $0xe2] sm:$0xff]
      %v2569 = vld [vmem:[%s2026 + $0xf2] sm:$0xff]
      %v2570 = vld [vmem:[%s2026 + $0xfa] sm:$0xff]
      %v2571 = vld [vmem:[%s2026 + $0x10a] sm:$0xff]
      %v2572 = vld [vmem:[%s2026 + $0x112] sm:$0xff]
      %v2573 = vld [vmem:[%s2026 + $0x122] sm:$0xff]
      %v2574 = vld [vmem:[%s2026 + $0x12a] sm:$0xff]
      %v2575 = vld [vmem:[%s2026 + $0x13a] sm:$0xff]
      %v2576 = vld [vmem:[%s2026 + $0x142] sm:$0xff]
      %v2577 = vld [vmem:[%s2026 + $0x152] sm:$0xff]
      %v2578 = vld [vmem:[%s2026 + $0x15a] sm:$0xff]
      %v2579 = vld [vmem:[%s2026 + $0x16a] sm:$0xff]
      %v2580 = vld [vmem:[%s2026 + $0x172] sm:$0xff]
      %v2581 = vld [vmem:[%s1 + $0x8] sm:$0x1]
      %2583 = vset.pattern.permute.xlu0 0
      %2584 = vperm.xlu0 %2583, %v2549
      %v2585 = vpop.permute.xlu0 %2584
      %2588 = vset.pattern.permute.xlu0 0
      %2589 = vperm.xlu0 %2588, %v2550
      %v2590 = vpop.permute.xlu0 %2589
      %2593 = vset.pattern.permute.xlu0 0
      %2594 = vperm.xlu0 %2593, %v2551
      %v2595 = vpop.permute.xlu0 %2594
      %2598 = vset.pattern.permute.xlu0 0
      %2599 = vperm.xlu0 %2598, %v2552
      %v2600 = vpop.permute.xlu0 %2599
      %2603 = vset.pattern.permute.xlu0 0
      %2604 = vperm.xlu0 %2603, %v2553
      %v2605 = vpop.permute.xlu0 %2604
      %2608 = vset.pattern.permute.xlu0 0
      %2609 = vperm.xlu0 %2608, %v2554
      %v2610 = vpop.permute.xlu0 %2609
      %2613 = vset.pattern.permute.xlu0 0
      %2614 = vperm.xlu0 %2613, %v2555
      %v2615 = vpop.permute.xlu0 %2614
      %2618 = vset.pattern.permute.xlu0 0
      %2619 = vperm.xlu0 %2618, %v2556
      %v2620 = vpop.permute.xlu0 %2619
      %2623 = vset.pattern.permute.xlu0 0
      %2624 = vperm.xlu0 %2623, %v2557
      %v2625 = vpop.permute.xlu0 %2624
      %2628 = vset.pattern.permute.xlu0 0
      %2629 = vperm.xlu0 %2628, %v2558
      %v2630 = vpop.permute.xlu0 %2629
      %2633 = vset.pattern.permute.xlu0 0
      %2634 = vperm.xlu0 %2633, %v2559
      %v2635 = vpop.permute.xlu0 %2634
      %2638 = vset.pattern.permute.xlu0 0
      %2639 = vperm.xlu0 %2638, %v2560
      %v2640 = vpop.permute.xlu0 %2639
      %2643 = vset.pattern.permute.xlu0 0
      %2644 = vperm.xlu0 %2643, %v2561
      %v2645 = vpop.permute.xlu0 %2644
      %2648 = vset.pattern.permute.xlu0 0
      %2649 = vperm.xlu0 %2648, %v2562
      %v2650 = vpop.permute.xlu0 %2649
      %2653 = vset.pattern.permute.xlu0 0
      %2654 = vperm.xlu0 %2653, %v2563
      %v2655 = vpop.permute.xlu0 %2654
      %2658 = vset.pattern.permute.xlu0 0
      %2659 = vperm.xlu0 %2658, %v2564
      %v2660 = vpop.permute.xlu0 %2659
      %2663 = vset.pattern.permute.xlu0 0
      %2664 = vperm.xlu0 %2663, %v2565
      %v2665 = vpop.permute.xlu0 %2664
      %2668 = vset.pattern.permute.xlu0 0
      %2669 = vperm.xlu0 %2668, %v2566
      %v2670 = vpop.permute.xlu0 %2669
      %2673 = vset.pattern.permute.xlu0 0
      %2674 = vperm.xlu0 %2673, %v2567
      %v2675 = vpop.permute.xlu0 %2674
      %2678 = vset.pattern.permute.xlu0 0
      %2679 = vperm.xlu0 %2678, %v2568
      %v2680 = vpop.permute.xlu0 %2679
      %2683 = vset.pattern.permute.xlu0 0
      %2684 = vperm.xlu0 %2683, %v2569
      %v2685 = vpop.permute.xlu0 %2684
      %2688 = vset.pattern.permute.xlu0 0
      %2689 = vperm.xlu0 %2688, %v2570
      %v2690 = vpop.permute.xlu0 %2689
      %2693 = vset.pattern.permute.xlu0 0
      %2694 = vperm.xlu0 %2693, %v2571
      %v2695 = vpop.permute.xlu0 %2694
      %2698 = vset.pattern.permute.xlu0 0
      %2699 = vperm.xlu0 %2698, %v2572
      %v2700 = vpop.permute.xlu0 %2699
      %2703 = vset.pattern.permute.xlu0 0
      %2704 = vperm.xlu0 %2703, %v2573
      %v2705 = vpop.permute.xlu0 %2704
      %2708 = vset.pattern.permute.xlu0 0
      %2709 = vperm.xlu0 %2708, %v2574
      %v2710 = vpop.permute.xlu0 %2709
      %2713 = vset.pattern.permute.xlu0 0
      %2714 = vperm.xlu0 %2713, %v2575
      %v2715 = vpop.permute.xlu0 %2714
      %2718 = vset.pattern.permute.xlu0 0
      %2719 = vperm.xlu0 %2718, %v2576
      %v2720 = vpop.permute.xlu0 %2719
      %2723 = vset.pattern.permute.xlu0 0
      %2724 = vperm.xlu0 %2723, %v2577
      %v2725 = vpop.permute.xlu0 %2724
      %2728 = vset.pattern.permute.xlu0 0
      %2729 = vperm.xlu0 %2728, %v2578
      %v2730 = vpop.permute.xlu0 %2729
      %2733 = vset.pattern.permute.xlu0 0
      %2734 = vperm.xlu0 %2733, %v2579
      %v2735 = vpop.permute.xlu0 %2734
      %2738 = vset.pattern.permute.xlu0 0
      %2739 = vperm.xlu0 %2738, %v2580
      %v2740 = vpop.permute.xlu0 %2739
      %v2742 = vlaneseq
      %v2743 = vshrl.u32 %v2742, 7
      %v2744 = vsub.s32 0, %v2743
      %v2745 = vrot.slane %v2581, %v2744
      %v2746 = vmul.f32 %v2585, %v2745
      %v2747 = vmul.f32 %v2590, %v2745
      %v2748 = vmul.f32 %v2595, %v2745
      %v2749 = vmul.f32 %v2600, %v2745
      %v2750 = vmul.f32 %v2605, %v2745
      %v2751 = vmul.f32 %v2610, %v2745
      %v2752 = vmul.f32 %v2615, %v2745
      %v2753 = vmul.f32 %v2620, %v2745
      %v2754 = vmul.f32 %v2625, %v2745
      %v2755 = vmul.f32 %v2630, %v2745
      %v2756 = vmul.f32 %v2635, %v2745
      %v2757 = vmul.f32 %v2640, %v2745
      %v2758 = vmul.f32 %v2645, %v2745
      %v2759 = vmul.f32 %v2650, %v2745
      %v2760 = vmul.f32 %v2655, %v2745
      %v2761 = vmul.f32 %v2660, %v2745
      %v2762 = vmul.f32 %v2665, %v2745
      %v2763 = vmul.f32 %v2670, %v2745
      %v2764 = vmul.f32 %v2675, %v2745
      %v2765 = vmul.f32 %v2680, %v2745
      %v2766 = vmul.f32 %v2685, %v2745
      %v2767 = vmul.f32 %v2690, %v2745
      %v2768 = vmul.f32 %v2695, %v2745
      %v2769 = vmul.f32 %v2700, %v2745
      %v2770 = vmul.f32 %v2705, %v2745
      %v2771 = vmul.f32 %v2710, %v2745
      %v2772 = vmul.f32 %v2715, %v2745
      %v2773 = vmul.f32 %v2720, %v2745
      %v2774 = vmul.f32 %v2725, %v2745
      %v2775 = vmul.f32 %v2730, %v2745
      %v2776 = vmul.f32 %v2735, %v2745
      %v2777 = vmul.f32 %v2740, %v2745
      %v2778 = vadd.f32 %v2517, %v2746
      %v2779 = vadd.f32 %v2518, %v2747
      %v2780 = vadd.f32 %v2519, %v2748
      %v2781 = vadd.f32 %v2520, %v2749
      %v2782 = vadd.f32 %v2521, %v2750
      %v2783 = vadd.f32 %v2522, %v2751
      %v2784 = vadd.f32 %v2523, %v2752
      %v2785 = vadd.f32 %v2524, %v2753
      %v2786 = vadd.f32 %v2525, %v2754
      %v2787 = vadd.f32 %v2526, %v2755
      %v2788 = vadd.f32 %v2527, %v2756
      %v2789 = vadd.f32 %v2528, %v2757
      %v2790 = vadd.f32 %v2529, %v2758
      %v2791 = vadd.f32 %v2530, %v2759
      %v2792 = vadd.f32 %v2531, %v2760
      %v2793 = vadd.f32 %v2532, %v2761
      %v2794 = vadd.f32 %v2533, %v2762
      %v2795 = vadd.f32 %v2534, %v2763
      %v2796 = vadd.f32 %v2535, %v2764
      %v2797 = vadd.f32 %v2536, %v2765
      %v2798 = vadd.f32 %v2537, %v2766
      %v2799 = vadd.f32 %v2538, %v2767
      %v2800 = vadd.f32 %v2539, %v2768
      %v2801 = vadd.f32 %v2540, %v2769
      %v2802 = vadd.f32 %v2541, %v2770
      %v2803 = vadd.f32 %v2542, %v2771
      %v2804 = vadd.f32 %v2543, %v2772
      %v2805 = vadd.f32 %v2544, %v2773
      %v2806 = vadd.f32 %v2545, %v2774
      %v2807 = vadd.f32 %v2546, %v2775
      %v2808 = vadd.f32 %v2547, %v2776
      %v2809 = vadd.f32 %v2548, %v2777
      %v2810 = vld [vmem:[%s2] sm:$0x1]
      %v2812 = vlaneseq
      %v2813 = vshrl.u32 %v2812, 7
      %v2814 = vsub.s32 0, %v2813
      %v2815 = vrot.slane %v2810, %v2814
      %v2817 = vadd.f32 %v2778, %v2815
      %v2818 = vadd.f32 %v2779, %v2815
      %v2819 = vadd.f32 %v2780, %v2815
      %v2820 = vadd.f32 %v2781, %v2815
      %v2821 = vadd.f32 %v2782, %v2815
      %v2822 = vadd.f32 %v2783, %v2815
      %v2823 = vadd.f32 %v2784, %v2815
      %v2824 = vadd.f32 %v2785, %v2815
      %v2825 = vadd.f32 %v2786, %v2815
      %v2826 = vadd.f32 %v2787, %v2815
      %v2827 = vadd.f32 %v2788, %v2815
      %v2828 = vadd.f32 %v2789, %v2815
      %v2829 = vadd.f32 %v2790, %v2815
      %v2830 = vadd.f32 %v2791, %v2815
      %v2831 = vadd.f32 %v2792, %v2815
      %v2832 = vadd.f32 %v2793, %v2815
      %v2833 = vadd.f32 %v2794, %v2815
      %v2834 = vadd.f32 %v2795, %v2815
      %v2835 = vadd.f32 %v2796, %v2815
      %v2836 = vadd.f32 %v2797, %v2815
      %v2837 = vadd.f32 %v2798, %v2815
      %v2838 = vadd.f32 %v2799, %v2815
      %v2839 = vadd.f32 %v2800, %v2815
      %v2840 = vadd.f32 %v2801, %v2815
      %v2841 = vadd.f32 %v2802, %v2815
      %v2842 = vadd.f32 %v2803, %v2815
      %v2843 = vadd.f32 %v2804, %v2815
      %v2844 = vadd.f32 %v2805, %v2815
      %v2845 = vadd.f32 %v2806, %v2815
      %v2846 = vadd.f32 %v2807, %v2815
      %v2847 = vadd.f32 %v2808, %v2815
      %v2848 = vadd.f32 %v2809, %v2815
      %v2849 = vmax.f32 %v2817, 0.0
      %v2850 = vmax.f32 %v2818, 0.0
      %v2851 = vmax.f32 %v2819, 0.0
      %v2852 = vmax.f32 %v2820, 0.0
      %v2853 = vmax.f32 %v2821, 0.0
      %v2854 = vmax.f32 %v2822, 0.0
      %v2855 = vmax.f32 %v2823, 0.0
      %v2856 = vmax.f32 %v2824, 0.0
      %v2857 = vmax.f32 %v2825, 0.0
      %v2858 = vmax.f32 %v2826, 0.0
      %v2859 = vmax.f32 %v2827, 0.0
      %v2860 = vmax.f32 %v2828, 0.0
      %v2861 = vmax.f32 %v2829, 0.0
      %v2862 = vmax.f32 %v2830, 0.0
      %v2863 = vmax.f32 %v2831, 0.0
      %v2864 = vmax.f32 %v2832, 0.0
      %v2865 = vmax.f32 %v2833, 0.0
      %v2866 = vmax.f32 %v2834, 0.0
      %v2867 = vmax.f32 %v2835, 0.0
      %v2868 = vmax.f32 %v2836, 0.0
      %v2869 = vmax.f32 %v2837, 0.0
      %v2870 = vmax.f32 %v2838, 0.0
      %v2871 = vmax.f32 %v2839, 0.0
      %v2872 = vmax.f32 %v2840, 0.0
      %v2873 = vmax.f32 %v2841, 0.0
      %v2874 = vmax.f32 %v2842, 0.0
      %v2875 = vmax.f32 %v2843, 0.0
      %v2876 = vmax.f32 %v2844, 0.0
      %v2877 = vmax.f32 %v2845, 0.0
      %v2878 = vmax.f32 %v2846, 0.0
      %v2879 = vmax.f32 %v2847, 0.0
      %v2880 = vmax.f32 %v2848, 0.0
      %2881 = vst [vmem:[#allocation3] sm:$0xf] 0
      %2882 = vst [vmem:[#allocation3 + $0x4] sm:$0xf] 0
      %2883 = vst [vmem:[#allocation3 + $0x8] sm:$0x1] 0
      %2884 = vst [vmem:[#allocation3 + $0xc] sm:$0xf] 0
      %2885 = vst [vmem:[#allocation3 + $0x10] sm:$0xf] 0
      %2886 = vst [vmem:[#allocation3 + $0x14] sm:$0x1] 0
      %2887 = vst [vmem:[#allocation3 + $0x18] sm:$0xf] 0
      %2888 = vst [vmem:[#allocation3 + $0x1c] sm:$0xf] 0
      %2889 = vst [vmem:[#allocation3 + $0x20] sm:$0x1] 0
      %2890 = vst [vmem:[#allocation3 + $0x24] sm:$0xf] 0
      %2891 = vst [vmem:[#allocation3 + $0x28] sm:$0xf] 0
      %2892 = vst [vmem:[#allocation3 + $0x2c] sm:$0x1] 0
      %2893 = vst [vmem:[#allocation3 + $0x30] sm:$0xf] 0
      %2894 = vst [vmem:[#allocation3 + $0x34] sm:$0xf] 0
      %2895 = vst [vmem:[#allocation3 + $0x38] sm:$0x1] 0
      %2896 = vst [vmem:[#allocation3 + $0x3c] sm:$0xf] 0
      %2897 = vst [vmem:[#allocation3 + $0x40] sm:$0xf] 0
      %2898 = vst [vmem:[#allocation3 + $0x44] sm:$0x1] 0
      %2899 = vst [vmem:[#allocation3 + $0x48] sm:$0xf] 0
      %2900 = vst [vmem:[#allocation3 + $0x4c] sm:$0xf] 0
      %2901 = vst [vmem:[#allocation3 + $0x50] sm:$0x1] 0
      %2902 = vst [vmem:[#allocation3 + $0x54] sm:$0xf] 0
      %2903 = vst [vmem:[#allocation3 + $0x58] sm:$0xf] 0
      %2904 = vst [vmem:[#allocation3 + $0x5c] sm:$0x1] 0
      %2905 = vst [vmem:[#allocation3 + $0x60] sm:$0xf] 0
      %2906 = vst [vmem:[#allocation3 + $0x64] sm:$0xf] 0
      %2907 = vst [vmem:[#allocation3 + $0x68] sm:$0x1] 0
      %2908 = vst [vmem:[#allocation3 + $0x6c] sm:$0xf] 0
      %2909 = vst [vmem:[#allocation3 + $0x70] sm:$0xf] 0
      %2910 = vst [vmem:[#allocation3 + $0x74] sm:$0x1] 0
      %2911 = vst [vmem:[#allocation3 + $0x78] sm:$0xf] 0
      %2912 = vst [vmem:[#allocation3 + $0x7c] sm:$0xf] 0
      %2913 = vst [vmem:[#allocation3 + $0x80] sm:$0x1] 0
      %2914 = vst [vmem:[#allocation3 + $0x84] sm:$0xf] 0
      %2915 = vst [vmem:[#allocation3 + $0x88] sm:$0xf] 0
      %2916 = vst [vmem:[#allocation3 + $0x8c] sm:$0x1] 0
      %2917 = vst [vmem:[#allocation3 + $0x90] sm:$0xf] 0
      %2918 = vst [vmem:[#allocation3 + $0x94] sm:$0xf] 0
      %2919 = vst [vmem:[#allocation3 + $0x98] sm:$0x1] 0
      %2920 = vst [vmem:[#allocation3 + $0x9c] sm:$0xf] 0
      %2921 = vst [vmem:[#allocation3 + $0xa0] sm:$0xf] 0
      %2922 = vst [vmem:[#allocation3 + $0xa4] sm:$0x1] 0
      %2923 = vst [vmem:[#allocation3 + $0xa8] sm:$0xf] 0
      %2924 = vst [vmem:[#allocation3 + $0xac] sm:$0xf] 0
      %2925 = vst [vmem:[#allocation3 + $0xb0] sm:$0x1] 0
      %2926 = vst [vmem:[#allocation3 + $0xb4] sm:$0xf] 0
      %2927 = vst [vmem:[#allocation3 + $0xb8] sm:$0xf] 0
      %2928 = vst [vmem:[#allocation3 + $0xbc] sm:$0x1] 0
      %2929 = vst [vmem:[#allocation3 + $0xc0] sm:$0xf] 0
      %2930 = vst [vmem:[#allocation3 + $0xc4] sm:$0xf] 0
      %2931 = vst [vmem:[#allocation3 + $0xc8] sm:$0x1] 0
      %2932 = vst [vmem:[#allocation3 + $0xcc] sm:$0xf] 0
      %2933 = vst [vmem:[#allocation3 + $0xd0] sm:$0xf] 0
      %2934 = vst [vmem:[#allocation3 + $0xd4] sm:$0x1] 0
      %v2935 = vpack.c.bf16 %v2850, %v2849
      %v2936 = vpack.c.bf16 %v2852, %v2851
      %v2937 = vpack.c.bf16 %v2854, %v2853
      %v2938 = vpack.c.bf16 %v2856, %v2855
      %v2939 = vpack.c.bf16 %v2858, %v2857
      %v2940 = vpack.c.bf16 %v2860, %v2859
      %v2941 = vpack.c.bf16 %v2862, %v2861
      %v2942 = vpack.c.bf16 %v2864, %v2863
      %v2943 = vpack.c.bf16 %v2866, %v2865
      %v2944 = vpack.c.bf16 %v2868, %v2867
      %v2945 = vpack.c.bf16 %v2870, %v2869
      %v2946 = vpack.c.bf16 %v2872, %v2871
      %v2947 = vpack.c.bf16 %v2874, %v2873
      %v2948 = vpack.c.bf16 %v2876, %v2875
      %v2949 = vpack.c.bf16 %v2878, %v2877
      %v2950 = vpack.c.bf16 %v2880, %v2879
      %v2967 = vunpack.c.l.b16 %v2935
      %v2968 = vunpack.c.h.b16 %v2935
      %v2969 = vunpack.c.l.b16 %v2936
      %v2970 = vunpack.c.h.b16 %v2936
      %v2971 = vunpack.c.l.b16 %v2937
      %v2972 = vunpack.c.h.b16 %v2937
      %v2973 = vunpack.c.l.b16 %v2938
      %v2974 = vunpack.c.h.b16 %v2938
      %v2975 = vunpack.c.l.b16 %v2939
      %v2976 = vunpack.c.h.b16 %v2939
      %v2977 = vunpack.c.l.b16 %v2940
      %v2978 = vunpack.c.h.b16 %v2940
      %v2979 = vunpack.c.l.b16 %v2941
      %v2980 = vunpack.c.h.b16 %v2941
      %v2981 = vunpack.c.l.b16 %v2942
      %v2982 = vunpack.c.h.b16 %v2942
      %v2983 = vunpack.c.l.b16 %v2943
      %v2984 = vunpack.c.h.b16 %v2943
      %v2985 = vunpack.c.l.b16 %v2944
      %v2986 = vunpack.c.h.b16 %v2944
      %v2987 = vunpack.c.l.b16 %v2945
      %v2988 = vunpack.c.h.b16 %v2945
      %v2989 = vunpack.c.l.b16 %v2946
      %v2990 = vunpack.c.h.b16 %v2946
      %v2991 = vunpack.c.l.b16 %v2947
      %v2992 = vunpack.c.h.b16 %v2947
      %v2993 = vunpack.c.l.b16 %v2948
      %v2994 = vunpack.c.h.b16 %v2948
      %v2995 = vunpack.c.l.b16 %v2949
      %v2996 = vunpack.c.h.b16 %v2949
      %v2997 = vunpack.c.l.b16 %v2950
      %v2998 = vunpack.c.h.b16 %v2950
      %v2999 = vpack.c.b16 %v2967, %v2967
      %v3000 = vpack.c.b16 %v2968, %v2968
      %v3001 = vpack.c.b16 %v2969, %v2969
      %v3002 = vpack.c.b16 %v2970, %v2970
      %v3003 = vpack.c.b16 %v2971, %v2971
      %v3004 = vpack.c.b16 %v2972, %v2972
      %v3005 = vpack.c.b16 %v2973, %v2973
      %v3006 = vpack.c.b16 %v2974, %v2974
      %v3007 = vpack.c.b16 %v2975, %v2975
      %v3008 = vpack.c.b16 %v2976, %v2976
      %v3009 = vpack.c.b16 %v2977, %v2977
      %v3010 = vpack.c.b16 %v2978, %v2978
      %v3011 = vpack.c.b16 %v2979, %v2979
      %v3012 = vpack.c.b16 %v2980, %v2980
      %v3013 = vpack.c.b16 %v2981, %v2981
      %v3014 = vpack.c.b16 %v2982, %v2982
      %v3015 = vpack.c.b16 %v2983, %v2983
      %v3016 = vpack.c.b16 %v2984, %v2984
      %v3017 = vpack.c.b16 %v2985, %v2985
      %v3018 = vpack.c.b16 %v2986, %v2986
      %v3019 = vpack.c.b16 %v2987, %v2987
      %v3020 = vpack.c.b16 %v2988, %v2988
      %v3021 = vpack.c.b16 %v2989, %v2989
      %v3022 = vpack.c.b16 %v2990, %v2990
      %v3023 = vpack.c.b16 %v2991, %v2991
      %v3024 = vpack.c.b16 %v2992, %v2992
      %v3025 = vpack.c.b16 %v2993, %v2993
      %v3026 = vpack.c.b16 %v2994, %v2994
      %v3027 = vpack.c.b16 %v2995, %v2995
      %v3028 = vpack.c.b16 %v2996, %v2996
      %v3029 = vpack.c.b16 %v2997, %v2997
      %v3030 = vpack.c.b16 %v2998, %v2998
      %vm3031 = vsmask.f32 256
      %vm3032 = vsmask.f32 4368
      %vm3033 = vmor %vm3031, %vm3032
      %v3035 = vshrl.u32 %v2999, 16
      %v3037 = vrot.slane %v3035, 7
      %v3038 = vshll.u32 %v2999, 16
      %v3040 = vor.u32 %v3037, %v3038
      %v3041 = vrot.slane %v3037, 4
      %v3043 = vshrl.u32 %v3000, 16
      %v3045 = vrot.slane %v3043, 7
      %v3046 = vshll.u32 %v3000, 16
      %v3048 = vor.u32 %v3045, %v3046
      %v3049 = vsel %vm3033, %v3041, %v3048
      %v3050 = vrot.slane %v3045, 4
      %v3052 = vshrl.u32 %v3001, 16
      %v3054 = vrot.slane %v3052, 7
      %v3055 = vshll.u32 %v3001, 16
      %v3057 = vor.u32 %v3054, %v3055
      %v3058 = vrot.slane %v3054, 4
      %v3060 = vshrl.u32 %v3002, 16
      %v3062 = vrot.slane %v3060, 7
      %v3063 = vshll.u32 %v3002, 16
      %v3065 = vor.u32 %v3062, %v3063
      %v3066 = vsel %vm3033, %v3058, %v3065
      %v3067 = vrot.slane %v3062, 4
      %v3069 = vshrl.u32 %v3003, 16
      %v3071 = vrot.slane %v3069, 7
      %v3072 = vshll.u32 %v3003, 16
      %v3074 = vor.u32 %v3071, %v3072
      %v3075 = vrot.slane %v3071, 4
      %v3077 = vshrl.u32 %v3004, 16
      %v3079 = vrot.slane %v3077, 7
      %v3080 = vshll.u32 %v3004, 16
      %v3082 = vor.u32 %v3079, %v3080
      %v3083 = vsel %vm3033, %v3075, %v3082
      %v3084 = vrot.slane %v3079, 4
      %v3086 = vshrl.u32 %v3005, 16
      %v3088 = vrot.slane %v3086, 7
      %v3089 = vshll.u32 %v3005, 16
      %v3091 = vor.u32 %v3088, %v3089
      %v3092 = vrot.slane %v3088, 4
      %v3094 = vshrl.u32 %v3006, 16
      %v3096 = vrot.slane %v3094, 7
      %v3097 = vshll.u32 %v3006, 16
      %v3099 = vor.u32 %v3096, %v3097
      %v3100 = vsel %vm3033, %v3092, %v3099
      %v3101 = vrot.slane %v3096, 4
      %v3103 = vshrl.u32 %v3007, 16
      %v3105 = vrot.slane %v3103, 7
      %v3106 = vshll.u32 %v3007, 16
      %v3108 = vor.u32 %v3105, %v3106
      %v3109 = vrot.slane %v3105, 4
      %v3111 = vshrl.u32 %v3008, 16
      %v3113 = vrot.slane %v3111, 7
      %v3114 = vshll.u32 %v3008, 16
      %v3116 = vor.u32 %v3113, %v3114
      %v3117 = vsel %vm3033, %v3109, %v3116
      %v3118 = vrot.slane %v3113, 4
      %v3120 = vshrl.u32 %v3009, 16
      %v3122 = vrot.slane %v3120, 7
      %v3123 = vshll.u32 %v3009, 16
      %v3125 = vor.u32 %v3122, %v3123
      %v3126 = vrot.slane %v3122, 4
      %v3128 = vshrl.u32 %v3010, 16
      %v3130 = vrot.slane %v3128, 7
      %v3131 = vshll.u32 %v3010, 16
      %v3133 = vor.u32 %v3130, %v3131
      %v3134 = vsel %vm3033, %v3126, %v3133
      %v3135 = vrot.slane %v3130, 4
      %v3137 = vshrl.u32 %v3011, 16
      %v3139 = vrot.slane %v3137, 7
      %v3140 = vshll.u32 %v3011, 16
      %v3142 = vor.u32 %v3139, %v3140
      %v3143 = vrot.slane %v3139, 4
      %v3145 = vshrl.u32 %v3012, 16
      %v3147 = vrot.slane %v3145, 7
      %v3148 = vshll.u32 %v3012, 16
      %v3150 = vor.u32 %v3147, %v3148
      %v3151 = vsel %vm3033, %v3143, %v3150
      %v3152 = vrot.slane %v3147, 4
      %v3154 = vshrl.u32 %v3013, 16
      %v3156 = vrot.slane %v3154, 7
      %v3157 = vshll.u32 %v3013, 16
      %v3159 = vor.u32 %v3156, %v3157
      %v3160 = vrot.slane %v3156, 4
      %v3162 = vshrl.u32 %v3014, 16
      %v3164 = vrot.slane %v3162, 7
      %v3165 = vshll.u32 %v3014, 16
      %v3167 = vor.u32 %v3164, %v3165
      %v3168 = vsel %vm3033, %v3160, %v3167
      %v3169 = vrot.slane %v3164, 4
      %v3171 = vshrl.u32 %v3015, 16
      %v3173 = vrot.slane %v3171, 7
      %v3174 = vshll.u32 %v3015, 16
      %v3176 = vor.u32 %v3173, %v3174
      %v3177 = vrot.slane %v3173, 4
      %v3179 = vshrl.u32 %v3016, 16
      %v3181 = vrot.slane %v3179, 7
      %v3182 = vshll.u32 %v3016, 16
      %v3184 = vor.u32 %v3181, %v3182
      %v3185 = vsel %vm3033, %v3177, %v3184
      %v3186 = vrot.slane %v3181, 4
      %v3188 = vshrl.u32 %v3017, 16
      %v3190 = vrot.slane %v3188, 7
      %v3191 = vshll.u32 %v3017, 16
      %v3193 = vor.u32 %v3190, %v3191
      %v3194 = vrot.slane %v3190, 4
      %v3196 = vshrl.u32 %v3018, 16
      %v3198 = vrot.slane %v3196, 7
      %v3199 = vshll.u32 %v3018, 16
      %v3201 = vor.u32 %v3198, %v3199
      %v3202 = vsel %vm3033, %v3194, %v3201
      %v3203 = vrot.slane %v3198, 4
      %v3205 = vshrl.u32 %v3019, 16
      %v3207 = vrot.slane %v3205, 7
      %v3208 = vshll.u32 %v3019, 16
      %v3210 = vor.u32 %v3207, %v3208
      %v3211 = vrot.slane %v3207, 4
      %v3213 = vshrl.u32 %v3020, 16
      %v3215 = vrot.slane %v3213, 7
      %v3216 = vshll.u32 %v3020, 16
      %v3218 = vor.u32 %v3215, %v3216
      %v3219 = vsel %vm3033, %v3211, %v3218
      %v3220 = vrot.slane %v3215, 4
      %v3222 = vshrl.u32 %v3021, 16
      %v3224 = vrot.slane %v3222, 7
      %v3225 = vshll.u32 %v3021, 16
      %v3227 = vor.u32 %v3224, %v3225
      %v3228 = vrot.slane %v3224, 4
      %v3230 = vshrl.u32 %v3022, 16
      %v3232 = vrot.slane %v3230, 7
      %v3233 = vshll.u32 %v3022, 16
      %v3235 = vor.u32 %v3232, %v3233
      %v3236 = vsel %vm3033, %v3228, %v3235
      %v3237 = vrot.slane %v3232, 4
      %v3239 = vshrl.u32 %v3023, 16
      %v3241 = vrot.slane %v3239, 7
      %v3242 = vshll.u32 %v3023, 16
      %v3244 = vor.u32 %v3241, %v3242
      %v3245 = vrot.slane %v3241, 4
      %v3247 = vshrl.u32 %v3024, 16
      %v3249 = vrot.slane %v3247, 7
      %v3250 = vshll.u32 %v3024, 16
      %v3252 = vor.u32 %v3249, %v3250
      %v3253 = vsel %vm3033, %v3245, %v3252
      %v3254 = vrot.slane %v3249, 4
      %v3256 = vshrl.u32 %v3025, 16
      %v3258 = vrot.slane %v3256, 7
      %v3259 = vshll.u32 %v3025, 16
      %v3261 = vor.u32 %v3258, %v3259
      %v3262 = vrot.slane %v3258, 4
      %v3264 = vshrl.u32 %v3026, 16
      %v3266 = vrot.slane %v3264, 7
      %v3267 = vshll.u32 %v3026, 16
      %v3269 = vor.u32 %v3266, %v3267
      %v3270 = vsel %vm3033, %v3262, %v3269
      %v3271 = vrot.slane %v3266, 4
      %v3273 = vshrl.u32 %v3027, 16
      %v3275 = vrot.slane %v3273, 7
      %v3276 = vshll.u32 %v3027, 16
      %v3278 = vor.u32 %v3275, %v3276
      %v3279 = vrot.slane %v3275, 4
      %v3281 = vshrl.u32 %v3028, 16
      %v3283 = vrot.slane %v3281, 7
      %v3284 = vshll.u32 %v3028, 16
      %v3286 = vor.u32 %v3283, %v3284
      %v3287 = vsel %vm3033, %v3279, %v3286
      %v3288 = vrot.slane %v3283, 4
      %v3290 = vshrl.u32 %v3029, 16
      %v3292 = vrot.slane %v3290, 7
      %v3293 = vshll.u32 %v3029, 16
      %v3295 = vor.u32 %v3292, %v3293
      %v3296 = vrot.slane %v3292, 4
      %v3298 = vshrl.u32 %v3030, 16
      %v3300 = vrot.slane %v3298, 7
      %v3301 = vshll.u32 %v3030, 16
      %v3303 = vor.u32 %v3300, %v3301
      %v3304 = vsel %vm3033, %v3296, %v3303
      %v3305 = vrot.slane %v3300, 4
      %s3354 = scalar_lea.vmem [#allocation3], 12
      %vm3355 = vcmask 1043456
      %vm3356 = vsmask.f32 7938
      %vm3357 = vmand %vm3355, %vm3356
      %v3358 = vld [vmem:[%s3354] sm:$0xf]
      %v3359 = vsel %vm3357, %v3040, %v3358
      %3360 = vst [vmem:[%s3354] sm:$0xf] %v3359
      %3361 = vst [vmem:[%s3354 + $0x4] sm:$0xf] %v3049
      %vm3362 = vcmask 1040384
      %vm3363 = vmand %vm3362, %vm3031
      %v3364 = vld [vmem:[%s3354 + $0x8] sm:$0x1]
      %v3365 = vsel %vm3363, %v3050, %v3364
      %3366 = vst [vmem:[%s3354 + $0x8] sm:$0x1] %v3365
      %v3367 = vld [vmem:[%s3354 + $0xc] sm:$0xf]
      %v3368 = vsel %vm3357, %v3057, %v3367
      %3369 = vst [vmem:[%s3354 + $0xc] sm:$0xf] %v3368
      %3370 = vst [vmem:[%s3354 + $0x10] sm:$0xf] %v3066
      %v3371 = vld [vmem:[%s3354 + $0x14] sm:$0x1]
      %v3372 = vsel %vm3363, %v3067, %v3371
      %3373 = vst [vmem:[%s3354 + $0x14] sm:$0x1] %v3372
      %v3374 = vld [vmem:[%s3354 + $0x18] sm:$0xf]
      %v3375 = vsel %vm3357, %v3074, %v3374
      %3376 = vst [vmem:[%s3354 + $0x18] sm:$0xf] %v3375
      %3377 = vst [vmem:[%s3354 + $0x1c] sm:$0xf] %v3083
      %v3378 = vld [vmem:[%s3354 + $0x20] sm:$0x1]
      %v3379 = vsel %vm3363, %v3084, %v3378
      %3380 = vst [vmem:[%s3354 + $0x20] sm:$0x1] %v3379
      %v3381 = vld [vmem:[%s3354 + $0x24] sm:$0xf]
      %v3382 = vsel %vm3357, %v3091, %v3381
      %3383 = vst [vmem:[%s3354 + $0x24] sm:$0xf] %v3382
      %3384 = vst [vmem:[%s3354 + $0x28] sm:$0xf] %v3100
      %v3385 = vld [vmem:[%s3354 + $0x2c] sm:$0x1]
      %v3386 = vsel %vm3363, %v3101, %v3385
      %3387 = vst [vmem:[%s3354 + $0x2c] sm:$0x1] %v3386
      %v3388 = vld [vmem:[%s3354 + $0x30] sm:$0xf]
      %v3389 = vsel %vm3357, %v3108, %v3388
      %3390 = vst [vmem:[%s3354 + $0x30] sm:$0xf] %v3389
      %3391 = vst [vmem:[%s3354 + $0x34] sm:$0xf] %v3117
      %v3392 = vld [vmem:[%s3354 + $0x38] sm:$0x1]
      %v3393 = vsel %vm3363, %v3118, %v3392
      %3394 = vst [vmem:[%s3354 + $0x38] sm:$0x1] %v3393
      %v3395 = vld [vmem:[%s3354 + $0x3c] sm:$0xf]
      %v3396 = vsel %vm3357, %v3125, %v3395
      %3397 = vst [vmem:[%s3354 + $0x3c] sm:$0xf] %v3396
      %3398 = vst [vmem:[%s3354 + $0x40] sm:$0xf] %v3134
      %v3399 = vld [vmem:[%s3354 + $0x44] sm:$0x1]
      %v3400 = vsel %vm3363, %v3135, %v3399
      %3401 = vst [vmem:[%s3354 + $0x44] sm:$0x1] %v3400
      %v3402 = vld [vmem:[%s3354 + $0x48] sm:$0xf]
      %v3403 = vsel %vm3357, %v3142, %v3402
      %3404 = vst [vmem:[%s3354 + $0x48] sm:$0xf] %v3403
      %3405 = vst [vmem:[%s3354 + $0x4c] sm:$0xf] %v3151
      %v3406 = vld [vmem:[%s3354 + $0x50] sm:$0x1]
      %v3407 = vsel %vm3363, %v3152, %v3406
      %3408 = vst [vmem:[%s3354 + $0x50] sm:$0x1] %v3407
      %v3409 = vld [vmem:[%s3354 + $0x54] sm:$0xf]
      %v3410 = vsel %vm3357, %v3159, %v3409
      %3411 = vst [vmem:[%s3354 + $0x54] sm:$0xf] %v3410
      %3412 = vst [vmem:[%s3354 + $0x58] sm:$0xf] %v3168
      %v3413 = vld [vmem:[%s3354 + $0x5c] sm:$0x1]
      %v3414 = vsel %vm3363, %v3169, %v3413
      %3415 = vst [vmem:[%s3354 + $0x5c] sm:$0x1] %v3414
      %v3416 = vld [vmem:[%s3354 + $0x60] sm:$0xf]
      %v3417 = vsel %vm3357, %v3176, %v3416
      %3418 = vst [vmem:[%s3354 + $0x60] sm:$0xf] %v3417
      %3419 = vst [vmem:[%s3354 + $0x64] sm:$0xf] %v3185
      %v3420 = vld [vmem:[%s3354 + $0x68] sm:$0x1]
      %v3421 = vsel %vm3363, %v3186, %v3420
      %3422 = vst [vmem:[%s3354 + $0x68] sm:$0x1] %v3421
      %v3423 = vld [vmem:[%s3354 + $0x6c] sm:$0xf]
      %v3424 = vsel %vm3357, %v3193, %v3423
      %3425 = vst [vmem:[%s3354 + $0x6c] sm:$0xf] %v3424
      %3426 = vst [vmem:[%s3354 + $0x70] sm:$0xf] %v3202
      %v3427 = vld [vmem:[%s3354 + $0x74] sm:$0x1]
      %v3428 = vsel %vm3363, %v3203, %v3427
      %3429 = vst [vmem:[%s3354 + $0x74] sm:$0x1] %v3428
      %v3430 = vld [vmem:[%s3354 + $0x78] sm:$0xf]
      %v3431 = vsel %vm3357, %v3210, %v3430
      %3432 = vst [vmem:[%s3354 + $0x78] sm:$0xf] %v3431
      %3433 = vst [vmem:[%s3354 + $0x7c] sm:$0xf] %v3219
      %v3434 = vld [vmem:[%s3354 + $0x80] sm:$0x1]
      %v3435 = vsel %vm3363, %v3220, %v3434
      %3436 = vst [vmem:[%s3354 + $0x80] sm:$0x1] %v3435
      %v3437 = vld [vmem:[%s3354 + $0x84] sm:$0xf]
      %v3438 = vsel %vm3357, %v3227, %v3437
      %3439 = vst [vmem:[%s3354 + $0x84] sm:$0xf] %v3438
      %3440 = vst [vmem:[%s3354 + $0x88] sm:$0xf] %v3236
      %v3441 = vld [vmem:[%s3354 + $0x8c] sm:$0x1]
      %v3442 = vsel %vm3363, %v3237, %v3441
      %3443 = vst [vmem:[%s3354 + $0x8c] sm:$0x1] %v3442
      %v3444 = vld [vmem:[%s3354 + $0x90] sm:$0xf]
      %v3445 = vsel %vm3357, %v3244, %v3444
      %3446 = vst [vmem:[%s3354 + $0x90] sm:$0xf] %v3445
      %3447 = vst [vmem:[%s3354 + $0x94] sm:$0xf] %v3253
      %v3448 = vld [vmem:[%s3354 + $0x98] sm:$0x1]
      %v3449 = vsel %vm3363, %v3254, %v3448
      %3450 = vst [vmem:[%s3354 + $0x98] sm:$0x1] %v3449
      %v3451 = vld [vmem:[%s3354 + $0x9c] sm:$0xf]
      %v3452 = vsel %vm3357, %v3261, %v3451
      %3453 = vst [vmem:[%s3354 + $0x9c] sm:$0xf] %v3452
      %3454 = vst [vmem:[%s3354 + $0xa0] sm:$0xf] %v3270
      %v3455 = vld [vmem:[%s3354 + $0xa4] sm:$0x1]
      %v3456 = vsel %vm3363, %v3271, %v3455
      %3457 = vst [vmem:[%s3354 + $0xa4] sm:$0x1] %v3456
      %v3458 = vld [vmem:[%s3354 + $0xa8] sm:$0xf]
      %v3459 = vsel %vm3357, %v3278, %v3458
      %3460 = vst [vmem:[%s3354 + $0xa8] sm:$0xf] %v3459
      %3461 = vst [vmem:[%s3354 + $0xac] sm:$0xf] %v3287
      %v3462 = vld [vmem:[%s3354 + $0xb0] sm:$0x1]
      %v3463 = vsel %vm3363, %v3288, %v3462
      %3464 = vst [vmem:[%s3354 + $0xb0] sm:$0x1] %v3463
      %v3465 = vld [vmem:[%s3354 + $0xb4] sm:$0xf]
      %v3466 = vsel %vm3357, %v3295, %v3465
      %3467 = vst [vmem:[%s3354 + $0xb4] sm:$0xf] %v3466
      %3468 = vst [vmem:[%s3354 + $0xb8] sm:$0xf] %v3304
      %v3469 = vld [vmem:[%s3354 + $0xbc] sm:$0x1]
      %v3470 = vsel %vm3363, %v3305, %v3469
      %3471 = vst [vmem:[%s3354 + $0xbc] sm:$0x1] %v3470
      %v3472 = vld [vmem:[#allocation3] sm:$0xf]
      %v3473 = vld [vmem:[#allocation3 + $0x4] sm:$0xf]
      %v3474 = vld [vmem:[#allocation3 + $0xc] sm:$0xf]
      %v3475 = vld [vmem:[#allocation3 + $0x10] sm:$0xf]
      %v3476 = vld [vmem:[#allocation3 + $0x18] sm:$0xf]
      %v3477 = vld [vmem:[#allocation3 + $0x1c] sm:$0xf]
      %v3478 = vld [vmem:[#allocation3 + $0x24] sm:$0xf]
      %v3479 = vld [vmem:[#allocation3 + $0x28] sm:$0xf]
      %v3480 = vld [vmem:[#allocation3 + $0x30] sm:$0xf]
      %v3481 = vld [vmem:[#allocation3 + $0x34] sm:$0xf]
      %v3482 = vld [vmem:[#allocation3 + $0x3c] sm:$0xf]
      %v3483 = vld [vmem:[#allocation3 + $0x40] sm:$0xf]
      %v3484 = vld [vmem:[#allocation3 + $0x48] sm:$0xf]
      %v3485 = vld [vmem:[#allocation3 + $0x4c] sm:$0xf]
      %v3486 = vld [vmem:[#allocation3 + $0x54] sm:$0xf]
      %v3487 = vld [vmem:[#allocation3 + $0x58] sm:$0xf]
      %v3488 = vld [vmem:[#allocation3 + $0x60] sm:$0xf]
      %v3489 = vld [vmem:[#allocation3 + $0x64] sm:$0xf]
      %v3490 = vld [vmem:[#allocation3 + $0x6c] sm:$0xf]
      %v3491 = vld [vmem:[#allocation3 + $0x70] sm:$0xf]
      %v3492 = vld [vmem:[#allocation3 + $0x78] sm:$0xf]
      %v3493 = vld [vmem:[#allocation3 + $0x7c] sm:$0xf]
      %v3494 = vld [vmem:[#allocation3 + $0x84] sm:$0xf]
      %v3495 = vld [vmem:[#allocation3 + $0x88] sm:$0xf]
      %v3496 = vld [vmem:[#allocation3 + $0x90] sm:$0xf]
      %v3497 = vld [vmem:[#allocation3 + $0x94] sm:$0xf]
      %v3498 = vld [vmem:[#allocation3 + $0x9c] sm:$0xf]
      %v3499 = vld [vmem:[#allocation3 + $0xa0] sm:$0xf]
      %v3500 = vld [vmem:[#allocation3 + $0xa8] sm:$0xf]
      %v3501 = vld [vmem:[#allocation3 + $0xac] sm:$0xf]
      %v3502 = vld [vmem:[#allocation3 + $0xb4] sm:$0xf]
      %v3503 = vld [vmem:[#allocation3 + $0xb8] sm:$0xf]
      %v3504 = vld [vmem:[%s3] sm:$0xf]
      %v3505 = vld [vmem:[%s3 + $0x4] sm:$0xf]
      %v3506 = vld [vmem:[%s3 + $0x8] sm:$0xf]
      %v3507 = vld [vmem:[%s3 + $0xc] sm:$0xf]
      %v3508 = vld [vmem:[%s3 + $0x10] sm:$0xf]
      %v3509 = vld [vmem:[%s3 + $0x14] sm:$0xf]
      %v3510 = vld [vmem:[%s3 + $0x18] sm:$0xf]
      %v3511 = vld [vmem:[%s3 + $0x1c] sm:$0xf]
      %v3512 = vld [vmem:[%s3 + $0x20] sm:$0xf]
      %v3513 = vld [vmem:[%s3 + $0x24] sm:$0xf]
      %v3514 = vld [vmem:[%s3 + $0x28] sm:$0xf]
      %v3515 = vld [vmem:[%s3 + $0x2c] sm:$0xf]
      %v3516 = vld [vmem:[%s3 + $0x30] sm:$0xf]
      %v3517 = vld [vmem:[%s3 + $0x34] sm:$0xf]
      %v3518 = vld [vmem:[%s3 + $0x38] sm:$0xf]
      %v3519 = vld [vmem:[%s3 + $0x3c] sm:$0xf]
      %v3520 = vld [vmem:[#allocation3 + $0x8] sm:$0x1]
      %v3521 = vld [vmem:[#allocation3 + $0x14] sm:$0x1]
      %v3522 = vld [vmem:[#allocation3 + $0x20] sm:$0x1]
      %v3523 = vld [vmem:[#allocation3 + $0x2c] sm:$0x1]
      %v3524 = vld [vmem:[#allocation3 + $0x38] sm:$0x1]
      %v3525 = vld [vmem:[#allocation3 + $0x44] sm:$0x1]
      %v3526 = vld [vmem:[#allocation3 + $0x50] sm:$0x1]
      %v3527 = vld [vmem:[#allocation3 + $0x5c] sm:$0x1]
      %v3528 = vld [vmem:[#allocation3 + $0x68] sm:$0x1]
      %v3529 = vld [vmem:[#allocation3 + $0x74] sm:$0x1]
      %v3530 = vld [vmem:[#allocation3 + $0x80] sm:$0x1]
      %v3531 = vld [vmem:[#allocation3 + $0x8c] sm:$0x1]
      %v3532 = vld [vmem:[#allocation3 + $0x98] sm:$0x1]
      %v3533 = vld [vmem:[#allocation3 + $0xa4] sm:$0x1]
      %v3534 = vld [vmem:[#allocation3 + $0xb0] sm:$0x1]
      %v3535 = vld [vmem:[#allocation3 + $0xbc] sm:$0x1]
      %vm3536 = vsmask.f32 3328
      %vm3537 = vsmask.f32 7440
      %vm3538 = vmor %vm3536, %vm3537
      %v3540 = vshrl.u32 %v3472, 16
      %v3542 = vrot.slane %v3540, 4
      %v3543 = vshll.u32 %v3472, 16
      %v3545 = vrot.slane %v3543, 5
      %v3546 = vor.u32 %v3542, %v3545
      %v3547 = vrot.slane %v3546, 4
      %v3549 = vshll.u32 %v3473, 16
      %v3551 = vrot.slane %v3549, 5
      %v3552 = vsel %vm3538, %v3547, %v3551
      %v3553 = vshrl.u32 %v3473, 16
      %v3555 = vrot.slane %v3553, 4
      %v3556 = vor.u32 %v3555, %v3551
      %v3557 = vrot.slane %v3556, 4
      %v3559 = vshll.u32 %v3520, 16
      %v3561 = vrot.slane %v3559, 5
      %v3562 = vsel %vm3538, %v3557, %v3561
      %v3564 = vshrl.u32 %v3474, 16
      %v3566 = vrot.slane %v3564, 4
      %v3567 = vshll.u32 %v3474, 16
      %v3569 = vrot.slane %v3567, 5
      %v3570 = vor.u32 %v3566, %v3569
      %v3571 = vrot.slane %v3570, 4
      %v3573 = vshll.u32 %v3475, 16
      %v3575 = vrot.slane %v3573, 5
      %v3576 = vsel %vm3538, %v3571, %v3575
      %v3577 = vshrl.u32 %v3475, 16
      %v3579 = vrot.slane %v3577, 4
      %v3580 = vor.u32 %v3579, %v3575
      %v3581 = vrot.slane %v3580, 4
      %v3583 = vshll.u32 %v3521, 16
      %v3585 = vrot.slane %v3583, 5
      %v3586 = vsel %vm3538, %v3581, %v3585
      %v3588 = vshrl.u32 %v3476, 16
      %v3590 = vrot.slane %v3588, 4
      %v3591 = vshll.u32 %v3476, 16
      %v3593 = vrot.slane %v3591, 5
      %v3594 = vor.u32 %v3590, %v3593
      %v3595 = vrot.slane %v3594, 4
      %v3597 = vshll.u32 %v3477, 16
      %v3599 = vrot.slane %v3597, 5
      %v3600 = vsel %vm3538, %v3595, %v3599
      %v3601 = vshrl.u32 %v3477, 16
      %v3603 = vrot.slane %v3601, 4
      %v3604 = vor.u32 %v3603, %v3599
      %v3605 = vrot.slane %v3604, 4
      %v3607 = vshll.u32 %v3522, 16
      %v3609 = vrot.slane %v3607, 5
      %v3610 = vsel %vm3538, %v3605, %v3609
      %v3612 = vshrl.u32 %v3478, 16
      %v3614 = vrot.slane %v3612, 4
      %v3615 = vshll.u32 %v3478, 16
      %v3617 = vrot.slane %v3615, 5
      %v3618 = vor.u32 %v3614, %v3617
      %v3619 = vrot.slane %v3618, 4
      %v3621 = vshll.u32 %v3479, 16
      %v3623 = vrot.slane %v3621, 5
      %v3624 = vsel %vm3538, %v3619, %v3623
      %v3625 = vshrl.u32 %v3479, 16
      %v3627 = vrot.slane %v3625, 4
      %v3628 = vor.u32 %v3627, %v3623
      %v3629 = vrot.slane %v3628, 4
      %v3631 = vshll.u32 %v3523, 16
      %v3633 = vrot.slane %v3631, 5
      %v3634 = vsel %vm3538, %v3629, %v3633
      %v3636 = vshrl.u32 %v3480, 16
      %v3638 = vrot.slane %v3636, 4
      %v3639 = vshll.u32 %v3480, 16
      %v3641 = vrot.slane %v3639, 5
      %v3642 = vor.u32 %v3638, %v3641
      %v3643 = vrot.slane %v3642, 4
      %v3645 = vshll.u32 %v3481, 16
      %v3647 = vrot.slane %v3645, 5
      %v3648 = vsel %vm3538, %v3643, %v3647
      %v3649 = vshrl.u32 %v3481, 16
      %v3651 = vrot.slane %v3649, 4
      %v3652 = vor.u32 %v3651, %v3647
      %v3653 = vrot.slane %v3652, 4
      %v3655 = vshll.u32 %v3524, 16
      %v3657 = vrot.slane %v3655, 5
      %v3658 = vsel %vm3538, %v3653, %v3657
      %v3660 = vshrl.u32 %v3482, 16
      %v3662 = vrot.slane %v3660, 4
      %v3663 = vshll.u32 %v3482, 16
      %v3665 = vrot.slane %v3663, 5
      %v3666 = vor.u32 %v3662, %v3665
      %v3667 = vrot.slane %v3666, 4
      %v3669 = vshll.u32 %v3483, 16
      %v3671 = vrot.slane %v3669, 5
      %v3672 = vsel %vm3538, %v3667, %v3671
      %v3673 = vshrl.u32 %v3483, 16
      %v3675 = vrot.slane %v3673, 4
      %v3676 = vor.u32 %v3675, %v3671
      %v3677 = vrot.slane %v3676, 4
      %v3679 = vshll.u32 %v3525, 16
      %v3681 = vrot.slane %v3679, 5
      %v3682 = vsel %vm3538, %v3677, %v3681
      %v3684 = vshrl.u32 %v3484, 16
      %v3686 = vrot.slane %v3684, 4
      %v3687 = vshll.u32 %v3484, 16
      %v3689 = vrot.slane %v3687, 5
      %v3690 = vor.u32 %v3686, %v3689
      %v3691 = vrot.slane %v3690, 4
      %v3693 = vshll.u32 %v3485, 16
      %v3695 = vrot.slane %v3693, 5
      %v3696 = vsel %vm3538, %v3691, %v3695
      %v3697 = vshrl.u32 %v3485, 16
      %v3699 = vrot.slane %v3697, 4
      %v3700 = vor.u32 %v3699, %v3695
      %v3701 = vrot.slane %v3700, 4
      %v3703 = vshll.u32 %v3526, 16
      %v3705 = vrot.slane %v3703, 5
      %v3706 = vsel %vm3538, %v3701, %v3705
      %v3708 = vshrl.u32 %v3486, 16
      %v3710 = vrot.slane %v3708, 4
      %v3711 = vshll.u32 %v3486, 16
      %v3713 = vrot.slane %v3711, 5
      %v3714 = vor.u32 %v3710, %v3713
      %v3715 = vrot.slane %v3714, 4
      %v3717 = vshll.u32 %v3487, 16
      %v3719 = vrot.slane %v3717, 5
      %v3720 = vsel %vm3538, %v3715, %v3719
      %v3721 = vshrl.u32 %v3487, 16
      %v3723 = vrot.slane %v3721, 4
      %v3724 = vor.u32 %v3723, %v3719
      %v3725 = vrot.slane %v3724, 4
      %v3727 = vshll.u32 %v3527, 16
      %v3729 = vrot.slane %v3727, 5
      %v3730 = vsel %vm3538, %v3725, %v3729
      %v3732 = vshrl.u32 %v3488, 16
      %v3734 = vrot.slane %v3732, 4
      %v3735 = vshll.u32 %v3488, 16
      %v3737 = vrot.slane %v3735, 5
      %v3738 = vor.u32 %v3734, %v3737
      %v3739 = vrot.slane %v3738, 4
      %v3741 = vshll.u32 %v3489, 16
      %v3743 = vrot.slane %v3741, 5
      %v3744 = vsel %vm3538, %v3739, %v3743
      %v3745 = vshrl.u32 %v3489, 16
      %v3747 = vrot.slane %v3745, 4
      %v3748 = vor.u32 %v3747, %v3743
      %v3749 = vrot.slane %v3748, 4
      %v3751 = vshll.u32 %v3528, 16
      %v3753 = vrot.slane %v3751, 5
      %v3754 = vsel %vm3538, %v3749, %v3753
      %v3756 = vshrl.u32 %v3490, 16
      %v3758 = vrot.slane %v3756, 4
      %v3759 = vshll.u32 %v3490, 16
      %v3761 = vrot.slane %v3759, 5
      %v3762 = vor.u32 %v3758, %v3761
      %v3763 = vrot.slane %v3762, 4
      %v3765 = vshll.u32 %v3491, 16
      %v3767 = vrot.slane %v3765, 5
      %v3768 = vsel %vm3538, %v3763, %v3767
      %v3769 = vshrl.u32 %v3491, 16
      %v3771 = vrot.slane %v3769, 4
      %v3772 = vor.u32 %v3771, %v3767
      %v3773 = vrot.slane %v3772, 4
      %v3775 = vshll.u32 %v3529, 16
      %v3777 = vrot.slane %v3775, 5
      %v3778 = vsel %vm3538, %v3773, %v3777
      %v3780 = vshrl.u32 %v3492, 16
      %v3782 = vrot.slane %v3780, 4
      %v3783 = vshll.u32 %v3492, 16
      %v3785 = vrot.slane %v3783, 5
      %v3786 = vor.u32 %v3782, %v3785
      %v3787 = vrot.slane %v3786, 4
      %v3789 = vshll.u32 %v3493, 16
      %v3791 = vrot.slane %v3789, 5
      %v3792 = vsel %vm3538, %v3787, %v3791
      %v3793 = vshrl.u32 %v3493, 16
      %v3795 = vrot.slane %v3793, 4
      %v3796 = vor.u32 %v3795, %v3791
      %v3797 = vrot.slane %v3796, 4
      %v3799 = vshll.u32 %v3530, 16
      %v3801 = vrot.slane %v3799, 5
      %v3802 = vsel %vm3538, %v3797, %v3801
      %v3804 = vshrl.u32 %v3494, 16
      %v3806 = vrot.slane %v3804, 4
      %v3807 = vshll.u32 %v3494, 16
      %v3809 = vrot.slane %v3807, 5
      %v3810 = vor.u32 %v3806, %v3809
      %v3811 = vrot.slane %v3810, 4
      %v3813 = vshll.u32 %v3495, 16
      %v3815 = vrot.slane %v3813, 5
      %v3816 = vsel %vm3538, %v3811, %v3815
      %v3817 = vshrl.u32 %v3495, 16
      %v3819 = vrot.slane %v3817, 4
      %v3820 = vor.u32 %v3819, %v3815
      %v3821 = vrot.slane %v3820, 4
      %v3823 = vshll.u32 %v3531, 16
      %v3825 = vrot.slane %v3823, 5
      %v3826 = vsel %vm3538, %v3821, %v3825
      %v3828 = vshrl.u32 %v3496, 16
      %v3830 = vrot.slane %v3828, 4
      %v3831 = vshll.u32 %v3496, 16
      %v3833 = vrot.slane %v3831, 5
      %v3834 = vor.u32 %v3830, %v3833
      %v3835 = vrot.slane %v3834, 4
      %v3837 = vshll.u32 %v3497, 16
      %v3839 = vrot.slane %v3837, 5
      %v3840 = vsel %vm3538, %v3835, %v3839
      %v3841 = vshrl.u32 %v3497, 16
      %v3843 = vrot.slane %v3841, 4
      %v3844 = vor.u32 %v3843, %v3839
      %v3845 = vrot.slane %v3844, 4
      %v3847 = vshll.u32 %v3532, 16
      %v3849 = vrot.slane %v3847, 5
      %v3850 = vsel %vm3538, %v3845, %v3849
      %v3852 = vshrl.u32 %v3498, 16
      %v3854 = vrot.slane %v3852, 4
      %v3855 = vshll.u32 %v3498, 16
      %v3857 = vrot.slane %v3855, 5
      %v3858 = vor.u32 %v3854, %v3857
      %v3859 = vrot.slane %v3858, 4
      %v3861 = vshll.u32 %v3499, 16
      %v3863 = vrot.slane %v3861, 5
      %v3864 = vsel %vm3538, %v3859, %v3863
      %v3865 = vshrl.u32 %v3499, 16
      %v3867 = vrot.slane %v3865, 4
      %v3868 = vor.u32 %v3867, %v3863
      %v3869 = vrot.slane %v3868, 4
      %v3871 = vshll.u32 %v3533, 16
      %v3873 = vrot.slane %v3871, 5
      %v3874 = vsel %vm3538, %v3869, %v3873
      %v3876 = vshrl.u32 %v3500, 16
      %v3878 = vrot.slane %v3876, 4
      %v3879 = vshll.u32 %v3500, 16
      %v3881 = vrot.slane %v3879, 5
      %v3882 = vor.u32 %v3878, %v3881
      %v3883 = vrot.slane %v3882, 4
      %v3885 = vshll.u32 %v3501, 16
      %v3887 = vrot.slane %v3885, 5
      %v3888 = vsel %vm3538, %v3883, %v3887
      %v3889 = vshrl.u32 %v3501, 16
      %v3891 = vrot.slane %v3889, 4
      %v3892 = vor.u32 %v3891, %v3887
      %v3893 = vrot.slane %v3892, 4
      %v3895 = vshll.u32 %v3534, 16
      %v3897 = vrot.slane %v3895, 5
      %v3898 = vsel %vm3538, %v3893, %v3897
      %v3900 = vshrl.u32 %v3502, 16
      %v3902 = vrot.slane %v3900, 4
      %v3903 = vshll.u32 %v3502, 16
      %v3905 = vrot.slane %v3903, 5
      %v3906 = vor.u32 %v3902, %v3905
      %v3907 = vrot.slane %v3906, 4
      %v3909 = vshll.u32 %v3503, 16
      %v3911 = vrot.slane %v3909, 5
      %v3912 = vsel %vm3538, %v3907, %v3911
      %v3913 = vshrl.u32 %v3503, 16
      %v3915 = vrot.slane %v3913, 4
      %v3916 = vor.u32 %v3915, %v3911
      %v3917 = vrot.slane %v3916, 4
      %v3919 = vshll.u32 %v3535, 16
      %v3921 = vrot.slane %v3919, 5
      %v3922 = vsel %vm3538, %v3917, %v3921
      %s3923 = scalar_lea.vmem %s3, 64
      %v3924 = vld [vmem:[%s3923] sm:$0xf]
      %v3925 = vld [vmem:[%s3923 + $0x4] sm:$0xf]
      %v3926 = vld [vmem:[%s3923 + $0x8] sm:$0xf]
      %v3927 = vld [vmem:[%s3923 + $0xc] sm:$0xf]
      %v3928 = vld [vmem:[%s3923 + $0x10] sm:$0xf]
      %v3929 = vld [vmem:[%s3923 + $0x14] sm:$0xf]
      %v3930 = vld [vmem:[%s3923 + $0x18] sm:$0xf]
      %v3931 = vld [vmem:[%s3923 + $0x1c] sm:$0xf]
      %v3932 = vld [vmem:[%s3923 + $0x20] sm:$0xf]
      %v3933 = vld [vmem:[%s3923 + $0x24] sm:$0xf]
      %v3934 = vld [vmem:[%s3923 + $0x28] sm:$0xf]
      %v3935 = vld [vmem:[%s3923 + $0x2c] sm:$0xf]
      %v3936 = vld [vmem:[%s3923 + $0x30] sm:$0xf]
      %v3937 = vld [vmem:[%s3923 + $0x34] sm:$0xf]
      %v3938 = vld [vmem:[%s3923 + $0x38] sm:$0xf]
      %v3939 = vld [vmem:[%s3923 + $0x3c] sm:$0xf]
      %v3940 = vunpack.c.l.b16 %v3552
      %v3941 = vunpack.c.l.b16 %v3562
      %v3942 = vunpack.c.l.b16 %v3576
      %v3943 = vunpack.c.l.b16 %v3586
      %v3944 = vunpack.c.l.b16 %v3600
      %v3945 = vunpack.c.l.b16 %v3610
      %v3946 = vunpack.c.l.b16 %v3624
      %v3947 = vunpack.c.l.b16 %v3634
      %v3948 = vunpack.c.l.b16 %v3648
      %v3949 = vunpack.c.l.b16 %v3658
      %v3950 = vunpack.c.l.b16 %v3672
      %v3951 = vunpack.c.l.b16 %v3682
      %v3952 = vunpack.c.l.b16 %v3696
      %v3953 = vunpack.c.l.b16 %v3706
      %v3954 = vunpack.c.l.b16 %v3720
      %v3955 = vunpack.c.l.b16 %v3730
      %v3956 = vunpack.c.l.b16 %v3744
      %v3957 = vunpack.c.l.b16 %v3754
      %v3958 = vunpack.c.l.b16 %v3768
      %v3959 = vunpack.c.l.b16 %v3778
      %v3960 = vunpack.c.l.b16 %v3792
      %v3961 = vunpack.c.l.b16 %v3802
      %v3962 = vunpack.c.l.b16 %v3816
      %v3963 = vunpack.c.l.b16 %v3826
      %v3964 = vunpack.c.l.b16 %v3840
      %v3965 = vunpack.c.l.b16 %v3850
      %v3966 = vunpack.c.l.b16 %v3864
      %v3967 = vunpack.c.l.b16 %v3874
      %v3968 = vunpack.c.l.b16 %v3888
      %v3969 = vunpack.c.l.b16 %v3898
      %v3970 = vunpack.c.l.b16 %v3912
      %v3971 = vunpack.c.l.b16 %v3922
      %v3972 = vpack.c.b16 %v3941, %v3940
      %v3973 = vpack.c.b16 %v3943, %v3942
      %v3974 = vpack.c.b16 %v3945, %v3944
      %v3975 = vpack.c.b16 %v3947, %v3946
      %v3976 = vpack.c.b16 %v3949, %v3948
      %v3977 = vpack.c.b16 %v3951, %v3950
      %v3978 = vpack.c.b16 %v3953, %v3952
      %v3979 = vpack.c.b16 %v3955, %v3954
      %v3980 = vpack.c.b16 %v3957, %v3956
      %v3981 = vpack.c.b16 %v3959, %v3958
      %v3982 = vpack.c.b16 %v3961, %v3960
      %v3983 = vpack.c.b16 %v3963, %v3962
      %v3984 = vpack.c.b16 %v3965, %v3964
      %v3985 = vpack.c.b16 %v3967, %v3966
      %v3986 = vpack.c.b16 %v3969, %v3968
      %v3987 = vpack.c.b16 %v3971, %v3970
      %v4020 = vunpack.c.l.b16 %v3924
      %v4021 = vunpack.c.l.b16 %v3925
      %v4022 = vunpack.c.l.b16 %v3926
      %v4023 = vunpack.c.l.b16 %v3927
      %v4024 = vunpack.c.l.b16 %v3928
      %v4025 = vunpack.c.l.b16 %v3929
      %v4026 = vunpack.c.l.b16 %v3930
      %v4027 = vunpack.c.l.b16 %v3931
      %v4028 = vunpack.c.l.b16 %v3932
      %v4029 = vunpack.c.l.b16 %v3933
      %v4030 = vunpack.c.l.b16 %v3934
      %v4031 = vunpack.c.l.b16 %v3935
      %v4032 = vunpack.c.l.b16 %v3936
      %v4033 = vunpack.c.l.b16 %v3937
      %v4034 = vunpack.c.l.b16 %v3938
      %v4035 = vunpack.c.l.b16 %v3939
      %v4036 = vpack.c.b16 %v4021, %v4020
      %v4037 = vpack.c.b16 %v4023, %v4022
      %v4038 = vpack.c.b16 %v4025, %v4024
      %v4039 = vpack.c.b16 %v4027, %v4026
      %v4040 = vpack.c.b16 %v4029, %v4028
      %v4041 = vpack.c.b16 %v4031, %v4030
      %v4042 = vpack.c.b16 %v4033, %v4032
      %v4043 = vpack.c.b16 %v4035, %v4034
      %4052 = vmatprep.subr.bf16.mxu0 0
      %4053 = vmatpush1.bf16.msra.mxu0 %v4036
      %4054 = vmatprep.subr.bf16.mxu0 0
      %4055 = vmatpush1.bf16.msra.mxu0 %v4037
      %4056 = vmatprep.subr.bf16.mxu0 0
      %4057 = vmatpush1.bf16.msra.mxu0 %v4038
      %4058 = vmatprep.subr.bf16.mxu0 0
      %4059 = vmatpush1.bf16.msra.mxu0 %v4039
      %4060 = vmatprep.subr.bf16.mxu0 0
      %4061 = vmatpush1.bf16.msra.mxu0 %v4040
      %4062 = vmatprep.subr.bf16.mxu0 0
      %4063 = vmatpush1.bf16.msra.mxu0 %v4041
      %4064 = vmatprep.subr.bf16.mxu0 0
      %4065 = vmatpush1.bf16.msra.mxu0 %v4042
      %4066 = vmatprep.subr.bf16.mxu0 0
      %4067 = vmatpush1.bf16.msra.mxu0 %v4043
      %4068 = vmatprep.subr.bf16.mxu0 0
      %4069 = vmatpush1.bf16.msra.mxu0 0
      %4070 = vmatprep.subr.bf16.mxu0 0
      %4071 = vmatpush1.bf16.msra.mxu0 0
      %4072 = vmatprep.subr.bf16.mxu0 0
      %4073 = vmatpush1.bf16.msra.mxu0 0
      %4074 = vmatprep.subr.bf16.mxu0 0
      %4075 = vmatpush1.bf16.msra.mxu0 0
      %4076 = vmatprep.subr.bf16.mxu0 0
      %4077 = vmatpush1.bf16.msra.mxu0 0
      %4078 = vmatprep.subr.bf16.mxu0 0
      %4079 = vmatpush1.bf16.msra.mxu0 0
      %4080 = vmatprep.subr.bf16.mxu0 0
      %4081 = vmatpush1.bf16.msra.mxu0 0
      %4082 = vmatprep.subr.bf16.mxu0 0
      %4083 = vmatpush1.bf16.msra.mxu0 0
      %4084 = vmatprep.mubr.bf16.mxu0 0
      %4085 = vmatmul.mubr.bf16.gmra.mrb[0].mxu0 %v3972
      %v4086 = vpop.f32.mrb[0].mxu0
      %v4087 = vadd.f32 0.0, %v4086
      %v4088 = vpop.f32.mrb[0].mxu0
      %v4089 = vpop.f32.mrb[0].mxu0
      %v4090 = vadd.f32 0.0, %v4089
      %v4091 = vpop.f32.mrb[0].mxu0
      %4092 = vmatprep.mubr.bf16.mxu0 0
      %4093 = vmatmul.mubr.bf16.gmra.mrb[0].mxu0 %v3973
      %v4094 = vpop.f32.mrb[0].mxu0
      %v4095 = vadd.f32 0.0, %v4094
      %v4096 = vpop.f32.mrb[0].mxu0
      %v4097 = vpop.f32.mrb[0].mxu0
      %v4098 = vadd.f32 0.0, %v4097
      %v4099 = vpop.f32.mrb[0].mxu0
      %4100 = vmatprep.mubr.bf16.mxu0 0
      %4101 = vmatmul.mubr.bf16.gmra.mrb[0].mxu0 %v3974
      %v4102 = vpop.f32.mrb[0].mxu0
      %v4103 = vadd.f32 0.0, %v4102
      %v4104 = vpop.f32.mrb[0].mxu0
      %v4105 = vpop.f32.mrb[0].mxu0
      %v4106 = vadd.f32 0.0, %v4105
      %v4107 = vpop.f32.mrb[0].mxu0
      %4108 = vmatprep.mubr.bf16.mxu0 0
      %4109 = vmatmul.mubr.bf16.gmra.mrb[0].mxu0 %v3975
      %v4110 = vpop.f32.mrb[0].mxu0
      %v4111 = vadd.f32 0.0, %v4110
      %v4112 = vpop.f32.mrb[0].mxu0
      %v4113 = vpop.f32.mrb[0].mxu0
      %v4114 = vadd.f32 0.0, %v4113
      %v4115 = vpop.f32.mrb[0].mxu0
      %4116 = vmatprep.mubr.bf16.mxu0 0
      %4117 = vmatmul.mubr.bf16.gmra.mrb[0].mxu0 %v3976
      %v4118 = vpop.f32.mrb[0].mxu0
      %v4119 = vadd.f32 0.0, %v4118
      %v4120 = vpop.f32.mrb[0].mxu0
      %v4121 = vpop.f32.mrb[0].mxu0
      %v4122 = vadd.f32 0.0, %v4121
      %v4123 = vpop.f32.mrb[0].mxu0
      %4124 = vmatprep.mubr.bf16.mxu0 0
      %4125 = vmatmul.mubr.bf16.gmra.mrb[0].mxu0 %v3977
      %v4126 = vpop.f32.mrb[0].mxu0
      %v4127 = vadd.f32 0.0, %v4126
      %v4128 = vpop.f32.mrb[0].mxu0
      %v4129 = vpop.f32.mrb[0].mxu0
      %v4130 = vadd.f32 0.0, %v4129
      %v4131 = vpop.f32.mrb[0].mxu0
      %4132 = vmatprep.mubr.bf16.mxu0 0
      %4133 = vmatmul.mubr.bf16.gmra.mrb[0].mxu0 %v3978
      %v4134 = vpop.f32.mrb[0].mxu0
      %v4135 = vadd.f32 0.0, %v4134
      %v4136 = vpop.f32.mrb[0].mxu0
      %v4137 = vpop.f32.mrb[0].mxu0
      %v4138 = vadd.f32 0.0, %v4137
      %v4139 = vpop.f32.mrb[0].mxu0
      %4140 = vmatprep.mubr.bf16.mxu0 0
      %4141 = vmatmul.mubr.bf16.gmra.mrb[0].mxu0 %v3979
      %v4142 = vpop.f32.mrb[0].mxu0
      %v4143 = vadd.f32 0.0, %v4142
      %v4144 = vpop.f32.mrb[0].mxu0
      %v4145 = vpop.f32.mrb[0].mxu0
      %v4146 = vadd.f32 0.0, %v4145
      %v4147 = vpop.f32.mrb[0].mxu0
      %4148 = vmatprep.mubr.bf16.mxu0 0
      %4149 = vmatmul.mubr.bf16.gmra.mrb[0].mxu0 %v3980
      %v4150 = vpop.f32.mrb[0].mxu0
      %v4151 = vadd.f32 0.0, %v4150
      %v4152 = vpop.f32.mrb[0].mxu0
      %v4153 = vpop.f32.mrb[0].mxu0
      %v4154 = vadd.f32 0.0, %v4153
      %v4155 = vpop.f32.mrb[0].mxu0
      %4156 = vmatprep.mubr.bf16.mxu0 0
      %4157 = vmatmul.mubr.bf16.gmra.mrb[0].mxu0 %v3981
      %v4158 = vpop.f32.mrb[0].mxu0
      %v4159 = vadd.f32 0.0, %v4158
      %v4160 = vpop.f32.mrb[0].mxu0
      %v4161 = vpop.f32.mrb[0].mxu0
      %v4162 = vadd.f32 0.0, %v4161
      %v4163 = vpop.f32.mrb[0].mxu0
      %4164 = vmatprep.mubr.bf16.mxu0 0
      %4165 = vmatmul.mubr.bf16.gmra.mrb[0].mxu0 %v3982
      %v4166 = vpop.f32.mrb[0].mxu0
      %v4167 = vadd.f32 0.0, %v4166
      %v4168 = vpop.f32.mrb[0].mxu0
      %v4169 = vpop.f32.mrb[0].mxu0
      %v4170 = vadd.f32 0.0, %v4169
      %v4171 = vpop.f32.mrb[0].mxu0
      %4172 = vmatprep.mubr.bf16.mxu0 0
      %4173 = vmatmul.mubr.bf16.gmra.mrb[0].mxu0 %v3983
      %v4174 = vpop.f32.mrb[0].mxu0
      %v4175 = vadd.f32 0.0, %v4174
      %v4176 = vpop.f32.mrb[0].mxu0
      %v4177 = vpop.f32.mrb[0].mxu0
      %v4178 = vadd.f32 0.0, %v4177
      %v4179 = vpop.f32.mrb[0].mxu0
      %4180 = vmatprep.mubr.bf16.mxu0 0
      %4181 = vmatmul.mubr.bf16.gmra.mrb[0].mxu0 %v3984
      %v4182 = vpop.f32.mrb[0].mxu0
      %v4183 = vadd.f32 0.0, %v4182
      %v4184 = vpop.f32.mrb[0].mxu0
      %v4185 = vpop.f32.mrb[0].mxu0
      %v4186 = vadd.f32 0.0, %v4185
      %v4187 = vpop.f32.mrb[0].mxu0
      %4188 = vmatprep.mubr.bf16.mxu0 0
      %4189 = vmatmul.mubr.bf16.gmra.mrb[0].mxu0 %v3985
      %v4190 = vpop.f32.mrb[0].mxu0
      %v4191 = vadd.f32 0.0, %v4190
      %v4192 = vpop.f32.mrb[0].mxu0
      %v4193 = vpop.f32.mrb[0].mxu0
      %v4194 = vadd.f32 0.0, %v4193
      %v4195 = vpop.f32.mrb[0].mxu0
      %4196 = vmatprep.mubr.bf16.mxu0 0
      %4197 = vmatmul.mubr.bf16.gmra.mrb[0].mxu0 %v3986
      %v4198 = vpop.f32.mrb[0].mxu0
      %v4199 = vadd.f32 0.0, %v4198
      %v4200 = vpop.f32.mrb[0].mxu0
      %v4201 = vpop.f32.mrb[0].mxu0
      %v4202 = vadd.f32 0.0, %v4201
      %v4203 = vpop.f32.mrb[0].mxu0
      %4204 = vmatprep.mubr.bf16.mxu0 0
      %4205 = vmatmul.mubr.bf16.gmra.mrb[0].mxu0 %v3987
      %v4206 = vpop.f32.mrb[0].mxu0
      %v4207 = vadd.f32 0.0, %v4206
      %v4208 = vpop.f32.mrb[0].mxu0
      %v4209 = vpop.f32.mrb[0].mxu0
      %v4210 = vadd.f32 0.0, %v4209
      %v4211 = vpop.f32.mrb[0].mxu0
      %4212 = vdwg.mxu0
      %v4245 = vunpack.c.l.b16 %v3472
      %v4246 = vunpack.c.l.b16 %v3473
      %v4247 = vunpack.c.l.b16 %v3474
      %v4248 = vunpack.c.l.b16 %v3475
      %v4249 = vunpack.c.l.b16 %v3476
      %v4250 = vunpack.c.l.b16 %v3477
      %v4251 = vunpack.c.l.b16 %v3478
      %v4252 = vunpack.c.l.b16 %v3479
      %v4253 = vunpack.c.l.b16 %v3480
      %v4254 = vunpack.c.l.b16 %v3481
      %v4255 = vunpack.c.l.b16 %v3482
      %v4256 = vunpack.c.l.b16 %v3483
      %v4257 = vunpack.c.l.b16 %v3484
      %v4258 = vunpack.c.l.b16 %v3485
      %v4259 = vunpack.c.l.b16 %v3486
      %v4260 = vunpack.c.l.b16 %v3487
      %v4261 = vunpack.c.l.b16 %v3488
      %v4262 = vunpack.c.l.b16 %v3489
      %v4263 = vunpack.c.l.b16 %v3490
      %v4264 = vunpack.c.l.b16 %v3491
      %v4265 = vunpack.c.l.b16 %v3492
      %v4266 = vunpack.c.l.b16 %v3493
      %v4267 = vunpack.c.l.b16 %v3494
      %v4268 = vunpack.c.l.b16 %v3495
      %v4269 = vunpack.c.l.b16 %v3496
      %v4270 = vunpack.c.l.b16 %v3497
      %v4271 = vunpack.c.l.b16 %v3498
      %v4272 = vunpack.c.l.b16 %v3499
      %v4273 = vunpack.c.l.b16 %v3500
      %v4274 = vunpack.c.l.b16 %v3501
      %v4275 = vunpack.c.l.b16 %v3502
      %v4276 = vunpack.c.l.b16 %v3503
      %v4277 = vpack.c.b16 %v4246, %v4245
      %v4278 = vpack.c.b16 %v4248, %v4247
      %v4279 = vpack.c.b16 %v4250, %v4249
      %v4280 = vpack.c.b16 %v4252, %v4251
      %v4281 = vpack.c.b16 %v4254, %v4253
      %v4282 = vpack.c.b16 %v4256, %v4255
      %v4283 = vpack.c.b16 %v4258, %v4257
      %v4284 = vpack.c.b16 %v4260, %v4259
      %v4285 = vpack.c.b16 %v4262, %v4261
      %v4286 = vpack.c.b16 %v4264, %v4263
      %v4287 = vpack.c.b16 %v4266, %v4265
      %v4288 = vpack.c.b16 %v4268, %v4267
      %v4289 = vpack.c.b16 %v4270, %v4269
      %v4290 = vpack.c.b16 %v4272, %v4271
      %v4291 = vpack.c.b16 %v4274, %v4273
      %v4292 = vpack.c.b16 %v4276, %v4275
      %v4325 = vunpack.c.l.b16 %v3504
      %v4326 = vunpack.c.l.b16 %v3505
      %v4327 = vunpack.c.l.b16 %v3506
      %v4328 = vunpack.c.l.b16 %v3507
      %v4329 = vunpack.c.l.b16 %v3508
      %v4330 = vunpack.c.l.b16 %v3509
      %v4331 = vunpack.c.l.b16 %v3510
      %v4332 = vunpack.c.l.b16 %v3511
      %v4333 = vunpack.c.l.b16 %v3512
      %v4334 = vunpack.c.l.b16 %v3513
      %v4335 = vunpack.c.l.b16 %v3514
      %v4336 = vunpack.c.l.b16 %v3515
      %v4337 = vunpack.c.l.b16 %v3516
      %v4338 = vunpack.c.l.b16 %v3517
      %v4339 = vunpack.c.l.b16 %v3518
      %v4340 = vunpack.c.l.b16 %v3519
      %v4341 = vpack.c.b16 %v4326, %v4325
      %v4342 = vpack.c.b16 %v4328, %v4327
      %v4343 = vpack.c.b16 %v4330, %v4329
      %v4344 = vpack.c.b16 %v4332, %v4331
      %v4345 = vpack.c.b16 %v4334, %v4333
      %v4346 = vpack.c.b16 %v4336, %v4335
      %v4347 = vpack.c.b16 %v4338, %v4337
      %v4348 = vpack.c.b16 %v4340, %v4339
      %4357 = vmatprep.subr.bf16.mxu0 0
      %4358 = vmatpush1.bf16.msra.mxu0 %v4341
      %4359 = vmatprep.subr.bf16.mxu0 0
      %4360 = vmatpush1.bf16.msra.mxu0 %v4342
      %4361 = vmatprep.subr.bf16.mxu0 0
      %4362 = vmatpush1.bf16.msra.mxu0 %v4343
      %4363 = vmatprep.subr.bf16.mxu0 0
      %4364 = vmatpush1.bf16.msra.mxu0 %v4344
      %4365 = vmatprep.subr.bf16.mxu0 0
      %4366 = vmatpush1.bf16.msra.mxu0 %v4345
      %4367 = vmatprep.subr.bf16.mxu0 0
      %4368 = vmatpush1.bf16.msra.mxu0 %v4346
      %4369 = vmatprep.subr.bf16.mxu0 0
      %4370 = vmatpush1.bf16.msra.mxu0 %v4347
      %4371 = vmatprep.subr.bf16.mxu0 0
      %4372 = vmatpush1.bf16.msra.mxu0 %v4348
      %4373 = vmatprep.subr.bf16.mxu0 0
      %4374 = vmatpush1.bf16.msra.mxu0 0
      %4375 = vmatprep.subr.bf16.mxu0 0
      %4376 = vmatpush1.bf16.msra.mxu0 0
      %4377 = vmatprep.subr.bf16.mxu0 0
      %4378 = vmatpush1.bf16.msra.mxu0 0
      %4379 = vmatprep.subr.bf16.mxu0 0
      %4380 = vmatpush1.bf16.msra.mxu0 0
      %4381 = vmatprep.subr.bf16.mxu0 0
      %4382 = vmatpush1.bf16.msra.mxu0 0
      %4383 = vmatprep.subr.bf16.mxu0 0
      %4384 = vmatpush1.bf16.msra.mxu0 0
      %4385 = vmatprep.subr.bf16.mxu0 0
      %4386 = vmatpush1.bf16.msra.mxu0 0
      %4387 = vmatprep.subr.bf16.mxu0 0
      %4388 = vmatpush1.bf16.msra.mxu0 0
      %4389 = vmatprep.mubr.bf16.mxu0 0
      %4390 = vmatmul.mubr.bf16.gmra.mrb[0].mxu0 %v4277
      %v4391 = vpop.f32.mrb[0].mxu0
      %v4392 = vadd.f32 %v4087, %v4391
      %v4393 = vpop.f32.mrb[0].mxu0
      %v4394 = vpop.f32.mrb[0].mxu0
      %v4395 = vadd.f32 %v4090, %v4394
      %v4396 = vpop.f32.mrb[0].mxu0
      %4397 = vmatprep.mubr.bf16.mxu0 0
      %4398 = vmatmul.mubr.bf16.gmra.mrb[0].mxu0 %v4278
      %v4399 = vpop.f32.mrb[0].mxu0
      %v4400 = vadd.f32 %v4095, %v4399
      %v4401 = vpop.f32.mrb[0].mxu0
      %v4402 = vpop.f32.mrb[0].mxu0
      %v4403 = vadd.f32 %v4098, %v4402
      %v4404 = vpop.f32.mrb[0].mxu0
      %4405 = vmatprep.mubr.bf16.mxu0 0
      %4406 = vmatmul.mubr.bf16.gmra.mrb[0].mxu0 %v4279
      %v4407 = vpop.f32.mrb[0].mxu0
      %v4408 = vadd.f32 %v4103, %v4407
      %v4409 = vpop.f32.mrb[0].mxu0
      %v4410 = vpop.f32.mrb[0].mxu0
      %v4411 = vadd.f32 %v4106, %v4410
      %v4412 = vpop.f32.mrb[0].mxu0
      %4413 = vmatprep.mubr.bf16.mxu0 0
      %4414 = vmatmul.mubr.bf16.gmra.mrb[0].mxu0 %v4280
      %v4415 = vpop.f32.mrb[0].mxu0
      %v4416 = vadd.f32 %v4111, %v4415
      %v4417 = vpop.f32.mrb[0].mxu0
      %v4418 = vpop.f32.mrb[0].mxu0
      %v4419 = vadd.f32 %v4114, %v4418
      %v4420 = vpop.f32.mrb[0].mxu0
      %4421 = vmatprep.mubr.bf16.mxu0 0
      %4422 = vmatmul.mubr.bf16.gmra.mrb[0].mxu0 %v4281
      %v4423 = vpop.f32.mrb[0].mxu0
      %v4424 = vadd.f32 %v4119, %v4423
      %v4425 = vpop.f32.mrb[0].mxu0
      %v4426 = vpop.f32.mrb[0].mxu0
      %v4427 = vadd.f32 %v4122, %v4426
      %v4428 = vpop.f32.mrb[0].mxu0
      %4429 = vmatprep.mubr.bf16.mxu0 0
      %4430 = vmatmul.mubr.bf16.gmra.mrb[0].mxu0 %v4282
      %v4431 = vpop.f32.mrb[0].mxu0
      %v4432 = vadd.f32 %v4127, %v4431
      %v4433 = vpop.f32.mrb[0].mxu0
      %v4434 = vpop.f32.mrb[0].mxu0
      %v4435 = vadd.f32 %v4130, %v4434
      %v4436 = vpop.f32.mrb[0].mxu0
      %4437 = vmatprep.mubr.bf16.mxu0 0
      %4438 = vmatmul.mubr.bf16.gmra.mrb[0].mxu0 %v4283
      %v4439 = vpop.f32.mrb[0].mxu0
      %v4440 = vadd.f32 %v4135, %v4439
      %v4441 = vpop.f32.mrb[0].mxu0
      %v4442 = vpop.f32.mrb[0].mxu0
      %v4443 = vadd.f32 %v4138, %v4442
      %v4444 = vpop.f32.mrb[0].mxu0
      %4445 = vmatprep.mubr.bf16.mxu0 0
      %4446 = vmatmul.mubr.bf16.gmra.mrb[0].mxu0 %v4284
      %v4447 = vpop.f32.mrb[0].mxu0
      %v4448 = vadd.f32 %v4143, %v4447
      %v4449 = vpop.f32.mrb[0].mxu0
      %v4450 = vpop.f32.mrb[0].mxu0
      %v4451 = vadd.f32 %v4146, %v4450
      %v4452 = vpop.f32.mrb[0].mxu0
      %4453 = vmatprep.mubr.bf16.mxu0 0
      %4454 = vmatmul.mubr.bf16.gmra.mrb[0].mxu0 %v4285
      %v4455 = vpop.f32.mrb[0].mxu0
      %v4456 = vadd.f32 %v4151, %v4455
      %v4457 = vpop.f32.mrb[0].mxu0
      %v4458 = vpop.f32.mrb[0].mxu0
      %v4459 = vadd.f32 %v4154, %v4458
      %v4460 = vpop.f32.mrb[0].mxu0
      %4461 = vmatprep.mubr.bf16.mxu0 0
      %4462 = vmatmul.mubr.bf16.gmra.mrb[0].mxu0 %v4286
      %v4463 = vpop.f32.mrb[0].mxu0
      %v4464 = vadd.f32 %v4159, %v4463
      %v4465 = vpop.f32.mrb[0].mxu0
      %v4466 = vpop.f32.mrb[0].mxu0
      %v4467 = vadd.f32 %v4162, %v4466
      %v4468 = vpop.f32.mrb[0].mxu0
      %4469 = vmatprep.mubr.bf16.mxu0 0
      %4470 = vmatmul.mubr.bf16.gmra.mrb[0].mxu0 %v4287
      %v4471 = vpop.f32.mrb[0].mxu0
      %v4472 = vadd.f32 %v4167, %v4471
      %v4473 = vpop.f32.mrb[0].mxu0
      %v4474 = vpop.f32.mrb[0].mxu0
      %v4475 = vadd.f32 %v4170, %v4474
      %v4476 = vpop.f32.mrb[0].mxu0
      %4477 = vmatprep.mubr.bf16.mxu0 0
      %4478 = vmatmul.mubr.bf16.gmra.mrb[0].mxu0 %v4288
      %v4479 = vpop.f32.mrb[0].mxu0
      %v4480 = vadd.f32 %v4175, %v4479
      %v4481 = vpop.f32.mrb[0].mxu0
      %v4482 = vpop.f32.mrb[0].mxu0
      %v4483 = vadd.f32 %v4178, %v4482
      %v4484 = vpop.f32.mrb[0].mxu0
      %4485 = vmatprep.mubr.bf16.mxu0 0
      %4486 = vmatmul.mubr.bf16.gmra.mrb[0].mxu0 %v4289
      %v4487 = vpop.f32.mrb[0].mxu0
      %v4488 = vadd.f32 %v4183, %v4487
      %v4489 = vpop.f32.mrb[0].mxu0
      %v4490 = vpop.f32.mrb[0].mxu0
      %v4491 = vadd.f32 %v4186, %v4490
      %v4492 = vpop.f32.mrb[0].mxu0
      %4493 = vmatprep.mubr.bf16.mxu0 0
      %4494 = vmatmul.mubr.bf16.gmra.mrb[0].mxu0 %v4290
      %v4495 = vpop.f32.mrb[0].mxu0
      %v4496 = vadd.f32 %v4191, %v4495
      %v4497 = vpop.f32.mrb[0].mxu0
      %v4498 = vpop.f32.mrb[0].mxu0
      %v4499 = vadd.f32 %v4194, %v4498
      %v4500 = vpop.f32.mrb[0].mxu0
      %4501 = vmatprep.mubr.bf16.mxu0 0
      %4502 = vmatmul.mubr.bf16.gmra.mrb[0].mxu0 %v4291
      %v4503 = vpop.f32.mrb[0].mxu0
      %v4504 = vadd.f32 %v4199, %v4503
      %v4505 = vpop.f32.mrb[0].mxu0
      %v4506 = vpop.f32.mrb[0].mxu0
      %v4507 = vadd.f32 %v4202, %v4506
      %v4508 = vpop.f32.mrb[0].mxu0
      %4509 = vmatprep.mubr.bf16.mxu0 0
      %4510 = vmatmul.mubr.bf16.gmra.mrb[0].mxu0 %v4292
      %v4511 = vpop.f32.mrb[0].mxu0
      %v4512 = vadd.f32 %v4207, %v4511
      %v4513 = vpop.f32.mrb[0].mxu0
      %v4514 = vpop.f32.mrb[0].mxu0
      %v4515 = vadd.f32 %v4210, %v4514
      %v4516 = vpop.f32.mrb[0].mxu0
      %4517 = vdwg.mxu0
      %v4518 = vld [vmem:[#allocation3] sm:$0xe]
      %v4519 = vld [vmem:[#allocation3 + $0xc] sm:$0xe]
      %v4520 = vld [vmem:[#allocation3 + $0x18] sm:$0xe]
      %v4521 = vld [vmem:[#allocation3 + $0x24] sm:$0xe]
      %v4522 = vld [vmem:[#allocation3 + $0x30] sm:$0xe]
      %v4523 = vld [vmem:[#allocation3 + $0x3c] sm:$0xe]
      %v4524 = vld [vmem:[#allocation3 + $0x48] sm:$0xe]
      %v4525 = vld [vmem:[#allocation3 + $0x54] sm:$0xe]
      %v4526 = vld [vmem:[#allocation3 + $0x60] sm:$0xe]
      %v4527 = vld [vmem:[#allocation3 + $0x6c] sm:$0xe]
      %v4528 = vld [vmem:[#allocation3 + $0x78] sm:$0xe]
      %v4529 = vld [vmem:[#allocation3 + $0x84] sm:$0xe]
      %v4530 = vld [vmem:[#allocation3 + $0x90] sm:$0xe]
      %v4531 = vld [vmem:[#allocation3 + $0x9c] sm:$0xe]
      %v4532 = vld [vmem:[#allocation3 + $0xa8] sm:$0xe]
      %v4533 = vld [vmem:[#allocation3 + $0xb4] sm:$0xe]
      %vm4566 = vcmask 1042432
      %vm4567 = vcmask 1046532
      %vm4568 = vmor %vm4566, %vm4567
      %v4569 = vrot.slane %v4518, 5
      %v4570 = vrot.slane %v4569, 4
      %v4571 = vrot.slane %v3473, 5
      %v4572 = vsel %vm4568, %v4570, %v4571
      %v4573 = vrot.slane %v4571, 4
      %v4574 = vrot.slane %v3520, 5
      %v4575 = vsel %vm4568, %v4573, %v4574
      %v4576 = vrot.slane %v4519, 5
      %v4577 = vrot.slane %v4576, 4
      %v4578 = vrot.slane %v3475, 5
      %v4579 = vsel %vm4568, %v4577, %v4578
      %v4580 = vrot.slane %v4578, 4
      %v4581 = vrot.slane %v3521, 5
      %v4582 = vsel %vm4568, %v4580, %v4581
      %v4583 = vrot.slane %v4520, 5
      %v4584 = vrot.slane %v4583, 4
      %v4585 = vrot.slane %v3477, 5
      %v4586 = vsel %vm4568, %v4584, %v4585
      %v4587 = vrot.slane %v4585, 4
      %v4588 = vrot.slane %v3522, 5
      %v4589 = vsel %vm4568, %v4587, %v4588
      %v4590 = vrot.slane %v4521, 5
      %v4591 = vrot.slane %v4590, 4
      %v4592 = vrot.slane %v3479, 5
      %v4593 = vsel %vm4568, %v4591, %v4592
      %v4594 = vrot.slane %v4592, 4
      %v4595 = vrot.slane %v3523, 5
      %v4596 = vsel %vm4568, %v4594, %v4595
      %v4597 = vrot.slane %v4522, 5
      %v4598 = vrot.slane %v4597, 4
      %v4599 = vrot.slane %v3481, 5
      %v4600 = vsel %vm4568, %v4598, %v4599
      %v4601 = vrot.slane %v4599, 4
      %v4602 = vrot.slane %v3524, 5
      %v4603 = vsel %vm4568, %v4601, %v4602
      %v4604 = vrot.slane %v4523, 5
      %v4605 = vrot.slane %v4604, 4
      %v4606 = vrot.slane %v3483, 5
      %v4607 = vsel %vm4568, %v4605, %v4606
      %v4608 = vrot.slane %v4606, 4
      %v4609 = vrot.slane %v3525, 5
      %v4610 = vsel %vm4568, %v4608, %v4609
      %v4611 = vrot.slane %v4524, 5
      %v4612 = vrot.slane %v4611, 4
      %v4613 = vrot.slane %v3485, 5
      %v4614 = vsel %vm4568, %v4612, %v4613
      %v4615 = vrot.slane %v4613, 4
      %v4616 = vrot.slane %v3526, 5
      %v4617 = vsel %vm4568, %v4615, %v4616
      %v4618 = vrot.slane %v4525, 5
      %v4619 = vrot.slane %v4618, 4
      %v4620 = vrot.slane %v3487, 5
      %v4621 = vsel %vm4568, %v4619, %v4620
      %v4622 = vrot.slane %v4620, 4
      %v4623 = vrot.slane %v3527, 5
      %v4624 = vsel %vm4568, %v4622, %v4623
      %v4625 = vrot.slane %v4526, 5
      %v4626 = vrot.slane %v4625, 4
      %v4627 = vrot.slane %v3489, 5
      %v4628 = vsel %vm4568, %v4626, %v4627
      %v4629 = vrot.slane %v4627, 4
      %v4630 = vrot.slane %v3528, 5
      %v4631 = vsel %vm4568, %v4629, %v4630
      %v4632 = vrot.slane %v4527, 5
      %v4633 = vrot.slane %v4632, 4
      %v4634 = vrot.slane %v3491, 5
      %v4635 = vsel %vm4568, %v4633, %v4634
      %v4636 = vrot.slane %v4634, 4
      %v4637 = vrot.slane %v3529, 5
      %v4638 = vsel %vm4568, %v4636, %v4637
      %v4639 = vrot.slane %v4528, 5
      %v4640 = vrot.slane %v4639, 4
      %v4641 = vrot.slane %v3493, 5
      %v4642 = vsel %vm4568, %v4640, %v4641
      %v4643 = vrot.slane %v4641, 4
      %v4644 = vrot.slane %v3530, 5
      %v4645 = vsel %vm4568, %v4643, %v4644
      %v4646 = vrot.slane %v4529, 5
      %v4647 = vrot.slane %v4646, 4
      %v4648 = vrot.slane %v3495, 5
      %v4649 = vsel %vm4568, %v4647, %v4648
      %v4650 = vrot.slane %v4648, 4
      %v4651 = vrot.slane %v3531, 5
      %v4652 = vsel %vm4568, %v4650, %v4651
      %v4653 = vrot.slane %v4530, 5
      %v4654 = vrot.slane %v4653, 4
      %v4655 = vrot.slane %v3497, 5
      %v4656 = vsel %vm4568, %v4654, %v4655
      %v4657 = vrot.slane %v4655, 4
      %v4658 = vrot.slane %v3532, 5
      %v4659 = vsel %vm4568, %v4657, %v4658
      %v4660 = vrot.slane %v4531, 5
      %v4661 = vrot.slane %v4660, 4
      %v4662 = vrot.slane %v3499, 5
      %v4663 = vsel %vm4568, %v4661, %v4662
      %v4664 = vrot.slane %v4662, 4
      %v4665 = vrot.slane %v3533, 5
      %v4666 = vsel %vm4568, %v4664, %v4665
      %v4667 = vrot.slane %v4532, 5
      %v4668 = vrot.slane %v4667, 4
      %v4669 = vrot.slane %v3501, 5
      %v4670 = vsel %vm4568, %v4668, %v4669
      %v4671 = vrot.slane %v4669, 4
      %v4672 = vrot.slane %v3534, 5
      %v4673 = vsel %vm4568, %v4671, %v4672
      %v4674 = vrot.slane %v4533, 5
      %v4675 = vrot.slane %v4674, 4
      %v4676 = vrot.slane %v3503, 5
      %v4677 = vsel %vm4568, %v4675, %v4676
      %v4678 = vrot.slane %v4676, 4
      %v4679 = vrot.slane %v3535, 5
      %v4680 = vsel %vm4568, %v4678, %v4679
      %s4681 = scalar_lea.vmem %s3, 128
      %v4682 = vld [vmem:[%s4681] sm:$0xf]
      %v4683 = vld [vmem:[%s4681 + $0x4] sm:$0xf]
      %v4684 = vld [vmem:[%s4681 + $0x8] sm:$0xf]
      %v4685 = vld [vmem:[%s4681 + $0xc] sm:$0xf]
      %v4686 = vld [vmem:[%s4681 + $0x10] sm:$0xf]
      %v4687 = vld [vmem:[%s4681 + $0x14] sm:$0xf]
      %v4688 = vld [vmem:[%s4681 + $0x18] sm:$0xf]
      %v4689 = vld [vmem:[%s4681 + $0x1c] sm:$0xf]
      %v4690 = vld [vmem:[%s4681 + $0x20] sm:$0xf]
      %v4691 = vld [vmem:[%s4681 + $0x24] sm:$0xf]
      %v4692 = vld [vmem:[%s4681 + $0x28] sm:$0xf]
      %v4693 = vld [vmem:[%s4681 + $0x2c] sm:$0xf]
      %v4694 = vld [vmem:[%s4681 + $0x30] sm:$0xf]
      %v4695 = vld [vmem:[%s4681 + $0x34] sm:$0xf]
      %v4696 = vld [vmem:[%s4681 + $0x38] sm:$0xf]
      %v4697 = vld [vmem:[%s4681 + $0x3c] sm:$0xf]
      %v4698 = vunpack.c.l.b16 %v4572
      %v4699 = vunpack.c.l.b16 %v4575
      %v4700 = vunpack.c.l.b16 %v4579
      %v4701 = vunpack.c.l.b16 %v4582
      %v4702 = vunpack.c.l.b16 %v4586
      %v4703 = vunpack.c.l.b16 %v4589
      %v4704 = vunpack.c.l.b16 %v4593
      %v4705 = vunpack.c.l.b16 %v4596
      %v4706 = vunpack.c.l.b16 %v4600
      %v4707 = vunpack.c.l.b16 %v4603
      %v4708 = vunpack.c.l.b16 %v4607
      %v4709 = vunpack.c.l.b16 %v4610
      %v4710 = vunpack.c.l.b16 %v4614
      %v4711 = vunpack.c.l.b16 %v4617
      %v4712 = vunpack.c.l.b16 %v4621
      %v4713 = vunpack.c.l.b16 %v4624
      %v4714 = vunpack.c.l.b16 %v4628
      %v4715 = vunpack.c.l.b16 %v4631
      %v4716 = vunpack.c.l.b16 %v4635
      %v4717 = vunpack.c.l.b16 %v4638
      %v4718 = vunpack.c.l.b16 %v4642
      %v4719 = vunpack.c.l.b16 %v4645
      %v4720 = vunpack.c.l.b16 %v4649
      %v4721 = vunpack.c.l.b16 %v4652
      %v4722 = vunpack.c.l.b16 %v4656
      %v4723 = vunpack.c.l.b16 %v4659
      %v4724 = vunpack.c.l.b16 %v4663
      %v4725 = vunpack.c.l.b16 %v4666
      %v4726 = vunpack.c.l.b16 %v4670
      %v4727 = vunpack.c.l.b16 %v4673
      %v4728 = vunpack.c.l.b16 %v4677
      %v4729 = vunpack.c.l.b16 %v4680
      %v4730 = vpack.c.b16 %v4699, %v4698
      %v4731 = vpack.c.b16 %v4701, %v4700
      %v4732 = vpack.c.b16 %v4703, %v4702
      %v4733 = vpack.c.b16 %v4705, %v4704
      %v4734 = vpack.c.b16 %v4707, %v4706
      %v4735 = vpack.c.b16 %v4709, %v4708
      %v4736 = vpack.c.b16 %v4711, %v4710
      %v4737 = vpack.c.b16 %v4713, %v4712
      %v4738 = vpack.c.b16 %v4715, %v4714
      %v4739 = vpack.c.b16 %v4717, %v4716
      %v4740 = vpack.c.b16 %v4719, %v4718
      %v4741 = vpack.c.b16 %v4721, %v4720
      %v4742 = vpack.c.b16 %v4723, %v4722
      %v4743 = vpack.c.b16 %v4725, %v4724
      %v4744 = vpack.c.b16 %v4727, %v4726
      %v4745 = vpack.c.b16 %v4729, %v4728
      %v4778 = vunpack.c.l.b16 %v4682
      %v4779 = vunpack.c.l.b16 %v4683
      %v4780 = vunpack.c.l.b16 %v4684
      %v4781 = vunpack.c.l.b16 %v4685
      %v4782 = vunpack.c.l.b16 %v4686
      %v4783 = vunpack.c.l.b16 %v4687
      %v4784 = vunpack.c.l.b16 %v4688
      %v4785 = vunpack.c.l.b16 %v4689
      %v4786 = vunpack.c.l.b16 %v4690
      %v4787 = vunpack.c.l.b16 %v4691
      %v4788 = vunpack.c.l.b16 %v4692
      %v4789 = vunpack.c.l.b16 %v4693
      %v4790 = vunpack.c.l.b16 %v4694
      %v4791 = vunpack.c.l.b16 %v4695
      %v4792 = vunpack.c.l.b16 %v4696
      %v4793 = vunpack.c.l.b16 %v4697
      %v4794 = vpack.c.b16 %v4779, %v4778
      %v4795 = vpack.c.b16 %v4781, %v4780
      %v4796 = vpack.c.b16 %v4783, %v4782
      %v4797 = vpack.c.b16 %v4785, %v4784
      %v4798 = vpack.c.b16 %v4787, %v4786
      %v4799 = vpack.c.b16 %v4789, %v4788
      %v4800 = vpack.c.b16 %v4791, %v4790
      %v4801 = vpack.c.b16 %v4793, %v4792
      %4810 = vmatprep.subr.bf16.mxu0 0
      %4811 = vmatpush1.bf16.msra.mxu0 %v4794
      %4812 = vmatprep.subr.bf16.mxu0 0
      %4813 = vmatpush1.bf16.msra.mxu0 %v4795
      %4814 = vmatprep.subr.bf16.mxu0 0
      %4815 = vmatpush1.bf16.msra.mxu0 %v4796
      %4816 = vmatprep.subr.bf16.mxu0 0
      %4817 = vmatpush1.bf16.msra.mxu0 %v4797
      %4818 = vmatprep.subr.bf16.mxu0 0
      %4819 = vmatpush1.bf16.msra.mxu0 %v4798
      %4820 = vmatprep.subr.bf16.mxu0 0
      %4821 = vmatpush1.bf16.msra.mxu0 %v4799
      %4822 = vmatprep.subr.bf16.mxu0 0
      %4823 = vmatpush1.bf16.msra.mxu0 %v4800
      %4824 = vmatprep.subr.bf16.mxu0 0
      %4825 = vmatpush1.bf16.msra.mxu0 %v4801
      %4826 = vmatprep.subr.bf16.mxu0 0
      %4827 = vmatpush1.bf16.msra.mxu0 0
      %4828 = vmatprep.subr.bf16.mxu0 0
      %4829 = vmatpush1.bf16.msra.mxu0 0
      %4830 = vmatprep.subr.bf16.mxu0 0
      %4831 = vmatpush1.bf16.msra.mxu0 0
      %4832 = vmatprep.subr.bf16.mxu0 0
      %4833 = vmatpush1.bf16.msra.mxu0 0
      %4834 = vmatprep.subr.bf16.mxu0 0
      %4835 = vmatpush1.bf16.msra.mxu0 0
      %4836 = vmatprep.subr.bf16.mxu0 0
      %4837 = vmatpush1.bf16.msra.mxu0 0
      %4838 = vmatprep.subr.bf16.mxu0 0
      %4839 = vmatpush1.bf16.msra.mxu0 0
      %4840 = vmatprep.subr.bf16.mxu0 0
      %4841 = vmatpush1.bf16.msra.mxu0 0
      %4842 = vmatprep.mubr.bf16.mxu0 0
      %4843 = vmatmul.mubr.bf16.gmra.mrb[0].mxu0 %v4730
      %v4844 = vpop.f32.mrb[0].mxu0
      %v4845 = vadd.f32 0.0, %v4844
      %v4846 = vpop.f32.mrb[0].mxu0
      %v4847 = vpop.f32.mrb[0].mxu0
      %v4848 = vadd.f32 0.0, %v4847
      %v4849 = vpop.f32.mrb[0].mxu0
      %4850 = vmatprep.mubr.bf16.mxu0 0
      %4851 = vmatmul.mubr.bf16.gmra.mrb[0].mxu0 %v4731
      %v4852 = vpop.f32.mrb[0].mxu0
      %v4853 = vadd.f32 0.0, %v4852
      %v4854 = vpop.f32.mrb[0].mxu0
      %v4855 = vpop.f32.mrb[0].mxu0
      %v4856 = vadd.f32 0.0, %v4855
      %v4857 = vpop.f32.mrb[0].mxu0
      %4858 = vmatprep.mubr.bf16.mxu0 0
      %4859 = vmatmul.mubr.bf16.gmra.mrb[0].mxu0 %v4732
      %v4860 = vpop.f32.mrb[0].mxu0
      %v4861 = vadd.f32 0.0, %v4860
      %v4862 = vpop.f32.mrb[0].mxu0
      %v4863 = vpop.f32.mrb[0].mxu0
      %v4864 = vadd.f32 0.0, %v4863
      %v4865 = vpop.f32.mrb[0].mxu0
      %4866 = vmatprep.mubr.bf16.mxu0 0
      %4867 = vmatmul.mubr.bf16.gmra.mrb[0].mxu0 %v4733
      %v4868 = vpop.f32.mrb[0].mxu0
      %v4869 = vadd.f32 0.0, %v4868
      %v4870 = vpop.f32.mrb[0].mxu0
      %v4871 = vpop.f32.mrb[0].mxu0
      %v4872 = vadd.f32 0.0, %v4871
      %v4873 = vpop.f32.mrb[0].mxu0
      %4874 = vmatprep.mubr.bf16.mxu0 0
      %4875 = vmatmul.mubr.bf16.gmra.mrb[0].mxu0 %v4734
      %v4876 = vpop.f32.mrb[0].mxu0
      %v4877 = vadd.f32 0.0, %v4876
      %v4878 = vpop.f32.mrb[0].mxu0
      %v4879 = vpop.f32.mrb[0].mxu0
      %v4880 = vadd.f32 0.0, %v4879
      %v4881 = vpop.f32.mrb[0].mxu0
      %4882 = vmatprep.mubr.bf16.mxu0 0
      %4883 = vmatmul.mubr.bf16.gmra.mrb[0].mxu0 %v4735
      %v4884 = vpop.f32.mrb[0].mxu0
      %v4885 = vadd.f32 0.0, %v4884
      %v4886 = vpop.f32.mrb[0].mxu0
      %v4887 = vpop.f32.mrb[0].mxu0
      %v4888 = vadd.f32 0.0, %v4887
      %v4889 = vpop.f32.mrb[0].mxu0
      %4890 = vmatprep.mubr.bf16.mxu0 0
      %4891 = vmatmul.mubr.bf16.gmra.mrb[0].mxu0 %v4736
      %v4892 = vpop.f32.mrb[0].mxu0
      %v4893 = vadd.f32 0.0, %v4892
      %v4894 = vpop.f32.mrb[0].mxu0
      %v4895 = vpop.f32.mrb[0].mxu0
      %v4896 = vadd.f32 0.0, %v4895
      %v4897 = vpop.f32.mrb[0].mxu0
      %4898 = vmatprep.mubr.bf16.mxu0 0
      %4899 = vmatmul.mubr.bf16.gmra.mrb[0].mxu0 %v4737
      %v4900 = vpop.f32.mrb[0].mxu0
      %v4901 = vadd.f32 0.0, %v4900
      %v4902 = vpop.f32.mrb[0].mxu0
      %v4903 = vpop.f32.mrb[0].mxu0
      %v4904 = vadd.f32 0.0, %v4903
      %v4905 = vpop.f32.mrb[0].mxu0
      %4906 = vmatprep.mubr.bf16.mxu0 0
      %4907 = vmatmul.mubr.bf16.gmra.mrb[0].mxu0 %v4738
      %v4908 = vpop.f32.mrb[0].mxu0
      %v4909 = vadd.f32 0.0, %v4908
      %v4910 = vpop.f32.mrb[0].mxu0
      %v4911 = vpop.f32.mrb[0].mxu0
      %v4912 = vadd.f32 0.0, %v4911
      %v4913 = vpop.f32.mrb[0].mxu0
      %4914 = vmatprep.mubr.bf16.mxu0 0
      %4915 = vmatmul.mubr.bf16.gmra.mrb[0].mxu0 %v4739
      %v4916 = vpop.f32.mrb[0].mxu0
      %v4917 = vadd.f32 0.0, %v4916
      %v4918 = vpop.f32.mrb[0].mxu0
      %v4919 = vpop.f32.mrb[0].mxu0
      %v4920 = vadd.f32 0.0, %v4919
      %v4921 = vpop.f32.mrb[0].mxu0
      %4922 = vmatprep.mubr.bf16.mxu0 0
      %4923 = vmatmul.mubr.bf16.gmra.mrb[0].mxu0 %v4740
      %v4924 = vpop.f32.mrb[0].mxu0
      %v4925 = vadd.f32 0.0, %v4924
      %v4926 = vpop.f32.mrb[0].mxu0
      %v4927 = vpop.f32.mrb[0].mxu0
      %v4928 = vadd.f32 0.0, %v4927
      %v4929 = vpop.f32.mrb[0].mxu0
      %4930 = vmatprep.mubr.bf16.mxu0 0
      %4931 = vmatmul.mubr.bf16.gmra.mrb[0].mxu0 %v4741
      %v4932 = vpop.f32.mrb[0].mxu0
      %v4933 = vadd.f32 0.0, %v4932
      %v4934 = vpop.f32.mrb[0].mxu0
      %v4935 = vpop.f32.mrb[0].mxu0
      %v4936 = vadd.f32 0.0, %v4935
      %v4937 = vpop.f32.mrb[0].mxu0
      %4938 = vmatprep.mubr.bf16.mxu0 0
      %4939 = vmatmul.mubr.bf16.gmra.mrb[0].mxu0 %v4742
      %v4940 = vpop.f32.mrb[0].mxu0
      %v4941 = vadd.f32 0.0, %v4940
      %v4942 = vpop.f32.mrb[0].mxu0
      %v4943 = vpop.f32.mrb[0].mxu0
      %v4944 = vadd.f32 0.0, %v4943
      %v4945 = vpop.f32.mrb[0].mxu0
      %4946 = vmatprep.mubr.bf16.mxu0 0
      %4947 = vmatmul.mubr.bf16.gmra.mrb[0].mxu0 %v4743
      %v4948 = vpop.f32.mrb[0].mxu0
      %v4949 = vadd.f32 0.0, %v4948
      %v4950 = vpop.f32.mrb[0].mxu0
      %v4951 = vpop.f32.mrb[0].mxu0
      %v4952 = vadd.f32 0.0, %v4951
      %v4953 = vpop.f32.mrb[0].mxu0
      %4954 = vmatprep.mubr.bf16.mxu0 0
      %4955 = vmatmul.mubr.bf16.gmra.mrb[0].mxu0 %v4744
      %v4956 = vpop.f32.mrb[0].mxu0
      %v4957 = vadd.f32 0.0, %v4956
      %v4958 = vpop.f32.mrb[0].mxu0
      %v4959 = vpop.f32.mrb[0].mxu0
      %v4960 = vadd.f32 0.0, %v4959
      %v4961 = vpop.f32.mrb[0].mxu0
      %4962 = vmatprep.mubr.bf16.mxu0 0
      %4963 = vmatmul.mubr.bf16.gmra.mrb[0].mxu0 %v4745
      %v4964 = vpop.f32.mrb[0].mxu0
      %v4965 = vadd.f32 0.0, %v4964
      %v4966 = vpop.f32.mrb[0].mxu0
      %v4967 = vpop.f32.mrb[0].mxu0
      %v4968 = vadd.f32 0.0, %v4967
      %v4969 = vpop.f32.mrb[0].mxu0
      %4970 = vdwg.mxu0
      %v4971 = vadd.f32 %v4392, %v4845
      %v4972 = vadd.f32 %v4395, %v4848
      %v4973 = vadd.f32 %v4400, %v4853
      %v4974 = vadd.f32 %v4403, %v4856
      %v4975 = vadd.f32 %v4408, %v4861
      %v4976 = vadd.f32 %v4411, %v4864
      %v4977 = vadd.f32 %v4416, %v4869
      %v4978 = vadd.f32 %v4419, %v4872
      %v4979 = vadd.f32 %v4424, %v4877
      %v4980 = vadd.f32 %v4427, %v4880
      %v4981 = vadd.f32 %v4432, %v4885
      %v4982 = vadd.f32 %v4435, %v4888
      %v4983 = vadd.f32 %v4440, %v4893
      %v4984 = vadd.f32 %v4443, %v4896
      %v4985 = vadd.f32 %v4448, %v4901
      %v4986 = vadd.f32 %v4451, %v4904
      %v4987 = vadd.f32 %v4456, %v4909
      %v4988 = vadd.f32 %v4459, %v4912
      %v4989 = vadd.f32 %v4464, %v4917
      %v4990 = vadd.f32 %v4467, %v4920
      %v4991 = vadd.f32 %v4472, %v4925
      %v4992 = vadd.f32 %v4475, %v4928
      %v4993 = vadd.f32 %v4480, %v4933
      %v4994 = vadd.f32 %v4483, %v4936
      %v4995 = vadd.f32 %v4488, %v4941
      %v4996 = vadd.f32 %v4491, %v4944
      %v4997 = vadd.f32 %v4496, %v4949
      %v4998 = vadd.f32 %v4499, %v4952
      %v4999 = vadd.f32 %v4504, %v4957
      %v5000 = vadd.f32 %v4507, %v4960
      %v5001 = vadd.f32 %v4512, %v4965
      %v5002 = vadd.f32 %v4515, %v4968
      %v5003 = vld [vmem:[%s3354] sm:$0xf]
      %v5004 = vld [vmem:[%s3354 + $0x4] sm:$0xf]
      %v5005 = vld [vmem:[%s3354 + $0xc] sm:$0xf]
      %v5006 = vld [vmem:[%s3354 + $0x10] sm:$0xf]
      %v5007 = vld [vmem:[%s3354 + $0x18] sm:$0xf]
      %v5008 = vld [vmem:[%s3354 + $0x1c] sm:$0xf]
      %v5009 = vld [vmem:[%s3354 + $0x24] sm:$0xf]
      %v5010 = vld [vmem:[%s3354 + $0x28] sm:$0xf]
      %v5011 = vld [vmem:[%s3354 + $0x30] sm:$0xf]
      %v5012 = vld [vmem:[%s3354 + $0x34] sm:$0xf]
      %v5013 = vld [vmem:[%s3354 + $0x3c] sm:$0xf]
      %v5014 = vld [vmem:[%s3354 + $0x40] sm:$0xf]
      %v5015 = vld [vmem:[%s3354 + $0x48] sm:$0xf]
      %v5016 = vld [vmem:[%s3354 + $0x4c] sm:$0xf]
      %v5017 = vld [vmem:[%s3354 + $0x54] sm:$0xf]
      %v5018 = vld [vmem:[%s3354 + $0x58] sm:$0xf]
      %v5019 = vld [vmem:[%s3354 + $0x60] sm:$0xf]
      %v5020 = vld [vmem:[%s3354 + $0x64] sm:$0xf]
      %v5021 = vld [vmem:[%s3354 + $0x6c] sm:$0xf]
      %v5022 = vld [vmem:[%s3354 + $0x70] sm:$0xf]
      %v5023 = vld [vmem:[%s3354 + $0x78] sm:$0xf]
      %v5024 = vld [vmem:[%s3354 + $0x7c] sm:$0xf]
      %v5025 = vld [vmem:[%s3354 + $0x84] sm:$0xf]
      %v5026 = vld [vmem:[%s3354 + $0x88] sm:$0xf]
      %v5027 = vld [vmem:[%s3354 + $0x90] sm:$0xf]
      %v5028 = vld [vmem:[%s3354 + $0x94] sm:$0xf]
      %v5029 = vld [vmem:[%s3354 + $0x9c] sm:$0xf]
      %v5030 = vld [vmem:[%s3354 + $0xa0] sm:$0xf]
      %v5031 = vld [vmem:[%s3354 + $0xa8] sm:$0xf]
      %v5032 = vld [vmem:[%s3354 + $0xac] sm:$0xf]
      %v5033 = vld [vmem:[%s3354 + $0xb4] sm:$0xf]
      %v5034 = vld [vmem:[%s3354 + $0xb8] sm:$0xf]
      %s5035 = scalar_lea.vmem %s3, 192
      %v5036 = vld [vmem:[%s5035] sm:$0xf]
      %v5037 = vld [vmem:[%s5035 + $0x4] sm:$0xf]
      %v5038 = vld [vmem:[%s5035 + $0x8] sm:$0xf]
      %v5039 = vld [vmem:[%s5035 + $0xc] sm:$0xf]
      %v5040 = vld [vmem:[%s5035 + $0x10] sm:$0xf]
      %v5041 = vld [vmem:[%s5035 + $0x14] sm:$0xf]
      %v5042 = vld [vmem:[%s5035 + $0x18] sm:$0xf]
      %v5043 = vld [vmem:[%s5035 + $0x1c] sm:$0xf]
      %v5044 = vld [vmem:[%s5035 + $0x20] sm:$0xf]
      %v5045 = vld [vmem:[%s5035 + $0x24] sm:$0xf]
      %v5046 = vld [vmem:[%s5035 + $0x28] sm:$0xf]
      %v5047 = vld [vmem:[%s5035 + $0x2c] sm:$0xf]
      %v5048 = vld [vmem:[%s5035 + $0x30] sm:$0xf]
      %v5049 = vld [vmem:[%s5035 + $0x34] sm:$0xf]
      %v5050 = vld [vmem:[%s5035 + $0x38] sm:$0xf]
      %v5051 = vld [vmem:[%s5035 + $0x3c] sm:$0xf]
      %v5084 = vunpack.c.l.b16 %v5003
      %v5085 = vunpack.c.l.b16 %v5004
      %v5086 = vunpack.c.l.b16 %v5005
      %v5087 = vunpack.c.l.b16 %v5006
      %v5088 = vunpack.c.l.b16 %v5007
      %v5089 = vunpack.c.l.b16 %v5008
      %v5090 = vunpack.c.l.b16 %v5009
      %v5091 = vunpack.c.l.b16 %v5010
      %v5092 = vunpack.c.l.b16 %v5011
      %v5093 = vunpack.c.l.b16 %v5012
      %v5094 = vunpack.c.l.b16 %v5013
      %v5095 = vunpack.c.l.b16 %v5014
      %v5096 = vunpack.c.l.b16 %v5015
      %v5097 = vunpack.c.l.b16 %v5016
      %v5098 = vunpack.c.l.b16 %v5017
      %v5099 = vunpack.c.l.b16 %v5018
      %v5100 = vunpack.c.l.b16 %v5019
      %v5101 = vunpack.c.l.b16 %v5020
      %v5102 = vunpack.c.l.b16 %v5021
      %v5103 = vunpack.c.l.b16 %v5022
      %v5104 = vunpack.c.l.b16 %v5023
      %v5105 = vunpack.c.l.b16 %v5024
      %v5106 = vunpack.c.l.b16 %v5025
      %v5107 = vunpack.c.l.b16 %v5026
      %v5108 = vunpack.c.l.b16 %v5027
      %v5109 = vunpack.c.l.b16 %v5028
      %v5110 = vunpack.c.l.b16 %v5029
      %v5111 = vunpack.c.l.b16 %v5030
      %v5112 = vunpack.c.l.b16 %v5031
      %v5113 = vunpack.c.l.b16 %v5032
      %v5114 = vunpack.c.l.b16 %v5033
      %v5115 = vunpack.c.l.b16 %v5034
      %v5116 = vpack.c.b16 %v5085, %v5084
      %v5117 = vpack.c.b16 %v5087, %v5086
      %v5118 = vpack.c.b16 %v5089, %v5088
      %v5119 = vpack.c.b16 %v5091, %v5090
      %v5120 = vpack.c.b16 %v5093, %v5092
      %v5121 = vpack.c.b16 %v5095, %v5094
      %v5122 = vpack.c.b16 %v5097, %v5096
      %v5123 = vpack.c.b16 %v5099, %v5098
      %v5124 = vpack.c.b16 %v5101, %v5100
      %v5125 = vpack.c.b16 %v5103, %v5102
      %v5126 = vpack.c.b16 %v5105, %v5104
      %v5127 = vpack.c.b16 %v5107, %v5106
      %v5128 = vpack.c.b16 %v5109, %v5108
      %v5129 = vpack.c.b16 %v5111, %v5110
      %v5130 = vpack.c.b16 %v5113, %v5112
      %v5131 = vpack.c.b16 %v5115, %v5114
      %v5164 = vunpack.c.l.b16 %v5036
      %v5165 = vunpack.c.l.b16 %v5037
      %v5166 = vunpack.c.l.b16 %v5038
      %v5167 = vunpack.c.l.b16 %v5039
      %v5168 = vunpack.c.l.b16 %v5040
      %v5169 = vunpack.c.l.b16 %v5041
      %v5170 = vunpack.c.l.b16 %v5042
      %v5171 = vunpack.c.l.b16 %v5043
      %v5172 = vunpack.c.l.b16 %v5044
      %v5173 = vunpack.c.l.b16 %v5045
      %v5174 = vunpack.c.l.b16 %v5046
      %v5175 = vunpack.c.l.b16 %v5047
      %v5176 = vunpack.c.l.b16 %v5048
      %v5177 = vunpack.c.l.b16 %v5049
      %v5178 = vunpack.c.l.b16 %v5050
      %v5179 = vunpack.c.l.b16 %v5051
      %v5180 = vpack.c.b16 %v5165, %v5164
      %v5181 = vpack.c.b16 %v5167, %v5166
      %v5182 = vpack.c.b16 %v5169, %v5168
      %v5183 = vpack.c.b16 %v5171, %v5170
      %v5184 = vpack.c.b16 %v5173, %v5172
      %v5185 = vpack.c.b16 %v5175, %v5174
      %v5186 = vpack.c.b16 %v5177, %v5176
      %v5187 = vpack.c.b16 %v5179, %v5178
      %5196 = vmatprep.subr.bf16.mxu0 0
      %5197 = vmatpush1.bf16.msra.mxu0 %v5180
      %5198 = vmatprep.subr.bf16.mxu0 0
      %5199 = vmatpush1.bf16.msra.mxu0 %v5181
      %5200 = vmatprep.subr.bf16.mxu0 0
      %5201 = vmatpush1.bf16.msra.mxu0 %v5182
      %5202 = vmatprep.subr.bf16.mxu0 0
      %5203 = vmatpush1.bf16.msra.mxu0 %v5183
      %5204 = vmatprep.subr.bf16.mxu0 0
      %5205 = vmatpush1.bf16.msra.mxu0 %v5184
      %5206 = vmatprep.subr.bf16.mxu0 0
      %5207 = vmatpush1.bf16.msra.mxu0 %v5185
      %5208 = vmatprep.subr.bf16.mxu0 0
      %5209 = vmatpush1.bf16.msra.mxu0 %v5186
      %5210 = vmatprep.subr.bf16.mxu0 0
      %5211 = vmatpush1.bf16.msra.mxu0 %v5187
      %5212 = vmatprep.subr.bf16.mxu0 0
      %5213 = vmatpush1.bf16.msra.mxu0 0
      %5214 = vmatprep.subr.bf16.mxu0 0
      %5215 = vmatpush1.bf16.msra.mxu0 0
      %5216 = vmatprep.subr.bf16.mxu0 0
      %5217 = vmatpush1.bf16.msra.mxu0 0
      %5218 = vmatprep.subr.bf16.mxu0 0
      %5219 = vmatpush1.bf16.msra.mxu0 0
      %5220 = vmatprep.subr.bf16.mxu0 0
      %5221 = vmatpush1.bf16.msra.mxu0 0
      %5222 = vmatprep.subr.bf16.mxu0 0
      %5223 = vmatpush1.bf16.msra.mxu0 0
      %5224 = vmatprep.subr.bf16.mxu0 0
      %5225 = vmatpush1.bf16.msra.mxu0 0
      %5226 = vmatprep.subr.bf16.mxu0 0
      %5227 = vmatpush1.bf16.msra.mxu0 0
      %5228 = vmatprep.mubr.bf16.mxu0 0
      %5229 = vmatmul.mubr.bf16.gmra.mrb[0].mxu0 %v5116
      %v5230 = vpop.f32.mrb[0].mxu0
      %v5231 = vadd.f32 0.0, %v5230
      %v5232 = vpop.f32.mrb[0].mxu0
      %v5233 = vpop.f32.mrb[0].mxu0
      %v5234 = vadd.f32 0.0, %v5233
      %v5235 = vpop.f32.mrb[0].mxu0
      %5236 = vmatprep.mubr.bf16.mxu0 0
      %5237 = vmatmul.mubr.bf16.gmra.mrb[0].mxu0 %v5117
      %v5238 = vpop.f32.mrb[0].mxu0
      %v5239 = vadd.f32 0.0, %v5238
      %v5240 = vpop.f32.mrb[0].mxu0
      %v5241 = vpop.f32.mrb[0].mxu0
      %v5242 = vadd.f32 0.0, %v5241
      %v5243 = vpop.f32.mrb[0].mxu0
      %5244 = vmatprep.mubr.bf16.mxu0 0
      %5245 = vmatmul.mubr.bf16.gmra.mrb[0].mxu0 %v5118
      %v5246 = vpop.f32.mrb[0].mxu0
      %v5247 = vadd.f32 0.0, %v5246
      %v5248 = vpop.f32.mrb[0].mxu0
      %v5249 = vpop.f32.mrb[0].mxu0
      %v5250 = vadd.f32 0.0, %v5249
      %v5251 = vpop.f32.mrb[0].mxu0
      %5252 = vmatprep.mubr.bf16.mxu0 0
      %5253 = vmatmul.mubr.bf16.gmra.mrb[0].mxu0 %v5119
      %v5254 = vpop.f32.mrb[0].mxu0
      %v5255 = vadd.f32 0.0, %v5254
      %v5256 = vpop.f32.mrb[0].mxu0
      %v5257 = vpop.f32.mrb[0].mxu0
      %v5258 = vadd.f32 0.0, %v5257
      %v5259 = vpop.f32.mrb[0].mxu0
      %5260 = vmatprep.mubr.bf16.mxu0 0
      %5261 = vmatmul.mubr.bf16.gmra.mrb[0].mxu0 %v5120
      %v5262 = vpop.f32.mrb[0].mxu0
      %v5263 = vadd.f32 0.0, %v5262
      %v5264 = vpop.f32.mrb[0].mxu0
      %v5265 = vpop.f32.mrb[0].mxu0
      %v5266 = vadd.f32 0.0, %v5265
      %v5267 = vpop.f32.mrb[0].mxu0
      %5268 = vmatprep.mubr.bf16.mxu0 0
      %5269 = vmatmul.mubr.bf16.gmra.mrb[0].mxu0 %v5121
      %v5270 = vpop.f32.mrb[0].mxu0
      %v5271 = vadd.f32 0.0, %v5270
      %v5272 = vpop.f32.mrb[0].mxu0
      %v5273 = vpop.f32.mrb[0].mxu0
      %v5274 = vadd.f32 0.0, %v5273
      %v5275 = vpop.f32.mrb[0].mxu0
      %5276 = vmatprep.mubr.bf16.mxu0 0
      %5277 = vmatmul.mubr.bf16.gmra.mrb[0].mxu0 %v5122
      %v5278 = vpop.f32.mrb[0].mxu0
      %v5279 = vadd.f32 0.0, %v5278
      %v5280 = vpop.f32.mrb[0].mxu0
      %v5281 = vpop.f32.mrb[0].mxu0
      %v5282 = vadd.f32 0.0, %v5281
      %v5283 = vpop.f32.mrb[0].mxu0
      %5284 = vmatprep.mubr.bf16.mxu0 0
      %5285 = vmatmul.mubr.bf16.gmra.mrb[0].mxu0 %v5123
      %v5286 = vpop.f32.mrb[0].mxu0
      %v5287 = vadd.f32 0.0, %v5286
      %v5288 = vpop.f32.mrb[0].mxu0
      %v5289 = vpop.f32.mrb[0].mxu0
      %v5290 = vadd.f32 0.0, %v5289
      %v5291 = vpop.f32.mrb[0].mxu0
      %5292 = vmatprep.mubr.bf16.mxu0 0
      %5293 = vmatmul.mubr.bf16.gmra.mrb[0].mxu0 %v5124
      %v5294 = vpop.f32.mrb[0].mxu0
      %v5295 = vadd.f32 0.0, %v5294
      %v5296 = vpop.f32.mrb[0].mxu0
      %v5297 = vpop.f32.mrb[0].mxu0
      %v5298 = vadd.f32 0.0, %v5297
      %v5299 = vpop.f32.mrb[0].mxu0
      %5300 = vmatprep.mubr.bf16.mxu0 0
      %5301 = vmatmul.mubr.bf16.gmra.mrb[0].mxu0 %v5125
      %v5302 = vpop.f32.mrb[0].mxu0
      %v5303 = vadd.f32 0.0, %v5302
      %v5304 = vpop.f32.mrb[0].mxu0
      %v5305 = vpop.f32.mrb[0].mxu0
      %v5306 = vadd.f32 0.0, %v5305
      %v5307 = vpop.f32.mrb[0].mxu0
      %5308 = vmatprep.mubr.bf16.mxu0 0
      %5309 = vmatmul.mubr.bf16.gmra.mrb[0].mxu0 %v5126
      %v5310 = vpop.f32.mrb[0].mxu0
      %v5311 = vadd.f32 0.0, %v5310
      %v5312 = vpop.f32.mrb[0].mxu0
      %v5313 = vpop.f32.mrb[0].mxu0
      %v5314 = vadd.f32 0.0, %v5313
      %v5315 = vpop.f32.mrb[0].mxu0
      %5316 = vmatprep.mubr.bf16.mxu0 0
      %5317 = vmatmul.mubr.bf16.gmra.mrb[0].mxu0 %v5127
      %v5318 = vpop.f32.mrb[0].mxu0
      %v5319 = vadd.f32 0.0, %v5318
      %v5320 = vpop.f32.mrb[0].mxu0
      %v5321 = vpop.f32.mrb[0].mxu0
      %v5322 = vadd.f32 0.0, %v5321
      %v5323 = vpop.f32.mrb[0].mxu0
      %5324 = vmatprep.mubr.bf16.mxu0 0
      %5325 = vmatmul.mubr.bf16.gmra.mrb[0].mxu0 %v5128
      %v5326 = vpop.f32.mrb[0].mxu0
      %v5327 = vadd.f32 0.0, %v5326
      %v5328 = vpop.f32.mrb[0].mxu0
      %v5329 = vpop.f32.mrb[0].mxu0
      %v5330 = vadd.f32 0.0, %v5329
      %v5331 = vpop.f32.mrb[0].mxu0
      %5332 = vmatprep.mubr.bf16.mxu0 0
      %5333 = vmatmul.mubr.bf16.gmra.mrb[0].mxu0 %v5129
      %v5334 = vpop.f32.mrb[0].mxu0
      %v5335 = vadd.f32 0.0, %v5334
      %v5336 = vpop.f32.mrb[0].mxu0
      %v5337 = vpop.f32.mrb[0].mxu0
      %v5338 = vadd.f32 0.0, %v5337
      %v5339 = vpop.f32.mrb[0].mxu0
      %5340 = vmatprep.mubr.bf16.mxu0 0
      %5341 = vmatmul.mubr.bf16.gmra.mrb[0].mxu0 %v5130
      %v5342 = vpop.f32.mrb[0].mxu0
      %v5343 = vadd.f32 0.0, %v5342
      %v5344 = vpop.f32.mrb[0].mxu0
      %v5345 = vpop.f32.mrb[0].mxu0
      %v5346 = vadd.f32 0.0, %v5345
      %v5347 = vpop.f32.mrb[0].mxu0
      %5348 = vmatprep.mubr.bf16.mxu0 0
      %5349 = vmatmul.mubr.bf16.gmra.mrb[0].mxu0 %v5131
      %v5350 = vpop.f32.mrb[0].mxu0
      %v5351 = vadd.f32 0.0, %v5350
      %v5352 = vpop.f32.mrb[0].mxu0
      %v5353 = vpop.f32.mrb[0].mxu0
      %v5354 = vadd.f32 0.0, %v5353
      %v5355 = vpop.f32.mrb[0].mxu0
      %5356 = vdwg.mxu0
      %v5357 = vadd.f32 %v4971, %v5231
      %v5358 = vadd.f32 %v4972, %v5234
      %v5359 = vadd.f32 %v4973, %v5239
      %v5360 = vadd.f32 %v4974, %v5242
      %v5361 = vadd.f32 %v4975, %v5247
      %v5362 = vadd.f32 %v4976, %v5250
      %v5363 = vadd.f32 %v4977, %v5255
      %v5364 = vadd.f32 %v4978, %v5258
      %v5365 = vadd.f32 %v4979, %v5263
      %v5366 = vadd.f32 %v4980, %v5266
      %v5367 = vadd.f32 %v4981, %v5271
      %v5368 = vadd.f32 %v4982, %v5274
      %v5369 = vadd.f32 %v4983, %v5279
      %v5370 = vadd.f32 %v4984, %v5282
      %v5371 = vadd.f32 %v4985, %v5287
      %v5372 = vadd.f32 %v4986, %v5290
      %v5373 = vadd.f32 %v4987, %v5295
      %v5374 = vadd.f32 %v4988, %v5298
      %v5375 = vadd.f32 %v4989, %v5303
      %v5376 = vadd.f32 %v4990, %v5306
      %v5377 = vadd.f32 %v4991, %v5311
      %v5378 = vadd.f32 %v4992, %v5314
      %v5379 = vadd.f32 %v4993, %v5319
      %v5380 = vadd.f32 %v4994, %v5322
      %v5381 = vadd.f32 %v4995, %v5327
      %v5382 = vadd.f32 %v4996, %v5330
      %v5383 = vadd.f32 %v4997, %v5335
      %v5384 = vadd.f32 %v4998, %v5338
      %v5385 = vadd.f32 %v4999, %v5343
      %v5386 = vadd.f32 %v5000, %v5346
      %v5387 = vadd.f32 %v5001, %v5351
      %v5388 = vadd.f32 %v5002, %v5354
      %v5389 = vld [vmem:[%s3354] sm:$0xf]
      %v5390 = vld [vmem:[%s3354 + $0x4] sm:$0xf]
      %v5391 = vld [vmem:[%s3354 + $0x8] sm:$0x1]
      %v5392 = vld [vmem:[%s3354 + $0xc] sm:$0xf]
      %v5393 = vld [vmem:[%s3354 + $0x10] sm:$0xf]
      %v5394 = vld [vmem:[%s3354 + $0x14] sm:$0x1]
      %v5395 = vld [vmem:[%s3354 + $0x18] sm:$0xf]
      %v5396 = vld [vmem:[%s3354 + $0x1c] sm:$0xf]
      %v5397 = vld [vmem:[%s3354 + $0x20] sm:$0x1]
      %v5398 = vld [vmem:[%s3354 + $0x24] sm:$0xf]
      %v5399 = vld [vmem:[%s3354 + $0x28] sm:$0xf]
      %v5400 = vld [vmem:[%s3354 + $0x2c] sm:$0x1]
      %v5401 = vld [vmem:[%s3354 + $0x30] sm:$0xf]
      %v5402 = vld [vmem:[%s3354 + $0x34] sm:$0xf]
      %v5403 = vld [vmem:[%s3354 + $0x38] sm:$0x1]
      %v5404 = vld [vmem:[%s3354 + $0x3c] sm:$0xf]
      %v5405 = vld [vmem:[%s3354 + $0x40] sm:$0xf]
      %v5406 = vld [vmem:[%s3354 + $0x44] sm:$0x1]
      %v5407 = vld [vmem:[%s3354 + $0x48] sm:$0xf]
      %v5408 = vld [vmem:[%s3354 + $0x4c] sm:$0xf]
      %v5409 = vld [vmem:[%s3354 + $0x50] sm:$0x1]
      %v5410 = vld [vmem:[%s3354 + $0x54] sm:$0xf]
      %v5411 = vld [vmem:[%s3354 + $0x58] sm:$0xf]
      %v5412 = vld [vmem:[%s3354 + $0x5c] sm:$0x1]
      %v5413 = vld [vmem:[%s3354 + $0x60] sm:$0xf]
      %v5414 = vld [vmem:[%s3354 + $0x64] sm:$0xf]
      %v5415 = vld [vmem:[%s3354 + $0x68] sm:$0x1]
      %v5416 = vld [vmem:[%s3354 + $0x6c] sm:$0xf]
      %v5417 = vld [vmem:[%s3354 + $0x70] sm:$0xf]
      %v5418 = vld [vmem:[%s3354 + $0x74] sm:$0x1]
      %v5419 = vld [vmem:[%s3354 + $0x78] sm:$0xf]
      %v5420 = vld [vmem:[%s3354 + $0x7c] sm:$0xf]
      %v5421 = vld [vmem:[%s3354 + $0x80] sm:$0x1]
      %v5422 = vld [vmem:[%s3354 + $0x84] sm:$0xf]
      %v5423 = vld [vmem:[%s3354 + $0x88] sm:$0xf]
      %v5424 = vld [vmem:[%s3354 + $0x8c] sm:$0x1]
      %v5425 = vld [vmem:[%s3354 + $0x90] sm:$0xf]
      %v5426 = vld [vmem:[%s3354 + $0x94] sm:$0xf]
      %v5427 = vld [vmem:[%s3354 + $0x98] sm:$0x1]
      %v5428 = vld [vmem:[%s3354 + $0x9c] sm:$0xf]
      %v5429 = vld [vmem:[%s3354 + $0xa0] sm:$0xf]
      %v5430 = vld [vmem:[%s3354 + $0xa4] sm:$0x1]
      %v5431 = vld [vmem:[%s3354 + $0xa8] sm:$0xf]
      %v5432 = vld [vmem:[%s3354 + $0xac] sm:$0xf]
      %v5433 = vld [vmem:[%s3354 + $0xb0] sm:$0x1]
      %v5434 = vld [vmem:[%s3354 + $0xb4] sm:$0xf]
      %v5435 = vld [vmem:[%s3354 + $0xb8] sm:$0xf]
      %v5436 = vld [vmem:[%s3354 + $0xbc] sm:$0x1]
      %v5438 = vshrl.u32 %v5389, 16
      %v5440 = vrot.slane %v5438, 4
      %v5441 = vshll.u32 %v5389, 16
      %v5443 = vrot.slane %v5441, 5
      %v5444 = vor.u32 %v5440, %v5443
      %v5445 = vrot.slane %v5444, 4
      %v5447 = vshll.u32 %v5390, 16
      %v5449 = vrot.slane %v5447, 5
      %v5450 = vsel %vm3538, %v5445, %v5449
      %v5451 = vshrl.u32 %v5390, 16
      %v5453 = vrot.slane %v5451, 4
      %v5454 = vor.u32 %v5453, %v5449
      %v5455 = vrot.slane %v5454, 4
      %v5457 = vshll.u32 %v5391, 16
      %v5459 = vrot.slane %v5457, 5
      %v5460 = vsel %vm3538, %v5455, %v5459
      %v5462 = vshrl.u32 %v5392, 16
      %v5464 = vrot.slane %v5462, 4
      %v5465 = vshll.u32 %v5392, 16
      %v5467 = vrot.slane %v5465, 5
      %v5468 = vor.u32 %v5464, %v5467
      %v5469 = vrot.slane %v5468, 4
      %v5471 = vshll.u32 %v5393, 16
      %v5473 = vrot.slane %v5471, 5
      %v5474 = vsel %vm3538, %v5469, %v5473
      %v5475 = vshrl.u32 %v5393, 16
      %v5477 = vrot.slane %v5475, 4
      %v5478 = vor.u32 %v5477, %v5473
      %v5479 = vrot.slane %v5478, 4
      %v5481 = vshll.u32 %v5394, 16
      %v5483 = vrot.slane %v5481, 5
      %v5484 = vsel %vm3538, %v5479, %v5483
      %v5486 = vshrl.u32 %v5395, 16
      %v5488 = vrot.slane %v5486, 4
      %v5489 = vshll.u32 %v5395, 16
      %v5491 = vrot.slane %v5489, 5
      %v5492 = vor.u32 %v5488, %v5491
      %v5493 = vrot.slane %v5492, 4
      %v5495 = vshll.u32 %v5396, 16
      %v5497 = vrot.slane %v5495, 5
      %v5498 = vsel %vm3538, %v5493, %v5497
      %v5499 = vshrl.u32 %v5396, 16
      %v5501 = vrot.slane %v5499, 4
      %v5502 = vor.u32 %v5501, %v5497
      %v5503 = vrot.slane %v5502, 4
      %v5505 = vshll.u32 %v5397, 16
      %v5507 = vrot.slane %v5505, 5
      %v5508 = vsel %vm3538, %v5503, %v5507
      %v5510 = vshrl.u32 %v5398, 16
      %v5512 = vrot.slane %v5510, 4
      %v5513 = vshll.u32 %v5398, 16
      %v5515 = vrot.slane %v5513, 5
      %v5516 = vor.u32 %v5512, %v5515
      %v5517 = vrot.slane %v5516, 4
      %v5519 = vshll.u32 %v5399, 16
      %v5521 = vrot.slane %v5519, 5
      %v5522 = vsel %vm3538, %v5517, %v5521
      %v5523 = vshrl.u32 %v5399, 16
      %v5525 = vrot.slane %v5523, 4
      %v5526 = vor.u32 %v5525, %v5521
      %v5527 = vrot.slane %v5526, 4
      %v5529 = vshll.u32 %v5400, 16
      %v5531 = vrot.slane %v5529, 5
      %v5532 = vsel %vm3538, %v5527, %v5531
      %v5534 = vshrl.u32 %v5401, 16
      %v5536 = vrot.slane %v5534, 4
      %v5537 = vshll.u32 %v5401, 16
      %v5539 = vrot.slane %v5537, 5
      %v5540 = vor.u32 %v5536, %v5539
      %v5541 = vrot.slane %v5540, 4
      %v5543 = vshll.u32 %v5402, 16
      %v5545 = vrot.slane %v5543, 5
      %v5546 = vsel %vm3538, %v5541, %v5545
      %v5547 = vshrl.u32 %v5402, 16
      %v5549 = vrot.slane %v5547, 4
      %v5550 = vor.u32 %v5549, %v5545
      %v5551 = vrot.slane %v5550, 4
      %v5553 = vshll.u32 %v5403, 16
      %v5555 = vrot.slane %v5553, 5
      %v5556 = vsel %vm3538, %v5551, %v5555
      %v5558 = vshrl.u32 %v5404, 16
      %v5560 = vrot.slane %v5558, 4
      %v5561 = vshll.u32 %v5404, 16
      %v5563 = vrot.slane %v5561, 5
      %v5564 = vor.u32 %v5560, %v5563
      %v5565 = vrot.slane %v5564, 4
      %v5567 = vshll.u32 %v5405, 16
      %v5569 = vrot.slane %v5567, 5
      %v5570 = vsel %vm3538, %v5565, %v5569
      %v5571 = vshrl.u32 %v5405, 16
      %v5573 = vrot.slane %v5571, 4
      %v5574 = vor.u32 %v5573, %v5569
      %v5575 = vrot.slane %v5574, 4
      %v5577 = vshll.u32 %v5406, 16
      %v5579 = vrot.slane %v5577, 5
      %v5580 = vsel %vm3538, %v5575, %v5579
      %v5582 = vshrl.u32 %v5407, 16
      %v5584 = vrot.slane %v5582, 4
      %v5585 = vshll.u32 %v5407, 16
      %v5587 = vrot.slane %v5585, 5
      %v5588 = vor.u32 %v5584, %v5587
      %v5589 = vrot.slane %v5588, 4
      %v5591 = vshll.u32 %v5408, 16
      %v5593 = vrot.slane %v5591, 5
      %v5594 = vsel %vm3538, %v5589, %v5593
      %v5595 = vshrl.u32 %v5408, 16
      %v5597 = vrot.slane %v5595, 4
      %v5598 = vor.u32 %v5597, %v5593
      %v5599 = vrot.slane %v5598, 4
      %v5601 = vshll.u32 %v5409, 16
      %v5603 = vrot.slane %v5601, 5
      %v5604 = vsel %vm3538, %v5599, %v5603
      %v5606 = vshrl.u32 %v5410, 16
      %v5608 = vrot.slane %v5606, 4
      %v5609 = vshll.u32 %v5410, 16
      %v5611 = vrot.slane %v5609, 5
      %v5612 = vor.u32 %v5608, %v5611
      %v5613 = vrot.slane %v5612, 4
      %v5615 = vshll.u32 %v5411, 16
      %v5617 = vrot.slane %v5615, 5
      %v5618 = vsel %vm3538, %v5613, %v5617
      %v5619 = vshrl.u32 %v5411, 16
      %v5621 = vrot.slane %v5619, 4
      %v5622 = vor.u32 %v5621, %v5617
      %v5623 = vrot.slane %v5622, 4
      %v5625 = vshll.u32 %v5412, 16
      %v5627 = vrot.slane %v5625, 5
      %v5628 = vsel %vm3538, %v5623, %v5627
      %v5630 = vshrl.u32 %v5413, 16
      %v5632 = vrot.slane %v5630, 4
      %v5633 = vshll.u32 %v5413, 16
      %v5635 = vrot.slane %v5633, 5
      %v5636 = vor.u32 %v5632, %v5635
      %v5637 = vrot.slane %v5636, 4
      %v5639 = vshll.u32 %v5414, 16
      %v5641 = vrot.slane %v5639, 5
      %v5642 = vsel %vm3538, %v5637, %v5641
      %v5643 = vshrl.u32 %v5414, 16
      %v5645 = vrot.slane %v5643, 4
      %v5646 = vor.u32 %v5645, %v5641
      %v5647 = vrot.slane %v5646, 4
      %v5649 = vshll.u32 %v5415, 16
      %v5651 = vrot.slane %v5649, 5
      %v5652 = vsel %vm3538, %v5647, %v5651
      %v5654 = vshrl.u32 %v5416, 16
      %v5656 = vrot.slane %v5654, 4
      %v5657 = vshll.u32 %v5416, 16
      %v5659 = vrot.slane %v5657, 5
      %v5660 = vor.u32 %v5656, %v5659
      %v5661 = vrot.slane %v5660, 4
      %v5663 = vshll.u32 %v5417, 16
      %v5665 = vrot.slane %v5663, 5
      %v5666 = vsel %vm3538, %v5661, %v5665
      %v5667 = vshrl.u32 %v5417, 16
      %v5669 = vrot.slane %v5667, 4
      %v5670 = vor.u32 %v5669, %v5665
      %v5671 = vrot.slane %v5670, 4
      %v5673 = vshll.u32 %v5418, 16
      %v5675 = vrot.slane %v5673, 5
      %v5676 = vsel %vm3538, %v5671, %v5675
      %v5678 = vshrl.u32 %v5419, 16
      %v5680 = vrot.slane %v5678, 4
      %v5681 = vshll.u32 %v5419, 16
      %v5683 = vrot.slane %v5681, 5
      %v5684 = vor.u32 %v5680, %v5683
      %v5685 = vrot.slane %v5684, 4
      %v5687 = vshll.u32 %v5420, 16
      %v5689 = vrot.slane %v5687, 5
      %v5690 = vsel %vm3538, %v5685, %v5689
      %v5691 = vshrl.u32 %v5420, 16
      %v5693 = vrot.slane %v5691, 4
      %v5694 = vor.u32 %v5693, %v5689
      %v5695 = vrot.slane %v5694, 4
      %v5697 = vshll.u32 %v5421, 16
      %v5699 = vrot.slane %v5697, 5
      %v5700 = vsel %vm3538, %v5695, %v5699
      %v5702 = vshrl.u32 %v5422, 16
      %v5704 = vrot.slane %v5702, 4
      %v5705 = vshll.u32 %v5422, 16
      %v5707 = vrot.slane %v5705, 5
      %v5708 = vor.u32 %v5704, %v5707
      %v5709 = vrot.slane %v5708, 4
      %v5711 = vshll.u32 %v5423, 16
      %v5713 = vrot.slane %v5711, 5
      %v5714 = vsel %vm3538, %v5709, %v5713
      %v5715 = vshrl.u32 %v5423, 16
      %v5717 = vrot.slane %v5715, 4
      %v5718 = vor.u32 %v5717, %v5713
      %v5719 = vrot.slane %v5718, 4
      %v5721 = vshll.u32 %v5424, 16
      %v5723 = vrot.slane %v5721, 5
      %v5724 = vsel %vm3538, %v5719, %v5723
      %v5726 = vshrl.u32 %v5425, 16
      %v5728 = vrot.slane %v5726, 4
      %v5729 = vshll.u32 %v5425, 16
      %v5731 = vrot.slane %v5729, 5
      %v5732 = vor.u32 %v5728, %v5731
      %v5733 = vrot.slane %v5732, 4
      %v5735 = vshll.u32 %v5426, 16
      %v5737 = vrot.slane %v5735, 5
      %v5738 = vsel %vm3538, %v5733, %v5737
      %v5739 = vshrl.u32 %v5426, 16
      %v5741 = vrot.slane %v5739, 4
      %v5742 = vor.u32 %v5741, %v5737
      %v5743 = vrot.slane %v5742, 4
      %v5745 = vshll.u32 %v5427, 16
      %v5747 = vrot.slane %v5745, 5
      %v5748 = vsel %vm3538, %v5743, %v5747
      %v5750 = vshrl.u32 %v5428, 16
      %v5752 = vrot.slane %v5750, 4
      %v5753 = vshll.u32 %v5428, 16
      %v5755 = vrot.slane %v5753, 5
      %v5756 = vor.u32 %v5752, %v5755
      %v5757 = vrot.slane %v5756, 4
      %v5759 = vshll.u32 %v5429, 16
      %v5761 = vrot.slane %v5759, 5
      %v5762 = vsel %vm3538, %v5757, %v5761
      %v5763 = vshrl.u32 %v5429, 16
      %v5765 = vrot.slane %v5763, 4
      %v5766 = vor.u32 %v5765, %v5761
      %v5767 = vrot.slane %v5766, 4
      %v5769 = vshll.u32 %v5430, 16
      %v5771 = vrot.slane %v5769, 5
      %v5772 = vsel %vm3538, %v5767, %v5771
      %v5774 = vshrl.u32 %v5431, 16
      %v5776 = vrot.slane %v5774, 4
      %v5777 = vshll.u32 %v5431, 16
      %v5779 = vrot.slane %v5777, 5
      %v5780 = vor.u32 %v5776, %v5779
      %v5781 = vrot.slane %v5780, 4
      %v5783 = vshll.u32 %v5432, 16
      %v5785 = vrot.slane %v5783, 5
      %v5786 = vsel %vm3538, %v5781, %v5785
      %v5787 = vshrl.u32 %v5432, 16
      %v5789 = vrot.slane %v5787, 4
      %v5790 = vor.u32 %v5789, %v5785
      %v5791 = vrot.slane %v5790, 4
      %v5793 = vshll.u32 %v5433, 16
      %v5795 = vrot.slane %v5793, 5
      %v5796 = vsel %vm3538, %v5791, %v5795
      %v5798 = vshrl.u32 %v5434, 16
      %v5800 = vrot.slane %v5798, 4
      %v5801 = vshll.u32 %v5434, 16
      %v5803 = vrot.slane %v5801, 5
      %v5804 = vor.u32 %v5800, %v5803
      %v5805 = vrot.slane %v5804, 4
      %v5807 = vshll.u32 %v5435, 16
      %v5809 = vrot.slane %v5807, 5
      %v5810 = vsel %vm3538, %v5805, %v5809
      %v5811 = vshrl.u32 %v5435, 16
      %v5813 = vrot.slane %v5811, 4
      %v5814 = vor.u32 %v5813, %v5809
      %v5815 = vrot.slane %v5814, 4
      %v5817 = vshll.u32 %v5436, 16
      %v5819 = vrot.slane %v5817, 5
      %v5820 = vsel %vm3538, %v5815, %v5819
      %s5821 = scalar_lea.vmem %s3, 256
      %v5822 = vld [vmem:[%s5821] sm:$0xf]
      %v5823 = vld [vmem:[%s5821 + $0x4] sm:$0xf]
      %v5824 = vld [vmem:[%s5821 + $0x8] sm:$0xf]
      %v5825 = vld [vmem:[%s5821 + $0xc] sm:$0xf]
      %v5826 = vld [vmem:[%s5821 + $0x10] sm:$0xf]
      %v5827 = vld [vmem:[%s5821 + $0x14] sm:$0xf]
      %v5828 = vld [vmem:[%s5821 + $0x18] sm:$0xf]
      %v5829 = vld [vmem:[%s5821 + $0x1c] sm:$0xf]
      %v5830 = vld [vmem:[%s5821 + $0x20] sm:$0xf]
      %v5831 = vld [vmem:[%s5821 + $0x24] sm:$0xf]
      %v5832 = vld [vmem:[%s5821 + $0x28] sm:$0xf]
      %v5833 = vld [vmem:[%s5821 + $0x2c] sm:$0xf]
      %v5834 = vld [vmem:[%s5821 + $0x30] sm:$0xf]
      %v5835 = vld [vmem:[%s5821 + $0x34] sm:$0xf]
      %v5836 = vld [vmem:[%s5821 + $0x38] sm:$0xf]
      %v5837 = vld [vmem:[%s5821 + $0x3c] sm:$0xf]
      %v5838 = vunpack.c.l.b16 %v5450
      %v5839 = vunpack.c.l.b16 %v5460
      %v5840 = vunpack.c.l.b16 %v5474
      %v5841 = vunpack.c.l.b16 %v5484
      %v5842 = vunpack.c.l.b16 %v5498
      %v5843 = vunpack.c.l.b16 %v5508
      %v5844 = vunpack.c.l.b16 %v5522
      %v5845 = vunpack.c.l.b16 %v5532
      %v5846 = vunpack.c.l.b16 %v5546
      %v5847 = vunpack.c.l.b16 %v5556
      %v5848 = vunpack.c.l.b16 %v5570
      %v5849 = vunpack.c.l.b16 %v5580
      %v5850 = vunpack.c.l.b16 %v5594
      %v5851 = vunpack.c.l.b16 %v5604
      %v5852 = vunpack.c.l.b16 %v5618
      %v5853 = vunpack.c.l.b16 %v5628
      %v5854 = vunpack.c.l.b16 %v5642
      %v5855 = vunpack.c.l.b16 %v5652
      %v5856 = vunpack.c.l.b16 %v5666
      %v5857 = vunpack.c.l.b16 %v5676
      %v5858 = vunpack.c.l.b16 %v5690
      %v5859 = vunpack.c.l.b16 %v5700
      %v5860 = vunpack.c.l.b16 %v5714
      %v5861 = vunpack.c.l.b16 %v5724
      %v5862 = vunpack.c.l.b16 %v5738
      %v5863 = vunpack.c.l.b16 %v5748
      %v5864 = vunpack.c.l.b16 %v5762
      %v5865 = vunpack.c.l.b16 %v5772
      %v5866 = vunpack.c.l.b16 %v5786
      %v5867 = vunpack.c.l.b16 %v5796
      %v5868 = vunpack.c.l.b16 %v5810
      %v5869 = vunpack.c.l.b16 %v5820
      %v5870 = vpack.c.b16 %v5839, %v5838
      %v5871 = vpack.c.b16 %v5841, %v5840
      %v5872 = vpack.c.b16 %v5843, %v5842
      %v5873 = vpack.c.b16 %v5845, %v5844
      %v5874 = vpack.c.b16 %v5847, %v5846
      %v5875 = vpack.c.b16 %v5849, %v5848
      %v5876 = vpack.c.b16 %v5851, %v5850
      %v5877 = vpack.c.b16 %v5853, %v5852
      %v5878 = vpack.c.b16 %v5855, %v5854
      %v5879 = vpack.c.b16 %v5857, %v5856
      %v5880 = vpack.c.b16 %v5859, %v5858
      %v5881 = vpack.c.b16 %v5861, %v5860
      %v5882 = vpack.c.b16 %v5863, %v5862
      %v5883 = vpack.c.b16 %v5865, %v5864
      %v5884 = vpack.c.b16 %v5867, %v5866
      %v5885 = vpack.c.b16 %v5869, %v5868
      %v5918 = vunpack.c.l.b16 %v5822
      %v5919 = vunpack.c.l.b16 %v5823
      %v5920 = vunpack.c.l.b16 %v5824
      %v5921 = vunpack.c.l.b16 %v5825
      %v5922 = vunpack.c.l.b16 %v5826
      %v5923 = vunpack.c.l.b16 %v5827
      %v5924 = vunpack.c.l.b16 %v5828
      %v5925 = vunpack.c.l.b16 %v5829
      %v5926 = vunpack.c.l.b16 %v5830
      %v5927 = vunpack.c.l.b16 %v5831
      %v5928 = vunpack.c.l.b16 %v5832
      %v5929 = vunpack.c.l.b16 %v5833
      %v5930 = vunpack.c.l.b16 %v5834
      %v5931 = vunpack.c.l.b16 %v5835
      %v5932 = vunpack.c.l.b16 %v5836
      %v5933 = vunpack.c.l.b16 %v5837
      %v5934 = vpack.c.b16 %v5919, %v5918
      %v5935 = vpack.c.b16 %v5921, %v5920
      %v5936 = vpack.c.b16 %v5923, %v5922
      %v5937 = vpack.c.b16 %v5925, %v5924
      %v5938 = vpack.c.b16 %v5927, %v5926
      %v5939 = vpack.c.b16 %v5929, %v5928
      %v5940 = vpack.c.b16 %v5931, %v5930
      %v5941 = vpack.c.b16 %v5933, %v5932
      %5950 = vmatprep.subr.bf16.mxu0 0
      %5951 = vmatpush1.bf16.msra.mxu0 %v5934
      %5952 = vmatprep.subr.bf16.mxu0 0
      %5953 = vmatpush1.bf16.msra.mxu0 %v5935
      %5954 = vmatprep.subr.bf16.mxu0 0
      %5955 = vmatpush1.bf16.msra.mxu0 %v5936
      %5956 = vmatprep.subr.bf16.mxu0 0
      %5957 = vmatpush1.bf16.msra.mxu0 %v5937
      %5958 = vmatprep.subr.bf16.mxu0 0
      %5959 = vmatpush1.bf16.msra.mxu0 %v5938
      %5960 = vmatprep.subr.bf16.mxu0 0
      %5961 = vmatpush1.bf16.msra.mxu0 %v5939
      %5962 = vmatprep.subr.bf16.mxu0 0
      %5963 = vmatpush1.bf16.msra.mxu0 %v5940
      %5964 = vmatprep.subr.bf16.mxu0 0
      %5965 = vmatpush1.bf16.msra.mxu0 %v5941
      %5966 = vmatprep.subr.bf16.mxu0 0
      %5967 = vmatpush1.bf16.msra.mxu0 0
      %5968 = vmatprep.subr.bf16.mxu0 0
      %5969 = vmatpush1.bf16.msra.mxu0 0
      %5970 = vmatprep.subr.bf16.mxu0 0
      %5971 = vmatpush1.bf16.msra.mxu0 0
      %5972 = vmatprep.subr.bf16.mxu0 0
      %5973 = vmatpush1.bf16.msra.mxu0 0
      %5974 = vmatprep.subr.bf16.mxu0 0
      %5975 = vmatpush1.bf16.msra.mxu0 0
      %5976 = vmatprep.subr.bf16.mxu0 0
      %5977 = vmatpush1.bf16.msra.mxu0 0
      %5978 = vmatprep.subr.bf16.mxu0 0
      %5979 = vmatpush1.bf16.msra.mxu0 0
      %5980 = vmatprep.subr.bf16.mxu0 0
      %5981 = vmatpush1.bf16.msra.mxu0 0
      %5982 = vmatprep.mubr.bf16.mxu0 0
      %5983 = vmatmul.mubr.bf16.gmra.mrb[0].mxu0 %v5870
      %v5984 = vpop.f32.mrb[0].mxu0
      %v5985 = vadd.f32 0.0, %v5984
      %v5986 = vpop.f32.mrb[0].mxu0
      %v5987 = vpop.f32.mrb[0].mxu0
      %v5988 = vadd.f32 0.0, %v5987
      %v5989 = vpop.f32.mrb[0].mxu0
      %5990 = vmatprep.mubr.bf16.mxu0 0
      %5991 = vmatmul.mubr.bf16.gmra.mrb[0].mxu0 %v5871
      %v5992 = vpop.f32.mrb[0].mxu0
      %v5993 = vadd.f32 0.0, %v5992
      %v5994 = vpop.f32.mrb[0].mxu0
      %v5995 = vpop.f32.mrb[0].mxu0
      %v5996 = vadd.f32 0.0, %v5995
      %v5997 = vpop.f32.mrb[0].mxu0
      %5998 = vmatprep.mubr.bf16.mxu0 0
      %5999 = vmatmul.mubr.bf16.gmra.mrb[0].mxu0 %v5872
      %v6000 = vpop.f32.mrb[0].mxu0
      %v6001 = vadd.f32 0.0, %v6000
      %v6002 = vpop.f32.mrb[0].mxu0
      %v6003 = vpop.f32.mrb[0].mxu0
      %v6004 = vadd.f32 0.0, %v6003
      %v6005 = vpop.f32.mrb[0].mxu0
      %6006 = vmatprep.mubr.bf16.mxu0 0
      %6007 = vmatmul.mubr.bf16.gmra.mrb[0].mxu0 %v5873
      %v6008 = vpop.f32.mrb[0].mxu0
      %v6009 = vadd.f32 0.0, %v6008
      %v6010 = vpop.f32.mrb[0].mxu0
      %v6011 = vpop.f32.mrb[0].mxu0
      %v6012 = vadd.f32 0.0, %v6011
      %v6013 = vpop.f32.mrb[0].mxu0
      %6014 = vmatprep.mubr.bf16.mxu0 0
      %6015 = vmatmul.mubr.bf16.gmra.mrb[0].mxu0 %v5874
      %v6016 = vpop.f32.mrb[0].mxu0
      %v6017 = vadd.f32 0.0, %v6016
      %v6018 = vpop.f32.mrb[0].mxu0
      %v6019 = vpop.f32.mrb[0].mxu0
      %v6020 = vadd.f32 0.0, %v6019
      %v6021 = vpop.f32.mrb[0].mxu0
      %6022 = vmatprep.mubr.bf16.mxu0 0
      %6023 = vmatmul.mubr.bf16.gmra.mrb[0].mxu0 %v5875
      %v6024 = vpop.f32.mrb[0].mxu0
      %v6025 = vadd.f32 0.0, %v6024
      %v6026 = vpop.f32.mrb[0].mxu0
      %v6027 = vpop.f32.mrb[0].mxu0
      %v6028 = vadd.f32 0.0, %v6027
      %v6029 = vpop.f32.mrb[0].mxu0
      %6030 = vmatprep.mubr.bf16.mxu0 0
      %6031 = vmatmul.mubr.bf16.gmra.mrb[0].mxu0 %v5876
      %v6032 = vpop.f32.mrb[0].mxu0
      %v6033 = vadd.f32 0.0, %v6032
      %v6034 = vpop.f32.mrb[0].mxu0
      %v6035 = vpop.f32.mrb[0].mxu0
      %v6036 = vadd.f32 0.0, %v6035
      %v6037 = vpop.f32.mrb[0].mxu0
      %6038 = vmatprep.mubr.bf16.mxu0 0
      %6039 = vmatmul.mubr.bf16.gmra.mrb[0].mxu0 %v5877
      %v6040 = vpop.f32.mrb[0].mxu0
      %v6041 = vadd.f32 0.0, %v6040
      %v6042 = vpop.f32.mrb[0].mxu0
      %v6043 = vpop.f32.mrb[0].mxu0
      %v6044 = vadd.f32 0.0, %v6043
      %v6045 = vpop.f32.mrb[0].mxu0
      %6046 = vmatprep.mubr.bf16.mxu0 0
      %6047 = vmatmul.mubr.bf16.gmra.mrb[0].mxu0 %v5878
      %v6048 = vpop.f32.mrb[0].mxu0
      %v6049 = vadd.f32 0.0, %v6048
      %v6050 = vpop.f32.mrb[0].mxu0
      %v6051 = vpop.f32.mrb[0].mxu0
      %v6052 = vadd.f32 0.0, %v6051
      %v6053 = vpop.f32.mrb[0].mxu0
      %6054 = vmatprep.mubr.bf16.mxu0 0
      %6055 = vmatmul.mubr.bf16.gmra.mrb[0].mxu0 %v5879
      %v6056 = vpop.f32.mrb[0].mxu0
      %v6057 = vadd.f32 0.0, %v6056
      %v6058 = vpop.f32.mrb[0].mxu0
      %v6059 = vpop.f32.mrb[0].mxu0
      %v6060 = vadd.f32 0.0, %v6059
      %v6061 = vpop.f32.mrb[0].mxu0
      %6062 = vmatprep.mubr.bf16.mxu0 0
      %6063 = vmatmul.mubr.bf16.gmra.mrb[0].mxu0 %v5880
      %v6064 = vpop.f32.mrb[0].mxu0
      %v6065 = vadd.f32 0.0, %v6064
      %v6066 = vpop.f32.mrb[0].mxu0
      %v6067 = vpop.f32.mrb[0].mxu0
      %v6068 = vadd.f32 0.0, %v6067
      %v6069 = vpop.f32.mrb[0].mxu0
      %6070 = vmatprep.mubr.bf16.mxu0 0
      %6071 = vmatmul.mubr.bf16.gmra.mrb[0].mxu0 %v5881
      %v6072 = vpop.f32.mrb[0].mxu0
      %v6073 = vadd.f32 0.0, %v6072
      %v6074 = vpop.f32.mrb[0].mxu0
      %v6075 = vpop.f32.mrb[0].mxu0
      %v6076 = vadd.f32 0.0, %v6075
      %v6077 = vpop.f32.mrb[0].mxu0
      %6078 = vmatprep.mubr.bf16.mxu0 0
      %6079 = vmatmul.mubr.bf16.gmra.mrb[0].mxu0 %v5882
      %v6080 = vpop.f32.mrb[0].mxu0
      %v6081 = vadd.f32 0.0, %v6080
      %v6082 = vpop.f32.mrb[0].mxu0
      %v6083 = vpop.f32.mrb[0].mxu0
      %v6084 = vadd.f32 0.0, %v6083
      %v6085 = vpop.f32.mrb[0].mxu0
      %6086 = vmatprep.mubr.bf16.mxu0 0
      %6087 = vmatmul.mubr.bf16.gmra.mrb[0].mxu0 %v5883
      %v6088 = vpop.f32.mrb[0].mxu0
      %v6089 = vadd.f32 0.0, %v6088
      %v6090 = vpop.f32.mrb[0].mxu0
      %v6091 = vpop.f32.mrb[0].mxu0
      %v6092 = vadd.f32 0.0, %v6091
      %v6093 = vpop.f32.mrb[0].mxu0
      %6094 = vmatprep.mubr.bf16.mxu0 0
      %6095 = vmatmul.mubr.bf16.gmra.mrb[0].mxu0 %v5884
      %v6096 = vpop.f32.mrb[0].mxu0
      %v6097 = vadd.f32 0.0, %v6096
      %v6098 = vpop.f32.mrb[0].mxu0
      %v6099 = vpop.f32.mrb[0].mxu0
      %v6100 = vadd.f32 0.0, %v6099
      %v6101 = vpop.f32.mrb[0].mxu0
      %6102 = vmatprep.mubr.bf16.mxu0 0
      %6103 = vmatmul.mubr.bf16.gmra.mrb[0].mxu0 %v5885
      %v6104 = vpop.f32.mrb[0].mxu0
      %v6105 = vadd.f32 0.0, %v6104
      %v6106 = vpop.f32.mrb[0].mxu0
      %v6107 = vpop.f32.mrb[0].mxu0
      %v6108 = vadd.f32 0.0, %v6107
      %v6109 = vpop.f32.mrb[0].mxu0
      %6110 = vdwg.mxu0
      %v6111 = vadd.f32 %v5357, %v5985
      %v6112 = vadd.f32 %v5358, %v5988
      %v6113 = vadd.f32 %v5359, %v5993
      %v6114 = vadd.f32 %v5360, %v5996
      %v6115 = vadd.f32 %v5361, %v6001
      %v6116 = vadd.f32 %v5362, %v6004
      %v6117 = vadd.f32 %v5363, %v6009
      %v6118 = vadd.f32 %v5364, %v6012
      %v6119 = vadd.f32 %v5365, %v6017
      %v6120 = vadd.f32 %v5366, %v6020
      %v6121 = vadd.f32 %v5367, %v6025
      %v6122 = vadd.f32 %v5368, %v6028
      %v6123 = vadd.f32 %v5369, %v6033
      %v6124 = vadd.f32 %v5370, %v6036
      %v6125 = vadd.f32 %v5371, %v6041
      %v6126 = vadd.f32 %v5372, %v6044
      %v6127 = vadd.f32 %v5373, %v6049
      %v6128 = vadd.f32 %v5374, %v6052
      %v6129 = vadd.f32 %v5375, %v6057
      %v6130 = vadd.f32 %v5376, %v6060
      %v6131 = vadd.f32 %v5377, %v6065
      %v6132 = vadd.f32 %v5378, %v6068
      %v6133 = vadd.f32 %v5379, %v6073
      %v6134 = vadd.f32 %v5380, %v6076
      %v6135 = vadd.f32 %v5381, %v6081
      %v6136 = vadd.f32 %v5382, %v6084
      %v6137 = vadd.f32 %v5383, %v6089
      %v6138 = vadd.f32 %v5384, %v6092
      %v6139 = vadd.f32 %v5385, %v6097
      %v6140 = vadd.f32 %v5386, %v6100
      %v6141 = vadd.f32 %v5387, %v6105
      %v6142 = vadd.f32 %v5388, %v6108
      %v6143 = vld [vmem:[%s3354] sm:$0xe]
      %v6144 = vld [vmem:[%s3354 + $0xc] sm:$0xe]
      %v6145 = vld [vmem:[%s3354 + $0x18] sm:$0xe]
      %v6146 = vld [vmem:[%s3354 + $0x24] sm:$0xe]
      %v6147 = vld [vmem:[%s3354 + $0x30] sm:$0xe]
      %v6148 = vld [vmem:[%s3354 + $0x3c] sm:$0xe]
      %v6149 = vld [vmem:[%s3354 + $0x48] sm:$0xe]
      %v6150 = vld [vmem:[%s3354 + $0x54] sm:$0xe]
      %v6151 = vld [vmem:[%s3354 + $0x60] sm:$0xe]
      %v6152 = vld [vmem:[%s3354 + $0x6c] sm:$0xe]
      %v6153 = vld [vmem:[%s3354 + $0x78] sm:$0xe]
      %v6154 = vld [vmem:[%s3354 + $0x84] sm:$0xe]
      %v6155 = vld [vmem:[%s3354 + $0x90] sm:$0xe]
      %v6156 = vld [vmem:[%s3354 + $0x9c] sm:$0xe]
      %v6157 = vld [vmem:[%s3354 + $0xa8] sm:$0xe]
      %v6158 = vld [vmem:[%s3354 + $0xb4] sm:$0xe]
      %v6207 = vrot.slane %v6143, 5
      %v6208 = vrot.slane %v6207, 4
      %v6209 = vrot.slane %v5390, 5
      %v6210 = vsel %vm4568, %v6208, %v6209
      %v6211 = vrot.slane %v6209, 4
      %v6212 = vrot.slane %v5391, 5
      %v6213 = vsel %vm4568, %v6211, %v6212
      %v6214 = vrot.slane %v6144, 5
      %v6215 = vrot.slane %v6214, 4
      %v6216 = vrot.slane %v5393, 5
      %v6217 = vsel %vm4568, %v6215, %v6216
      %v6218 = vrot.slane %v6216, 4
      %v6219 = vrot.slane %v5394, 5
      %v6220 = vsel %vm4568, %v6218, %v6219
      %v6221 = vrot.slane %v6145, 5
      %v6222 = vrot.slane %v6221, 4
      %v6223 = vrot.slane %v5396, 5
      %v6224 = vsel %vm4568, %v6222, %v6223
      %v6225 = vrot.slane %v6223, 4
      %v6226 = vrot.slane %v5397, 5
      %v6227 = vsel %vm4568, %v6225, %v6226
      %v6228 = vrot.slane %v6146, 5
      %v6229 = vrot.slane %v6228, 4
      %v6230 = vrot.slane %v5399, 5
      %v6231 = vsel %vm4568, %v6229, %v6230
      %v6232 = vrot.slane %v6230, 4
      %v6233 = vrot.slane %v5400, 5
      %v6234 = vsel %vm4568, %v6232, %v6233
      %v6235 = vrot.slane %v6147, 5
      %v6236 = vrot.slane %v6235, 4
      %v6237 = vrot.slane %v5402, 5
      %v6238 = vsel %vm4568, %v6236, %v6237
      %v6239 = vrot.slane %v6237, 4
      %v6240 = vrot.slane %v5403, 5
      %v6241 = vsel %vm4568, %v6239, %v6240
      %v6242 = vrot.slane %v6148, 5
      %v6243 = vrot.slane %v6242, 4
      %v6244 = vrot.slane %v5405, 5
      %v6245 = vsel %vm4568, %v6243, %v6244
      %v6246 = vrot.slane %v6244, 4
      %v6247 = vrot.slane %v5406, 5
      %v6248 = vsel %vm4568, %v6246, %v6247
      %v6249 = vrot.slane %v6149, 5
      %v6250 = vrot.slane %v6249, 4
      %v6251 = vrot.slane %v5408, 5
      %v6252 = vsel %vm4568, %v6250, %v6251
      %v6253 = vrot.slane %v6251, 4
      %v6254 = vrot.slane %v5409, 5
      %v6255 = vsel %vm4568, %v6253, %v6254
      %v6256 = vrot.slane %v6150, 5
      %v6257 = vrot.slane %v6256, 4
      %v6258 = vrot.slane %v5411, 5
      %v6259 = vsel %vm4568, %v6257, %v6258
      %v6260 = vrot.slane %v6258, 4
      %v6261 = vrot.slane %v5412, 5
      %v6262 = vsel %vm4568, %v6260, %v6261
      %v6263 = vrot.slane %v6151, 5
      %v6264 = vrot.slane %v6263, 4
      %v6265 = vrot.slane %v5414, 5
      %v6266 = vsel %vm4568, %v6264, %v6265
      %v6267 = vrot.slane %v6265, 4
      %v6268 = vrot.slane %v5415, 5
      %v6269 = vsel %vm4568, %v6267, %v6268
      %v6270 = vrot.slane %v6152, 5
      %v6271 = vrot.slane %v6270, 4
      %v6272 = vrot.slane %v5417, 5
      %v6273 = vsel %vm4568, %v6271, %v6272
      %v6274 = vrot.slane %v6272, 4
      %v6275 = vrot.slane %v5418, 5
      %v6276 = vsel %vm4568, %v6274, %v6275
      %v6277 = vrot.slane %v6153, 5
      %v6278 = vrot.slane %v6277, 4
      %v6279 = vrot.slane %v5420, 5
      %v6280 = vsel %vm4568, %v6278, %v6279
      %v6281 = vrot.slane %v6279, 4
      %v6282 = vrot.slane %v5421, 5
      %v6283 = vsel %vm4568, %v6281, %v6282
      %v6284 = vrot.slane %v6154, 5
      %v6285 = vrot.slane %v6284, 4
      %v6286 = vrot.slane %v5423, 5
      %v6287 = vsel %vm4568, %v6285, %v6286
      %v6288 = vrot.slane %v6286, 4
      %v6289 = vrot.slane %v5424, 5
      %v6290 = vsel %vm4568, %v6288, %v6289
      %v6291 = vrot.slane %v6155, 5
      %v6292 = vrot.slane %v6291, 4
      %v6293 = vrot.slane %v5426, 5
      %v6294 = vsel %vm4568, %v6292, %v6293
      %v6295 = vrot.slane %v6293, 4
      %v6296 = vrot.slane %v5427, 5
      %v6297 = vsel %vm4568, %v6295, %v6296
      %v6298 = vrot.slane %v6156, 5
      %v6299 = vrot.slane %v6298, 4
      %v6300 = vrot.slane %v5429, 5
      %v6301 = vsel %vm4568, %v6299, %v6300
      %v6302 = vrot.slane %v6300, 4
      %v6303 = vrot.slane %v5430, 5
      %v6304 = vsel %vm4568, %v6302, %v6303
      %v6305 = vrot.slane %v6157, 5
      %v6306 = vrot.slane %v6305, 4
      %v6307 = vrot.slane %v5432, 5
      %v6308 = vsel %vm4568, %v6306, %v6307
      %v6309 = vrot.slane %v6307, 4
      %v6310 = vrot.slane %v5433, 5
      %v6311 = vsel %vm4568, %v6309, %v6310
      %v6312 = vrot.slane %v6158, 5
      %v6313 = vrot.slane %v6312, 4
      %v6314 = vrot.slane %v5435, 5
      %v6315 = vsel %vm4568, %v6313, %v6314
      %v6316 = vrot.slane %v6314, 4
      %v6317 = vrot.slane %v5436, 5
      %v6318 = vsel %vm4568, %v6316, %v6317
      %s6319 = scalar_lea.vmem %s3, 320
      %v6320 = vld [vmem:[%s6319] sm:$0xf]
      %v6321 = vld [vmem:[%s6319 + $0x4] sm:$0xf]
      %v6322 = vld [vmem:[%s6319 + $0x8] sm:$0xf]
      %v6323 = vld [vmem:[%s6319 + $0xc] sm:$0xf]
      %v6324 = vld [vmem:[%s6319 + $0x10] sm:$0xf]
      %v6325 = vld [vmem:[%s6319 + $0x14] sm:$0xf]
      %v6326 = vld [vmem:[%s6319 + $0x18] sm:$0xf]
      %v6327 = vld [vmem:[%s6319 + $0x1c] sm:$0xf]
      %v6328 = vld [vmem:[%s6319 + $0x20] sm:$0xf]
      %v6329 = vld [vmem:[%s6319 + $0x24] sm:$0xf]
      %v6330 = vld [vmem:[%s6319 + $0x28] sm:$0xf]
      %v6331 = vld [vmem:[%s6319 + $0x2c] sm:$0xf]
      %v6332 = vld [vmem:[%s6319 + $0x30] sm:$0xf]
      %v6333 = vld [vmem:[%s6319 + $0x34] sm:$0xf]
      %v6334 = vld [vmem:[%s6319 + $0x38] sm:$0xf]
      %v6335 = vld [vmem:[%s6319 + $0x3c] sm:$0xf]
      %v6336 = vunpack.c.l.b16 %v6210
      %v6337 = vunpack.c.l.b16 %v6213
      %v6338 = vunpack.c.l.b16 %v6217
      %v6339 = vunpack.c.l.b16 %v6220
      %v6340 = vunpack.c.l.b16 %v6224
      %v6341 = vunpack.c.l.b16 %v6227
      %v6342 = vunpack.c.l.b16 %v6231
      %v6343 = vunpack.c.l.b16 %v6234
      %v6344 = vunpack.c.l.b16 %v6238
      %v6345 = vunpack.c.l.b16 %v6241
      %v6346 = vunpack.c.l.b16 %v6245
      %v6347 = vunpack.c.l.b16 %v6248
      %v6348 = vunpack.c.l.b16 %v6252
      %v6349 = vunpack.c.l.b16 %v6255
      %v6350 = vunpack.c.l.b16 %v6259
      %v6351 = vunpack.c.l.b16 %v6262
      %v6352 = vunpack.c.l.b16 %v6266
      %v6353 = vunpack.c.l.b16 %v6269
      %v6354 = vunpack.c.l.b16 %v6273
      %v6355 = vunpack.c.l.b16 %v6276
      %v6356 = vunpack.c.l.b16 %v6280
      %v6357 = vunpack.c.l.b16 %v6283
      %v6358 = vunpack.c.l.b16 %v6287
      %v6359 = vunpack.c.l.b16 %v6290
      %v6360 = vunpack.c.l.b16 %v6294
      %v6361 = vunpack.c.l.b16 %v6297
      %v6362 = vunpack.c.l.b16 %v6301
      %v6363 = vunpack.c.l.b16 %v6304
      %v6364 = vunpack.c.l.b16 %v6308
      %v6365 = vunpack.c.l.b16 %v6311
      %v6366 = vunpack.c.l.b16 %v6315
      %v6367 = vunpack.c.l.b16 %v6318
      %v6368 = vpack.c.b16 %v6337, %v6336
      %v6369 = vpack.c.b16 %v6339, %v6338
      %v6370 = vpack.c.b16 %v6341, %v6340
      %v6371 = vpack.c.b16 %v6343, %v6342
      %v6372 = vpack.c.b16 %v6345, %v6344
      %v6373 = vpack.c.b16 %v6347, %v6346
      %v6374 = vpack.c.b16 %v6349, %v6348
      %v6375 = vpack.c.b16 %v6351, %v6350
      %v6376 = vpack.c.b16 %v6353, %v6352
      %v6377 = vpack.c.b16 %v6355, %v6354
      %v6378 = vpack.c.b16 %v6357, %v6356
      %v6379 = vpack.c.b16 %v6359, %v6358
      %v6380 = vpack.c.b16 %v6361, %v6360
      %v6381 = vpack.c.b16 %v6363, %v6362
      %v6382 = vpack.c.b16 %v6365, %v6364
      %v6383 = vpack.c.b16 %v6367, %v6366
      %v6416 = vunpack.c.l.b16 %v6320
      %v6417 = vunpack.c.l.b16 %v6321
      %v6418 = vunpack.c.l.b16 %v6322
      %v6419 = vunpack.c.l.b16 %v6323
      %v6420 = vunpack.c.l.b16 %v6324
      %v6421 = vunpack.c.l.b16 %v6325
      %v6422 = vunpack.c.l.b16 %v6326
      %v6423 = vunpack.c.l.b16 %v6327
      %v6424 = vunpack.c.l.b16 %v6328
      %v6425 = vunpack.c.l.b16 %v6329
      %v6426 = vunpack.c.l.b16 %v6330
      %v6427 = vunpack.c.l.b16 %v6331
      %v6428 = vunpack.c.l.b16 %v6332
      %v6429 = vunpack.c.l.b16 %v6333
      %v6430 = vunpack.c.l.b16 %v6334
      %v6431 = vunpack.c.l.b16 %v6335
      %v6432 = vpack.c.b16 %v6417, %v6416
      %v6433 = vpack.c.b16 %v6419, %v6418
      %v6434 = vpack.c.b16 %v6421, %v6420
      %v6435 = vpack.c.b16 %v6423, %v6422
      %v6436 = vpack.c.b16 %v6425, %v6424
      %v6437 = vpack.c.b16 %v6427, %v6426
      %v6438 = vpack.c.b16 %v6429, %v6428
      %v6439 = vpack.c.b16 %v6431, %v6430
      %6448 = vmatprep.subr.bf16.mxu0 0
      %6449 = vmatpush1.bf16.msra.mxu0 %v6432
      %6450 = vmatprep.subr.bf16.mxu0 0
      %6451 = vmatpush1.bf16.msra.mxu0 %v6433
      %6452 = vmatprep.subr.bf16.mxu0 0
      %6453 = vmatpush1.bf16.msra.mxu0 %v6434
      %6454 = vmatprep.subr.bf16.mxu0 0
      %6455 = vmatpush1.bf16.msra.mxu0 %v6435
      %6456 = vmatprep.subr.bf16.mxu0 0
      %6457 = vmatpush1.bf16.msra.mxu0 %v6436
      %6458 = vmatprep.subr.bf16.mxu0 0
      %6459 = vmatpush1.bf16.msra.mxu0 %v6437
      %6460 = vmatprep.subr.bf16.mxu0 0
      %6461 = vmatpush1.bf16.msra.mxu0 %v6438
      %6462 = vmatprep.subr.bf16.mxu0 0
      %6463 = vmatpush1.bf16.msra.mxu0 %v6439
      %6464 = vmatprep.subr.bf16.mxu0 0
      %6465 = vmatpush1.bf16.msra.mxu0 0
      %6466 = vmatprep.subr.bf16.mxu0 0
      %6467 = vmatpush1.bf16.msra.mxu0 0
      %6468 = vmatprep.subr.bf16.mxu0 0
      %6469 = vmatpush1.bf16.msra.mxu0 0
      %6470 = vmatprep.subr.bf16.mxu0 0
      %6471 = vmatpush1.bf16.msra.mxu0 0
      %6472 = vmatprep.subr.bf16.mxu0 0
      %6473 = vmatpush1.bf16.msra.mxu0 0
      %6474 = vmatprep.subr.bf16.mxu0 0
      %6475 = vmatpush1.bf16.msra.mxu0 0
      %6476 = vmatprep.subr.bf16.mxu0 0
      %6477 = vmatpush1.bf16.msra.mxu0 0
      %6478 = vmatprep.subr.bf16.mxu0 0
      %6479 = vmatpush1.bf16.msra.mxu0 0
      %6480 = vmatprep.mubr.bf16.mxu0 0
      %6481 = vmatmul.mubr.bf16.gmra.mrb[0].mxu0 %v6368
      %v6482 = vpop.f32.mrb[0].mxu0
      %v6483 = vadd.f32 0.0, %v6482
      %v6484 = vpop.f32.mrb[0].mxu0
      %v6485 = vpop.f32.mrb[0].mxu0
      %v6486 = vadd.f32 0.0, %v6485
      %v6487 = vpop.f32.mrb[0].mxu0
      %6488 = vmatprep.mubr.bf16.mxu0 0
      %6489 = vmatmul.mubr.bf16.gmra.mrb[0].mxu0 %v6369
      %v6490 = vpop.f32.mrb[0].mxu0
      %v6491 = vadd.f32 0.0, %v6490
      %v6492 = vpop.f32.mrb[0].mxu0
      %v6493 = vpop.f32.mrb[0].mxu0
      %v6494 = vadd.f32 0.0, %v6493
      %v6495 = vpop.f32.mrb[0].mxu0
      %6496 = vmatprep.mubr.bf16.mxu0 0
      %6497 = vmatmul.mubr.bf16.gmra.mrb[0].mxu0 %v6370
      %v6498 = vpop.f32.mrb[0].mxu0
      %v6499 = vadd.f32 0.0, %v6498
      %v6500 = vpop.f32.mrb[0].mxu0
      %v6501 = vpop.f32.mrb[0].mxu0
      %v6502 = vadd.f32 0.0, %v6501
      %v6503 = vpop.f32.mrb[0].mxu0
      %6504 = vmatprep.mubr.bf16.mxu0 0
      %6505 = vmatmul.mubr.bf16.gmra.mrb[0].mxu0 %v6371
      %v6506 = vpop.f32.mrb[0].mxu0
      %v6507 = vadd.f32 0.0, %v6506
      %v6508 = vpop.f32.mrb[0].mxu0
      %v6509 = vpop.f32.mrb[0].mxu0
      %v6510 = vadd.f32 0.0, %v6509
      %v6511 = vpop.f32.mrb[0].mxu0
      %6512 = vmatprep.mubr.bf16.mxu0 0
      %6513 = vmatmul.mubr.bf16.gmra.mrb[0].mxu0 %v6372
      %v6514 = vpop.f32.mrb[0].mxu0
      %v6515 = vadd.f32 0.0, %v6514
      %v6516 = vpop.f32.mrb[0].mxu0
      %v6517 = vpop.f32.mrb[0].mxu0
      %v6518 = vadd.f32 0.0, %v6517
      %v6519 = vpop.f32.mrb[0].mxu0
      %6520 = vmatprep.mubr.bf16.mxu0 0
      %6521 = vmatmul.mubr.bf16.gmra.mrb[0].mxu0 %v6373
      %v6522 = vpop.f32.mrb[0].mxu0
      %v6523 = vadd.f32 0.0, %v6522
      %v6524 = vpop.f32.mrb[0].mxu0
      %v6525 = vpop.f32.mrb[0].mxu0
      %v6526 = vadd.f32 0.0, %v6525
      %v6527 = vpop.f32.mrb[0].mxu0
      %6528 = vmatprep.mubr.bf16.mxu0 0
      %6529 = vmatmul.mubr.bf16.gmra.mrb[0].mxu0 %v6374
      %v6530 = vpop.f32.mrb[0].mxu0
      %v6531 = vadd.f32 0.0, %v6530
      %v6532 = vpop.f32.mrb[0].mxu0
      %v6533 = vpop.f32.mrb[0].mxu0
      %v6534 = vadd.f32 0.0, %v6533
      %v6535 = vpop.f32.mrb[0].mxu0
      %6536 = vmatprep.mubr.bf16.mxu0 0
      %6537 = vmatmul.mubr.bf16.gmra.mrb[0].mxu0 %v6375
      %v6538 = vpop.f32.mrb[0].mxu0
      %v6539 = vadd.f32 0.0, %v6538
      %v6540 = vpop.f32.mrb[0].mxu0
      %v6541 = vpop.f32.mrb[0].mxu0
      %v6542 = vadd.f32 0.0, %v6541
      %v6543 = vpop.f32.mrb[0].mxu0
      %6544 = vmatprep.mubr.bf16.mxu0 0
      %6545 = vmatmul.mubr.bf16.gmra.mrb[0].mxu0 %v6376
      %v6546 = vpop.f32.mrb[0].mxu0
      %v6547 = vadd.f32 0.0, %v6546
      %v6548 = vpop.f32.mrb[0].mxu0
      %v6549 = vpop.f32.mrb[0].mxu0
      %v6550 = vadd.f32 0.0, %v6549
      %v6551 = vpop.f32.mrb[0].mxu0
      %6552 = vmatprep.mubr.bf16.mxu0 0
      %6553 = vmatmul.mubr.bf16.gmra.mrb[0].mxu0 %v6377
      %v6554 = vpop.f32.mrb[0].mxu0
      %v6555 = vadd.f32 0.0, %v6554
      %v6556 = vpop.f32.mrb[0].mxu0
      %v6557 = vpop.f32.mrb[0].mxu0
      %v6558 = vadd.f32 0.0, %v6557
      %v6559 = vpop.f32.mrb[0].mxu0
      %6560 = vmatprep.mubr.bf16.mxu0 0
      %6561 = vmatmul.mubr.bf16.gmra.mrb[0].mxu0 %v6378
      %v6562 = vpop.f32.mrb[0].mxu0
      %v6563 = vadd.f32 0.0, %v6562
      %v6564 = vpop.f32.mrb[0].mxu0
      %v6565 = vpop.f32.mrb[0].mxu0
      %v6566 = vadd.f32 0.0, %v6565
      %v6567 = vpop.f32.mrb[0].mxu0
      %6568 = vmatprep.mubr.bf16.mxu0 0
      %6569 = vmatmul.mubr.bf16.gmra.mrb[0].mxu0 %v6379
      %v6570 = vpop.f32.mrb[0].mxu0
      %v6571 = vadd.f32 0.0, %v6570
      %v6572 = vpop.f32.mrb[0].mxu0
      %v6573 = vpop.f32.mrb[0].mxu0
      %v6574 = vadd.f32 0.0, %v6573
      %v6575 = vpop.f32.mrb[0].mxu0
      %6576 = vmatprep.mubr.bf16.mxu0 0
      %6577 = vmatmul.mubr.bf16.gmra.mrb[0].mxu0 %v6380
      %v6578 = vpop.f32.mrb[0].mxu0
      %v6579 = vadd.f32 0.0, %v6578
      %v6580 = vpop.f32.mrb[0].mxu0
      %v6581 = vpop.f32.mrb[0].mxu0
      %v6582 = vadd.f32 0.0, %v6581
      %v6583 = vpop.f32.mrb[0].mxu0
      %6584 = vmatprep.mubr.bf16.mxu0 0
      %6585 = vmatmul.mubr.bf16.gmra.mrb[0].mxu0 %v6381
      %v6586 = vpop.f32.mrb[0].mxu0
      %v6587 = vadd.f32 0.0, %v6586
      %v6588 = vpop.f32.mrb[0].mxu0
      %v6589 = vpop.f32.mrb[0].mxu0
      %v6590 = vadd.f32 0.0, %v6589
      %v6591 = vpop.f32.mrb[0].mxu0
      %6592 = vmatprep.mubr.bf16.mxu0 0
      %6593 = vmatmul.mubr.bf16.gmra.mrb[0].mxu0 %v6382
      %v6594 = vpop.f32.mrb[0].mxu0
      %v6595 = vadd.f32 0.0, %v6594
      %v6596 = vpop.f32.mrb[0].mxu0
      %v6597 = vpop.f32.mrb[0].mxu0
      %v6598 = vadd.f32 0.0, %v6597
      %v6599 = vpop.f32.mrb[0].mxu0
      %6600 = vmatprep.mubr.bf16.mxu0 0
      %6601 = vmatmul.mubr.bf16.gmra.mrb[0].mxu0 %v6383
      %v6602 = vpop.f32.mrb[0].mxu0
      %v6603 = vadd.f32 0.0, %v6602
      %v6604 = vpop.f32.mrb[0].mxu0
      %v6605 = vpop.f32.mrb[0].mxu0
      %v6606 = vadd.f32 0.0, %v6605
      %v6607 = vpop.f32.mrb[0].mxu0
      %6608 = vdwg.mxu0
      %v6609 = vadd.f32 %v6111, %v6483
      %v6610 = vadd.f32 %v6112, %v6486
      %v6611 = vadd.f32 %v6113, %v6491
      %v6612 = vadd.f32 %v6114, %v6494
      %v6613 = vadd.f32 %v6115, %v6499
      %v6614 = vadd.f32 %v6116, %v6502
      %v6615 = vadd.f32 %v6117, %v6507
      %v6616 = vadd.f32 %v6118, %v6510
      %v6617 = vadd.f32 %v6119, %v6515
      %v6618 = vadd.f32 %v6120, %v6518
      %v6619 = vadd.f32 %v6121, %v6523
      %v6620 = vadd.f32 %v6122, %v6526
      %v6621 = vadd.f32 %v6123, %v6531
      %v6622 = vadd.f32 %v6124, %v6534
      %v6623 = vadd.f32 %v6125, %v6539
      %v6624 = vadd.f32 %v6126, %v6542
      %v6625 = vadd.f32 %v6127, %v6547
      %v6626 = vadd.f32 %v6128, %v6550
      %v6627 = vadd.f32 %v6129, %v6555
      %v6628 = vadd.f32 %v6130, %v6558
      %v6629 = vadd.f32 %v6131, %v6563
      %v6630 = vadd.f32 %v6132, %v6566
      %v6631 = vadd.f32 %v6133, %v6571
      %v6632 = vadd.f32 %v6134, %v6574
      %v6633 = vadd.f32 %v6135, %v6579
      %v6634 = vadd.f32 %v6136, %v6582
      %v6635 = vadd.f32 %v6137, %v6587
      %v6636 = vadd.f32 %v6138, %v6590
      %v6637 = vadd.f32 %v6139, %v6595
      %v6638 = vadd.f32 %v6140, %v6598
      %v6639 = vadd.f32 %v6141, %v6603
      %v6640 = vadd.f32 %v6142, %v6606
      %s6641 = scalar_lea.vmem [#allocation3], 24
      %v6642 = vld [vmem:[%s6641] sm:$0xf]
      %v6643 = vld [vmem:[%s6641 + $0x4] sm:$0xf]
      %v6644 = vld [vmem:[%s6641 + $0xc] sm:$0xf]
      %v6645 = vld [vmem:[%s6641 + $0x10] sm:$0xf]
      %v6646 = vld [vmem:[%s6641 + $0x18] sm:$0xf]
      %v6647 = vld [vmem:[%s6641 + $0x1c] sm:$0xf]
      %v6648 = vld [vmem:[%s6641 + $0x24] sm:$0xf]
      %v6649 = vld [vmem:[%s6641 + $0x28] sm:$0xf]
      %v6650 = vld [vmem:[%s6641 + $0x30] sm:$0xf]
      %v6651 = vld [vmem:[%s6641 + $0x34] sm:$0xf]
      %v6652 = vld [vmem:[%s6641 + $0x3c] sm:$0xf]
      %v6653 = vld [vmem:[%s6641 + $0x40] sm:$0xf]
      %v6654 = vld [vmem:[%s6641 + $0x48] sm:$0xf]
      %v6655 = vld [vmem:[%s6641 + $0x4c] sm:$0xf]
      %v6656 = vld [vmem:[%s6641 + $0x54] sm:$0xf]
      %v6657 = vld [vmem:[%s6641 + $0x58] sm:$0xf]
      %v6658 = vld [vmem:[%s6641 + $0x60] sm:$0xf]
      %v6659 = vld [vmem:[%s6641 + $0x64] sm:$0xf]
      %v6660 = vld [vmem:[%s6641 + $0x6c] sm:$0xf]
      %v6661 = vld [vmem:[%s6641 + $0x70] sm:$0xf]
      %v6662 = vld [vmem:[%s6641 + $0x78] sm:$0xf]
      %v6663 = vld [vmem:[%s6641 + $0x7c] sm:$0xf]
      %v6664 = vld [vmem:[%s6641 + $0x84] sm:$0xf]
      %v6665 = vld [vmem:[%s6641 + $0x88] sm:$0xf]
      %v6666 = vld [vmem:[%s6641 + $0x90] sm:$0xf]
      %v6667 = vld [vmem:[%s6641 + $0x94] sm:$0xf]
      %v6668 = vld [vmem:[%s6641 + $0x9c] sm:$0xf]
      %v6669 = vld [vmem:[%s6641 + $0xa0] sm:$0xf]
      %v6670 = vld [vmem:[%s6641 + $0xa8] sm:$0xf]
      %v6671 = vld [vmem:[%s6641 + $0xac] sm:$0xf]
      %v6672 = vld [vmem:[%s6641 + $0xb4] sm:$0xf]
      %v6673 = vld [vmem:[%s6641 + $0xb8] sm:$0xf]
      %s6674 = scalar_lea.vmem %s3, 384
      %v6675 = vld [vmem:[%s6674] sm:$0xf]
      %v6676 = vld [vmem:[%s6674 + $0x4] sm:$0xf]
      %v6677 = vld [vmem:[%s6674 + $0x8] sm:$0xf]
      %v6678 = vld [vmem:[%s6674 + $0xc] sm:$0xf]
      %v6679 = vld [vmem:[%s6674 + $0x10] sm:$0xf]
      %v6680 = vld [vmem:[%s6674 + $0x14] sm:$0xf]
      %v6681 = vld [vmem:[%s6674 + $0x18] sm:$0xf]
      %v6682 = vld [vmem:[%s6674 + $0x1c] sm:$0xf]
      %v6683 = vld [vmem:[%s6674 + $0x20] sm:$0xf]
      %v6684 = vld [vmem:[%s6674 + $0x24] sm:$0xf]
      %v6685 = vld [vmem:[%s6674 + $0x28] sm:$0xf]
      %v6686 = vld [vmem:[%s6674 + $0x2c] sm:$0xf]
      %v6687 = vld [vmem:[%s6674 + $0x30] sm:$0xf]
      %v6688 = vld [vmem:[%s6674 + $0x34] sm:$0xf]
      %v6689 = vld [vmem:[%s6674 + $0x38] sm:$0xf]
      %v6690 = vld [vmem:[%s6674 + $0x3c] sm:$0xf]
      %v6723 = vunpack.c.l.b16 %v6642
      %v6724 = vunpack.c.l.b16 %v6643
      %v6725 = vunpack.c.l.b16 %v6644
      %v6726 = vunpack.c.l.b16 %v6645
      %v6727 = vunpack.c.l.b16 %v6646
      %v6728 = vunpack.c.l.b16 %v6647
      %v6729 = vunpack.c.l.b16 %v6648
      %v6730 = vunpack.c.l.b16 %v6649
      %v6731 = vunpack.c.l.b16 %v6650
      %v6732 = vunpack.c.l.b16 %v6651
      %v6733 = vunpack.c.l.b16 %v6652
      %v6734 = vunpack.c.l.b16 %v6653
      %v6735 = vunpack.c.l.b16 %v6654
      %v6736 = vunpack.c.l.b16 %v6655
      %v6737 = vunpack.c.l.b16 %v6656
      %v6738 = vunpack.c.l.b16 %v6657
      %v6739 = vunpack.c.l.b16 %v6658
      %v6740 = vunpack.c.l.b16 %v6659
      %v6741 = vunpack.c.l.b16 %v6660
      %v6742 = vunpack.c.l.b16 %v6661
      %v6743 = vunpack.c.l.b16 %v6662
      %v6744 = vunpack.c.l.b16 %v6663
      %v6745 = vunpack.c.l.b16 %v6664
      %v6746 = vunpack.c.l.b16 %v6665
      %v6747 = vunpack.c.l.b16 %v6666
      %v6748 = vunpack.c.l.b16 %v6667
      %v6749 = vunpack.c.l.b16 %v6668
      %v6750 = vunpack.c.l.b16 %v6669
      %v6751 = vunpack.c.l.b16 %v6670
      %v6752 = vunpack.c.l.b16 %v6671
      %v6753 = vunpack.c.l.b16 %v6672
      %v6754 = vunpack.c.l.b16 %v6673
      %v6755 = vpack.c.b16 %v6724, %v6723
      %v6756 = vpack.c.b16 %v6726, %v6725
      %v6757 = vpack.c.b16 %v6728, %v6727
      %v6758 = vpack.c.b16 %v6730, %v6729
      %v6759 = vpack.c.b16 %v6732, %v6731
      %v6760 = vpack.c.b16 %v6734, %v6733
      %v6761 = vpack.c.b16 %v6736, %v6735
      %v6762 = vpack.c.b16 %v6738, %v6737
      %v6763 = vpack.c.b16 %v6740, %v6739
      %v6764 = vpack.c.b16 %v6742, %v6741
      %v6765 = vpack.c.b16 %v6744, %v6743
      %v6766 = vpack.c.b16 %v6746, %v6745
      %v6767 = vpack.c.b16 %v6748, %v6747
      %v6768 = vpack.c.b16 %v6750, %v6749
      %v6769 = vpack.c.b16 %v6752, %v6751
      %v6770 = vpack.c.b16 %v6754, %v6753
      %v6803 = vunpack.c.l.b16 %v6675
      %v6804 = vunpack.c.l.b16 %v6676
      %v6805 = vunpack.c.l.b16 %v6677
      %v6806 = vunpack.c.l.b16 %v6678
      %v6807 = vunpack.c.l.b16 %v6679
      %v6808 = vunpack.c.l.b16 %v6680
      %v6809 = vunpack.c.l.b16 %v6681
      %v6810 = vunpack.c.l.b16 %v6682
      %v6811 = vunpack.c.l.b16 %v6683
      %v6812 = vunpack.c.l.b16 %v6684
      %v6813 = vunpack.c.l.b16 %v6685
      %v6814 = vunpack.c.l.b16 %v6686
      %v6815 = vunpack.c.l.b16 %v6687
      %v6816 = vunpack.c.l.b16 %v6688
      %v6817 = vunpack.c.l.b16 %v6689
      %v6818 = vunpack.c.l.b16 %v6690
      %v6819 = vpack.c.b16 %v6804, %v6803
      %v6820 = vpack.c.b16 %v6806, %v6805
      %v6821 = vpack.c.b16 %v6808, %v6807
      %v6822 = vpack.c.b16 %v6810, %v6809
      %v6823 = vpack.c.b16 %v6812, %v6811
      %v6824 = vpack.c.b16 %v6814, %v6813
      %v6825 = vpack.c.b16 %v6816, %v6815
      %v6826 = vpack.c.b16 %v6818, %v6817
      %6835 = vmatprep.subr.bf16.mxu0 0
      %6836 = vmatpush1.bf16.msra.mxu0 %v6819
      %6837 = vmatprep.subr.bf16.mxu0 0
      %6838 = vmatpush1.bf16.msra.mxu0 %v6820
      %6839 = vmatprep.subr.bf16.mxu0 0
      %6840 = vmatpush1.bf16.msra.mxu0 %v6821
      %6841 = vmatprep.subr.bf16.mxu0 0
      %6842 = vmatpush1.bf16.msra.mxu0 %v6822
      %6843 = vmatprep.subr.bf16.mxu0 0
      %6844 = vmatpush1.bf16.msra.mxu0 %v6823
      %6845 = vmatprep.subr.bf16.mxu0 0
      %6846 = vmatpush1.bf16.msra.mxu0 %v6824
      %6847 = vmatprep.subr.bf16.mxu0 0
      %6848 = vmatpush1.bf16.msra.mxu0 %v6825
      %6849 = vmatprep.subr.bf16.mxu0 0
      %6850 = vmatpush1.bf16.msra.mxu0 %v6826
      %6851 = vmatprep.subr.bf16.mxu0 0
      %6852 = vmatpush1.bf16.msra.mxu0 0
      %6853 = vmatprep.subr.bf16.mxu0 0
      %6854 = vmatpush1.bf16.msra.mxu0 0
      %6855 = vmatprep.subr.bf16.mxu0 0
      %6856 = vmatpush1.bf16.msra.mxu0 0
      %6857 = vmatprep.subr.bf16.mxu0 0
      %6858 = vmatpush1.bf16.msra.mxu0 0
      %6859 = vmatprep.subr.bf16.mxu0 0
      %6860 = vmatpush1.bf16.msra.mxu0 0
      %6861 = vmatprep.subr.bf16.mxu0 0
      %6862 = vmatpush1.bf16.msra.mxu0 0
      %6863 = vmatprep.subr.bf16.mxu0 0
      %6864 = vmatpush1.bf16.msra.mxu0 0
      %6865 = vmatprep.subr.bf16.mxu0 0
      %6866 = vmatpush1.bf16.msra.mxu0 0
      %6867 = vmatprep.mubr.bf16.mxu0 0
      %6868 = vmatmul.mubr.bf16.gmra.mrb[0].mxu0 %v6755
      %v6869 = vpop.f32.mrb[0].mxu0
      %v6870 = vadd.f32 0.0, %v6869
      %v6871 = vpop.f32.mrb[0].mxu0
      %v6872 = vpop.f32.mrb[0].mxu0
      %v6873 = vadd.f32 0.0, %v6872
      %v6874 = vpop.f32.mrb[0].mxu0
      %6875 = vmatprep.mubr.bf16.mxu0 0
      %6876 = vmatmul.mubr.bf16.gmra.mrb[0].mxu0 %v6756
      %v6877 = vpop.f32.mrb[0].mxu0
      %v6878 = vadd.f32 0.0, %v6877
      %v6879 = vpop.f32.mrb[0].mxu0
      %v6880 = vpop.f32.mrb[0].mxu0
      %v6881 = vadd.f32 0.0, %v6880
      %v6882 = vpop.f32.mrb[0].mxu0
      %6883 = vmatprep.mubr.bf16.mxu0 0
      %6884 = vmatmul.mubr.bf16.gmra.mrb[0].mxu0 %v6757
      %v6885 = vpop.f32.mrb[0].mxu0
      %v6886 = vadd.f32 0.0, %v6885
      %v6887 = vpop.f32.mrb[0].mxu0
      %v6888 = vpop.f32.mrb[0].mxu0
      %v6889 = vadd.f32 0.0, %v6888
      %v6890 = vpop.f32.mrb[0].mxu0
      %6891 = vmatprep.mubr.bf16.mxu0 0
      %6892 = vmatmul.mubr.bf16.gmra.mrb[0].mxu0 %v6758
      %v6893 = vpop.f32.mrb[0].mxu0
      %v6894 = vadd.f32 0.0, %v6893
      %v6895 = vpop.f32.mrb[0].mxu0
      %v6896 = vpop.f32.mrb[0].mxu0
      %v6897 = vadd.f32 0.0, %v6896
      %v6898 = vpop.f32.mrb[0].mxu0
      %6899 = vmatprep.mubr.bf16.mxu0 0
      %6900 = vmatmul.mubr.bf16.gmra.mrb[0].mxu0 %v6759
      %v6901 = vpop.f32.mrb[0].mxu0
      %v6902 = vadd.f32 0.0, %v6901
      %v6903 = vpop.f32.mrb[0].mxu0
      %v6904 = vpop.f32.mrb[0].mxu0
      %v6905 = vadd.f32 0.0, %v6904
      %v6906 = vpop.f32.mrb[0].mxu0
      %6907 = vmatprep.mubr.bf16.mxu0 0
      %6908 = vmatmul.mubr.bf16.gmra.mrb[0].mxu0 %v6760
      %v6909 = vpop.f32.mrb[0].mxu0
      %v6910 = vadd.f32 0.0, %v6909
      %v6911 = vpop.f32.mrb[0].mxu0
      %v6912 = vpop.f32.mrb[0].mxu0
      %v6913 = vadd.f32 0.0, %v6912
      %v6914 = vpop.f32.mrb[0].mxu0
      %6915 = vmatprep.mubr.bf16.mxu0 0
      %6916 = vmatmul.mubr.bf16.gmra.mrb[0].mxu0 %v6761
      %v6917 = vpop.f32.mrb[0].mxu0
      %v6918 = vadd.f32 0.0, %v6917
      %v6919 = vpop.f32.mrb[0].mxu0
      %v6920 = vpop.f32.mrb[0].mxu0
      %v6921 = vadd.f32 0.0, %v6920
      %v6922 = vpop.f32.mrb[0].mxu0
      %6923 = vmatprep.mubr.bf16.mxu0 0
      %6924 = vmatmul.mubr.bf16.gmra.mrb[0].mxu0 %v6762
      %v6925 = vpop.f32.mrb[0].mxu0
      %v6926 = vadd.f32 0.0, %v6925
      %v6927 = vpop.f32.mrb[0].mxu0
      %v6928 = vpop.f32.mrb[0].mxu0
      %v6929 = vadd.f32 0.0, %v6928
      %v6930 = vpop.f32.mrb[0].mxu0
      %6931 = vmatprep.mubr.bf16.mxu0 0
      %6932 = vmatmul.mubr.bf16.gmra.mrb[0].mxu0 %v6763
      %v6933 = vpop.f32.mrb[0].mxu0
      %v6934 = vadd.f32 0.0, %v6933
      %v6935 = vpop.f32.mrb[0].mxu0
      %v6936 = vpop.f32.mrb[0].mxu0
      %v6937 = vadd.f32 0.0, %v6936
      %v6938 = vpop.f32.mrb[0].mxu0
      %6939 = vmatprep.mubr.bf16.mxu0 0
      %6940 = vmatmul.mubr.bf16.gmra.mrb[0].mxu0 %v6764
      %v6941 = vpop.f32.mrb[0].mxu0
      %v6942 = vadd.f32 0.0, %v6941
      %v6943 = vpop.f32.mrb[0].mxu0
      %v6944 = vpop.f32.mrb[0].mxu0
      %v6945 = vadd.f32 0.0, %v6944
      %v6946 = vpop.f32.mrb[0].mxu0
      %6947 = vmatprep.mubr.bf16.mxu0 0
      %6948 = vmatmul.mubr.bf16.gmra.mrb[0].mxu0 %v6765
      %v6949 = vpop.f32.mrb[0].mxu0
      %v6950 = vadd.f32 0.0, %v6949
      %v6951 = vpop.f32.mrb[0].mxu0
      %v6952 = vpop.f32.mrb[0].mxu0
      %v6953 = vadd.f32 0.0, %v6952
      %v6954 = vpop.f32.mrb[0].mxu0
      %6955 = vmatprep.mubr.bf16.mxu0 0
      %6956 = vmatmul.mubr.bf16.gmra.mrb[0].mxu0 %v6766
      %v6957 = vpop.f32.mrb[0].mxu0
      %v6958 = vadd.f32 0.0, %v6957
      %v6959 = vpop.f32.mrb[0].mxu0
      %v6960 = vpop.f32.mrb[0].mxu0
      %v6961 = vadd.f32 0.0, %v6960
      %v6962 = vpop.f32.mrb[0].mxu0
      %6963 = vmatprep.mubr.bf16.mxu0 0
      %6964 = vmatmul.mubr.bf16.gmra.mrb[0].mxu0 %v6767
      %v6965 = vpop.f32.mrb[0].mxu0
      %v6966 = vadd.f32 0.0, %v6965
      %v6967 = vpop.f32.mrb[0].mxu0
      %v6968 = vpop.f32.mrb[0].mxu0
      %v6969 = vadd.f32 0.0, %v6968
      %v6970 = vpop.f32.mrb[0].mxu0
      %6971 = vmatprep.mubr.bf16.mxu0 0
      %6972 = vmatmul.mubr.bf16.gmra.mrb[0].mxu0 %v6768
      %v6973 = vpop.f32.mrb[0].mxu0
      %v6974 = vadd.f32 0.0, %v6973
      %v6975 = vpop.f32.mrb[0].mxu0
      %v6976 = vpop.f32.mrb[0].mxu0
      %v6977 = vadd.f32 0.0, %v6976
      %v6978 = vpop.f32.mrb[0].mxu0
      %6979 = vmatprep.mubr.bf16.mxu0 0
      %6980 = vmatmul.mubr.bf16.gmra.mrb[0].mxu0 %v6769
      %v6981 = vpop.f32.mrb[0].mxu0
      %v6982 = vadd.f32 0.0, %v6981
      %v6983 = vpop.f32.mrb[0].mxu0
      %v6984 = vpop.f32.mrb[0].mxu0
      %v6985 = vadd.f32 0.0, %v6984
      %v6986 = vpop.f32.mrb[0].mxu0
      %6987 = vmatprep.mubr.bf16.mxu0 0
      %6988 = vmatmul.mubr.bf16.gmra.mrb[0].mxu0 %v6770
      %v6989 = vpop.f32.mrb[0].mxu0
      %v6990 = vadd.f32 0.0, %v6989
      %v6991 = vpop.f32.mrb[0].mxu0
      %v6992 = vpop.f32.mrb[0].mxu0
      %v6993 = vadd.f32 0.0, %v6992
      %v6994 = vpop.f32.mrb[0].mxu0
      %6995 = vdwg.mxu0
      %v6996 = vadd.f32 %v6609, %v6870
      %v6997 = vadd.f32 %v6610, %v6873
      %v6998 = vadd.f32 %v6611, %v6878
      %v6999 = vadd.f32 %v6612, %v6881
      %v7000 = vadd.f32 %v6613, %v6886
      %v7001 = vadd.f32 %v6614, %v6889
      %v7002 = vadd.f32 %v6615, %v6894
      %v7003 = vadd.f32 %v6616, %v6897
      %v7004 = vadd.f32 %v6617, %v6902
      %v7005 = vadd.f32 %v6618, %v6905
      %v7006 = vadd.f32 %v6619, %v6910
      %v7007 = vadd.f32 %v6620, %v6913
      %v7008 = vadd.f32 %v6621, %v6918
      %v7009 = vadd.f32 %v6622, %v6921
      %v7010 = vadd.f32 %v6623, %v6926
      %v7011 = vadd.f32 %v6624, %v6929
      %v7012 = vadd.f32 %v6625, %v6934
      %v7013 = vadd.f32 %v6626, %v6937
      %v7014 = vadd.f32 %v6627, %v6942
      %v7015 = vadd.f32 %v6628, %v6945
      %v7016 = vadd.f32 %v6629, %v6950
      %v7017 = vadd.f32 %v6630, %v6953
      %v7018 = vadd.f32 %v6631, %v6958
      %v7019 = vadd.f32 %v6632, %v6961
      %v7020 = vadd.f32 %v6633, %v6966
      %v7021 = vadd.f32 %v6634, %v6969
      %v7022 = vadd.f32 %v6635, %v6974
      %v7023 = vadd.f32 %v6636, %v6977
      %v7024 = vadd.f32 %v6637, %v6982
      %v7025 = vadd.f32 %v6638, %v6985
      %v7026 = vadd.f32 %v6639, %v6990
      %v7027 = vadd.f32 %v6640, %v6993
      %v7028 = vld [vmem:[%s6641] sm:$0xf]
      %v7029 = vld [vmem:[%s6641 + $0x4] sm:$0xf]
      %v7030 = vld [vmem:[%s6641 + $0x8] sm:$0x1]
      %v7031 = vld [vmem:[%s6641 + $0xc] sm:$0xf]
      %v7032 = vld [vmem:[%s6641 + $0x10] sm:$0xf]
      %v7033 = vld [vmem:[%s6641 + $0x14] sm:$0x1]
      %v7034 = vld [vmem:[%s6641 + $0x18] sm:$0xf]
      %v7035 = vld [vmem:[%s6641 + $0x1c] sm:$0xf]
      %v7036 = vld [vmem:[%s6641 + $0x20] sm:$0x1]
      %v7037 = vld [vmem:[%s6641 + $0x24] sm:$0xf]
      %v7038 = vld [vmem:[%s6641 + $0x28] sm:$0xf]
      %v7039 = vld [vmem:[%s6641 + $0x2c] sm:$0x1]
      %v7040 = vld [vmem:[%s6641 + $0x30] sm:$0xf]
      %v7041 = vld [vmem:[%s6641 + $0x34] sm:$0xf]
      %v7042 = vld [vmem:[%s6641 + $0x38] sm:$0x1]
      %v7043 = vld [vmem:[%s6641 + $0x3c] sm:$0xf]
      %v7044 = vld [vmem:[%s6641 + $0x40] sm:$0xf]
      %v7045 = vld [vmem:[%s6641 + $0x44] sm:$0x1]
      %v7046 = vld [vmem:[%s6641 + $0x48] sm:$0xf]
      %v7047 = vld [vmem:[%s6641 + $0x4c] sm:$0xf]
      %v7048 = vld [vmem:[%s6641 + $0x50] sm:$0x1]
      %v7049 = vld [vmem:[%s6641 + $0x54] sm:$0xf]
      %v7050 = vld [vmem:[%s6641 + $0x58] sm:$0xf]
      %v7051 = vld [vmem:[%s6641 + $0x5c] sm:$0x1]
      %v7052 = vld [vmem:[%s6641 + $0x60] sm:$0xf]
      %v7053 = vld [vmem:[%s6641 + $0x64] sm:$0xf]
      %v7054 = vld [vmem:[%s6641 + $0x68] sm:$0x1]
      %v7055 = vld [vmem:[%s6641 + $0x6c] sm:$0xf]
      %v7056 = vld [vmem:[%s6641 + $0x70] sm:$0xf]
      %v7057 = vld [vmem:[%s6641 + $0x74] sm:$0x1]
      %v7058 = vld [vmem:[%s6641 + $0x78] sm:$0xf]
      %v7059 = vld [vmem:[%s6641 + $0x7c] sm:$0xf]
      %v7060 = vld [vmem:[%s6641 + $0x80] sm:$0x1]
      %v7061 = vld [vmem:[%s6641 + $0x84] sm:$0xf]
      %v7062 = vld [vmem:[%s6641 + $0x88] sm:$0xf]
      %v7063 = vld [vmem:[%s6641 + $0x8c] sm:$0x1]
      %v7064 = vld [vmem:[%s6641 + $0x90] sm:$0xf]
      %v7065 = vld [vmem:[%s6641 + $0x94] sm:$0xf]
      %v7066 = vld [vmem:[%s6641 + $0x98] sm:$0x1]
      %v7067 = vld [vmem:[%s6641 + $0x9c] sm:$0xf]
      %v7068 = vld [vmem:[%s6641 + $0xa0] sm:$0xf]
      %v7069 = vld [vmem:[%s6641 + $0xa4] sm:$0x1]
      %v7070 = vld [vmem:[%s6641 + $0xa8] sm:$0xf]
      %v7071 = vld [vmem:[%s6641 + $0xac] sm:$0xf]
      %v7072 = vld [vmem:[%s6641 + $0xb0] sm:$0x1]
      %v7073 = vld [vmem:[%s6641 + $0xb4] sm:$0xf]
      %v7074 = vld [vmem:[%s6641 + $0xb8] sm:$0xf]
      %v7075 = vld [vmem:[%s6641 + $0xbc] sm:$0x1]
      %v7077 = vshrl.u32 %v7028, 16
      %v7079 = vrot.slane %v7077, 4
      %v7080 = vshll.u32 %v7028, 16
      %v7082 = vrot.slane %v7080, 5
      %v7083 = vor.u32 %v7079, %v7082
      %v7084 = vrot.slane %v7083, 4
      %v7086 = vshll.u32 %v7029, 16
      %v7088 = vrot.slane %v7086, 5
      %v7089 = vsel %vm3538, %v7084, %v7088
      %v7090 = vshrl.u32 %v7029, 16
      %v7092 = vrot.slane %v7090, 4
      %v7093 = vor.u32 %v7092, %v7088
      %v7094 = vrot.slane %v7093, 4
      %v7096 = vshll.u32 %v7030, 16
      %v7098 = vrot.slane %v7096, 5
      %v7099 = vsel %vm3538, %v7094, %v7098
      %v7101 = vshrl.u32 %v7031, 16
      %v7103 = vrot.slane %v7101, 4
      %v7104 = vshll.u32 %v7031, 16
      %v7106 = vrot.slane %v7104, 5
      %v7107 = vor.u32 %v7103, %v7106
      %v7108 = vrot.slane %v7107, 4
      %v7110 = vshll.u32 %v7032, 16
      %v7112 = vrot.slane %v7110, 5
      %v7113 = vsel %vm3538, %v7108, %v7112
      %v7114 = vshrl.u32 %v7032, 16
      %v7116 = vrot.slane %v7114, 4
      %v7117 = vor.u32 %v7116, %v7112
      %v7118 = vrot.slane %v7117, 4
      %v7120 = vshll.u32 %v7033, 16
      %v7122 = vrot.slane %v7120, 5
      %v7123 = vsel %vm3538, %v7118, %v7122
      %v7125 = vshrl.u32 %v7034, 16
      %v7127 = vrot.slane %v7125, 4
      %v7128 = vshll.u32 %v7034, 16
      %v7130 = vrot.slane %v7128, 5
      %v7131 = vor.u32 %v7127, %v7130
      %v7132 = vrot.slane %v7131, 4
      %v7134 = vshll.u32 %v7035, 16
      %v7136 = vrot.slane %v7134, 5
      %v7137 = vsel %vm3538, %v7132, %v7136
      %v7138 = vshrl.u32 %v7035, 16
      %v7140 = vrot.slane %v7138, 4
      %v7141 = vor.u32 %v7140, %v7136
      %v7142 = vrot.slane %v7141, 4
      %v7144 = vshll.u32 %v7036, 16
      %v7146 = vrot.slane %v7144, 5
      %v7147 = vsel %vm3538, %v7142, %v7146
      %v7149 = vshrl.u32 %v7037, 16
      %v7151 = vrot.slane %v7149, 4
      %v7152 = vshll.u32 %v7037, 16
      %v7154 = vrot.slane %v7152, 5
      %v7155 = vor.u32 %v7151, %v7154
      %v7156 = vrot.slane %v7155, 4
      %v7158 = vshll.u32 %v7038, 16
      %v7160 = vrot.slane %v7158, 5
      %v7161 = vsel %vm3538, %v7156, %v7160
      %v7162 = vshrl.u32 %v7038, 16
      %v7164 = vrot.slane %v7162, 4
      %v7165 = vor.u32 %v7164, %v7160
      %v7166 = vrot.slane %v7165, 4
      %v7168 = vshll.u32 %v7039, 16
      %v7170 = vrot.slane %v7168, 5
      %v7171 = vsel %vm3538, %v7166, %v7170
      %v7173 = vshrl.u32 %v7040, 16
      %v7175 = vrot.slane %v7173, 4
      %v7176 = vshll.u32 %v7040, 16
      %v7178 = vrot.slane %v7176, 5
      %v7179 = vor.u32 %v7175, %v7178
      %v7180 = vrot.slane %v7179, 4
      %v7182 = vshll.u32 %v7041, 16
      %v7184 = vrot.slane %v7182, 5
      %v7185 = vsel %vm3538, %v7180, %v7184
      %v7186 = vshrl.u32 %v7041, 16
      %v7188 = vrot.slane %v7186, 4
      %v7189 = vor.u32 %v7188, %v7184
      %v7190 = vrot.slane %v7189, 4
      %v7192 = vshll.u32 %v7042, 16
      %v7194 = vrot.slane %v7192, 5
      %v7195 = vsel %vm3538, %v7190, %v7194
      %v7197 = vshrl.u32 %v7043, 16
      %v7199 = vrot.slane %v7197, 4
      %v7200 = vshll.u32 %v7043, 16
      %v7202 = vrot.slane %v7200, 5
      %v7203 = vor.u32 %v7199, %v7202
      %v7204 = vrot.slane %v7203, 4
      %v7206 = vshll.u32 %v7044, 16
      %v7208 = vrot.slane %v7206, 5
      %v7209 = vsel %vm3538, %v7204, %v7208
      %v7210 = vshrl.u32 %v7044, 16
      %v7212 = vrot.slane %v7210, 4
      %v7213 = vor.u32 %v7212, %v7208
      %v7214 = vrot.slane %v7213, 4
      %v7216 = vshll.u32 %v7045, 16
      %v7218 = vrot.slane %v7216, 5
      %v7219 = vsel %vm3538, %v7214, %v7218
      %v7221 = vshrl.u32 %v7046, 16
      %v7223 = vrot.slane %v7221, 4
      %v7224 = vshll.u32 %v7046, 16
      %v7226 = vrot.slane %v7224, 5
      %v7227 = vor.u32 %v7223, %v7226
      %v7228 = vrot.slane %v7227, 4
      %v7230 = vshll.u32 %v7047, 16
      %v7232 = vrot.slane %v7230, 5
      %v7233 = vsel %vm3538, %v7228, %v7232
      %v7234 = vshrl.u32 %v7047, 16
      %v7236 = vrot.slane %v7234, 4
      %v7237 = vor.u32 %v7236, %v7232
      %v7238 = vrot.slane %v7237, 4
      %v7240 = vshll.u32 %v7048, 16
      %v7242 = vrot.slane %v7240, 5
      %v7243 = vsel %vm3538, %v7238, %v7242
      %v7245 = vshrl.u32 %v7049, 16
      %v7247 = vrot.slane %v7245, 4
      %v7248 = vshll.u32 %v7049, 16
      %v7250 = vrot.slane %v7248, 5
      %v7251 = vor.u32 %v7247, %v7250
      %v7252 = vrot.slane %v7251, 4
      %v7254 = vshll.u32 %v7050, 16
      %v7256 = vrot.slane %v7254, 5
      %v7257 = vsel %vm3538, %v7252, %v7256
      %v7258 = vshrl.u32 %v7050, 16
      %v7260 = vrot.slane %v7258, 4
      %v7261 = vor.u32 %v7260, %v7256
      %v7262 = vrot.slane %v7261, 4
      %v7264 = vshll.u32 %v7051, 16
      %v7266 = vrot.slane %v7264, 5
      %v7267 = vsel %vm3538, %v7262, %v7266
      %v7269 = vshrl.u32 %v7052, 16
      %v7271 = vrot.slane %v7269, 4
      %v7272 = vshll.u32 %v7052, 16
      %v7274 = vrot.slane %v7272, 5
      %v7275 = vor.u32 %v7271, %v7274
      %v7276 = vrot.slane %v7275, 4
      %v7278 = vshll.u32 %v7053, 16
      %v7280 = vrot.slane %v7278, 5
      %v7281 = vsel %vm3538, %v7276, %v7280
      %v7282 = vshrl.u32 %v7053, 16
      %v7284 = vrot.slane %v7282, 4
      %v7285 = vor.u32 %v7284, %v7280
      %v7286 = vrot.slane %v7285, 4
      %v7288 = vshll.u32 %v7054, 16
      %v7290 = vrot.slane %v7288, 5
      %v7291 = vsel %vm3538, %v7286, %v7290
      %v7293 = vshrl.u32 %v7055, 16
      %v7295 = vrot.slane %v7293, 4
      %v7296 = vshll.u32 %v7055, 16
      %v7298 = vrot.slane %v7296, 5
      %v7299 = vor.u32 %v7295, %v7298
      %v7300 = vrot.slane %v7299, 4
      %v7302 = vshll.u32 %v7056, 16
      %v7304 = vrot.slane %v7302, 5
      %v7305 = vsel %vm3538, %v7300, %v7304
      %v7306 = vshrl.u32 %v7056, 16
      %v7308 = vrot.slane %v7306, 4
      %v7309 = vor.u32 %v7308, %v7304
      %v7310 = vrot.slane %v7309, 4
      %v7312 = vshll.u32 %v7057, 16
      %v7314 = vrot.slane %v7312, 5
      %v7315 = vsel %vm3538, %v7310, %v7314
      %v7317 = vshrl.u32 %v7058, 16
      %v7319 = vrot.slane %v7317, 4
      %v7320 = vshll.u32 %v7058, 16
      %v7322 = vrot.slane %v7320, 5
      %v7323 = vor.u32 %v7319, %v7322
      %v7324 = vrot.slane %v7323, 4
      %v7326 = vshll.u32 %v7059, 16
      %v7328 = vrot.slane %v7326, 5
      %v7329 = vsel %vm3538, %v7324, %v7328
      %v7330 = vshrl.u32 %v7059, 16
      %v7332 = vrot.slane %v7330, 4
      %v7333 = vor.u32 %v7332, %v7328
      %v7334 = vrot.slane %v7333, 4
      %v7336 = vshll.u32 %v7060, 16
      %v7338 = vrot.slane %v7336, 5
      %v7339 = vsel %vm3538, %v7334, %v7338
      %v7341 = vshrl.u32 %v7061, 16
      %v7343 = vrot.slane %v7341, 4
      %v7344 = vshll.u32 %v7061, 16
      %v7346 = vrot.slane %v7344, 5
      %v7347 = vor.u32 %v7343, %v7346
      %v7348 = vrot.slane %v7347, 4
      %v7350 = vshll.u32 %v7062, 16
      %v7352 = vrot.slane %v7350, 5
      %v7353 = vsel %vm3538, %v7348, %v7352
      %v7354 = vshrl.u32 %v7062, 16
      %v7356 = vrot.slane %v7354, 4
      %v7357 = vor.u32 %v7356, %v7352
      %v7358 = vrot.slane %v7357, 4
      %v7360 = vshll.u32 %v7063, 16
      %v7362 = vrot.slane %v7360, 5
      %v7363 = vsel %vm3538, %v7358, %v7362
      %v7365 = vshrl.u32 %v7064, 16
      %v7367 = vrot.slane %v7365, 4
      %v7368 = vshll.u32 %v7064, 16
      %v7370 = vrot.slane %v7368, 5
      %v7371 = vor.u32 %v7367, %v7370
      %v7372 = vrot.slane %v7371, 4
      %v7374 = vshll.u32 %v7065, 16
      %v7376 = vrot.slane %v7374, 5
      %v7377 = vsel %vm3538, %v7372, %v7376
      %v7378 = vshrl.u32 %v7065, 16
      %v7380 = vrot.slane %v7378, 4
      %v7381 = vor.u32 %v7380, %v7376
      %v7382 = vrot.slane %v7381, 4
      %v7384 = vshll.u32 %v7066, 16
      %v7386 = vrot.slane %v7384, 5
      %v7387 = vsel %vm3538, %v7382, %v7386
      %v7389 = vshrl.u32 %v7067, 16
      %v7391 = vrot.slane %v7389, 4
      %v7392 = vshll.u32 %v7067, 16
      %v7394 = vrot.slane %v7392, 5
      %v7395 = vor.u32 %v7391, %v7394
      %v7396 = vrot.slane %v7395, 4
      %v7398 = vshll.u32 %v7068, 16
      %v7400 = vrot.slane %v7398, 5
      %v7401 = vsel %vm3538, %v7396, %v7400
      %v7402 = vshrl.u32 %v7068, 16
      %v7404 = vrot.slane %v7402, 4
      %v7405 = vor.u32 %v7404, %v7400
      %v7406 = vrot.slane %v7405, 4
      %v7408 = vshll.u32 %v7069, 16
      %v7410 = vrot.slane %v7408, 5
      %v7411 = vsel %vm3538, %v7406, %v7410
      %v7413 = vshrl.u32 %v7070, 16
      %v7415 = vrot.slane %v7413, 4
      %v7416 = vshll.u32 %v7070, 16
      %v7418 = vrot.slane %v7416, 5
      %v7419 = vor.u32 %v7415, %v7418
      %v7420 = vrot.slane %v7419, 4
      %v7422 = vshll.u32 %v7071, 16
      %v7424 = vrot.slane %v7422, 5
      %v7425 = vsel %vm3538, %v7420, %v7424
      %v7426 = vshrl.u32 %v7071, 16
      %v7428 = vrot.slane %v7426, 4
      %v7429 = vor.u32 %v7428, %v7424
      %v7430 = vrot.slane %v7429, 4
      %v7432 = vshll.u32 %v7072, 16
      %v7434 = vrot.slane %v7432, 5
      %v7435 = vsel %vm3538, %v7430, %v7434
      %v7437 = vshrl.u32 %v7073, 16
      %v7439 = vrot.slane %v7437, 4
      %v7440 = vshll.u32 %v7073, 16
      %v7442 = vrot.slane %v7440, 5
      %v7443 = vor.u32 %v7439, %v7442
      %v7444 = vrot.slane %v7443, 4
      %v7446 = vshll.u32 %v7074, 16
      %v7448 = vrot.slane %v7446, 5
      %v7449 = vsel %vm3538, %v7444, %v7448
      %v7450 = vshrl.u32 %v7074, 16
      %v7452 = vrot.slane %v7450, 4
      %v7453 = vor.u32 %v7452, %v7448
      %v7454 = vrot.slane %v7453, 4
      %v7456 = vshll.u32 %v7075, 16
      %v7458 = vrot.slane %v7456, 5
      %v7459 = vsel %vm3538, %v7454, %v7458
      %s7460 = scalar_lea.vmem %s3, 448
      %v7461 = vld [vmem:[%s7460] sm:$0xf]
      %v7462 = vld [vmem:[%s7460 + $0x4] sm:$0xf]
      %v7463 = vld [vmem:[%s7460 + $0x8] sm:$0xf]
      %v7464 = vld [vmem:[%s7460 + $0xc] sm:$0xf]
      %v7465 = vld [vmem:[%s7460 + $0x10] sm:$0xf]
      %v7466 = vld [vmem:[%s7460 + $0x14] sm:$0xf]
      %v7467 = vld [vmem:[%s7460 + $0x18] sm:$0xf]
      %v7468 = vld [vmem:[%s7460 + $0x1c] sm:$0xf]
      %v7469 = vld [vmem:[%s7460 + $0x20] sm:$0xf]
      %v7470 = vld [vmem:[%s7460 + $0x24] sm:$0xf]
      %v7471 = vld [vmem:[%s7460 + $0x28] sm:$0xf]
      %v7472 = vld [vmem:[%s7460 + $0x2c] sm:$0xf]
      %v7473 = vld [vmem:[%s7460 + $0x30] sm:$0xf]
      %v7474 = vld [vmem:[%s7460 + $0x34] sm:$0xf]
      %v7475 = vld [vmem:[%s7460 + $0x38] sm:$0xf]
      %v7476 = vld [vmem:[%s7460 + $0x3c] sm:$0xf]
      %v7477 = vunpack.c.l.b16 %v7089
      %v7478 = vunpack.c.l.b16 %v7099
      %v7479 = vunpack.c.l.b16 %v7113
      %v7480 = vunpack.c.l.b16 %v7123
      %v7481 = vunpack.c.l.b16 %v7137
      %v7482 = vunpack.c.l.b16 %v7147
      %v7483 = vunpack.c.l.b16 %v7161
      %v7484 = vunpack.c.l.b16 %v7171
      %v7485 = vunpack.c.l.b16 %v7185
      %v7486 = vunpack.c.l.b16 %v7195
      %v7487 = vunpack.c.l.b16 %v7209
      %v7488 = vunpack.c.l.b16 %v7219
      %v7489 = vunpack.c.l.b16 %v7233
      %v7490 = vunpack.c.l.b16 %v7243
      %v7491 = vunpack.c.l.b16 %v7257
      %v7492 = vunpack.c.l.b16 %v7267
      %v7493 = vunpack.c.l.b16 %v7281
      %v7494 = vunpack.c.l.b16 %v7291
      %v7495 = vunpack.c.l.b16 %v7305
      %v7496 = vunpack.c.l.b16 %v7315
      %v7497 = vunpack.c.l.b16 %v7329
      %v7498 = vunpack.c.l.b16 %v7339
      %v7499 = vunpack.c.l.b16 %v7353
      %v7500 = vunpack.c.l.b16 %v7363
      %v7501 = vunpack.c.l.b16 %v7377
      %v7502 = vunpack.c.l.b16 %v7387
      %v7503 = vunpack.c.l.b16 %v7401
      %v7504 = vunpack.c.l.b16 %v7411
      %v7505 = vunpack.c.l.b16 %v7425
      %v7506 = vunpack.c.l.b16 %v7435
      %v7507 = vunpack.c.l.b16 %v7449
      %v7508 = vunpack.c.l.b16 %v7459
      %v7509 = vpack.c.b16 %v7478, %v7477
      %v7510 = vpack.c.b16 %v7480, %v7479
      %v7511 = vpack.c.b16 %v7482, %v7481
      %v7512 = vpack.c.b16 %v7484, %v7483
      %v7513 = vpack.c.b16 %v7486, %v7485
      %v7514 = vpack.c.b16 %v7488, %v7487
      %v7515 = vpack.c.b16 %v7490, %v7489
      %v7516 = vpack.c.b16 %v7492, %v7491
      %v7517 = vpack.c.b16 %v7494, %v7493
      %v7518 = vpack.c.b16 %v7496, %v7495
      %v7519 = vpack.c.b16 %v7498, %v7497
      %v7520 = vpack.c.b16 %v7500, %v7499
      %v7521 = vpack.c.b16 %v7502, %v7501
      %v7522 = vpack.c.b16 %v7504, %v7503
      %v7523 = vpack.c.b16 %v7506, %v7505
      %v7524 = vpack.c.b16 %v7508, %v7507
      %v7557 = vunpack.c.l.b16 %v7461
      %v7558 = vunpack.c.l.b16 %v7462
      %v7559 = vunpack.c.l.b16 %v7463
      %v7560 = vunpack.c.l.b16 %v7464
      %v7561 = vunpack.c.l.b16 %v7465
      %v7562 = vunpack.c.l.b16 %v7466
      %v7563 = vunpack.c.l.b16 %v7467
      %v7564 = vunpack.c.l.b16 %v7468
      %v7565 = vunpack.c.l.b16 %v7469
      %v7566 = vunpack.c.l.b16 %v7470
      %v7567 = vunpack.c.l.b16 %v7471
      %v7568 = vunpack.c.l.b16 %v7472
      %v7569 = vunpack.c.l.b16 %v7473
      %v7570 = vunpack.c.l.b16 %v7474
      %v7571 = vunpack.c.l.b16 %v7475
      %v7572 = vunpack.c.l.b16 %v7476
      %v7573 = vpack.c.b16 %v7558, %v7557
      %v7574 = vpack.c.b16 %v7560, %v7559
      %v7575 = vpack.c.b16 %v7562, %v7561
      %v7576 = vpack.c.b16 %v7564, %v7563
      %v7577 = vpack.c.b16 %v7566, %v7565
      %v7578 = vpack.c.b16 %v7568, %v7567
      %v7579 = vpack.c.b16 %v7570, %v7569
      %v7580 = vpack.c.b16 %v7572, %v7571
      %7589 = vmatprep.subr.bf16.mxu0 0
      %7590 = vmatpush1.bf16.msra.mxu0 %v7573
      %7591 = vmatprep.subr.bf16.mxu0 0
      %7592 = vmatpush1.bf16.msra.mxu0 %v7574
      %7593 = vmatprep.subr.bf16.mxu0 0
      %7594 = vmatpush1.bf16.msra.mxu0 %v7575
      %7595 = vmatprep.subr.bf16.mxu0 0
      %7596 = vmatpush1.bf16.msra.mxu0 %v7576
      %7597 = vmatprep.subr.bf16.mxu0 0
      %7598 = vmatpush1.bf16.msra.mxu0 %v7577
      %7599 = vmatprep.subr.bf16.mxu0 0
      %7600 = vmatpush1.bf16.msra.mxu0 %v7578
      %7601 = vmatprep.subr.bf16.mxu0 0
      %7602 = vmatpush1.bf16.msra.mxu0 %v7579
      %7603 = vmatprep.subr.bf16.mxu0 0
      %7604 = vmatpush1.bf16.msra.mxu0 %v7580
      %7605 = vmatprep.subr.bf16.mxu0 0
      %7606 = vmatpush1.bf16.msra.mxu0 0
      %7607 = vmatprep.subr.bf16.mxu0 0
      %7608 = vmatpush1.bf16.msra.mxu0 0
      %7609 = vmatprep.subr.bf16.mxu0 0
      %7610 = vmatpush1.bf16.msra.mxu0 0
      %7611 = vmatprep.subr.bf16.mxu0 0
      %7612 = vmatpush1.bf16.msra.mxu0 0
      %7613 = vmatprep.subr.bf16.mxu0 0
      %7614 = vmatpush1.bf16.msra.mxu0 0
      %7615 = vmatprep.subr.bf16.mxu0 0
      %7616 = vmatpush1.bf16.msra.mxu0 0
      %7617 = vmatprep.subr.bf16.mxu0 0
      %7618 = vmatpush1.bf16.msra.mxu0 0
      %7619 = vmatprep.subr.bf16.mxu0 0
      %7620 = vmatpush1.bf16.msra.mxu0 0
      %7621 = vmatprep.mubr.bf16.mxu0 0
      %7622 = vmatmul.mubr.bf16.gmra.mrb[0].mxu0 %v7509
      %v7623 = vpop.f32.mrb[0].mxu0
      %v7624 = vadd.f32 0.0, %v7623
      %v7625 = vpop.f32.mrb[0].mxu0
      %v7626 = vpop.f32.mrb[0].mxu0
      %v7627 = vadd.f32 0.0, %v7626
      %v7628 = vpop.f32.mrb[0].mxu0
      %7629 = vmatprep.mubr.bf16.mxu0 0
      %7630 = vmatmul.mubr.bf16.gmra.mrb[0].mxu0 %v7510
      %v7631 = vpop.f32.mrb[0].mxu0
      %v7632 = vadd.f32 0.0, %v7631
      %v7633 = vpop.f32.mrb[0].mxu0
      %v7634 = vpop.f32.mrb[0].mxu0
      %v7635 = vadd.f32 0.0, %v7634
      %v7636 = vpop.f32.mrb[0].mxu0
      %7637 = vmatprep.mubr.bf16.mxu0 0
      %7638 = vmatmul.mubr.bf16.gmra.mrb[0].mxu0 %v7511
      %v7639 = vpop.f32.mrb[0].mxu0
      %v7640 = vadd.f32 0.0, %v7639
      %v7641 = vpop.f32.mrb[0].mxu0
      %v7642 = vpop.f32.mrb[0].mxu0
      %v7643 = vadd.f32 0.0, %v7642
      %v7644 = vpop.f32.mrb[0].mxu0
      %7645 = vmatprep.mubr.bf16.mxu0 0
      %7646 = vmatmul.mubr.bf16.gmra.mrb[0].mxu0 %v7512
      %v7647 = vpop.f32.mrb[0].mxu0
      %v7648 = vadd.f32 0.0, %v7647
      %v7649 = vpop.f32.mrb[0].mxu0
      %v7650 = vpop.f32.mrb[0].mxu0
      %v7651 = vadd.f32 0.0, %v7650
      %v7652 = vpop.f32.mrb[0].mxu0
      %7653 = vmatprep.mubr.bf16.mxu0 0
      %7654 = vmatmul.mubr.bf16.gmra.mrb[0].mxu0 %v7513
      %v7655 = vpop.f32.mrb[0].mxu0
      %v7656 = vadd.f32 0.0, %v7655
      %v7657 = vpop.f32.mrb[0].mxu0
      %v7658 = vpop.f32.mrb[0].mxu0
      %v7659 = vadd.f32 0.0, %v7658
      %v7660 = vpop.f32.mrb[0].mxu0
      %7661 = vmatprep.mubr.bf16.mxu0 0
      %7662 = vmatmul.mubr.bf16.gmra.mrb[0].mxu0 %v7514
      %v7663 = vpop.f32.mrb[0].mxu0
      %v7664 = vadd.f32 0.0, %v7663
      %v7665 = vpop.f32.mrb[0].mxu0
      %v7666 = vpop.f32.mrb[0].mxu0
      %v7667 = vadd.f32 0.0, %v7666
      %v7668 = vpop.f32.mrb[0].mxu0
      %7669 = vmatprep.mubr.bf16.mxu0 0
      %7670 = vmatmul.mubr.bf16.gmra.mrb[0].mxu0 %v7515
      %v7671 = vpop.f32.mrb[0].mxu0
      %v7672 = vadd.f32 0.0, %v7671
      %v7673 = vpop.f32.mrb[0].mxu0
      %v7674 = vpop.f32.mrb[0].mxu0
      %v7675 = vadd.f32 0.0, %v7674
      %v7676 = vpop.f32.mrb[0].mxu0
      %7677 = vmatprep.mubr.bf16.mxu0 0
      %7678 = vmatmul.mubr.bf16.gmra.mrb[0].mxu0 %v7516
      %v7679 = vpop.f32.mrb[0].mxu0
      %v7680 = vadd.f32 0.0, %v7679
      %v7681 = vpop.f32.mrb[0].mxu0
      %v7682 = vpop.f32.mrb[0].mxu0
      %v7683 = vadd.f32 0.0, %v7682
      %v7684 = vpop.f32.mrb[0].mxu0
      %7685 = vmatprep.mubr.bf16.mxu0 0
      %7686 = vmatmul.mubr.bf16.gmra.mrb[0].mxu0 %v7517
      %v7687 = vpop.f32.mrb[0].mxu0
      %v7688 = vadd.f32 0.0, %v7687
      %v7689 = vpop.f32.mrb[0].mxu0
      %v7690 = vpop.f32.mrb[0].mxu0
      %v7691 = vadd.f32 0.0, %v7690
      %v7692 = vpop.f32.mrb[0].mxu0
      %7693 = vmatprep.mubr.bf16.mxu0 0
      %7694 = vmatmul.mubr.bf16.gmra.mrb[0].mxu0 %v7518
      %v7695 = vpop.f32.mrb[0].mxu0
      %v7696 = vadd.f32 0.0, %v7695
      %v7697 = vpop.f32.mrb[0].mxu0
      %v7698 = vpop.f32.mrb[0].mxu0
      %v7699 = vadd.f32 0.0, %v7698
      %v7700 = vpop.f32.mrb[0].mxu0
      %7701 = vmatprep.mubr.bf16.mxu0 0
      %7702 = vmatmul.mubr.bf16.gmra.mrb[0].mxu0 %v7519
      %v7703 = vpop.f32.mrb[0].mxu0
      %v7704 = vadd.f32 0.0, %v7703
      %v7705 = vpop.f32.mrb[0].mxu0
      %v7706 = vpop.f32.mrb[0].mxu0
      %v7707 = vadd.f32 0.0, %v7706
      %v7708 = vpop.f32.mrb[0].mxu0
      %7709 = vmatprep.mubr.bf16.mxu0 0
      %7710 = vmatmul.mubr.bf16.gmra.mrb[0].mxu0 %v7520
      %v7711 = vpop.f32.mrb[0].mxu0
      %v7712 = vadd.f32 0.0, %v7711
      %v7713 = vpop.f32.mrb[0].mxu0
      %v7714 = vpop.f32.mrb[0].mxu0
      %v7715 = vadd.f32 0.0, %v7714
      %v7716 = vpop.f32.mrb[0].mxu0
      %7717 = vmatprep.mubr.bf16.mxu0 0
      %7718 = vmatmul.mubr.bf16.gmra.mrb[0].mxu0 %v7521
      %v7719 = vpop.f32.mrb[0].mxu0
      %v7720 = vadd.f32 0.0, %v7719
      %v7721 = vpop.f32.mrb[0].mxu0
      %v7722 = vpop.f32.mrb[0].mxu0
      %v7723 = vadd.f32 0.0, %v7722
      %v7724 = vpop.f32.mrb[0].mxu0
      %7725 = vmatprep.mubr.bf16.mxu0 0
      %7726 = vmatmul.mubr.bf16.gmra.mrb[0].mxu0 %v7522
      %v7727 = vpop.f32.mrb[0].mxu0
      %v7728 = vadd.f32 0.0, %v7727
      %v7729 = vpop.f32.mrb[0].mxu0
      %v7730 = vpop.f32.mrb[0].mxu0
      %v7731 = vadd.f32 0.0, %v7730
      %v7732 = vpop.f32.mrb[0].mxu0
      %7733 = vmatprep.mubr.bf16.mxu0 0
      %7734 = vmatmul.mubr.bf16.gmra.mrb[0].mxu0 %v7523
      %v7735 = vpop.f32.mrb[0].mxu0
      %v7736 = vadd.f32 0.0, %v7735
      %v7737 = vpop.f32.mrb[0].mxu0
      %v7738 = vpop.f32.mrb[0].mxu0
      %v7739 = vadd.f32 0.0, %v7738
      %v7740 = vpop.f32.mrb[0].mxu0
      %7741 = vmatprep.mubr.bf16.mxu0 0
      %7742 = vmatmul.mubr.bf16.gmra.mrb[0].mxu0 %v7524
      %v7743 = vpop.f32.mrb[0].mxu0
      %v7744 = vadd.f32 0.0, %v7743
      %v7745 = vpop.f32.mrb[0].mxu0
      %v7746 = vpop.f32.mrb[0].mxu0
      %v7747 = vadd.f32 0.0, %v7746
      %v7748 = vpop.f32.mrb[0].mxu0
      %7749 = vdwg.mxu0
      %v7750 = vadd.f32 %v6996, %v7624
      %v7751 = vadd.f32 %v6997, %v7627
      %v7752 = vadd.f32 %v6998, %v7632
      %v7753 = vadd.f32 %v6999, %v7635
      %v7754 = vadd.f32 %v7000, %v7640
      %v7755 = vadd.f32 %v7001, %v7643
      %v7756 = vadd.f32 %v7002, %v7648
      %v7757 = vadd.f32 %v7003, %v7651
      %v7758 = vadd.f32 %v7004, %v7656
      %v7759 = vadd.f32 %v7005, %v7659
      %v7760 = vadd.f32 %v7006, %v7664
      %v7761 = vadd.f32 %v7007, %v7667
      %v7762 = vadd.f32 %v7008, %v7672
      %v7763 = vadd.f32 %v7009, %v7675
      %v7764 = vadd.f32 %v7010, %v7680
      %v7765 = vadd.f32 %v7011, %v7683
      %v7766 = vadd.f32 %v7012, %v7688
      %v7767 = vadd.f32 %v7013, %v7691
      %v7768 = vadd.f32 %v7014, %v7696
      %v7769 = vadd.f32 %v7015, %v7699
      %v7770 = vadd.f32 %v7016, %v7704
      %v7771 = vadd.f32 %v7017, %v7707
      %v7772 = vadd.f32 %v7018, %v7712
      %v7773 = vadd.f32 %v7019, %v7715
      %v7774 = vadd.f32 %v7020, %v7720
      %v7775 = vadd.f32 %v7021, %v7723
      %v7776 = vadd.f32 %v7022, %v7728
      %v7777 = vadd.f32 %v7023, %v7731
      %v7778 = vadd.f32 %v7024, %v7736
      %v7779 = vadd.f32 %v7025, %v7739
      %v7780 = vadd.f32 %v7026, %v7744
      %v7781 = vadd.f32 %v7027, %v7747
      %v7782 = vld [vmem:[%s6641] sm:$0xe]
      %v7783 = vld [vmem:[%s6641 + $0xc] sm:$0xe]
      %v7784 = vld [vmem:[%s6641 + $0x18] sm:$0xe]
      %v7785 = vld [vmem:[%s6641 + $0x24] sm:$0xe]
      %v7786 = vld [vmem:[%s6641 + $0x30] sm:$0xe]
      %v7787 = vld [vmem:[%s6641 + $0x3c] sm:$0xe]
      %v7788 = vld [vmem:[%s6641 + $0x48] sm:$0xe]
      %v7789 = vld [vmem:[%s6641 + $0x54] sm:$0xe]
      %v7790 = vld [vmem:[%s6641 + $0x60] sm:$0xe]
      %v7791 = vld [vmem:[%s6641 + $0x6c] sm:$0xe]
      %v7792 = vld [vmem:[%s6641 + $0x78] sm:$0xe]
      %v7793 = vld [vmem:[%s6641 + $0x84] sm:$0xe]
      %v7794 = vld [vmem:[%s6641 + $0x90] sm:$0xe]
      %v7795 = vld [vmem:[%s6641 + $0x9c] sm:$0xe]
      %v7796 = vld [vmem:[%s6641 + $0xa8] sm:$0xe]
      %v7797 = vld [vmem:[%s6641 + $0xb4] sm:$0xe]
      %v7846 = vrot.slane %v7782, 5
      %v7847 = vrot.slane %v7846, 4
      %v7848 = vrot.slane %v7029, 5
      %v7849 = vsel %vm4568, %v7847, %v7848
      %v7850 = vrot.slane %v7848, 4
      %v7851 = vrot.slane %v7030, 5
      %v7852 = vsel %vm4568, %v7850, %v7851
      %v7853 = vrot.slane %v7783, 5
      %v7854 = vrot.slane %v7853, 4
      %v7855 = vrot.slane %v7032, 5
      %v7856 = vsel %vm4568, %v7854, %v7855
      %v7857 = vrot.slane %v7855, 4
      %v7858 = vrot.slane %v7033, 5
      %v7859 = vsel %vm4568, %v7857, %v7858
      %v7860 = vrot.slane %v7784, 5
      %v7861 = vrot.slane %v7860, 4
      %v7862 = vrot.slane %v7035, 5
      %v7863 = vsel %vm4568, %v7861, %v7862
      %v7864 = vrot.slane %v7862, 4
      %v7865 = vrot.slane %v7036, 5
      %v7866 = vsel %vm4568, %v7864, %v7865
      %v7867 = vrot.slane %v7785, 5
      %v7868 = vrot.slane %v7867, 4
      %v7869 = vrot.slane %v7038, 5
      %v7870 = vsel %vm4568, %v7868, %v7869
      %v7871 = vrot.slane %v7869, 4
      %v7872 = vrot.slane %v7039, 5
      %v7873 = vsel %vm4568, %v7871, %v7872
      %v7874 = vrot.slane %v7786, 5
      %v7875 = vrot.slane %v7874, 4
      %v7876 = vrot.slane %v7041, 5
      %v7877 = vsel %vm4568, %v7875, %v7876
      %v7878 = vrot.slane %v7876, 4
      %v7879 = vrot.slane %v7042, 5
      %v7880 = vsel %vm4568, %v7878, %v7879
      %v7881 = vrot.slane %v7787, 5
      %v7882 = vrot.slane %v7881, 4
      %v7883 = vrot.slane %v7044, 5
      %v7884 = vsel %vm4568, %v7882, %v7883
      %v7885 = vrot.slane %v7883, 4
      %v7886 = vrot.slane %v7045, 5
      %v7887 = vsel %vm4568, %v7885, %v7886
      %v7888 = vrot.slane %v7788, 5
      %v7889 = vrot.slane %v7888, 4
      %v7890 = vrot.slane %v7047, 5
      %v7891 = vsel %vm4568, %v7889, %v7890
      %v7892 = vrot.slane %v7890, 4
      %v7893 = vrot.slane %v7048, 5
      %v7894 = vsel %vm4568, %v7892, %v7893
      %v7895 = vrot.slane %v7789, 5
      %v7896 = vrot.slane %v7895, 4
      %v7897 = vrot.slane %v7050, 5
      %v7898 = vsel %vm4568, %v7896, %v7897
      %v7899 = vrot.slane %v7897, 4
      %v7900 = vrot.slane %v7051, 5
      %v7901 = vsel %vm4568, %v7899, %v7900
      %v7902 = vrot.slane %v7790, 5
      %v7903 = vrot.slane %v7902, 4
      %v7904 = vrot.slane %v7053, 5
      %v7905 = vsel %vm4568, %v7903, %v7904
      %v7906 = vrot.slane %v7904, 4
      %v7907 = vrot.slane %v7054, 5
      %v7908 = vsel %vm4568, %v7906, %v7907
      %v7909 = vrot.slane %v7791, 5
      %v7910 = vrot.slane %v7909, 4
      %v7911 = vrot.slane %v7056, 5
      %v7912 = vsel %vm4568, %v7910, %v7911
      %v7913 = vrot.slane %v7911, 4
      %v7914 = vrot.slane %v7057, 5
      %v7915 = vsel %vm4568, %v7913, %v7914
      %v7916 = vrot.slane %v7792, 5
      %v7917 = vrot.slane %v7916, 4
      %v7918 = vrot.slane %v7059, 5
      %v7919 = vsel %vm4568, %v7917, %v7918
      %v7920 = vrot.slane %v7918, 4
      %v7921 = vrot.slane %v7060, 5
      %v7922 = vsel %vm4568, %v7920, %v7921
      %v7923 = vrot.slane %v7793, 5
      %v7924 = vrot.slane %v7923, 4
      %v7925 = vrot.slane %v7062, 5
      %v7926 = vsel %vm4568, %v7924, %v7925
      %v7927 = vrot.slane %v7925, 4
      %v7928 = vrot.slane %v7063, 5
      %v7929 = vsel %vm4568, %v7927, %v7928
      %v7930 = vrot.slane %v7794, 5
      %v7931 = vrot.slane %v7930, 4
      %v7932 = vrot.slane %v7065, 5
      %v7933 = vsel %vm4568, %v7931, %v7932
      %v7934 = vrot.slane %v7932, 4
      %v7935 = vrot.slane %v7066, 5
      %v7936 = vsel %vm4568, %v7934, %v7935
      %v7937 = vrot.slane %v7795, 5
      %v7938 = vrot.slane %v7937, 4
      %v7939 = vrot.slane %v7068, 5
      %v7940 = vsel %vm4568, %v7938, %v7939
      %v7941 = vrot.slane %v7939, 4
      %v7942 = vrot.slane %v7069, 5
      %v7943 = vsel %vm4568, %v7941, %v7942
      %v7944 = vrot.slane %v7796, 5
      %v7945 = vrot.slane %v7944, 4
      %v7946 = vrot.slane %v7071, 5
      %v7947 = vsel %vm4568, %v7945, %v7946
      %v7948 = vrot.slane %v7946, 4
      %v7949 = vrot.slane %v7072, 5
      %v7950 = vsel %vm4568, %v7948, %v7949
      %v7951 = vrot.slane %v7797, 5
      %v7952 = vrot.slane %v7951, 4
      %v7953 = vrot.slane %v7074, 5
      %v7954 = vsel %vm4568, %v7952, %v7953
      %v7955 = vrot.slane %v7953, 4
      %v7956 = vrot.slane %v7075, 5
      %v7957 = vsel %vm4568, %v7955, %v7956
      %s7958 = scalar_lea.vmem %s3, 512
      %v7959 = vld [vmem:[%s7958] sm:$0xf]
      %v7960 = vld [vmem:[%s7958 + $0x4] sm:$0xf]
      %v7961 = vld [vmem:[%s7958 + $0x8] sm:$0xf]
      %v7962 = vld [vmem:[%s7958 + $0xc] sm:$0xf]
      %v7963 = vld [vmem:[%s7958 + $0x10] sm:$0xf]
      %v7964 = vld [vmem:[%s7958 + $0x14] sm:$0xf]
      %v7965 = vld [vmem:[%s7958 + $0x18] sm:$0xf]
      %v7966 = vld [vmem:[%s7958 + $0x1c] sm:$0xf]
      %v7967 = vld [vmem:[%s7958 + $0x20] sm:$0xf]
      %v7968 = vld [vmem:[%s7958 + $0x24] sm:$0xf]
      %v7969 = vld [vmem:[%s7958 + $0x28] sm:$0xf]
      %v7970 = vld [vmem:[%s7958 + $0x2c] sm:$0xf]
      %v7971 = vld [vmem:[%s7958 + $0x30] sm:$0xf]
      %v7972 = vld [vmem:[%s7958 + $0x34] sm:$0xf]
      %v7973 = vld [vmem:[%s7958 + $0x38] sm:$0xf]
      %v7974 = vld [vmem:[%s7958 + $0x3c] sm:$0xf]
      %v7975 = vunpack.c.l.b16 %v7849
      %v7976 = vunpack.c.l.b16 %v7852
      %v7977 = vunpack.c.l.b16 %v7856
      %v7978 = vunpack.c.l.b16 %v7859
      %v7979 = vunpack.c.l.b16 %v7863
      %v7980 = vunpack.c.l.b16 %v7866
      %v7981 = vunpack.c.l.b16 %v7870
      %v7982 = vunpack.c.l.b16 %v7873
      %v7983 = vunpack.c.l.b16 %v7877
      %v7984 = vunpack.c.l.b16 %v7880
      %v7985 = vunpack.c.l.b16 %v7884
      %v7986 = vunpack.c.l.b16 %v7887
      %v7987 = vunpack.c.l.b16 %v7891
      %v7988 = vunpack.c.l.b16 %v7894
      %v7989 = vunpack.c.l.b16 %v7898
      %v7990 = vunpack.c.l.b16 %v7901
      %v7991 = vunpack.c.l.b16 %v7905
      %v7992 = vunpack.c.l.b16 %v7908
      %v7993 = vunpack.c.l.b16 %v7912
      %v7994 = vunpack.c.l.b16 %v7915
      %v7995 = vunpack.c.l.b16 %v7919
      %v7996 = vunpack.c.l.b16 %v7922
      %v7997 = vunpack.c.l.b16 %v7926
      %v7998 = vunpack.c.l.b16 %v7929
      %v7999 = vunpack.c.l.b16 %v7933
      %v8000 = vunpack.c.l.b16 %v7936
      %v8001 = vunpack.c.l.b16 %v7940
      %v8002 = vunpack.c.l.b16 %v7943
      %v8003 = vunpack.c.l.b16 %v7947
      %v8004 = vunpack.c.l.b16 %v7950
      %v8005 = vunpack.c.l.b16 %v7954
      %v8006 = vunpack.c.l.b16 %v7957
      %v8007 = vpack.c.b16 %v7976, %v7975
      %v8008 = vpack.c.b16 %v7978, %v7977
      %v8009 = vpack.c.b16 %v7980, %v7979
      %v8010 = vpack.c.b16 %v7982, %v7981
      %v8011 = vpack.c.b16 %v7984, %v7983
      %v8012 = vpack.c.b16 %v7986, %v7985
      %v8013 = vpack.c.b16 %v7988, %v7987
      %v8014 = vpack.c.b16 %v7990, %v7989
      %v8015 = vpack.c.b16 %v7992, %v7991
      %v8016 = vpack.c.b16 %v7994, %v7993
      %v8017 = vpack.c.b16 %v7996, %v7995
      %v8018 = vpack.c.b16 %v7998, %v7997
      %v8019 = vpack.c.b16 %v8000, %v7999
      %v8020 = vpack.c.b16 %v8002, %v8001
      %v8021 = vpack.c.b16 %v8004, %v8003
      %v8022 = vpack.c.b16 %v8006, %v8005
      %v8055 = vunpack.c.l.b16 %v7959
      %v8056 = vunpack.c.l.b16 %v7960
      %v8057 = vunpack.c.l.b16 %v7961
      %v8058 = vunpack.c.l.b16 %v7962
      %v8059 = vunpack.c.l.b16 %v7963
      %v8060 = vunpack.c.l.b16 %v7964
      %v8061 = vunpack.c.l.b16 %v7965
      %v8062 = vunpack.c.l.b16 %v7966
      %v8063 = vunpack.c.l.b16 %v7967
      %v8064 = vunpack.c.l.b16 %v7968
      %v8065 = vunpack.c.l.b16 %v7969
      %v8066 = vunpack.c.l.b16 %v7970
      %v8067 = vunpack.c.l.b16 %v7971
      %v8068 = vunpack.c.l.b16 %v7972
      %v8069 = vunpack.c.l.b16 %v7973
      %v8070 = vunpack.c.l.b16 %v7974
      %v8071 = vpack.c.b16 %v8056, %v8055
      %v8072 = vpack.c.b16 %v8058, %v8057
      %v8073 = vpack.c.b16 %v8060, %v8059
      %v8074 = vpack.c.b16 %v8062, %v8061
      %v8075 = vpack.c.b16 %v8064, %v8063
      %v8076 = vpack.c.b16 %v8066, %v8065
      %v8077 = vpack.c.b16 %v8068, %v8067
      %v8078 = vpack.c.b16 %v8070, %v8069
      %8087 = vmatprep.subr.bf16.mxu0 0
      %8088 = vmatpush1.bf16.msra.mxu0 %v8071
      %8089 = vmatprep.subr.bf16.mxu0 0
      %8090 = vmatpush1.bf16.msra.mxu0 %v8072
      %8091 = vmatprep.subr.bf16.mxu0 0
      %8092 = vmatpush1.bf16.msra.mxu0 %v8073
      %8093 = vmatprep.subr.bf16.mxu0 0
      %8094 = vmatpush1.bf16.msra.mxu0 %v8074
      %8095 = vmatprep.subr.bf16.mxu0 0
      %8096 = vmatpush1.bf16.msra.mxu0 %v8075
      %8097 = vmatprep.subr.bf16.mxu0 0
      %8098 = vmatpush1.bf16.msra.mxu0 %v8076
      %8099 = vmatprep.subr.bf16.mxu0 0
      %8100 = vmatpush1.bf16.msra.mxu0 %v8077
      %8101 = vmatprep.subr.bf16.mxu0 0
      %8102 = vmatpush1.bf16.msra.mxu0 %v8078
      %8103 = vmatprep.subr.bf16.mxu0 0
      %8104 = vmatpush1.bf16.msra.mxu0 0
      %8105 = vmatprep.subr.bf16.mxu0 0
      %8106 = vmatpush1.bf16.msra.mxu0 0
      %8107 = vmatprep.subr.bf16.mxu0 0
      %8108 = vmatpush1.bf16.msra.mxu0 0
      %8109 = vmatprep.subr.bf16.mxu0 0
      %8110 = vmatpush1.bf16.msra.mxu0 0
      %8111 = vmatprep.subr.bf16.mxu0 0
      %8112 = vmatpush1.bf16.msra.mxu0 0
      %8113 = vmatprep.subr.bf16.mxu0 0
      %8114 = vmatpush1.bf16.msra.mxu0 0
      %8115 = vmatprep.subr.bf16.mxu0 0
      %8116 = vmatpush1.bf16.msra.mxu0 0
      %8117 = vmatprep.subr.bf16.mxu0 0
      %8118 = vmatpush1.bf16.msra.mxu0 0
      %8119 = vmatprep.mubr.bf16.mxu0 0
      %8120 = vmatmul.mubr.bf16.gmra.mrb[0].mxu0 %v8007
      %v8121 = vpop.f32.mrb[0].mxu0
      %v8122 = vadd.f32 0.0, %v8121
      %v8123 = vpop.f32.mrb[0].mxu0
      %v8124 = vpop.f32.mrb[0].mxu0
      %v8125 = vadd.f32 0.0, %v8124
      %v8126 = vpop.f32.mrb[0].mxu0
      %8127 = vmatprep.mubr.bf16.mxu0 0
      %8128 = vmatmul.mubr.bf16.gmra.mrb[0].mxu0 %v8008
      %v8129 = vpop.f32.mrb[0].mxu0
      %v8130 = vadd.f32 0.0, %v8129
      %v8131 = vpop.f32.mrb[0].mxu0
      %v8132 = vpop.f32.mrb[0].mxu0
      %v8133 = vadd.f32 0.0, %v8132
      %v8134 = vpop.f32.mrb[0].mxu0
      %8135 = vmatprep.mubr.bf16.mxu0 0
      %8136 = vmatmul.mubr.bf16.gmra.mrb[0].mxu0 %v8009
      %v8137 = vpop.f32.mrb[0].mxu0
      %v8138 = vadd.f32 0.0, %v8137
      %v8139 = vpop.f32.mrb[0].mxu0
      %v8140 = vpop.f32.mrb[0].mxu0
      %v8141 = vadd.f32 0.0, %v8140
      %v8142 = vpop.f32.mrb[0].mxu0
      %8143 = vmatprep.mubr.bf16.mxu0 0
      %8144 = vmatmul.mubr.bf16.gmra.mrb[0].mxu0 %v8010
      %v8145 = vpop.f32.mrb[0].mxu0
      %v8146 = vadd.f32 0.0, %v8145
      %v8147 = vpop.f32.mrb[0].mxu0
      %v8148 = vpop.f32.mrb[0].mxu0
      %v8149 = vadd.f32 0.0, %v8148
      %v8150 = vpop.f32.mrb[0].mxu0
      %8151 = vmatprep.mubr.bf16.mxu0 0
      %8152 = vmatmul.mubr.bf16.gmra.mrb[0].mxu0 %v8011
      %v8153 = vpop.f32.mrb[0].mxu0
      %v8154 = vadd.f32 0.0, %v8153
      %v8155 = vpop.f32.mrb[0].mxu0
      %v8156 = vpop.f32.mrb[0].mxu0
      %v8157 = vadd.f32 0.0, %v8156
      %v8158 = vpop.f32.mrb[0].mxu0
      %8159 = vmatprep.mubr.bf16.mxu0 0
      %8160 = vmatmul.mubr.bf16.gmra.mrb[0].mxu0 %v8012
      %v8161 = vpop.f32.mrb[0].mxu0
      %v8162 = vadd.f32 0.0, %v8161
      %v8163 = vpop.f32.mrb[0].mxu0
      %v8164 = vpop.f32.mrb[0].mxu0
      %v8165 = vadd.f32 0.0, %v8164
      %v8166 = vpop.f32.mrb[0].mxu0
      %8167 = vmatprep.mubr.bf16.mxu0 0
      %8168 = vmatmul.mubr.bf16.gmra.mrb[0].mxu0 %v8013
      %v8169 = vpop.f32.mrb[0].mxu0
      %v8170 = vadd.f32 0.0, %v8169
      %v8171 = vpop.f32.mrb[0].mxu0
      %v8172 = vpop.f32.mrb[0].mxu0
      %v8173 = vadd.f32 0.0, %v8172
      %v8174 = vpop.f32.mrb[0].mxu0
      %8175 = vmatprep.mubr.bf16.mxu0 0
      %8176 = vmatmul.mubr.bf16.gmra.mrb[0].mxu0 %v8014
      %v8177 = vpop.f32.mrb[0].mxu0
      %v8178 = vadd.f32 0.0, %v8177
      %v8179 = vpop.f32.mrb[0].mxu0
      %v8180 = vpop.f32.mrb[0].mxu0
      %v8181 = vadd.f32 0.0, %v8180
      %v8182 = vpop.f32.mrb[0].mxu0
      %8183 = vmatprep.mubr.bf16.mxu0 0
      %8184 = vmatmul.mubr.bf16.gmra.mrb[0].mxu0 %v8015
      %v8185 = vpop.f32.mrb[0].mxu0
      %v8186 = vadd.f32 0.0, %v8185
      %v8187 = vpop.f32.mrb[0].mxu0
      %v8188 = vpop.f32.mrb[0].mxu0
      %v8189 = vadd.f32 0.0, %v8188
      %v8190 = vpop.f32.mrb[0].mxu0
      %8191 = vmatprep.mubr.bf16.mxu0 0
      %8192 = vmatmul.mubr.bf16.gmra.mrb[0].mxu0 %v8016
      %v8193 = vpop.f32.mrb[0].mxu0
      %v8194 = vadd.f32 0.0, %v8193
      %v8195 = vpop.f32.mrb[0].mxu0
      %v8196 = vpop.f32.mrb[0].mxu0
      %v8197 = vadd.f32 0.0, %v8196
      %v8198 = vpop.f32.mrb[0].mxu0
      %8199 = vmatprep.mubr.bf16.mxu0 0
      %8200 = vmatmul.mubr.bf16.gmra.mrb[0].mxu0 %v8017
      %v8201 = vpop.f32.mrb[0].mxu0
      %v8202 = vadd.f32 0.0, %v8201
      %v8203 = vpop.f32.mrb[0].mxu0
      %v8204 = vpop.f32.mrb[0].mxu0
      %v8205 = vadd.f32 0.0, %v8204
      %v8206 = vpop.f32.mrb[0].mxu0
      %8207 = vmatprep.mubr.bf16.mxu0 0
      %8208 = vmatmul.mubr.bf16.gmra.mrb[0].mxu0 %v8018
      %v8209 = vpop.f32.mrb[0].mxu0
      %v8210 = vadd.f32 0.0, %v8209
      %v8211 = vpop.f32.mrb[0].mxu0
      %v8212 = vpop.f32.mrb[0].mxu0
      %v8213 = vadd.f32 0.0, %v8212
      %v8214 = vpop.f32.mrb[0].mxu0
      %8215 = vmatprep.mubr.bf16.mxu0 0
      %8216 = vmatmul.mubr.bf16.gmra.mrb[0].mxu0 %v8019
      %v8217 = vpop.f32.mrb[0].mxu0
      %v8218 = vadd.f32 0.0, %v8217
      %v8219 = vpop.f32.mrb[0].mxu0
      %v8220 = vpop.f32.mrb[0].mxu0
      %v8221 = vadd.f32 0.0, %v8220
      %v8222 = vpop.f32.mrb[0].mxu0
      %8223 = vmatprep.mubr.bf16.mxu0 0
      %8224 = vmatmul.mubr.bf16.gmra.mrb[0].mxu0 %v8020
      %v8225 = vpop.f32.mrb[0].mxu0
      %v8226 = vadd.f32 0.0, %v8225
      %v8227 = vpop.f32.mrb[0].mxu0
      %v8228 = vpop.f32.mrb[0].mxu0
      %v8229 = vadd.f32 0.0, %v8228
      %v8230 = vpop.f32.mrb[0].mxu0
      %8231 = vmatprep.mubr.bf16.mxu0 0
      %8232 = vmatmul.mubr.bf16.gmra.mrb[0].mxu0 %v8021
      %v8233 = vpop.f32.mrb[0].mxu0
      %v8234 = vadd.f32 0.0, %v8233
      %v8235 = vpop.f32.mrb[0].mxu0
      %v8236 = vpop.f32.mrb[0].mxu0
      %v8237 = vadd.f32 0.0, %v8236
      %v8238 = vpop.f32.mrb[0].mxu0
      %8239 = vmatprep.mubr.bf16.mxu0 0
      %8240 = vmatmul.mubr.bf16.gmra.mrb[0].mxu0 %v8022
      %v8241 = vpop.f32.mrb[0].mxu0
      %v8242 = vadd.f32 0.0, %v8241
      %v8243 = vpop.f32.mrb[0].mxu0
      %v8244 = vpop.f32.mrb[0].mxu0
      %v8245 = vadd.f32 0.0, %v8244
      %v8246 = vpop.f32.mrb[0].mxu0
      %8247 = vdwg.mxu0
      %v8248 = vadd.f32 %v7750, %v8122
      %v8249 = vadd.f32 %v7751, %v8125
      %v8250 = vadd.f32 %v7752, %v8130
      %v8251 = vadd.f32 %v7753, %v8133
      %v8252 = vadd.f32 %v7754, %v8138
      %v8253 = vadd.f32 %v7755, %v8141
      %v8254 = vadd.f32 %v7756, %v8146
      %v8255 = vadd.f32 %v7757, %v8149
      %v8256 = vadd.f32 %v7758, %v8154
      %v8257 = vadd.f32 %v7759, %v8157
      %v8258 = vadd.f32 %v7760, %v8162
      %v8259 = vadd.f32 %v7761, %v8165
      %v8260 = vadd.f32 %v7762, %v8170
      %v8261 = vadd.f32 %v7763, %v8173
      %v8262 = vadd.f32 %v7764, %v8178
      %v8263 = vadd.f32 %v7765, %v8181
      %v8264 = vadd.f32 %v7766, %v8186
      %v8265 = vadd.f32 %v7767, %v8189
      %v8266 = vadd.f32 %v7768, %v8194
      %v8267 = vadd.f32 %v7769, %v8197
      %v8268 = vadd.f32 %v7770, %v8202
      %v8269 = vadd.f32 %v7771, %v8205
      %v8270 = vadd.f32 %v7772, %v8210
      %v8271 = vadd.f32 %v7773, %v8213
      %v8272 = vadd.f32 %v7774, %v8218
      %v8273 = vadd.f32 %v7775, %v8221
      %v8274 = vadd.f32 %v7776, %v8226
      %v8275 = vadd.f32 %v7777, %v8229
      %v8276 = vadd.f32 %v7778, %v8234
      %v8277 = vadd.f32 %v7779, %v8237
      %v8278 = vadd.f32 %v7780, %v8242
      %v8279 = vadd.f32 %v7781, %v8245
      %v8280 = vld [vmem:[%s4] sm:$0x1]
      %v8282 = vlaneseq
      %v8283 = vshrl.u32 %v8282, 7
      %v8284 = vsub.s32 0, %v8283
      %v8285 = vrot.slane %v8280, %v8284
      %v8287 = vadd.f32 %v8248, %v8285
      %v8288 = vadd.f32 %v8249, %v8285
      %v8289 = vadd.f32 %v8250, %v8285
      %v8290 = vadd.f32 %v8251, %v8285
      %v8291 = vadd.f32 %v8252, %v8285
      %v8292 = vadd.f32 %v8253, %v8285
      %v8293 = vadd.f32 %v8254, %v8285
      %v8294 = vadd.f32 %v8255, %v8285
      %v8295 = vadd.f32 %v8256, %v8285
      %v8296 = vadd.f32 %v8257, %v8285
      %v8297 = vadd.f32 %v8258, %v8285
      %v8298 = vadd.f32 %v8259, %v8285
      %v8299 = vadd.f32 %v8260, %v8285
      %v8300 = vadd.f32 %v8261, %v8285
      %v8301 = vadd.f32 %v8262, %v8285
      %v8302 = vadd.f32 %v8263, %v8285
      %v8303 = vadd.f32 %v8264, %v8285
      %v8304 = vadd.f32 %v8265, %v8285
      %v8305 = vadd.f32 %v8266, %v8285
      %v8306 = vadd.f32 %v8267, %v8285
      %v8307 = vadd.f32 %v8268, %v8285
      %v8308 = vadd.f32 %v8269, %v8285
      %v8309 = vadd.f32 %v8270, %v8285
      %v8310 = vadd.f32 %v8271, %v8285
      %v8311 = vadd.f32 %v8272, %v8285
      %v8312 = vadd.f32 %v8273, %v8285
      %v8313 = vadd.f32 %v8274, %v8285
      %v8314 = vadd.f32 %v8275, %v8285
      %v8315 = vadd.f32 %v8276, %v8285
      %v8316 = vadd.f32 %v8277, %v8285
      %v8317 = vadd.f32 %v8278, %v8285
      %v8318 = vadd.f32 %v8279, %v8285
      %v8319 = vmax.f32 %v8287, 0.0
      %v8320 = vmax.f32 %v8288, 0.0
      %v8321 = vmax.f32 %v8289, 0.0
      %v8322 = vmax.f32 %v8290, 0.0
      %v8323 = vmax.f32 %v8291, 0.0
      %v8324 = vmax.f32 %v8292, 0.0
      %v8325 = vmax.f32 %v8293, 0.0
      %v8326 = vmax.f32 %v8294, 0.0
      %v8327 = vmax.f32 %v8295, 0.0
      %v8328 = vmax.f32 %v8296, 0.0
      %v8329 = vmax.f32 %v8297, 0.0
      %v8330 = vmax.f32 %v8298, 0.0
      %v8331 = vmax.f32 %v8299, 0.0
      %v8332 = vmax.f32 %v8300, 0.0
      %v8333 = vmax.f32 %v8301, 0.0
      %v8334 = vmax.f32 %v8302, 0.0
      %v8335 = vmax.f32 %v8303, 0.0
      %v8336 = vmax.f32 %v8304, 0.0
      %v8337 = vmax.f32 %v8305, 0.0
      %v8338 = vmax.f32 %v8306, 0.0
      %v8339 = vmax.f32 %v8307, 0.0
      %v8340 = vmax.f32 %v8308, 0.0
      %v8341 = vmax.f32 %v8309, 0.0
      %v8342 = vmax.f32 %v8310, 0.0
      %v8343 = vmax.f32 %v8311, 0.0
      %v8344 = vmax.f32 %v8312, 0.0
      %v8345 = vmax.f32 %v8313, 0.0
      %v8346 = vmax.f32 %v8314, 0.0
      %v8347 = vmax.f32 %v8315, 0.0
      %v8348 = vmax.f32 %v8316, 0.0
      %v8349 = vmax.f32 %v8317, 0.0
      %v8350 = vmax.f32 %v8318, 0.0
      %v8351 = vpack.c.bf16 %v8320, %v8319
      %v8352 = vpack.c.bf16 %v8322, %v8321
      %v8353 = vpack.c.bf16 %v8324, %v8323
      %v8354 = vpack.c.bf16 %v8326, %v8325
      %v8355 = vpack.c.bf16 %v8328, %v8327
      %v8356 = vpack.c.bf16 %v8330, %v8329
      %v8357 = vpack.c.bf16 %v8332, %v8331
      %v8358 = vpack.c.bf16 %v8334, %v8333
      %v8359 = vpack.c.bf16 %v8336, %v8335
      %v8360 = vpack.c.bf16 %v8338, %v8337
      %v8361 = vpack.c.bf16 %v8340, %v8339
      %v8362 = vpack.c.bf16 %v8342, %v8341
      %v8363 = vpack.c.bf16 %v8344, %v8343
      %v8364 = vpack.c.bf16 %v8346, %v8345
      %v8365 = vpack.c.bf16 %v8348, %v8347
      %v8366 = vpack.c.bf16 %v8350, %v8349
      %v8367 = vld [vmem:[%s5] sm:$0xff]
      %v8368 = vld [vmem:[%s5 + $0x8] sm:$0xf]
      %v8369 = vld [vmem:[%s5 + $0xc] sm:$0xff]
      %v8370 = vld [vmem:[%s5 + $0x14] sm:$0xf]
      %v8371 = vld [vmem:[%s5 + $0x18] sm:$0xff]
      %v8372 = vld [vmem:[%s5 + $0x20] sm:$0xf]
      %v8373 = vld [vmem:[%s5 + $0x24] sm:$0xff]
      %v8374 = vld [vmem:[%s5 + $0x2c] sm:$0xf]
      %v8375 = vld [vmem:[%s5 + $0x30] sm:$0xff]
      %v8376 = vld [vmem:[%s5 + $0x38] sm:$0xf]
      %v8377 = vld [vmem:[%s5 + $0x3c] sm:$0xff]
      %v8378 = vld [vmem:[%s5 + $0x44] sm:$0xf]
      %v8379 = vld [vmem:[%s5 + $0x48] sm:$0xff]
      %v8380 = vld [vmem:[%s5 + $0x50] sm:$0xf]
      %v8381 = vld [vmem:[%s5 + $0x54] sm:$0xff]
      %v8382 = vld [vmem:[%s5 + $0x5c] sm:$0xf]
      %v8383 = vld [vmem:[%s5 + $0x60] sm:$0xff]
      %v8384 = vld [vmem:[%s5 + $0x68] sm:$0xf]
      %v8385 = vld [vmem:[%s5 + $0x6c] sm:$0xff]
      %v8386 = vld [vmem:[%s5 + $0x74] sm:$0xf]
      %v8387 = vld [vmem:[%s5 + $0x78] sm:$0xff]
      %v8388 = vld [vmem:[%s5 + $0x80] sm:$0xf]
      %v8389 = vld [vmem:[%s5 + $0x84] sm:$0xff]
      %v8390 = vld [vmem:[%s5 + $0x8c] sm:$0xf]
      %v8391 = vld [vmem:[%s5 + $0x90] sm:$0xff]
      %v8392 = vld [vmem:[%s5 + $0x98] sm:$0xf]
      %v8393 = vld [vmem:[%s5 + $0x9c] sm:$0xff]
      %v8394 = vld [vmem:[%s5 + $0xa4] sm:$0xf]
      %v8395 = vld [vmem:[%s5 + $0xa8] sm:$0xff]
      %v8396 = vld [vmem:[%s5 + $0xb0] sm:$0xf]
      %v8397 = vld [vmem:[%s5 + $0xb4] sm:$0xff]
      %v8398 = vld [vmem:[%s5 + $0xbc] sm:$0xf]
      %v8399 = vld [vmem:[%s6] sm:$0x7]
      %v8401 = vlaneseq
      %v8402 = vshrl.u32 %v8401, 7
      %v8403 = vsub.s32 0, %v8402
      %v8404 = vrot.slane %v8399, %v8403
      %v8405 = vlaneseq
      %v8406 = vshrl.u32 %v8405, 7
      %v8407 = vsub.s32 1, %v8406
      %v8408 = vrot.slane %v8399, %v8407
      %v8409 = vlaneseq
      %v8410 = vshrl.u32 %v8409, 7
      %v8411 = vsub.s32 2, %v8410
      %v8412 = vrot.slane %v8399, %v8411
      %v8448 = vunpack.c.l.b16 %v8367
      %v8449 = vunpack.c.h.b16 %v8367
      %v8450 = vunpack.c.l.b16 %v8368
      %v8451 = vunpack.c.l.b16 %v8369
      %v8452 = vunpack.c.h.b16 %v8369
      %v8453 = vunpack.c.l.b16 %v8370
      %v8454 = vunpack.c.l.b16 %v8371
      %v8455 = vunpack.c.h.b16 %v8371
      %v8456 = vunpack.c.l.b16 %v8372
      %v8457 = vunpack.c.l.b16 %v8373
      %v8458 = vunpack.c.h.b16 %v8373
      %v8459 = vunpack.c.l.b16 %v8374
      %v8460 = vunpack.c.l.b16 %v8375
      %v8461 = vunpack.c.h.b16 %v8375
      %v8462 = vunpack.c.l.b16 %v8376
      %v8463 = vunpack.c.l.b16 %v8377
      %v8464 = vunpack.c.h.b16 %v8377
      %v8465 = vunpack.c.l.b16 %v8378
      %v8466 = vunpack.c.l.b16 %v8379
      %v8467 = vunpack.c.h.b16 %v8379
      %v8468 = vunpack.c.l.b16 %v8380
      %v8469 = vunpack.c.l.b16 %v8381
      %v8470 = vunpack.c.h.b16 %v8381
      %v8471 = vunpack.c.l.b16 %v8382
      %v8472 = vunpack.c.l.b16 %v8383
      %v8473 = vunpack.c.h.b16 %v8383
      %v8474 = vunpack.c.l.b16 %v8384
      %v8475 = vunpack.c.l.b16 %v8385
      %v8476 = vunpack.c.h.b16 %v8385
      %v8477 = vunpack.c.l.b16 %v8386
      %v8478 = vunpack.c.l.b16 %v8387
      %v8479 = vunpack.c.h.b16 %v8387
      %v8480 = vunpack.c.l.b16 %v8388
      %v8481 = vunpack.c.l.b16 %v8389
      %v8482 = vunpack.c.h.b16 %v8389
      %v8483 = vunpack.c.l.b16 %v8390
      %v8484 = vunpack.c.l.b16 %v8391
      %v8485 = vunpack.c.h.b16 %v8391
      %v8486 = vunpack.c.l.b16 %v8392
      %v8487 = vunpack.c.l.b16 %v8393
      %v8488 = vunpack.c.h.b16 %v8393
      %v8489 = vunpack.c.l.b16 %v8394
      %v8490 = vunpack.c.l.b16 %v8395
      %v8491 = vunpack.c.h.b16 %v8395
      %v8492 = vunpack.c.l.b16 %v8396
      %v8493 = vunpack.c.l.b16 %v8397
      %v8494 = vunpack.c.h.b16 %v8397
      %v8495 = vunpack.c.l.b16 %v8398
      %v8496 = vpack.c.b16 %v8451, %v8448
      %v8497 = vpack.c.b16 %v8452, %v8449
      %v8498 = vpack.c.b16 %v8453, %v8450
      %v8499 = vpack.c.b16 %v8457, %v8454
      %v8500 = vpack.c.b16 %v8458, %v8455
      %v8501 = vpack.c.b16 %v8459, %v8456
      %v8502 = vpack.c.b16 %v8463, %v8460
      %v8503 = vpack.c.b16 %v8464, %v8461
      %v8504 = vpack.c.b16 %v8465, %v8462
      %v8505 = vpack.c.b16 %v8469, %v8466
      %v8506 = vpack.c.b16 %v8470, %v8467
      %v8507 = vpack.c.b16 %v8471, %v8468
      %v8508 = vpack.c.b16 %v8475, %v8472
      %v8509 = vpack.c.b16 %v8476, %v8473
      %v8510 = vpack.c.b16 %v8477, %v8474
      %v8511 = vpack.c.b16 %v8481, %v8478
      %v8512 = vpack.c.b16 %v8482, %v8479
      %v8513 = vpack.c.b16 %v8483, %v8480
      %v8514 = vpack.c.b16 %v8487, %v8484
      %v8515 = vpack.c.b16 %v8488, %v8485
      %v8516 = vpack.c.b16 %v8489, %v8486
      %v8517 = vpack.c.b16 %v8493, %v8490
      %v8518 = vpack.c.b16 %v8494, %v8491
      %v8519 = vpack.c.b16 %v8495, %v8492
      %8544 = vmatprep.subr.bf16.mxu0 %v8497
      %8545 = vmatpush1.bf16.msra.mxu0 %v8496
      %8546 = vmatprep.subr.bf16.mxu0 %v8500
      %8547 = vmatpush1.bf16.msra.mxu0 %v8499
      %8548 = vmatprep.subr.bf16.mxu0 %v8503
      %8549 = vmatpush1.bf16.msra.mxu0 %v8502
      %8550 = vmatprep.subr.bf16.mxu0 %v8506
      %8551 = vmatpush1.bf16.msra.mxu0 %v8505
      %8552 = vmatprep.subr.bf16.mxu0 %v8509
      %8553 = vmatpush1.bf16.msra.mxu0 %v8508
      %8554 = vmatprep.subr.bf16.mxu0 %v8512
      %8555 = vmatpush1.bf16.msra.mxu0 %v8511
      %8556 = vmatprep.subr.bf16.mxu0 %v8515
      %8557 = vmatpush1.bf16.msra.mxu0 %v8514
      %8558 = vmatprep.subr.bf16.mxu0 %v8518
      %8559 = vmatpush1.bf16.msra.mxu0 %v8517
      %8560 = vmatprep.subr.bf16.mxu0 0
      %8561 = vmatpush1.bf16.msra.mxu0 0
      %8562 = vmatprep.subr.bf16.mxu0 0
      %8563 = vmatpush1.bf16.msra.mxu0 0
      %8564 = vmatprep.subr.bf16.mxu0 0
      %8565 = vmatpush1.bf16.msra.mxu0 0
      %8566 = vmatprep.subr.bf16.mxu0 0
      %8567 = vmatpush1.bf16.msra.mxu0 0
      %8568 = vmatprep.subr.bf16.mxu0 0
      %8569 = vmatpush1.bf16.msra.mxu0 0
      %8570 = vmatprep.subr.bf16.mxu0 0
      %8571 = vmatpush1.bf16.msra.mxu0 0
      %8572 = vmatprep.subr.bf16.mxu0 0
      %8573 = vmatpush1.bf16.msra.mxu0 0
      %8574 = vmatprep.subr.bf16.mxu0 0
      %8575 = vmatpush1.bf16.msra.mxu0 0
      %8576 = vmatprep.mubr.bf16.mxu0 0
      %8577 = vmatmul.mubr.bf16.gmra.mrb[0].mxu0 %v8351
      %v8578 = vpop.f32.mrb[0].mxu0
      %v8579 = vadd.f32 %v8404, %v8578
      %v8580 = vpop.f32.mrb[0].mxu0
      %v8581 = vadd.f32 %v8408, %v8580
      %v8582 = vpop.f32.mrb[0].mxu0
      %v8583 = vadd.f32 %v8404, %v8582
      %v8584 = vpop.f32.mrb[0].mxu0
      %v8585 = vadd.f32 %v8408, %v8584
      %8586 = vmatprep.mubr.bf16.mxu0 0
      %8587 = vmatmul.mubr.bf16.gmra.mrb[0].mxu0 %v8352
      %v8588 = vpop.f32.mrb[0].mxu0
      %v8589 = vadd.f32 %v8404, %v8588
      %v8590 = vpop.f32.mrb[0].mxu0
      %v8591 = vadd.f32 %v8408, %v8590
      %v8592 = vpop.f32.mrb[0].mxu0
      %v8593 = vadd.f32 %v8404, %v8592
      %v8594 = vpop.f32.mrb[0].mxu0
      %v8595 = vadd.f32 %v8408, %v8594
      %8596 = vmatprep.mubr.bf16.mxu0 0
      %8597 = vmatmul.mubr.bf16.gmra.mrb[0].mxu0 %v8353
      %v8598 = vpop.f32.mrb[0].mxu0
      %v8599 = vadd.f32 %v8404, %v8598
      %v8600 = vpop.f32.mrb[0].mxu0
      %v8601 = vadd.f32 %v8408, %v8600
      %v8602 = vpop.f32.mrb[0].mxu0
      %v8603 = vadd.f32 %v8404, %v8602
      %v8604 = vpop.f32.mrb[0].mxu0
      %v8605 = vadd.f32 %v8408, %v8604
      %8606 = vmatprep.mubr.bf16.mxu0 0
      %8607 = vmatmul.mubr.bf16.gmra.mrb[0].mxu0 %v8354
      %v8608 = vpop.f32.mrb[0].mxu0
      %v8609 = vadd.f32 %v8404, %v8608
      %v8610 = vpop.f32.mrb[0].mxu0
      %v8611 = vadd.f32 %v8408, %v8610
      %v8612 = vpop.f32.mrb[0].mxu0
      %v8613 = vadd.f32 %v8404, %v8612
      %v8614 = vpop.f32.mrb[0].mxu0
      %v8615 = vadd.f32 %v8408, %v8614
      %8616 = vmatprep.mubr.bf16.mxu0 0
      %8617 = vmatmul.mubr.bf16.gmra.mrb[0].mxu0 %v8355
      %v8618 = vpop.f32.mrb[0].mxu0
      %v8619 = vadd.f32 %v8404, %v8618
      %v8620 = vpop.f32.mrb[0].mxu0
      %v8621 = vadd.f32 %v8408, %v8620
      %v8622 = vpop.f32.mrb[0].mxu0
      %v8623 = vadd.f32 %v8404, %v8622
      %v8624 = vpop.f32.mrb[0].mxu0
      %v8625 = vadd.f32 %v8408, %v8624
      %8626 = vmatprep.mubr.bf16.mxu0 0
      %8627 = vmatmul.mubr.bf16.gmra.mrb[0].mxu0 %v8356
      %v8628 = vpop.f32.mrb[0].mxu0
      %v8629 = vadd.f32 %v8404, %v8628
      %v8630 = vpop.f32.mrb[0].mxu0
      %v8631 = vadd.f32 %v8408, %v8630
      %v8632 = vpop.f32.mrb[0].mxu0
      %v8633 = vadd.f32 %v8404, %v8632
      %v8634 = vpop.f32.mrb[0].mxu0
      %v8635 = vadd.f32 %v8408, %v8634
      %8636 = vmatprep.mubr.bf16.mxu0 0
      %8637 = vmatmul.mubr.bf16.gmra.mrb[0].mxu0 %v8357
      %v8638 = vpop.f32.mrb[0].mxu0
      %v8639 = vadd.f32 %v8404, %v8638
      %v8640 = vpop.f32.mrb[0].mxu0
      %v8641 = vadd.f32 %v8408, %v8640
      %v8642 = vpop.f32.mrb[0].mxu0
      %v8643 = vadd.f32 %v8404, %v8642
      %v8644 = vpop.f32.mrb[0].mxu0
      %v8645 = vadd.f32 %v8408, %v8644
      %8646 = vmatprep.mubr.bf16.mxu0 0
      %8647 = vmatmul.mubr.bf16.gmra.mrb[0].mxu0 %v8358
      %v8648 = vpop.f32.mrb[0].mxu0
      %v8649 = vadd.f32 %v8404, %v8648
      %v8650 = vpop.f32.mrb[0].mxu0
      %v8651 = vadd.f32 %v8408, %v8650
      %v8652 = vpop.f32.mrb[0].mxu0
      %v8653 = vadd.f32 %v8404, %v8652
      %v8654 = vpop.f32.mrb[0].mxu0
      %v8655 = vadd.f32 %v8408, %v8654
      %8656 = vmatprep.mubr.bf16.mxu0 0
      %8657 = vmatmul.mubr.bf16.gmra.mrb[0].mxu0 %v8359
      %v8658 = vpop.f32.mrb[0].mxu0
      %v8659 = vadd.f32 %v8404, %v8658
      %v8660 = vpop.f32.mrb[0].mxu0
      %v8661 = vadd.f32 %v8408, %v8660
      %v8662 = vpop.f32.mrb[0].mxu0
      %v8663 = vadd.f32 %v8404, %v8662
      %v8664 = vpop.f32.mrb[0].mxu0
      %v8665 = vadd.f32 %v8408, %v8664
      %8666 = vmatprep.mubr.bf16.mxu0 0
      %8667 = vmatmul.mubr.bf16.gmra.mrb[0].mxu0 %v8360
      %v8668 = vpop.f32.mrb[0].mxu0
      %v8669 = vadd.f32 %v8404, %v8668
      %v8670 = vpop.f32.mrb[0].mxu0
      %v8671 = vadd.f32 %v8408, %v8670
      %v8672 = vpop.f32.mrb[0].mxu0
      %v8673 = vadd.f32 %v8404, %v8672
      %v8674 = vpop.f32.mrb[0].mxu0
      %v8675 = vadd.f32 %v8408, %v8674
      %8676 = vmatprep.mubr.bf16.mxu0 0
      %8677 = vmatmul.mubr.bf16.gmra.mrb[0].mxu0 %v8361
      %v8678 = vpop.f32.mrb[0].mxu0
      %v8679 = vadd.f32 %v8404, %v8678
      %v8680 = vpop.f32.mrb[0].mxu0
      %v8681 = vadd.f32 %v8408, %v8680
      %v8682 = vpop.f32.mrb[0].mxu0
      %v8683 = vadd.f32 %v8404, %v8682
      %v8684 = vpop.f32.mrb[0].mxu0
      %v8685 = vadd.f32 %v8408, %v8684
      %8686 = vmatprep.mubr.bf16.mxu0 0
      %8687 = vmatmul.mubr.bf16.gmra.mrb[0].mxu0 %v8362
      %v8688 = vpop.f32.mrb[0].mxu0
      %v8689 = vadd.f32 %v8404, %v8688
      %v8690 = vpop.f32.mrb[0].mxu0
      %v8691 = vadd.f32 %v8408, %v8690
      %v8692 = vpop.f32.mrb[0].mxu0
      %v8693 = vadd.f32 %v8404, %v8692
      %v8694 = vpop.f32.mrb[0].mxu0
      %v8695 = vadd.f32 %v8408, %v8694
      %8696 = vmatprep.mubr.bf16.mxu0 0
      %8697 = vmatmul.mubr.bf16.gmra.mrb[0].mxu0 %v8363
      %v8698 = vpop.f32.mrb[0].mxu0
      %v8699 = vadd.f32 %v8404, %v8698
      %v8700 = vpop.f32.mrb[0].mxu0
      %v8701 = vadd.f32 %v8408, %v8700
      %v8702 = vpop.f32.mrb[0].mxu0
      %v8703 = vadd.f32 %v8404, %v8702
      %v8704 = vpop.f32.mrb[0].mxu0
      %v8705 = vadd.f32 %v8408, %v8704
      %8706 = vmatprep.mubr.bf16.mxu0 0
      %8707 = vmatmul.mubr.bf16.gmra.mrb[0].mxu0 %v8364
      %v8708 = vpop.f32.mrb[0].mxu0
      %v8709 = vadd.f32 %v8404, %v8708
      %v8710 = vpop.f32.mrb[0].mxu0
      %v8711 = vadd.f32 %v8408, %v8710
      %v8712 = vpop.f32.mrb[0].mxu0
      %v8713 = vadd.f32 %v8404, %v8712
      %v8714 = vpop.f32.mrb[0].mxu0
      %v8715 = vadd.f32 %v8408, %v8714
      %8716 = vmatprep.mubr.bf16.mxu0 0
      %8717 = vmatmul.mubr.bf16.gmra.mrb[0].mxu0 %v8365
      %v8718 = vpop.f32.mrb[0].mxu0
      %v8719 = vadd.f32 %v8404, %v8718
      %v8720 = vpop.f32.mrb[0].mxu0
      %v8721 = vadd.f32 %v8408, %v8720
      %v8722 = vpop.f32.mrb[0].mxu0
      %v8723 = vadd.f32 %v8404, %v8722
      %v8724 = vpop.f32.mrb[0].mxu0
      %v8725 = vadd.f32 %v8408, %v8724
      %8726 = vmatprep.mubr.bf16.mxu0 0
      %8727 = vmatmul.mubr.bf16.gmra.mrb[0].mxu0 %v8366
      %v8728 = vpop.f32.mrb[0].mxu0
      %v8729 = vadd.f32 %v8404, %v8728
      %v8730 = vpop.f32.mrb[0].mxu0
      %v8731 = vadd.f32 %v8408, %v8730
      %v8732 = vpop.f32.mrb[0].mxu0
      %v8733 = vadd.f32 %v8404, %v8732
      %v8734 = vpop.f32.mrb[0].mxu0
      %v8735 = vadd.f32 %v8408, %v8734
      %8736 = vdwg.mxu0
      %8737 = vmatprep.subr.bf16.mxu0 0
      %8738 = vmatpush1.bf16.msra.mxu0 %v8498
      %8739 = vmatprep.subr.bf16.mxu0 0
      %8740 = vmatpush1.bf16.msra.mxu0 %v8501
      %8741 = vmatprep.subr.bf16.mxu0 0
      %8742 = vmatpush1.bf16.msra.mxu0 %v8504
      %8743 = vmatprep.subr.bf16.mxu0 0
      %8744 = vmatpush1.bf16.msra.mxu0 %v8507
      %8745 = vmatprep.subr.bf16.mxu0 0
      %8746 = vmatpush1.bf16.msra.mxu0 %v8510
      %8747 = vmatprep.subr.bf16.mxu0 0
      %8748 = vmatpush1.bf16.msra.mxu0 %v8513
      %8749 = vmatprep.subr.bf16.mxu0 0
      %8750 = vmatpush1.bf16.msra.mxu0 %v8516
      %8751 = vmatprep.subr.bf16.mxu0 0
      %8752 = vmatpush1.bf16.msra.mxu0 %v8519
      %8753 = vmatprep.subr.bf16.mxu0 0
      %8754 = vmatpush1.bf16.msra.mxu0 0
      %8755 = vmatprep.subr.bf16.mxu0 0
      %8756 = vmatpush1.bf16.msra.mxu0 0
      %8757 = vmatprep.subr.bf16.mxu0 0
      %8758 = vmatpush1.bf16.msra.mxu0 0
      %8759 = vmatprep.subr.bf16.mxu0 0
      %8760 = vmatpush1.bf16.msra.mxu0 0
      %8761 = vmatprep.subr.bf16.mxu0 0
      %8762 = vmatpush1.bf16.msra.mxu0 0
      %8763 = vmatprep.subr.bf16.mxu0 0
      %8764 = vmatpush1.bf16.msra.mxu0 0
      %8765 = vmatprep.subr.bf16.mxu0 0
      %8766 = vmatpush1.bf16.msra.mxu0 0
      %8767 = vmatprep.subr.bf16.mxu0 0
      %8768 = vmatpush1.bf16.msra.mxu0 0
      %8769 = vmatprep.mubr.bf16.mxu0 0
      %8770 = vmatmul.mubr.bf16.gmra.mrb[0].mxu0 %v8351
      %v8771 = vpop.f32.mrb[0].mxu0
      %v8772 = vadd.f32 %v8412, %v8771
      %v8773 = vpop.f32.mrb[0].mxu0
      %v8774 = vpop.f32.mrb[0].mxu0
      %v8775 = vadd.f32 %v8412, %v8774
      %v8776 = vpop.f32.mrb[0].mxu0
      %8777 = vmatprep.mubr.bf16.mxu0 0
      %8778 = vmatmul.mubr.bf16.gmra.mrb[0].mxu0 %v8352
      %v8779 = vpop.f32.mrb[0].mxu0
      %v8780 = vadd.f32 %v8412, %v8779
      %v8781 = vpop.f32.mrb[0].mxu0
      %v8782 = vpop.f32.mrb[0].mxu0
      %v8783 = vadd.f32 %v8412, %v8782
      %v8784 = vpop.f32.mrb[0].mxu0
      %8785 = vmatprep.mubr.bf16.mxu0 0
      %8786 = vmatmul.mubr.bf16.gmra.mrb[0].mxu0 %v8353
      %v8787 = vpop.f32.mrb[0].mxu0
      %v8788 = vadd.f32 %v8412, %v8787
      %v8789 = vpop.f32.mrb[0].mxu0
      %v8790 = vpop.f32.mrb[0].mxu0
      %v8791 = vadd.f32 %v8412, %v8790
      %v8792 = vpop.f32.mrb[0].mxu0
      %8793 = vmatprep.mubr.bf16.mxu0 0
      %8794 = vmatmul.mubr.bf16.gmra.mrb[0].mxu0 %v8354
      %v8795 = vpop.f32.mrb[0].mxu0
      %v8796 = vadd.f32 %v8412, %v8795
      %v8797 = vpop.f32.mrb[0].mxu0
      %v8798 = vpop.f32.mrb[0].mxu0
      %v8799 = vadd.f32 %v8412, %v8798
      %v8800 = vpop.f32.mrb[0].mxu0
      %8801 = vmatprep.mubr.bf16.mxu0 0
      %8802 = vmatmul.mubr.bf16.gmra.mrb[0].mxu0 %v8355
      %v8803 = vpop.f32.mrb[0].mxu0
      %v8804 = vadd.f32 %v8412, %v8803
      %v8805 = vpop.f32.mrb[0].mxu0
      %v8806 = vpop.f32.mrb[0].mxu0
      %v8807 = vadd.f32 %v8412, %v8806
      %v8808 = vpop.f32.mrb[0].mxu0
      %8809 = vmatprep.mubr.bf16.mxu0 0
      %8810 = vmatmul.mubr.bf16.gmra.mrb[0].mxu0 %v8356
      %v8811 = vpop.f32.mrb[0].mxu0
      %v8812 = vadd.f32 %v8412, %v8811
      %v8813 = vpop.f32.mrb[0].mxu0
      %v8814 = vpop.f32.mrb[0].mxu0
      %v8815 = vadd.f32 %v8412, %v8814
      %v8816 = vpop.f32.mrb[0].mxu0
      %8817 = vmatprep.mubr.bf16.mxu0 0
      %8818 = vmatmul.mubr.bf16.gmra.mrb[0].mxu0 %v8357
      %v8819 = vpop.f32.mrb[0].mxu0
      %v8820 = vadd.f32 %v8412, %v8819
      %v8821 = vpop.f32.mrb[0].mxu0
      %v8822 = vpop.f32.mrb[0].mxu0
      %v8823 = vadd.f32 %v8412, %v8822
      %v8824 = vpop.f32.mrb[0].mxu0
      %8825 = vmatprep.mubr.bf16.mxu0 0
      %8826 = vmatmul.mubr.bf16.gmra.mrb[0].mxu0 %v8358
      %v8827 = vpop.f32.mrb[0].mxu0
      %v8828 = vadd.f32 %v8412, %v8827
      %v8829 = vpop.f32.mrb[0].mxu0
      %v8830 = vpop.f32.mrb[0].mxu0
      %v8831 = vadd.f32 %v8412, %v8830
      %v8832 = vpop.f32.mrb[0].mxu0
      %8833 = vmatprep.mubr.bf16.mxu0 0
      %8834 = vmatmul.mubr.bf16.gmra.mrb[0].mxu0 %v8359
      %v8835 = vpop.f32.mrb[0].mxu0
      %v8836 = vadd.f32 %v8412, %v8835
      %v8837 = vpop.f32.mrb[0].mxu0
      %v8838 = vpop.f32.mrb[0].mxu0
      %v8839 = vadd.f32 %v8412, %v8838
      %v8840 = vpop.f32.mrb[0].mxu0
      %8841 = vmatprep.mubr.bf16.mxu0 0
      %8842 = vmatmul.mubr.bf16.gmra.mrb[0].mxu0 %v8360
      %v8843 = vpop.f32.mrb[0].mxu0
      %v8844 = vadd.f32 %v8412, %v8843
      %v8845 = vpop.f32.mrb[0].mxu0
      %v8846 = vpop.f32.mrb[0].mxu0
      %v8847 = vadd.f32 %v8412, %v8846
      %v8848 = vpop.f32.mrb[0].mxu0
      %8849 = vmatprep.mubr.bf16.mxu0 0
      %8850 = vmatmul.mubr.bf16.gmra.mrb[0].mxu0 %v8361
      %v8851 = vpop.f32.mrb[0].mxu0
      %v8852 = vadd.f32 %v8412, %v8851
      %v8853 = vpop.f32.mrb[0].mxu0
      %v8854 = vpop.f32.mrb[0].mxu0
      %v8855 = vadd.f32 %v8412, %v8854
      %v8856 = vpop.f32.mrb[0].mxu0
      %8857 = vmatprep.mubr.bf16.mxu0 0
      %8858 = vmatmul.mubr.bf16.gmra.mrb[0].mxu0 %v8362
      %v8859 = vpop.f32.mrb[0].mxu0
      %v8860 = vadd.f32 %v8412, %v8859
      %v8861 = vpop.f32.mrb[0].mxu0
      %v8862 = vpop.f32.mrb[0].mxu0
      %v8863 = vadd.f32 %v8412, %v8862
      %v8864 = vpop.f32.mrb[0].mxu0
      %8865 = vmatprep.mubr.bf16.mxu0 0
      %8866 = vmatmul.mubr.bf16.gmra.mrb[0].mxu0 %v8363
      %v8867 = vpop.f32.mrb[0].mxu0
      %v8868 = vadd.f32 %v8412, %v8867
      %v8869 = vpop.f32.mrb[0].mxu0
      %v8870 = vpop.f32.mrb[0].mxu0
      %v8871 = vadd.f32 %v8412, %v8870
      %v8872 = vpop.f32.mrb[0].mxu0
      %8873 = vmatprep.mubr.bf16.mxu0 0
      %8874 = vmatmul.mubr.bf16.gmra.mrb[0].mxu0 %v8364
      %v8875 = vpop.f32.mrb[0].mxu0
      %v8876 = vadd.f32 %v8412, %v8875
      %v8877 = vpop.f32.mrb[0].mxu0
      %v8878 = vpop.f32.mrb[0].mxu0
      %v8879 = vadd.f32 %v8412, %v8878
      %v8880 = vpop.f32.mrb[0].mxu0
      %8881 = vmatprep.mubr.bf16.mxu0 0
      %8882 = vmatmul.mubr.bf16.gmra.mrb[0].mxu0 %v8365
      %v8883 = vpop.f32.mrb[0].mxu0
      %v8884 = vadd.f32 %v8412, %v8883
      %v8885 = vpop.f32.mrb[0].mxu0
      %v8886 = vpop.f32.mrb[0].mxu0
      %v8887 = vadd.f32 %v8412, %v8886
      %v8888 = vpop.f32.mrb[0].mxu0
      %8889 = vmatprep.mubr.bf16.mxu0 0
      %8890 = vmatmul.mubr.bf16.gmra.mrb[0].mxu0 %v8366
      %v8891 = vpop.f32.mrb[0].mxu0
      %v8892 = vadd.f32 %v8412, %v8891
      %v8893 = vpop.f32.mrb[0].mxu0
      %v8894 = vpop.f32.mrb[0].mxu0
      %v8895 = vadd.f32 %v8412, %v8894
      %v8896 = vpop.f32.mrb[0].mxu0
      %8897 = vdwg.mxu0
      %v8898 = vmax.f32 %v8579, %v8581
      %v8899 = vmax.f32 %v8898, %v8772
      %8900 = vmax.xlane.f32.xlu0 %v8899
      %v8901 = vpop.xlane.xlu0 %8900
      %v8902 = vmax.f32 %v8583, %v8585
      %v8903 = vmax.f32 %v8902, %v8775
      %8904 = vmax.xlane.f32.xlu0 %v8903
      %v8905 = vpop.xlane.xlu0 %8904
      %v8906 = vmax.f32 %v8589, %v8591
      %v8907 = vmax.f32 %v8906, %v8780
      %8908 = vmax.xlane.f32.xlu0 %v8907
      %v8909 = vpop.xlane.xlu0 %8908
      %v8910 = vmax.f32 %v8593, %v8595
      %v8911 = vmax.f32 %v8910, %v8783
      %8912 = vmax.xlane.f32.xlu0 %v8911
      %v8913 = vpop.xlane.xlu0 %8912
      %v8914 = vmax.f32 %v8599, %v8601
      %v8915 = vmax.f32 %v8914, %v8788
      %8916 = vmax.xlane.f32.xlu0 %v8915
      %v8917 = vpop.xlane.xlu0 %8916
      %v8918 = vmax.f32 %v8603, %v8605
      %v8919 = vmax.f32 %v8918, %v8791
      %8920 = vmax.xlane.f32.xlu0 %v8919
      %v8921 = vpop.xlane.xlu0 %8920
      %v8922 = vmax.f32 %v8609, %v8611
      %v8923 = vmax.f32 %v8922, %v8796
      %8924 = vmax.xlane.f32.xlu0 %v8923
      %v8925 = vpop.xlane.xlu0 %8924
      %v8926 = vmax.f32 %v8613, %v8615
      %v8927 = vmax.f32 %v8926, %v8799
      %8928 = vmax.xlane.f32.xlu0 %v8927
      %v8929 = vpop.xlane.xlu0 %8928
      %v8930 = vmax.f32 %v8619, %v8621
      %v8931 = vmax.f32 %v8930, %v8804
      %8932 = vmax.xlane.f32.xlu0 %v8931
      %v8933 = vpop.xlane.xlu0 %8932
      %v8934 = vmax.f32 %v8623, %v8625
      %v8935 = vmax.f32 %v8934, %v8807
      %8936 = vmax.xlane.f32.xlu0 %v8935
      %v8937 = vpop.xlane.xlu0 %8936
      %v8938 = vmax.f32 %v8629, %v8631
      %v8939 = vmax.f32 %v8938, %v8812
      %8940 = vmax.xlane.f32.xlu0 %v8939
      %v8941 = vpop.xlane.xlu0 %8940
      %v8942 = vmax.f32 %v8633, %v8635
      %v8943 = vmax.f32 %v8942, %v8815
      %8944 = vmax.xlane.f32.xlu0 %v8943
      %v8945 = vpop.xlane.xlu0 %8944
      %v8946 = vmax.f32 %v8639, %v8641
      %v8947 = vmax.f32 %v8946, %v8820
      %8948 = vmax.xlane.f32.xlu0 %v8947
      %v8949 = vpop.xlane.xlu0 %8948
      %v8950 = vmax.f32 %v8643, %v8645
      %v8951 = vmax.f32 %v8950, %v8823
      %8952 = vmax.xlane.f32.xlu0 %v8951
      %v8953 = vpop.xlane.xlu0 %8952
      %v8954 = vmax.f32 %v8649, %v8651
      %v8955 = vmax.f32 %v8954, %v8828
      %8956 = vmax.xlane.f32.xlu0 %v8955
      %v8957 = vpop.xlane.xlu0 %8956
      %v8958 = vmax.f32 %v8653, %v8655
      %v8959 = vmax.f32 %v8958, %v8831
      %8960 = vmax.xlane.f32.xlu0 %v8959
      %v8961 = vpop.xlane.xlu0 %8960
      %v8962 = vmax.f32 %v8659, %v8661
      %v8963 = vmax.f32 %v8962, %v8836
      %8964 = vmax.xlane.f32.xlu0 %v8963
      %v8965 = vpop.xlane.xlu0 %8964
      %v8966 = vmax.f32 %v8663, %v8665
      %v8967 = vmax.f32 %v8966, %v8839
      %8968 = vmax.xlane.f32.xlu0 %v8967
      %v8969 = vpop.xlane.xlu0 %8968
      %v8970 = vmax.f32 %v8669, %v8671
      %v8971 = vmax.f32 %v8970, %v8844
      %8972 = vmax.xlane.f32.xlu0 %v8971
      %v8973 = vpop.xlane.xlu0 %8972
      %v8974 = vmax.f32 %v8673, %v8675
      %v8975 = vmax.f32 %v8974, %v8847
      %8976 = vmax.xlane.f32.xlu0 %v8975
      %v8977 = vpop.xlane.xlu0 %8976
      %v8978 = vmax.f32 %v8679, %v8681
      %v8979 = vmax.f32 %v8978, %v8852
      %8980 = vmax.xlane.f32.xlu0 %v8979
      %v8981 = vpop.xlane.xlu0 %8980
      %v8982 = vmax.f32 %v8683, %v8685
      %v8983 = vmax.f32 %v8982, %v8855
      %8984 = vmax.xlane.f32.xlu0 %v8983
      %v8985 = vpop.xlane.xlu0 %8984
      %v8986 = vmax.f32 %v8689, %v8691
      %v8987 = vmax.f32 %v8986, %v8860
      %8988 = vmax.xlane.f32.xlu0 %v8987
      %v8989 = vpop.xlane.xlu0 %8988
      %v8990 = vmax.f32 %v8693, %v8695
      %v8991 = vmax.f32 %v8990, %v8863
      %8992 = vmax.xlane.f32.xlu0 %v8991
      %v8993 = vpop.xlane.xlu0 %8992
      %v8994 = vmax.f32 %v8699, %v8701
      %v8995 = vmax.f32 %v8994, %v8868
      %8996 = vmax.xlane.f32.xlu0 %v8995
      %v8997 = vpop.xlane.xlu0 %8996
      %v8998 = vmax.f32 %v8703, %v8705
      %v8999 = vmax.f32 %v8998, %v8871
      %9000 = vmax.xlane.f32.xlu0 %v8999
      %v9001 = vpop.xlane.xlu0 %9000
      %v9002 = vmax.f32 %v8709, %v8711
      %v9003 = vmax.f32 %v9002, %v8876
      %9004 = vmax.xlane.f32.xlu0 %v9003
      %v9005 = vpop.xlane.xlu0 %9004
      %v9006 = vmax.f32 %v8713, %v8715
      %v9007 = vmax.f32 %v9006, %v8879
      %9008 = vmax.xlane.f32.xlu0 %v9007
      %v9009 = vpop.xlane.xlu0 %9008
      %v9010 = vmax.f32 %v8719, %v8721
      %v9011 = vmax.f32 %v9010, %v8884
      %9012 = vmax.xlane.f32.xlu0 %v9011
      %v9013 = vpop.xlane.xlu0 %9012
      %v9014 = vmax.f32 %v8723, %v8725
      %v9015 = vmax.f32 %v9014, %v8887
      %9016 = vmax.xlane.f32.xlu0 %v9015
      %v9017 = vpop.xlane.xlu0 %9016
      %v9018 = vmax.f32 %v8729, %v8731
      %v9019 = vmax.f32 %v9018, %v8892
      %9020 = vmax.xlane.f32.xlu0 %v9019
      %v9021 = vpop.xlane.xlu0 %9020
      %v9022 = vmax.f32 %v8733, %v8735
      %v9023 = vmax.f32 %v9022, %v8895
      %9024 = vmax.xlane.f32.xlu0 %v9023
      %v9025 = vpop.xlane.xlu0 %9024
      %v9026 = vsub.f32 %v8579, %v8901
      %v9027 = vsub.f32 %v8581, %v8901
      %v9028 = vsub.f32 %v8772, %v8901
      %v9029 = vsub.f32 %v8583, %v8905
      %v9030 = vsub.f32 %v8585, %v8905
      %v9031 = vsub.f32 %v8775, %v8905
      %v9032 = vsub.f32 %v8589, %v8909
      %v9033 = vsub.f32 %v8591, %v8909
      %v9034 = vsub.f32 %v8780, %v8909
      %v9035 = vsub.f32 %v8593, %v8913
      %v9036 = vsub.f32 %v8595, %v8913
      %v9037 = vsub.f32 %v8783, %v8913
      %v9038 = vsub.f32 %v8599, %v8917
      %v9039 = vsub.f32 %v8601, %v8917
      %v9040 = vsub.f32 %v8788, %v8917
      %v9041 = vsub.f32 %v8603, %v8921
      %v9042 = vsub.f32 %v8605, %v8921
      %v9043 = vsub.f32 %v8791, %v8921
      %v9044 = vsub.f32 %v8609, %v8925
      %v9045 = vsub.f32 %v8611, %v8925
      %v9046 = vsub.f32 %v8796, %v8925
      %v9047 = vsub.f32 %v8613, %v8929
      %v9048 = vsub.f32 %v8615, %v8929
      %v9049 = vsub.f32 %v8799, %v8929
      %v9050 = vsub.f32 %v8619, %v8933
      %v9051 = vsub.f32 %v8621, %v8933
      %v9052 = vsub.f32 %v8804, %v8933
      %v9053 = vsub.f32 %v8623, %v8937
      %v9054 = vsub.f32 %v8625, %v8937
      %v9055 = vsub.f32 %v8807, %v8937
      %v9056 = vsub.f32 %v8629, %v8941
      %v9057 = vsub.f32 %v8631, %v8941
      %v9058 = vsub.f32 %v8812, %v8941
      %v9059 = vsub.f32 %v8633, %v8945
      %v9060 = vsub.f32 %v8635, %v8945
      %v9061 = vsub.f32 %v8815, %v8945
      %v9062 = vsub.f32 %v8639, %v8949
      %v9063 = vsub.f32 %v8641, %v8949
      %v9064 = vsub.f32 %v8820, %v8949
      %v9065 = vsub.f32 %v8643, %v8953
      %v9066 = vsub.f32 %v8645, %v8953
      %v9067 = vsub.f32 %v8823, %v8953
      %v9068 = vsub.f32 %v8649, %v8957
      %v9069 = vsub.f32 %v8651, %v8957
      %v9070 = vsub.f32 %v8828, %v8957
      %v9071 = vsub.f32 %v8653, %v8961
      %v9072 = vsub.f32 %v8655, %v8961
      %v9073 = vsub.f32 %v8831, %v8961
      %v9074 = vsub.f32 %v8659, %v8965
      %v9075 = vsub.f32 %v8661, %v8965
      %v9076 = vsub.f32 %v8836, %v8965
      %v9077 = vsub.f32 %v8663, %v8969
      %v9078 = vsub.f32 %v8665, %v8969
      %v9079 = vsub.f32 %v8839, %v8969
      %v9080 = vsub.f32 %v8669, %v8973
      %v9081 = vsub.f32 %v8671, %v8973
      %v9082 = vsub.f32 %v8844, %v8973
      %v9083 = vsub.f32 %v8673, %v8977
      %v9084 = vsub.f32 %v8675, %v8977
      %v9085 = vsub.f32 %v8847, %v8977
      %v9086 = vsub.f32 %v8679, %v8981
      %v9087 = vsub.f32 %v8681, %v8981
      %v9088 = vsub.f32 %v8852, %v8981
      %v9089 = vsub.f32 %v8683, %v8985
      %v9090 = vsub.f32 %v8685, %v8985
      %v9091 = vsub.f32 %v8855, %v8985
      %v9092 = vsub.f32 %v8689, %v8989
      %v9093 = vsub.f32 %v8691, %v8989
      %v9094 = vsub.f32 %v8860, %v8989
      %v9095 = vsub.f32 %v8693, %v8993
      %v9096 = vsub.f32 %v8695, %v8993
      %v9097 = vsub.f32 %v8863, %v8993
      %v9098 = vsub.f32 %v8699, %v8997
      %v9099 = vsub.f32 %v8701, %v8997
      %v9100 = vsub.f32 %v8868, %v8997
      %v9101 = vsub.f32 %v8703, %v9001
      %v9102 = vsub.f32 %v8705, %v9001
      %v9103 = vsub.f32 %v8871, %v9001
      %v9104 = vsub.f32 %v8709, %v9005
      %v9105 = vsub.f32 %v8711, %v9005
      %v9106 = vsub.f32 %v8876, %v9005
      %v9107 = vsub.f32 %v8713, %v9009
      %v9108 = vsub.f32 %v8715, %v9009
      %v9109 = vsub.f32 %v8879, %v9009
      %v9110 = vsub.f32 %v8719, %v9013
      %v9111 = vsub.f32 %v8721, %v9013
      %v9112 = vsub.f32 %v8884, %v9013
      %v9113 = vsub.f32 %v8723, %v9017
      %v9114 = vsub.f32 %v8725, %v9017
      %v9115 = vsub.f32 %v8887, %v9017
      %v9116 = vsub.f32 %v8729, %v9021
      %v9117 = vsub.f32 %v8731, %v9021
      %v9118 = vsub.f32 %v8892, %v9021
      %v9119 = vsub.f32 %v8733, %v9025
      %v9120 = vsub.f32 %v8735, %v9025
      %v9121 = vsub.f32 %v8895, %v9025
      %v9122 = vmul.f32 %v9026, 1.442695
      %v9123 = vpow.pop %v9122
      %v9124 = vmul.f32 %v9027, 1.442695
      %v9125 = vpow.pop %v9124
      %v9126 = vmul.f32 %v9028, 1.442695
      %v9127 = vpow.pop %v9126
      %v9128 = vmul.f32 %v9029, 1.442695
      %v9129 = vpow.pop %v9128
      %v9130 = vmul.f32 %v9030, 1.442695
      %v9131 = vpow.pop %v9130
      %v9132 = vmul.f32 %v9031, 1.442695
      %v9133 = vpow.pop %v9132
      %v9134 = vmul.f32 %v9032, 1.442695
      %v9135 = vpow.pop %v9134
      %v9136 = vmul.f32 %v9033, 1.442695
      %v9137 = vpow.pop %v9136
      %v9138 = vmul.f32 %v9034, 1.442695
      %v9139 = vpow.pop %v9138
      %v9140 = vmul.f32 %v9035, 1.442695
      %v9141 = vpow.pop %v9140
      %v9142 = vmul.f32 %v9036, 1.442695
      %v9143 = vpow.pop %v9142
      %v9144 = vmul.f32 %v9037, 1.442695
      %v9145 = vpow.pop %v9144
      %v9146 = vmul.f32 %v9038, 1.442695
      %v9147 = vpow.pop %v9146
      %v9148 = vmul.f32 %v9039, 1.442695
      %v9149 = vpow.pop %v9148
      %v9150 = vmul.f32 %v9040, 1.442695
      %v9151 = vpow.pop %v9150
      %v9152 = vmul.f32 %v9041, 1.442695
      %v9153 = vpow.pop %v9152
      %v9154 = vmul.f32 %v9042, 1.442695
      %v9155 = vpow.pop %v9154
      %v9156 = vmul.f32 %v9043, 1.442695
      %v9157 = vpow.pop %v9156
      %v9158 = vmul.f32 %v9044, 1.442695
      %v9159 = vpow.pop %v9158
      %v9160 = vmul.f32 %v9045, 1.442695
      %v9161 = vpow.pop %v9160
      %v9162 = vmul.f32 %v9046, 1.442695
      %v9163 = vpow.pop %v9162
      %v9164 = vmul.f32 %v9047, 1.442695
      %v9165 = vpow.pop %v9164
      %v9166 = vmul.f32 %v9048, 1.442695
      %v9167 = vpow.pop %v9166
      %v9168 = vmul.f32 %v9049, 1.442695
      %v9169 = vpow.pop %v9168
      %v9170 = vmul.f32 %v9050, 1.442695
      %v9171 = vpow.pop %v9170
      %v9172 = vmul.f32 %v9051, 1.442695
      %v9173 = vpow.pop %v9172
      %v9174 = vmul.f32 %v9052, 1.442695
      %v9175 = vpow.pop %v9174
      %v9176 = vmul.f32 %v9053, 1.442695
      %v9177 = vpow.pop %v9176
      %v9178 = vmul.f32 %v9054, 1.442695
      %v9179 = vpow.pop %v9178
      %v9180 = vmul.f32 %v9055, 1.442695
      %v9181 = vpow.pop %v9180
      %v9182 = vmul.f32 %v9056, 1.442695
      %v9183 = vpow.pop %v9182
      %v9184 = vmul.f32 %v9057, 1.442695
      %v9185 = vpow.pop %v9184
      %v9186 = vmul.f32 %v9058, 1.442695
      %v9187 = vpow.pop %v9186
      %v9188 = vmul.f32 %v9059, 1.442695
      %v9189 = vpow.pop %v9188
      %v9190 = vmul.f32 %v9060, 1.442695
      %v9191 = vpow.pop %v9190
      %v9192 = vmul.f32 %v9061, 1.442695
      %v9193 = vpow.pop %v9192
      %v9194 = vmul.f32 %v9062, 1.442695
      %v9195 = vpow.pop %v9194
      %v9196 = vmul.f32 %v9063, 1.442695
      %v9197 = vpow.pop %v9196
      %v9198 = vmul.f32 %v9064, 1.442695
      %v9199 = vpow.pop %v9198
      %v9200 = vmul.f32 %v9065, 1.442695
      %v9201 = vpow.pop %v9200
      %v9202 = vmul.f32 %v9066, 1.442695
      %v9203 = vpow.pop %v9202
      %v9204 = vmul.f32 %v9067, 1.442695
      %v9205 = vpow.pop %v9204
      %v9206 = vmul.f32 %v9068, 1.442695
      %v9207 = vpow.pop %v9206
      %v9208 = vmul.f32 %v9069, 1.442695
      %v9209 = vpow.pop %v9208
      %v9210 = vmul.f32 %v9070, 1.442695
      %v9211 = vpow.pop %v9210
      %v9212 = vmul.f32 %v9071, 1.442695
      %v9213 = vpow.pop %v9212
      %v9214 = vmul.f32 %v9072, 1.442695
      %v9215 = vpow.pop %v9214
      %v9216 = vmul.f32 %v9073, 1.442695
      %v9217 = vpow.pop %v9216
      %v9218 = vmul.f32 %v9074, 1.442695
      %v9219 = vpow.pop %v9218
      %v9220 = vmul.f32 %v9075, 1.442695
      %v9221 = vpow.pop %v9220
      %v9222 = vmul.f32 %v9076, 1.442695
      %v9223 = vpow.pop %v9222
      %v9224 = vmul.f32 %v9077, 1.442695
      %v9225 = vpow.pop %v9224
      %v9226 = vmul.f32 %v9078, 1.442695
      %v9227 = vpow.pop %v9226
      %v9228 = vmul.f32 %v9079, 1.442695
      %v9229 = vpow.pop %v9228
      %v9230 = vmul.f32 %v9080, 1.442695
      %v9231 = vpow.pop %v9230
      %v9232 = vmul.f32 %v9081, 1.442695
      %v9233 = vpow.pop %v9232
      %v9234 = vmul.f32 %v9082, 1.442695
      %v9235 = vpow.pop %v9234
      %v9236 = vmul.f32 %v9083, 1.442695
      %v9237 = vpow.pop %v9236
      %v9238 = vmul.f32 %v9084, 1.442695
      %v9239 = vpow.pop %v9238
      %v9240 = vmul.f32 %v9085, 1.442695
      %v9241 = vpow.pop %v9240
      %v9242 = vmul.f32 %v9086, 1.442695
      %v9243 = vpow.pop %v9242
      %v9244 = vmul.f32 %v9087, 1.442695
      %v9245 = vpow.pop %v9244
      %v9246 = vmul.f32 %v9088, 1.442695
      %v9247 = vpow.pop %v9246
      %v9248 = vmul.f32 %v9089, 1.442695
      %v9249 = vpow.pop %v9248
      %v9250 = vmul.f32 %v9090, 1.442695
      %v9251 = vpow.pop %v9250
      %v9252 = vmul.f32 %v9091, 1.442695
      %v9253 = vpow.pop %v9252
      %v9254 = vmul.f32 %v9092, 1.442695
      %v9255 = vpow.pop %v9254
      %v9256 = vmul.f32 %v9093, 1.442695
      %v9257 = vpow.pop %v9256
      %v9258 = vmul.f32 %v9094, 1.442695
      %v9259 = vpow.pop %v9258
      %v9260 = vmul.f32 %v9095, 1.442695
      %v9261 = vpow.pop %v9260
      %v9262 = vmul.f32 %v9096, 1.442695
      %v9263 = vpow.pop %v9262
      %v9264 = vmul.f32 %v9097, 1.442695
      %v9265 = vpow.pop %v9264
      %v9266 = vmul.f32 %v9098, 1.442695
      %v9267 = vpow.pop %v9266
      %v9268 = vmul.f32 %v9099, 1.442695
      %v9269 = vpow.pop %v9268
      %v9270 = vmul.f32 %v9100, 1.442695
      %v9271 = vpow.pop %v9270
      %v9272 = vmul.f32 %v9101, 1.442695
      %v9273 = vpow.pop %v9272
      %v9274 = vmul.f32 %v9102, 1.442695
      %v9275 = vpow.pop %v9274
      %v9276 = vmul.f32 %v9103, 1.442695
      %v9277 = vpow.pop %v9276
      %v9278 = vmul.f32 %v9104, 1.442695
      %v9279 = vpow.pop %v9278
      %v9280 = vmul.f32 %v9105, 1.442695
      %v9281 = vpow.pop %v9280
      %v9282 = vmul.f32 %v9106, 1.442695
      %v9283 = vpow.pop %v9282
      %v9284 = vmul.f32 %v9107, 1.442695
      %v9285 = vpow.pop %v9284
      %v9286 = vmul.f32 %v9108, 1.442695
      %v9287 = vpow.pop %v9286
      %v9288 = vmul.f32 %v9109, 1.442695
      %v9289 = vpow.pop %v9288
      %v9290 = vmul.f32 %v9110, 1.442695
      %v9291 = vpow.pop %v9290
      %v9292 = vmul.f32 %v9111, 1.442695
      %v9293 = vpow.pop %v9292
      %v9294 = vmul.f32 %v9112, 1.442695
      %v9295 = vpow.pop %v9294
      %v9296 = vmul.f32 %v9113, 1.442695
      %v9297 = vpow.pop %v9296
      %v9298 = vmul.f32 %v9114, 1.442695
      %v9299 = vpow.pop %v9298
      %v9300 = vmul.f32 %v9115, 1.442695
      %v9301 = vpow.pop %v9300
      %v9302 = vmul.f32 %v9116, 1.442695
      %v9303 = vpow.pop %v9302
      %v9304 = vmul.f32 %v9117, 1.442695
      %v9305 = vpow.pop %v9304
      %v9306 = vmul.f32 %v9118, 1.442695
      %v9307 = vpow.pop %v9306
      %v9308 = vmul.f32 %v9119, 1.442695
      %v9309 = vpow.pop %v9308
      %v9310 = vmul.f32 %v9120, 1.442695
      %v9311 = vpow.pop %v9310
      %v9312 = vmul.f32 %v9121, 1.442695
      %v9313 = vpow.pop %v9312
      %v9314 = vadd.f32 %v9123, %v9125
      %v9315 = vadd.f32 %v9314, %v9127
      %9316 = vadd.xlane.f32.xlu0 %v9315
      %v9317 = vpop.xlane.xlu0 %9316
      %v9318 = vadd.f32 %v9129, %v9131
      %v9319 = vadd.f32 %v9318, %v9133
      %9320 = vadd.xlane.f32.xlu0 %v9319
      %v9321 = vpop.xlane.xlu0 %9320
      %v9322 = vadd.f32 %v9135, %v9137
      %v9323 = vadd.f32 %v9322, %v9139
      %9324 = vadd.xlane.f32.xlu0 %v9323
      %v9325 = vpop.xlane.xlu0 %9324
      %v9326 = vadd.f32 %v9141, %v9143
      %v9327 = vadd.f32 %v9326, %v9145
      %9328 = vadd.xlane.f32.xlu0 %v9327
      %v9329 = vpop.xlane.xlu0 %9328
      %v9330 = vadd.f32 %v9147, %v9149
      %v9331 = vadd.f32 %v9330, %v9151
      %9332 = vadd.xlane.f32.xlu0 %v9331
      %v9333 = vpop.xlane.xlu0 %9332
      %v9334 = vadd.f32 %v9153, %v9155
      %v9335 = vadd.f32 %v9334, %v9157
      %9336 = vadd.xlane.f32.xlu0 %v9335
      %v9337 = vpop.xlane.xlu0 %9336
      %v9338 = vadd.f32 %v9159, %v9161
      %v9339 = vadd.f32 %v9338, %v9163
      %9340 = vadd.xlane.f32.xlu0 %v9339
      %v9341 = vpop.xlane.xlu0 %9340
      %v9342 = vadd.f32 %v9165, %v9167
      %v9343 = vadd.f32 %v9342, %v9169
      %9344 = vadd.xlane.f32.xlu0 %v9343
      %v9345 = vpop.xlane.xlu0 %9344
      %v9346 = vadd.f32 %v9171, %v9173
      %v9347 = vadd.f32 %v9346, %v9175
      %9348 = vadd.xlane.f32.xlu0 %v9347
      %v9349 = vpop.xlane.xlu0 %9348
      %v9350 = vadd.f32 %v9177, %v9179
      %v9351 = vadd.f32 %v9350, %v9181
      %9352 = vadd.xlane.f32.xlu0 %v9351
      %v9353 = vpop.xlane.xlu0 %9352
      %v9354 = vadd.f32 %v9183, %v9185
      %v9355 = vadd.f32 %v9354, %v9187
      %9356 = vadd.xlane.f32.xlu0 %v9355
      %v9357 = vpop.xlane.xlu0 %9356
      %v9358 = vadd.f32 %v9189, %v9191
      %v9359 = vadd.f32 %v9358, %v9193
      %9360 = vadd.xlane.f32.xlu0 %v9359
      %v9361 = vpop.xlane.xlu0 %9360
      %v9362 = vadd.f32 %v9195, %v9197
      %v9363 = vadd.f32 %v9362, %v9199
      %9364 = vadd.xlane.f32.xlu0 %v9363
      %v9365 = vpop.xlane.xlu0 %9364
      %v9366 = vadd.f32 %v9201, %v9203
      %v9367 = vadd.f32 %v9366, %v9205
      %9368 = vadd.xlane.f32.xlu0 %v9367
      %v9369 = vpop.xlane.xlu0 %9368
      %v9370 = vadd.f32 %v9207, %v9209
      %v9371 = vadd.f32 %v9370, %v9211
      %9372 = vadd.xlane.f32.xlu0 %v9371
      %v9373 = vpop.xlane.xlu0 %9372
      %v9374 = vadd.f32 %v9213, %v9215
      %v9375 = vadd.f32 %v9374, %v9217
      %9376 = vadd.xlane.f32.xlu0 %v9375
      %v9377 = vpop.xlane.xlu0 %9376
      %v9378 = vadd.f32 %v9219, %v9221
      %v9379 = vadd.f32 %v9378, %v9223
      %9380 = vadd.xlane.f32.xlu0 %v9379
      %v9381 = vpop.xlane.xlu0 %9380
      %v9382 = vadd.f32 %v9225, %v9227
      %v9383 = vadd.f32 %v9382, %v9229
      %9384 = vadd.xlane.f32.xlu0 %v9383
      %v9385 = vpop.xlane.xlu0 %9384
      %v9386 = vadd.f32 %v9231, %v9233
      %v9387 = vadd.f32 %v9386, %v9235
      %9388 = vadd.xlane.f32.xlu0 %v9387
      %v9389 = vpop.xlane.xlu0 %9388
      %v9390 = vadd.f32 %v9237, %v9239
      %v9391 = vadd.f32 %v9390, %v9241
      %9392 = vadd.xlane.f32.xlu0 %v9391
      %v9393 = vpop.xlane.xlu0 %9392
      %v9394 = vadd.f32 %v9243, %v9245
      %v9395 = vadd.f32 %v9394, %v9247
      %9396 = vadd.xlane.f32.xlu0 %v9395
      %v9397 = vpop.xlane.xlu0 %9396
      %v9398 = vadd.f32 %v9249, %v9251
      %v9399 = vadd.f32 %v9398, %v9253
      %9400 = vadd.xlane.f32.xlu0 %v9399
      %v9401 = vpop.xlane.xlu0 %9400
      %v9402 = vadd.f32 %v9255, %v9257
      %v9403 = vadd.f32 %v9402, %v9259
      %9404 = vadd.xlane.f32.xlu0 %v9403
      %v9405 = vpop.xlane.xlu0 %9404
      %v9406 = vadd.f32 %v9261, %v9263
      %v9407 = vadd.f32 %v9406, %v9265
      %9408 = vadd.xlane.f32.xlu0 %v9407
      %v9409 = vpop.xlane.xlu0 %9408
      %v9410 = vadd.f32 %v9267, %v9269
      %v9411 = vadd.f32 %v9410, %v9271
      %9412 = vadd.xlane.f32.xlu0 %v9411
      %v9413 = vpop.xlane.xlu0 %9412
      %v9414 = vadd.f32 %v9273, %v9275
      %v9415 = vadd.f32 %v9414, %v9277
      %9416 = vadd.xlane.f32.xlu0 %v9415
      %v9417 = vpop.xlane.xlu0 %9416
      %v9418 = vadd.f32 %v9279, %v9281
      %v9419 = vadd.f32 %v9418, %v9283
      %9420 = vadd.xlane.f32.xlu0 %v9419
      %v9421 = vpop.xlane.xlu0 %9420
      %v9422 = vadd.f32 %v9285, %v9287
      %v9423 = vadd.f32 %v9422, %v9289
      %9424 = vadd.xlane.f32.xlu0 %v9423
      %v9425 = vpop.xlane.xlu0 %9424
      %v9426 = vadd.f32 %v9291, %v9293
      %v9427 = vadd.f32 %v9426, %v9295
      %9428 = vadd.xlane.f32.xlu0 %v9427
      %v9429 = vpop.xlane.xlu0 %9428
      %v9430 = vadd.f32 %v9297, %v9299
      %v9431 = vadd.f32 %v9430, %v9301
      %9432 = vadd.xlane.f32.xlu0 %v9431
      %v9433 = vpop.xlane.xlu0 %9432
      %v9434 = vadd.f32 %v9303, %v9305
      %v9435 = vadd.f32 %v9434, %v9307
      %9436 = vadd.xlane.f32.xlu0 %v9435
      %v9437 = vpop.xlane.xlu0 %9436
      %v9438 = vadd.f32 %v9309, %v9311
      %v9439 = vadd.f32 %v9438, %v9313
      %9440 = vadd.xlane.f32.xlu0 %v9439
      %v9441 = vpop.xlane.xlu0 %9440
      %v9442 = vld [vmem:[%s7] sm:$0xff]
      %v9443 = vld [vmem:[%s7 + $0x8] sm:$0xff]
      %v9444 = vld [vmem:[%s7 + $0x10] sm:$0xff]
      %v9445 = vld [vmem:[%s7 + $0x18] sm:$0xff]
      %v9446 = vld [vmem:[%s7 + $0x20] sm:$0xff]
      %v9447 = vld [vmem:[%s7 + $0x28] sm:$0xff]
      %v9448 = vld [vmem:[%s7 + $0x30] sm:$0xff]
      %v9449 = vld [vmem:[%s7 + $0x38] sm:$0xff]
      %v9450 = vld [vmem:[%s7 + $0x40] sm:$0xff]
      %v9451 = vld [vmem:[%s7 + $0x48] sm:$0xff]
      %v9452 = vld [vmem:[%s7 + $0x50] sm:$0xff]
      %v9453 = vld [vmem:[%s7 + $0x58] sm:$0xff]
      %v9454 = vld [vmem:[%s7 + $0x60] sm:$0xff]
      %v9455 = vld [vmem:[%s7 + $0x68] sm:$0xff]
      %v9456 = vld [vmem:[%s7 + $0x70] sm:$0xff]
      %v9457 = vld [vmem:[%s7 + $0x78] sm:$0xff]
      %v9458 = vld [vmem:[%s7 + $0x80] sm:$0xff]
      %v9459 = vld [vmem:[%s7 + $0x88] sm:$0xff]
      %v9460 = vld [vmem:[%s7 + $0x90] sm:$0xff]
      %v9461 = vld [vmem:[%s7 + $0x98] sm:$0xff]
      %v9462 = vld [vmem:[%s7 + $0xa0] sm:$0xff]
      %v9463 = vld [vmem:[%s7 + $0xa8] sm:$0xff]
      %v9464 = vld [vmem:[%s7 + $0xb0] sm:$0xff]
      %v9465 = vld [vmem:[%s7 + $0xb8] sm:$0xff]
      %v9466 = vld [vmem:[%s7 + $0xc0] sm:$0xff]
      %v9467 = vld [vmem:[%s7 + $0xc8] sm:$0xff]
      %v9468 = vld [vmem:[%s7 + $0xd0] sm:$0xff]
      %v9469 = vld [vmem:[%s7 + $0xd8] sm:$0xff]
      %v9470 = vld [vmem:[%s7 + $0xe0] sm:$0xff]
      %v9471 = vld [vmem:[%s7 + $0xe8] sm:$0xff]
      %v9472 = vld [vmem:[%s7 + $0xf0] sm:$0xff]
      %v9473 = vld [vmem:[%s7 + $0xf8] sm:$0xff]
      %v9474 = vld [vmem:[%s7 + $0x100] sm:$0xff]
      %v9475 = vld [vmem:[%s7 + $0x108] sm:$0xff]
      %v9476 = vld [vmem:[%s7 + $0x110] sm:$0xff]
      %v9477 = vld [vmem:[%s7 + $0x118] sm:$0xff]
      %v9478 = vld [vmem:[%s7 + $0x120] sm:$0xff]
      %v9479 = vld [vmem:[%s7 + $0x128] sm:$0xff]
      %v9480 = vld [vmem:[%s7 + $0x130] sm:$0xff]
      %v9481 = vld [vmem:[%s7 + $0x138] sm:$0xff]
      %v9482 = vld [vmem:[%s7 + $0x140] sm:$0xff]
      %v9483 = vld [vmem:[%s7 + $0x148] sm:$0xff]
      %v9484 = vld [vmem:[%s7 + $0x150] sm:$0xff]
      %v9485 = vld [vmem:[%s7 + $0x158] sm:$0xff]
      %v9486 = vld [vmem:[%s7 + $0x160] sm:$0xff]
      %v9487 = vld [vmem:[%s7 + $0x168] sm:$0xff]
      %v9488 = vld [vmem:[%s7 + $0x170] sm:$0xff]
      %v9489 = vld [vmem:[%s7 + $0x178] sm:$0xff]
      %9490 = vmatprep.subr.mxu0 0.0
      %9491 = vmatpush1.msra.mxu0 %v9442
      %9492 = vmatprep.subr.mxu0 0.0
      %9493 = vmatpush1.msra.mxu0 %v9443
      %9494 = vmatprep.subr.mxu0 0.0
      %9495 = vmatpush1.msra.mxu0 %v9444
      %9496 = vmatprep.subr.mxu0 0.0
      %9497 = vmatpush1.msra.mxu0 %v9445
      %9498 = vmatprep.subr.mxu0 0.0
      %9499 = vmatpush1.msra.mxu0 %v9446
      %9500 = vmatprep.subr.mxu0 0.0
      %9501 = vmatpush1.msra.mxu0 %v9447
      %9502 = vmatprep.subr.mxu0 0.0
      %9503 = vmatpush1.msra.mxu0 %v9448
      %9504 = vmatprep.subr.mxu0 0.0
      %9505 = vmatpush1.msra.mxu0 %v9449
      %9506 = vmatprep.subr.mxu0 0.0
      %9507 = vmatpush1.msra.mxu0 %v9450
      %9508 = vmatprep.subr.mxu0 0.0
      %9509 = vmatpush1.msra.mxu0 %v9451
      %9510 = vmatprep.subr.mxu0 0.0
      %9511 = vmatpush1.msra.mxu0 %v9452
      %9512 = vmatprep.subr.mxu0 0.0
      %9513 = vmatpush1.msra.mxu0 %v9453
      %9514 = vmatprep.subr.mxu0 0.0
      %9515 = vmatpush1.msra.mxu0 %v9454
      %9516 = vmatprep.subr.mxu0 0.0
      %9517 = vmatpush1.msra.mxu0 %v9455
      %9518 = vmatprep.subr.mxu0 0.0
      %9519 = vmatpush1.msra.mxu0 %v9456
      %9520 = vmatprep.subr.mxu0 0.0
      %9521 = vmatpush1.msra.mxu0 %v9457
      %9522 = vmatprep.subr.mxu0 0.0
      %9523 = vmatpush1.msra.mxu0 %v9458
      %9524 = vmatprep.subr.mxu0 0.0
      %9525 = vmatpush1.msra.mxu0 %v9459
      %9526 = vmatprep.subr.mxu0 0.0
      %9527 = vmatpush1.msra.mxu0 %v9460
      %9528 = vmatprep.subr.mxu0 0.0
      %9529 = vmatpush1.msra.mxu0 %v9461
      %9530 = vmatprep.subr.mxu0 0.0
      %9531 = vmatpush1.msra.mxu0 %v9462
      %9532 = vmatprep.subr.mxu0 0.0
      %9533 = vmatpush1.msra.mxu0 %v9463
      %9534 = vmatprep.subr.mxu0 0.0
      %9535 = vmatpush1.msra.mxu0 %v9464
      %9536 = vmatprep.subr.mxu0 0.0
      %9537 = vmatpush1.msra.mxu0 %v9465
      %9538 = vmatprep.subr.mxu0 0.0
      %9539 = vmatpush1.msra.mxu0 %v9466
      %9540 = vmatprep.subr.mxu0 0.0
      %9541 = vmatpush1.msra.mxu0 %v9467
      %9542 = vmatprep.subr.mxu0 0.0
      %9543 = vmatpush1.msra.mxu0 %v9468
      %9544 = vmatprep.subr.mxu0 0.0
      %9545 = vmatpush1.msra.mxu0 %v9469
      %9546 = vmatprep.subr.mxu0 0.0
      %9547 = vmatpush1.msra.mxu0 %v9470
      %9548 = vmatprep.subr.mxu0 0.0
      %9549 = vmatpush1.msra.mxu0 %v9471
      %9550 = vmatprep.subr.mxu0 0.0
      %9551 = vmatpush1.msra.mxu0 %v9472
      %9552 = vmatprep.subr.mxu0 0.0
      %9553 = vmatpush1.msra.mxu0 %v9473
      %9554 = vmatprep.mubr.f32.mxu0 %v9125
      %9555 = vmatmul.mubr.f32.gmra.mrb[0].mxu0 %v9123
      %v9556 = vpop.f32.mrb[0].mxu0
      %v9557 = vadd.f32 0.0, %v9556
      %v9558 = vpop.f32.mrb[0].mxu0
      %9559 = vmatprep.mubr.f32.mxu0 %v9131
      %9560 = vmatmul.mubr.f32.gmra.mrb[0].mxu0 %v9129
      %v9561 = vpop.f32.mrb[0].mxu0
      %v9562 = vadd.f32 0.0, %v9561
      %v9563 = vpop.f32.mrb[0].mxu0
      %9564 = vmatprep.mubr.f32.mxu0 %v9137
      %9565 = vmatmul.mubr.f32.gmra.mrb[0].mxu0 %v9135
      %v9566 = vpop.f32.mrb[0].mxu0
      %v9567 = vadd.f32 0.0, %v9566
      %v9568 = vpop.f32.mrb[0].mxu0
      %9569 = vmatprep.mubr.f32.mxu0 %v9143
      %9570 = vmatmul.mubr.f32.gmra.mrb[0].mxu0 %v9141
      %v9571 = vpop.f32.mrb[0].mxu0
      %v9572 = vadd.f32 0.0, %v9571
      %v9573 = vpop.f32.mrb[0].mxu0
      %9574 = vmatprep.mubr.f32.mxu0 %v9149
      %9575 = vmatmul.mubr.f32.gmra.mrb[0].mxu0 %v9147
      %v9576 = vpop.f32.mrb[0].mxu0
      %v9577 = vadd.f32 0.0, %v9576
      %v9578 = vpop.f32.mrb[0].mxu0
      %9579 = vmatprep.mubr.f32.mxu0 %v9155
      %9580 = vmatmul.mubr.f32.gmra.mrb[0].mxu0 %v9153
      %v9581 = vpop.f32.mrb[0].mxu0
      %v9582 = vadd.f32 0.0, %v9581
      %v9583 = vpop.f32.mrb[0].mxu0
      %9584 = vmatprep.mubr.f32.mxu0 %v9161
      %9585 = vmatmul.mubr.f32.gmra.mrb[0].mxu0 %v9159
      %v9586 = vpop.f32.mrb[0].mxu0
      %v9587 = vadd.f32 0.0, %v9586
      %v9588 = vpop.f32.mrb[0].mxu0
      %9589 = vmatprep.mubr.f32.mxu0 %v9167
      %9590 = vmatmul.mubr.f32.gmra.mrb[0].mxu0 %v9165
      %v9591 = vpop.f32.mrb[0].mxu0
      %v9592 = vadd.f32 0.0, %v9591
      %v9593 = vpop.f32.mrb[0].mxu0
      %9594 = vmatprep.mubr.f32.mxu0 %v9173
      %9595 = vmatmul.mubr.f32.gmra.mrb[0].mxu0 %v9171
      %v9596 = vpop.f32.mrb[0].mxu0
      %v9597 = vadd.f32 0.0, %v9596
      %v9598 = vpop.f32.mrb[0].mxu0
      %9599 = vmatprep.mubr.f32.mxu0 %v9179
      %9600 = vmatmul.mubr.f32.gmra.mrb[0].mxu0 %v9177
      %v9601 = vpop.f32.mrb[0].mxu0
      %v9602 = vadd.f32 0.0, %v9601
      %v9603 = vpop.f32.mrb[0].mxu0
      %9604 = vmatprep.mubr.f32.mxu0 %v9185
      %9605 = vmatmul.mubr.f32.gmra.mrb[0].mxu0 %v9183
      %v9606 = vpop.f32.mrb[0].mxu0
      %v9607 = vadd.f32 0.0, %v9606
      %v9608 = vpop.f32.mrb[0].mxu0
      %9609 = vmatprep.mubr.f32.mxu0 %v9191
      %9610 = vmatmul.mubr.f32.gmra.mrb[0].mxu0 %v9189
      %v9611 = vpop.f32.mrb[0].mxu0
      %v9612 = vadd.f32 0.0, %v9611
      %v9613 = vpop.f32.mrb[0].mxu0
      %9614 = vmatprep.mubr.f32.mxu0 %v9197
      %9615 = vmatmul.mubr.f32.gmra.mrb[0].mxu0 %v9195
      %v9616 = vpop.f32.mrb[0].mxu0
      %v9617 = vadd.f32 0.0, %v9616
      %v9618 = vpop.f32.mrb[0].mxu0
      %9619 = vmatprep.mubr.f32.mxu0 %v9203
      %9620 = vmatmul.mubr.f32.gmra.mrb[0].mxu0 %v9201
      %v9621 = vpop.f32.mrb[0].mxu0
      %v9622 = vadd.f32 0.0, %v9621
      %v9623 = vpop.f32.mrb[0].mxu0
      %9624 = vmatprep.mubr.f32.mxu0 %v9209
      %9625 = vmatmul.mubr.f32.gmra.mrb[0].mxu0 %v9207
      %v9626 = vpop.f32.mrb[0].mxu0
      %v9627 = vadd.f32 0.0, %v9626
      %v9628 = vpop.f32.mrb[0].mxu0
      %9629 = vmatprep.mubr.f32.mxu0 %v9215
      %9630 = vmatmul.mubr.f32.gmra.mrb[0].mxu0 %v9213
      %v9631 = vpop.f32.mrb[0].mxu0
      %v9632 = vadd.f32 0.0, %v9631
      %v9633 = vpop.f32.mrb[0].mxu0
      %9634 = vmatprep.mubr.f32.mxu0 %v9221
      %9635 = vmatmul.mubr.f32.gmra.mrb[0].mxu0 %v9219
      %v9636 = vpop.f32.mrb[0].mxu0
      %v9637 = vadd.f32 0.0, %v9636
      %v9638 = vpop.f32.mrb[0].mxu0
      %9639 = vmatprep.mubr.f32.mxu0 %v9227
      %9640 = vmatmul.mubr.f32.gmra.mrb[0].mxu0 %v9225
      %v9641 = vpop.f32.mrb[0].mxu0
      %v9642 = vadd.f32 0.0, %v9641
      %v9643 = vpop.f32.mrb[0].mxu0
      %9644 = vmatprep.mubr.f32.mxu0 %v9233
      %9645 = vmatmul.mubr.f32.gmra.mrb[0].mxu0 %v9231
      %v9646 = vpop.f32.mrb[0].mxu0
      %v9647 = vadd.f32 0.0, %v9646
      %v9648 = vpop.f32.mrb[0].mxu0
      %9649 = vmatprep.mubr.f32.mxu0 %v9239
      %9650 = vmatmul.mubr.f32.gmra.mrb[0].mxu0 %v9237
      %v9651 = vpop.f32.mrb[0].mxu0
      %v9652 = vadd.f32 0.0, %v9651
      %v9653 = vpop.f32.mrb[0].mxu0
      %9654 = vmatprep.mubr.f32.mxu0 %v9245
      %9655 = vmatmul.mubr.f32.gmra.mrb[0].mxu0 %v9243
      %v9656 = vpop.f32.mrb[0].mxu0
      %v9657 = vadd.f32 0.0, %v9656
      %v9658 = vpop.f32.mrb[0].mxu0
      %9659 = vmatprep.mubr.f32.mxu0 %v9251
      %9660 = vmatmul.mubr.f32.gmra.mrb[0].mxu0 %v9249
      %v9661 = vpop.f32.mrb[0].mxu0
      %v9662 = vadd.f32 0.0, %v9661
      %v9663 = vpop.f32.mrb[0].mxu0
      %9664 = vmatprep.mubr.f32.mxu0 %v9257
      %9665 = vmatmul.mubr.f32.gmra.mrb[0].mxu0 %v9255
      %v9666 = vpop.f32.mrb[0].mxu0
      %v9667 = vadd.f32 0.0, %v9666
      %v9668 = vpop.f32.mrb[0].mxu0
      %9669 = vmatprep.mubr.f32.mxu0 %v9263
      %9670 = vmatmul.mubr.f32.gmra.mrb[0].mxu0 %v9261
      %v9671 = vpop.f32.mrb[0].mxu0
      %v9672 = vadd.f32 0.0, %v9671
      %v9673 = vpop.f32.mrb[0].mxu0
      %9674 = vmatprep.mubr.f32.mxu0 %v9269
      %9675 = vmatmul.mubr.f32.gmra.mrb[0].mxu0 %v9267
      %v9676 = vpop.f32.mrb[0].mxu0
      %v9677 = vadd.f32 0.0, %v9676
      %v9678 = vpop.f32.mrb[0].mxu0
      %9679 = vmatprep.mubr.f32.mxu0 %v9275
      %9680 = vmatmul.mubr.f32.gmra.mrb[0].mxu0 %v9273
      %v9681 = vpop.f32.mrb[0].mxu0
      %v9682 = vadd.f32 0.0, %v9681
      %v9683 = vpop.f32.mrb[0].mxu0
      %9684 = vmatprep.mubr.f32.mxu0 %v9281
      %9685 = vmatmul.mubr.f32.gmra.mrb[0].mxu0 %v9279
      %v9686 = vpop.f32.mrb[0].mxu0
      %v9687 = vadd.f32 0.0, %v9686
      %v9688 = vpop.f32.mrb[0].mxu0
      %9689 = vmatprep.mubr.f32.mxu0 %v9287
      %9690 = vmatmul.mubr.f32.gmra.mrb[0].mxu0 %v9285
      %v9691 = vpop.f32.mrb[0].mxu0
      %v9692 = vadd.f32 0.0, %v9691
      %v9693 = vpop.f32.mrb[0].mxu0
      %9694 = vmatprep.mubr.f32.mxu0 %v9293
      %9695 = vmatmul.mubr.f32.gmra.mrb[0].mxu0 %v9291
      %v9696 = vpop.f32.mrb[0].mxu0
      %v9697 = vadd.f32 0.0, %v9696
      %v9698 = vpop.f32.mrb[0].mxu0
      %9699 = vmatprep.mubr.f32.mxu0 %v9299
      %9700 = vmatmul.mubr.f32.gmra.mrb[0].mxu0 %v9297
      %v9701 = vpop.f32.mrb[0].mxu0
      %v9702 = vadd.f32 0.0, %v9701
      %v9703 = vpop.f32.mrb[0].mxu0
      %9704 = vmatprep.mubr.f32.mxu0 %v9305
      %9705 = vmatmul.mubr.f32.gmra.mrb[0].mxu0 %v9303
      %v9706 = vpop.f32.mrb[0].mxu0
      %v9707 = vadd.f32 0.0, %v9706
      %v9708 = vpop.f32.mrb[0].mxu0
      %9709 = vmatprep.mubr.f32.mxu0 %v9311
      %9710 = vmatmul.mubr.f32.gmra.mrb[0].mxu0 %v9309
      %v9711 = vpop.f32.mrb[0].mxu0
      %v9712 = vadd.f32 0.0, %v9711
      %v9713 = vpop.f32.mrb[0].mxu0
      %9714 = vdwg.mxu0
      %9715 = vmatprep.subr.mxu0 0.0
      %9716 = vmatpush1.msra.mxu0 %v9474
      %9717 = vmatprep.subr.mxu0 0.0
      %9718 = vmatpush1.msra.mxu0 %v9475
      %9719 = vmatprep.subr.mxu0 0.0
      %9720 = vmatpush1.msra.mxu0 %v9476
      %9721 = vmatprep.subr.mxu0 0.0
      %9722 = vmatpush1.msra.mxu0 %v9477
      %9723 = vmatprep.subr.mxu0 0.0
      %9724 = vmatpush1.msra.mxu0 %v9478
      %9725 = vmatprep.subr.mxu0 0.0
      %9726 = vmatpush1.msra.mxu0 %v9479
      %9727 = vmatprep.subr.mxu0 0.0
      %9728 = vmatpush1.msra.mxu0 %v9480
      %9729 = vmatprep.subr.mxu0 0.0
      %9730 = vmatpush1.msra.mxu0 %v9481
      %9731 = vmatprep.subr.mxu0 0.0
      %9732 = vmatpush1.msra.mxu0 %v9482
      %9733 = vmatprep.subr.mxu0 0.0
      %9734 = vmatpush1.msra.mxu0 %v9483
      %9735 = vmatprep.subr.mxu0 0.0
      %9736 = vmatpush1.msra.mxu0 %v9484
      %9737 = vmatprep.subr.mxu0 0.0
      %9738 = vmatpush1.msra.mxu0 %v9485
      %9739 = vmatprep.subr.mxu0 0.0
      %9740 = vmatpush1.msra.mxu0 %v9486
      %9741 = vmatprep.subr.mxu0 0.0
      %9742 = vmatpush1.msra.mxu0 %v9487
      %9743 = vmatprep.subr.mxu0 0.0
      %9744 = vmatpush1.msra.mxu0 %v9488
      %9745 = vmatprep.subr.mxu0 0.0
      %9746 = vmatpush1.msra.mxu0 %v9489
      %9747 = vmatprep.subr.mxu0 0.0
      %9748 = vmatpush1.msra.mxu0 0.0
      %9749 = vmatprep.subr.mxu0 0.0
      %9750 = vmatpush1.msra.mxu0 0.0
      %9751 = vmatprep.subr.mxu0 0.0
      %9752 = vmatpush1.msra.mxu0 0.0
      %9753 = vmatprep.subr.mxu0 0.0
      %9754 = vmatpush1.msra.mxu0 0.0
      %9755 = vmatprep.subr.mxu0 0.0
      %9756 = vmatpush1.msra.mxu0 0.0
      %9757 = vmatprep.subr.mxu0 0.0
      %9758 = vmatpush1.msra.mxu0 0.0
      %9759 = vmatprep.subr.mxu0 0.0
      %9760 = vmatpush1.msra.mxu0 0.0
      %9761 = vmatprep.subr.mxu0 0.0
      %9762 = vmatpush1.msra.mxu0 0.0
      %9763 = vmatprep.subr.mxu0 0.0
      %9764 = vmatpush1.msra.mxu0 0.0
      %9765 = vmatprep.subr.mxu0 0.0
      %9766 = vmatpush1.msra.mxu0 0.0
      %9767 = vmatprep.subr.mxu0 0.0
      %9768 = vmatpush1.msra.mxu0 0.0
      %9769 = vmatprep.subr.mxu0 0.0
      %9770 = vmatpush1.msra.mxu0 0.0
      %9771 = vmatprep.subr.mxu0 0.0
      %9772 = vmatpush1.msra.mxu0 0.0
      %9773 = vmatprep.subr.mxu0 0.0
      %9774 = vmatpush1.msra.mxu0 0.0
      %9775 = vmatprep.subr.mxu0 0.0
      %9776 = vmatpush1.msra.mxu0 0.0
      %9777 = vmatprep.subr.mxu0 0.0
      %9778 = vmatpush1.msra.mxu0 0.0
      %9779 = vmatprep.mubr.f32.mxu0 0.0
      %9780 = vmatmul.mubr.f32.gmra.mrb[0].mxu0 %v9127
      %v9781 = vpop.f32.mrb[0].mxu0
      %v9782 = vadd.f32 %v9557, %v9781
      %v9783 = vpop.f32.mrb[0].mxu0
      %9784 = vmatprep.mubr.f32.mxu0 0.0
      %9785 = vmatmul.mubr.f32.gmra.mrb[0].mxu0 %v9133
      %v9786 = vpop.f32.mrb[0].mxu0
      %v9787 = vadd.f32 %v9562, %v9786
      %v9788 = vpop.f32.mrb[0].mxu0
      %9789 = vmatprep.mubr.f32.mxu0 0.0
      %9790 = vmatmul.mubr.f32.gmra.mrb[0].mxu0 %v9139
      %v9791 = vpop.f32.mrb[0].mxu0
      %v9792 = vadd.f32 %v9567, %v9791
      %v9793 = vpop.f32.mrb[0].mxu0
      %9794 = vmatprep.mubr.f32.mxu0 0.0
      %9795 = vmatmul.mubr.f32.gmra.mrb[0].mxu0 %v9145
      %v9796 = vpop.f32.mrb[0].mxu0
      %v9797 = vadd.f32 %v9572, %v9796
      %v9798 = vpop.f32.mrb[0].mxu0
      %9799 = vmatprep.mubr.f32.mxu0 0.0
      %9800 = vmatmul.mubr.f32.gmra.mrb[0].mxu0 %v9151
      %v9801 = vpop.f32.mrb[0].mxu0
      %v9802 = vadd.f32 %v9577, %v9801
      %v9803 = vpop.f32.mrb[0].mxu0
      %9804 = vmatprep.mubr.f32.mxu0 0.0
      %9805 = vmatmul.mubr.f32.gmra.mrb[0].mxu0 %v9157
      %v9806 = vpop.f32.mrb[0].mxu0
      %v9807 = vadd.f32 %v9582, %v9806
      %v9808 = vpop.f32.mrb[0].mxu0
      %9809 = vmatprep.mubr.f32.mxu0 0.0
      %9810 = vmatmul.mubr.f32.gmra.mrb[0].mxu0 %v9163
      %v9811 = vpop.f32.mrb[0].mxu0
      %v9812 = vadd.f32 %v9587, %v9811
      %v9813 = vpop.f32.mrb[0].mxu0
      %9814 = vmatprep.mubr.f32.mxu0 0.0
      %9815 = vmatmul.mubr.f32.gmra.mrb[0].mxu0 %v9169
      %v9816 = vpop.f32.mrb[0].mxu0
      %v9817 = vadd.f32 %v9592, %v9816
      %v9818 = vpop.f32.mrb[0].mxu0
      %9819 = vmatprep.mubr.f32.mxu0 0.0
      %9820 = vmatmul.mubr.f32.gmra.mrb[0].mxu0 %v9175
      %v9821 = vpop.f32.mrb[0].mxu0
      %v9822 = vadd.f32 %v9597, %v9821
      %v9823 = vpop.f32.mrb[0].mxu0
      %9824 = vmatprep.mubr.f32.mxu0 0.0
      %9825 = vmatmul.mubr.f32.gmra.mrb[0].mxu0 %v9181
      %v9826 = vpop.f32.mrb[0].mxu0
      %v9827 = vadd.f32 %v9602, %v9826
      %v9828 = vpop.f32.mrb[0].mxu0
      %9829 = vmatprep.mubr.f32.mxu0 0.0
      %9830 = vmatmul.mubr.f32.gmra.mrb[0].mxu0 %v9187
      %v9831 = vpop.f32.mrb[0].mxu0
      %v9832 = vadd.f32 %v9607, %v9831
      %v9833 = vpop.f32.mrb[0].mxu0
      %9834 = vmatprep.mubr.f32.mxu0 0.0
      %9835 = vmatmul.mubr.f32.gmra.mrb[0].mxu0 %v9193
      %v9836 = vpop.f32.mrb[0].mxu0
      %v9837 = vadd.f32 %v9612, %v9836
      %v9838 = vpop.f32.mrb[0].mxu0
      %9839 = vmatprep.mubr.f32.mxu0 0.0
      %9840 = vmatmul.mubr.f32.gmra.mrb[0].mxu0 %v9199
      %v9841 = vpop.f32.mrb[0].mxu0
      %v9842 = vadd.f32 %v9617, %v9841
      %v9843 = vpop.f32.mrb[0].mxu0
      %9844 = vmatprep.mubr.f32.mxu0 0.0
      %9845 = vmatmul.mubr.f32.gmra.mrb[0].mxu0 %v9205
      %v9846 = vpop.f32.mrb[0].mxu0
      %v9847 = vadd.f32 %v9622, %v9846
      %v9848 = vpop.f32.mrb[0].mxu0
      %9849 = vmatprep.mubr.f32.mxu0 0.0
      %9850 = vmatmul.mubr.f32.gmra.mrb[0].mxu0 %v9211
      %v9851 = vpop.f32.mrb[0].mxu0
      %v9852 = vadd.f32 %v9627, %v9851
      %v9853 = vpop.f32.mrb[0].mxu0
      %9854 = vmatprep.mubr.f32.mxu0 0.0
      %9855 = vmatmul.mubr.f32.gmra.mrb[0].mxu0 %v9217
      %v9856 = vpop.f32.mrb[0].mxu0
      %v9857 = vadd.f32 %v9632, %v9856
      %v9858 = vpop.f32.mrb[0].mxu0
      %9859 = vmatprep.mubr.f32.mxu0 0.0
      %9860 = vmatmul.mubr.f32.gmra.mrb[0].mxu0 %v9223
      %v9861 = vpop.f32.mrb[0].mxu0
      %v9862 = vadd.f32 %v9637, %v9861
      %v9863 = vpop.f32.mrb[0].mxu0
      %9864 = vmatprep.mubr.f32.mxu0 0.0
      %9865 = vmatmul.mubr.f32.gmra.mrb[0].mxu0 %v9229
      %v9866 = vpop.f32.mrb[0].mxu0
      %v9867 = vadd.f32 %v9642, %v9866
      %v9868 = vpop.f32.mrb[0].mxu0
      %9869 = vmatprep.mubr.f32.mxu0 0.0
      %9870 = vmatmul.mubr.f32.gmra.mrb[0].mxu0 %v9235
      %v9871 = vpop.f32.mrb[0].mxu0
      %v9872 = vadd.f32 %v9647, %v9871
      %v9873 = vpop.f32.mrb[0].mxu0
      %9874 = vmatprep.mubr.f32.mxu0 0.0
      %9875 = vmatmul.mubr.f32.gmra.mrb[0].mxu0 %v9241
      %v9876 = vpop.f32.mrb[0].mxu0
      %v9877 = vadd.f32 %v9652, %v9876
      %v9878 = vpop.f32.mrb[0].mxu0
      %9879 = vmatprep.mubr.f32.mxu0 0.0
      %9880 = vmatmul.mubr.f32.gmra.mrb[0].mxu0 %v9247
      %v9881 = vpop.f32.mrb[0].mxu0
      %v9882 = vadd.f32 %v9657, %v9881
      %v9883 = vpop.f32.mrb[0].mxu0
      %9884 = vmatprep.mubr.f32.mxu0 0.0
      %9885 = vmatmul.mubr.f32.gmra.mrb[0].mxu0 %v9253
      %v9886 = vpop.f32.mrb[0].mxu0
      %v9887 = vadd.f32 %v9662, %v9886
      %v9888 = vpop.f32.mrb[0].mxu0
      %9889 = vmatprep.mubr.f32.mxu0 0.0
      %9890 = vmatmul.mubr.f32.gmra.mrb[0].mxu0 %v9259
      %v9891 = vpop.f32.mrb[0].mxu0
      %v9892 = vadd.f32 %v9667, %v9891
      %v9893 = vpop.f32.mrb[0].mxu0
      %9894 = vmatprep.mubr.f32.mxu0 0.0
      %9895 = vmatmul.mubr.f32.gmra.mrb[0].mxu0 %v9265
      %v9896 = vpop.f32.mrb[0].mxu0
      %v9897 = vadd.f32 %v9672, %v9896
      %v9898 = vpop.f32.mrb[0].mxu0
      %9899 = vmatprep.mubr.f32.mxu0 0.0
      %9900 = vmatmul.mubr.f32.gmra.mrb[0].mxu0 %v9271
      %v9901 = vpop.f32.mrb[0].mxu0
      %v9902 = vadd.f32 %v9677, %v9901
      %v9903 = vpop.f32.mrb[0].mxu0
      %9904 = vmatprep.mubr.f32.mxu0 0.0
      %9905 = vmatmul.mubr.f32.gmra.mrb[0].mxu0 %v9277
      %v9906 = vpop.f32.mrb[0].mxu0
      %v9907 = vadd.f32 %v9682, %v9906
      %v9908 = vpop.f32.mrb[0].mxu0
      %9909 = vmatprep.mubr.f32.mxu0 0.0
      %9910 = vmatmul.mubr.f32.gmra.mrb[0].mxu0 %v9283
      %v9911 = vpop.f32.mrb[0].mxu0
      %v9912 = vadd.f32 %v9687, %v9911
      %v9913 = vpop.f32.mrb[0].mxu0
      %9914 = vmatprep.mubr.f32.mxu0 0.0
      %9915 = vmatmul.mubr.f32.gmra.mrb[0].mxu0 %v9289
      %v9916 = vpop.f32.mrb[0].mxu0
      %v9917 = vadd.f32 %v9692, %v9916
      %v9918 = vpop.f32.mrb[0].mxu0
      %9919 = vmatprep.mubr.f32.mxu0 0.0
      %9920 = vmatmul.mubr.f32.gmra.mrb[0].mxu0 %v9295
      %v9921 = vpop.f32.mrb[0].mxu0
      %v9922 = vadd.f32 %v9697, %v9921
      %v9923 = vpop.f32.mrb[0].mxu0
      %9924 = vmatprep.mubr.f32.mxu0 0.0
      %9925 = vmatmul.mubr.f32.gmra.mrb[0].mxu0 %v9301
      %v9926 = vpop.f32.mrb[0].mxu0
      %v9927 = vadd.f32 %v9702, %v9926
      %v9928 = vpop.f32.mrb[0].mxu0
      %9929 = vmatprep.mubr.f32.mxu0 0.0
      %9930 = vmatmul.mubr.f32.gmra.mrb[0].mxu0 %v9307
      %v9931 = vpop.f32.mrb[0].mxu0
      %v9932 = vadd.f32 %v9707, %v9931
      %v9933 = vpop.f32.mrb[0].mxu0
      %9934 = vmatprep.mubr.f32.mxu0 0.0
      %9935 = vmatmul.mubr.f32.gmra.mrb[0].mxu0 %v9313
      %v9936 = vpop.f32.mrb[0].mxu0
      %v9937 = vadd.f32 %v9712, %v9936
      %v9938 = vpop.f32.mrb[0].mxu0
      %9939 = vdwg.mxu0
      %v9940 = vrcp.pop %v9317
      %v9941 = vrcp.pop %v9321
      %v9942 = vrcp.pop %v9325
      %v9943 = vrcp.pop %v9329
      %v9944 = vrcp.pop %v9333
      %v9945 = vrcp.pop %v9337
      %v9946 = vrcp.pop %v9341
      %v9947 = vrcp.pop %v9345
      %v9948 = vrcp.pop %v9349
      %v9949 = vrcp.pop %v9353
      %v9950 = vrcp.pop %v9357
      %v9951 = vrcp.pop %v9361
      %v9952 = vrcp.pop %v9365
      %v9953 = vrcp.pop %v9369
      %v9954 = vrcp.pop %v9373
      %v9955 = vrcp.pop %v9377
      %v9956 = vrcp.pop %v9381
      %v9957 = vrcp.pop %v9385
      %v9958 = vrcp.pop %v9389
      %v9959 = vrcp.pop %v9393
      %v9960 = vrcp.pop %v9397
      %v9961 = vrcp.pop %v9401
      %v9962 = vrcp.pop %v9405
      %v9963 = vrcp.pop %v9409
      %v9964 = vrcp.pop %v9413
      %v9965 = vrcp.pop %v9417
      %v9966 = vrcp.pop %v9421
      %v9967 = vrcp.pop %v9425
      %v9968 = vrcp.pop %v9429
      %v9969 = vrcp.pop %v9433
      %v9970 = vrcp.pop %v9437
      %v9971 = vrcp.pop %v9441
      %v9972 = vmul.f32 %v9782, %v9940
      %v9973 = vmul.f32 %v9787, %v9941
      %v9974 = vmul.f32 %v9792, %v9942
      %v9975 = vmul.f32 %v9797, %v9943
      %v9976 = vmul.f32 %v9802, %v9944
      %v9977 = vmul.f32 %v9807, %v9945
      %v9978 = vmul.f32 %v9812, %v9946
      %v9979 = vmul.f32 %v9817, %v9947
      %v9980 = vmul.f32 %v9822, %v9948
      %v9981 = vmul.f32 %v9827, %v9949
      %v9982 = vmul.f32 %v9832, %v9950
      %v9983 = vmul.f32 %v9837, %v9951
      %v9984 = vmul.f32 %v9842, %v9952
      %v9985 = vmul.f32 %v9847, %v9953
      %v9986 = vmul.f32 %v9852, %v9954
      %v9987 = vmul.f32 %v9857, %v9955
      %v9988 = vmul.f32 %v9862, %v9956
      %v9989 = vmul.f32 %v9867, %v9957
      %v9990 = vmul.f32 %v9872, %v9958
      %v9991 = vmul.f32 %v9877, %v9959
      %v9992 = vmul.f32 %v9882, %v9960
      %v9993 = vmul.f32 %v9887, %v9961
      %v9994 = vmul.f32 %v9892, %v9962
      %v9995 = vmul.f32 %v9897, %v9963
      %v9996 = vmul.f32 %v9902, %v9964
      %v9997 = vmul.f32 %v9907, %v9965
      %v9998 = vmul.f32 %v9912, %v9966
      %v9999 = vmul.f32 %v9917, %v9967
      %v10000 = vmul.f32 %v9922, %v9968
      %v10001 = vmul.f32 %v9927, %v9969
      %v10002 = vmul.f32 %v9932, %v9970
      %v10003 = vmul.f32 %v9937, %v9971
      %vm10004 = vcmask 15360
      %10005 = vst.msk [vmem:[%s305] sm:$0xff] %vm10004, %v9972
      %10006 = vst.msk [vmem:[%s305 + $0x8] sm:$0xff] %vm10004, %v9973
      %10007 = vst.msk [vmem:[%s305 + $0x10] sm:$0xff] %vm10004, %v9974
      %10008 = vst.msk [vmem:[%s305 + $0x18] sm:$0xff] %vm10004, %v9975
      %10009 = vst.msk [vmem:[%s305 + $0x20] sm:$0xff] %vm10004, %v9976
      %10010 = vst.msk [vmem:[%s305 + $0x28] sm:$0xff] %vm10004, %v9977
      %10011 = vst.msk [vmem:[%s305 + $0x30] sm:$0xff] %vm10004, %v9978
      %10012 = vst.msk [vmem:[%s305 + $0x38] sm:$0xff] %vm10004, %v9979
      %10013 = vst.msk [vmem:[%s305 + $0x40] sm:$0xff] %vm10004, %v9980
      %10014 = vst.msk [vmem:[%s305 + $0x48] sm:$0xff] %vm10004, %v9981
      %10015 = vst.msk [vmem:[%s305 + $0x50] sm:$0xff] %vm10004, %v9982
      %10016 = vst.msk [vmem:[%s305 + $0x58] sm:$0xff] %vm10004, %v9983
      %10017 = vst.msk [vmem:[%s305 + $0x60] sm:$0xff] %vm10004, %v9984
      %10018 = vst.msk [vmem:[%s305 + $0x68] sm:$0xff] %vm10004, %v9985
      %10019 = vst.msk [vmem:[%s305 + $0x70] sm:$0xff] %vm10004, %v9986
      %10020 = vst.msk [vmem:[%s305 + $0x78] sm:$0xff] %vm10004, %v9987
      %10021 = vst.msk [vmem:[%s305 + $0x80] sm:$0xff] %vm10004, %v9988
      %10022 = vst.msk [vmem:[%s305 + $0x88] sm:$0xff] %vm10004, %v9989
      %10023 = vst.msk [vmem:[%s305 + $0x90] sm:$0xff] %vm10004, %v9990
      %10024 = vst.msk [vmem:[%s305 + $0x98] sm:$0xff] %vm10004, %v9991
      %10025 = vst.msk [vmem:[%s305 + $0xa0] sm:$0xff] %vm10004, %v9992
      %10026 = vst.msk [vmem:[%s305 + $0xa8] sm:$0xff] %vm10004, %v9993
      %10027 = vst.msk [vmem:[%s305 + $0xb0] sm:$0xff] %vm10004, %v9994
      %10028 = vst.msk [vmem:[%s305 + $0xb8] sm:$0xff] %vm10004, %v9995
      %10029 = vst.msk [vmem:[%s305 + $0xc0] sm:$0xff] %vm10004, %v9996
      %10030 = vst.msk [vmem:[%s305 + $0xc8] sm:$0xff] %vm10004, %v9997
      %10031 = vst.msk [vmem:[%s305 + $0xd0] sm:$0xff] %vm10004, %v9998
      %10032 = vst.msk [vmem:[%s305 + $0xd8] sm:$0xff] %vm10004, %v9999
      %10033 = vst.msk [vmem:[%s305 + $0xe0] sm:$0xff] %vm10004, %v10000
      %10034 = vst.msk [vmem:[%s305 + $0xe8] sm:$0xff] %vm10004, %v10001
      %10035 = vst.msk [vmem:[%s305 + $0xf0] sm:$0xff] %vm10004, %v10002
      %10036 = vst.msk [vmem:[%s305 + $0xf8] sm:$0xff] %vm10004, %v10003
      %p10037 = scmp.lt.s32.totalorder %s19, 1
      %s10038 = scalar_select %p10037, %s19, 1
      %s10039 = smul.addr %s10038, 32
      %s10040 = smul.addr %s10039, 8
      %s10041 = scalar_lea.vmem %s8, %s10040
      // Predicated region
      $region53: #{tpu_custom_call.1} parent=51 // pred_check
        %p10042 = pneg %p210
      $region54: #{tpu_custom_call.1} parent=51 // pred_check_branch
        %10044 = sbr.rel (%p10042) target = $region56
      $region55: #{tpu_custom_call.1} parent=51 // pred_region
        _
      $region56: #{tpu_custom_call.1} parent=51 // pred_fallthru
        _
    $region52: #{tpu_custom_call.1} parent=5 // pred_fallthru
      _
    %p10045 = scmp.le.s32.totalorder 2, %s14
    // Predicated region
    $region57: #{tpu_custom_call.1} parent=5 // pred_check
      %p10046 = pneg %p10045
    $region58: #{tpu_custom_call.1} parent=5 // pred_check_branch
      %10048 = sbr.rel (%p10046) target = $region60
    $region59: #{tpu_custom_call.1} parent=5 // pred_region
      %s10049 = ssub.s32 %s14, 2
      // Predicated region
      $region61: #{tpu_custom_call.1} parent=59 // pred_check
        %p10050 = pneg %p216
      $region62: #{tpu_custom_call.1} parent=59 // pred_check_branch
        %10052 = sbr.rel (%p10050) target = $region64
      $region63: #{tpu_custom_call.1} parent=59 // pred_region
        %p10053 = scmp.lt.s32.totalorder %s20, 1
        %s10054 = scalar_select %p10053, %s20, 1
        %s10055 = smul.addr %s10054, 32
        %s10056 = smul.addr %s10055, 8
        %s10057 = scalar_lea.vmem %s8, %s10056
      $region64: #{tpu_custom_call.1} parent=59 // pred_fallthru
        _
    $region60: #{tpu_custom_call.1} parent=5 // pred_fallthru
      _
  $region6: #{tpu_custom_call.1} parent=0 // loop_footer
    %s18 = sadd.s32 1, %s14
  $region7: #{tpu_custom_call.1} parent=0 // loop_footer_branch
    %13 = sbr.rel target = $region3
  $region8: #{tpu_custom_call.1} parent=0 // loop_exit
    _

</llo_original>
